<compile_context>
chip_gen: v7x
topology: tpu7x:2x2x1
jax: 0.10.0
libtpu: 0.0.40
codegen_flags: <defaults>
</compile_context>

<pallas_src>
import functools
import math

import jax
import jax.numpy as jnp
from jax import lax
from jax.experimental import pallas as pl
from jax.experimental.pallas import tpu as pltpu


# ---------------------------------------------------------------------------
# In-kernel helpers (operate on loaded values inside a kernel body)
# ---------------------------------------------------------------------------
def _conv3(y, w, *, circular):
    """Conv1d(kernel_size=3, stride=1, padding=1) along the sublane (L) axis.

    y: (L, Cin) float32, w: (3, Cin, Cout) bfloat16 per-tap slabs.  The shifted
    taps are produced with pltpu.roll (XLU slot, avoids unaligned sublane-slice
    copies); zero padding is realised by masking the wrapped-around row.
    """
    L, C = y.shape
    ym1 = pltpu.roll(y, shift=1, axis=0)        # row l -> y[(l-1) % L]
    yp1 = pltpu.roll(y, shift=L - 1, axis=0)    # row l -> y[(l+1) % L]
    if not circular:
        ridx = lax.broadcasted_iota(jnp.int32, (L, C), 0)
        ym1 = jnp.where(ridx == 0, 0.0, ym1)
        yp1 = jnp.where(ridx == L - 1, 0.0, yp1)
    acc = jnp.dot(ym1.astype(jnp.bfloat16), w[0],
                  preferred_element_type=jnp.float32)
    acc = acc + jnp.dot(y.astype(jnp.bfloat16), w[1],
                        preferred_element_type=jnp.float32)
    acc = acc + jnp.dot(yp1.astype(jnp.bfloat16), w[2],
                        preferred_element_type=jnp.float32)
    return acc


def _take_lanes(x, start, width):
    """x[:, start:start+width] via a 0/1 selection matmul (MXU filler; avoids
    narrow static lane-slice relayouts for the 8-lane attention heads)."""
    C = x.shape[-1]
    rows = lax.broadcasted_iota(jnp.int32, (C, width), 0)
    cols = lax.broadcasted_iota(jnp.int32, (C, width), 1)
    sel = (rows == cols + start).astype(x.dtype)
    return jnp.dot(x, sel, preferred_element_type=jnp.float32)


def _maxpool2_lanes(y):
    """MaxPool1d(kernel_size=2, stride=2) over the channel (lane) axis."""
    C = y.shape[-1]
    half = C // 2
    rows = lax.broadcasted_iota(jnp.int32, (C, half), 0)
    cols = lax.broadcasted_iota(jnp.int32, (C, half), 1)
    even = jnp.dot(y, (rows == 2 * cols).astype(y.dtype),
                   preferred_element_type=jnp.float32)
    odd = jnp.dot(y, (rows == 2 * cols + 1).astype(y.dtype),
                  preferred_element_type=jnp.float32)
    return jnp.maximum(even, odd)


def _layer_norm(z, g, b):
    mu = jnp.mean(z, axis=-1, keepdims=True)
    zc = z - mu
    var = jnp.mean(zc * zc, axis=-1, keepdims=True)
    return zc * lax.rsqrt(var + 1e-5) * g + b


def _encoder_layer_math(x, wqkv, bqkv, wo, bo, ln1g, ln1b, w1, b1, w2, b2,
                        ln2g, ln2b, num_heads):
    """One TrafficADEncoderLayer on a single batch element: (L, d) -> (L, d)."""
    L, d = x.shape
    dh = d // num_heads
    scale = 1.0 / math.sqrt(dh)
    # merged Q|K|V projection -> one lane-dense (L, 3d) matmul
    qkv = jnp.dot(x.astype(jnp.bfloat16), wqkv,
                  preferred_element_type=jnp.float32) + bqkv
    # per-head softmax attention; output projection folded per head:
    #   concat_h(head_h) @ wo == sum_h head_h @ wo[h*dh:(h+1)*dh, :]
    new_x = jnp.zeros((L, d), jnp.float32)
    for h in range(num_heads):                      # static unroll (H small)
        q = _take_lanes(qkv, h * dh, dh)
        k = _take_lanes(qkv, d + h * dh, dh)
        v = _take_lanes(qkv, 2 * d + h * dh, dh)
        s = lax.dot_general(q, k, (((1,), (1,)), ((), ())),
                            preferred_element_type=jnp.float32) * scale
        p = jnp.exp(s - jnp.max(s, axis=-1, keepdims=True))
        p = p * pl.reciprocal(jnp.sum(p, axis=-1, keepdims=True), approx=True)
        head = jnp.dot(p, v, preferred_element_type=jnp.float32)   # (L, dh)
        new_x = new_x + jnp.dot(head, wo[h * dh:(h + 1) * dh, :],
                                preferred_element_type=jnp.float32)
    new_x = new_x + bo
    x1 = _layer_norm(x + new_x, ln1g, ln1b)
    hmid = jnp.maximum(
        jnp.dot(x1.astype(jnp.bfloat16), w1,
                preferred_element_type=jnp.float32) + b1, 0.0)
    y = jnp.dot(hmid.astype(jnp.bfloat16), w2,
                preferred_element_type=jnp.float32) + b2
    return _layer_norm(x1 + y, ln2g, ln2b)


# ---------------------------------------------------------------------------
# Fused kernels
# ---------------------------------------------------------------------------
def _embed_cnn_kernel(x_ref, embw_ref, pe_ref, w1_ref, b1_ref, w2_ref, b2_ref,
                      bns_ref, bnt_ref, o_ref):
    _, L, F = x_ref.shape
    x = x_ref[...].reshape(L, F)
    bns = bns_ref[...]          # (L, 1): eval-mode BatchNorm1d(win_size) affine
    bnt = bnt_ref[...]
    # DataEmbedding: circular token Conv1d(k=3, bias=False) + sinusoidal PE
    y = _conv3(x, embw_ref[...], circular=True) + pe_ref[...]
    # CNN1 -> BatchNorm1d(win_size) -> ReLU -> MaxPool1d(2, 2) over channels
    y = _conv3(y, w1_ref[...], circular=False) + b1_ref[...]
    y = _maxpool2_lanes(jnp.maximum(y * bns + bnt, 0.0))
    # CNN2 -> (shared) BatchNorm1d(win_size) -> ReLU -> MaxPool1d(2, 2)
    y = _conv3(y, w2_ref[...], circular=False) + b2_ref[...]
    y = _maxpool2_lanes(jnp.maximum(y * bns + bnt, 0.0))
    o_ref[...] = y.reshape(1, L, y.shape[-1])


def _encoder_layer_kernel(x_ref, wqkv_ref, bqkv_ref, wo_ref, bo_ref,
                          ln1g_ref, ln1b_ref, w1_ref, b1_ref, w2_ref, b2_ref,
                          ln2g_ref, ln2b_ref, o_ref, *, num_heads):
    _, L, d = x_ref.shape
    out = _encoder_layer_math(
        x_ref[...].reshape(L, d), wqkv_ref[...], bqkv_ref[...], wo_ref[...],
        bo_ref[...], ln1g_ref[...], ln1b_ref[...], w1_ref[...], b1_ref[...],
        w2_ref[...], b2_ref[...], ln2g_ref[...], ln2b_ref[...], num_heads)
    o_ref[...] = out.reshape(1, L, d)


def _encoder_layer_head_kernel(x_ref, wqkv_ref, bqkv_ref, wo_ref, bo_ref,
                               ln1g_ref, ln1b_ref, w1_ref, b1_ref, w2_ref,
                               b2_ref, ln2g_ref, ln2b_ref, hw_ref, hb_ref,
                               o_ref, *, num_heads):
    _, L, d = x_ref.shape
    out = _encoder_layer_math(
        x_ref[...].reshape(L, d), wqkv_ref[...], bqkv_ref[...], wo_ref[...],
        bo_ref[...], ln1g_ref[...], ln1b_ref[...], w1_ref[...], b1_ref[...],
        w2_ref[...], b2_ref[...], ln2g_ref[...], ln2b_ref[...], num_heads)
    # AdaptiveAvgPool1d(1) over L + Linear head, fused into the last layer.
    pooled = jnp.mean(out, axis=0, keepdims=True)                  # (1, d)
    logits = jnp.dot(pooled, hw_ref[...],
                     preferred_element_type=jnp.float32) + hb_ref[...]
    o_ref[...] = logits.reshape(1, 1, logits.shape[-1])


# ---------------------------------------------------------------------------
# pallas_call wrappers
# ---------------------------------------------------------------------------
_PARALLEL_B = pltpu.CompilerParams(dimension_semantics=("parallel",))

_LAYER_KEYS = ("wqkv", "bqkv", "wo", "bo", "ln1_g", "ln1_b",
               "w1", "b1", "w2", "b2", "ln2_g", "ln2_b")


def embed_cnn_block(x, p):
    B, L, F = x.shape
    D4 = p["cnn2_wk"].shape[2] // 2
    full2 = lambda a: pl.BlockSpec(a.shape, lambda b: (0, 0))
    full3 = lambda a: pl.BlockSpec(a.shape, lambda b: (0, 0, 0))
    return pl.pallas_call(
        _embed_cnn_kernel,
        out_shape=jax.ShapeDtypeStruct((B, L, D4), jnp.float32),
        grid=(B,),
        in_specs=[
            pl.BlockSpec((1, L, F), lambda b: (b, 0, 0)),
            full3(p["emb_wk"]), full2(p["pe"]),
            full3(p["cnn1_wk"]), full2(p["cnn1_b"]),
            full3(p["cnn2_wk"]), full2(p["cnn2_b"]),
            full2(p["bn_scale"]), full2(p["bn_shift"]),
        ],
        out_specs=pl.BlockSpec((1, L, D4), lambda b: (b, 0, 0)),
        compiler_params=_PARALLEL_B,
    )(x, p["emb_wk"], p["pe"], p["cnn1_wk"], p["cnn1_b"],
      p["cnn2_wk"], p["cnn2_b"], p["bn_scale"], p["bn_shift"])


def encoder_layer(x, lp, num_heads):
    B, L, d = x.shape
    w_args = tuple(lp[k] for k in _LAYER_KEYS)
    return pl.pallas_call(
        functools.partial(_encoder_layer_kernel, num_heads=num_heads),
        out_shape=jax.ShapeDtypeStruct((B, L, d), jnp.float32),
        grid=(B,),
        in_specs=[pl.BlockSpec((1, L, d), lambda b: (b, 0, 0))]
                 + [pl.BlockSpec(a.shape, lambda b: (0, 0)) for a in w_args],
        out_specs=pl.BlockSpec((1, L, d), lambda b: (b, 0, 0)),
        compiler_params=_PARALLEL_B,
    )(x, *w_args)


def encoder_layer_with_head(x, lp, head_w, head_b, num_heads):
    B, L, d = x.shape
    C = head_w.shape[1]
    w_args = tuple(lp[k] for k in _LAYER_KEYS) + (head_w, head_b)
    out = pl.pallas_call(
        functools.partial(_encoder_layer_head_kernel, num_heads=num_heads),
        out_shape=jax.ShapeDtypeStruct((B, 1, C), jnp.float32),
        grid=(B,),
        in_specs=[pl.BlockSpec((1, L, d), lambda b: (b, 0, 0))]
                 + [pl.BlockSpec(a.shape, lambda b: (0, 0)) for a in w_args],
        out_specs=pl.BlockSpec((1, 1, C), lambda b: (b, 0, 0)),
        compiler_params=_PARALLEL_B,
    )(x, *w_args)
    return out.reshape(B, C)


# ---------------------------------------------------------------------------
# Model forward + parameters
# ---------------------------------------------------------------------------
def cnn1d_transformer_forward(x, params, num_heads):
    out = embed_cnn_block(x, params)                    # (B, L, d_model // 4)
    layers = params["layers"]
    for lp in layers[:-1]:
        out = encoder_layer(out, lp, num_heads)
    return encoder_layer_with_head(out, layers[-1], params["head_w"],
                                   params["head_b"], num_heads)


def sinusoidal_pe(L, d):
    pos = jnp.arange(L, dtype=jnp.float32)[:, None]
    div = jnp.exp(jnp.arange(0, d, 2, dtype=jnp.float32) * (-math.log(10000.0) / d))
    pe = jnp.zeros((L, d), jnp.float32)
    pe = pe.at[:, 0::2].set(jnp.sin(pos * div))
    pe = pe.at[:, 1::2].set(jnp.cos(pos * div))
    return pe


def init_params(key, feature_num, d_model, num_heads, e_layers, win_size,
                num_classes):
    d2, d4 = d_model // 2, d_model // 4
    d_ff = 4 * d4
    bf = jnp.bfloat16
    keys = iter(jax.random.split(key, 64))

    def nrm(shape, s=0.05, dtype=jnp.float32):
        return (s * jax.random.normal(next(keys), shape, jnp.float32)).astype(dtype)

    params = {
        # DataEmbedding token conv (circular, bias=False); per-tap (K, Cin, Cout)
        "emb_wk": nrm((3, feature_num, d_model), dtype=bf),
        "pe": sinusoidal_pe(win_size, d_model),
        # CNN1 / CNN2 per-tap weights (K, Cin, Cout) in bf16, biases in f32
        "cnn1_wk": nrm((3, d_model, d_model), dtype=bf),
        "cnn1_b": nrm((1, d_model)),
        "cnn2_wk": nrm((3, d2, d2), dtype=bf),
        "cnn2_b": nrm((1, d2)),
        "head_w": nrm((d4, num_classes)),
        "head_b": nrm((1, num_classes)),
    }

    # Shared BatchNorm1d(win_size) (the reference applies self.norm1 twice);
    # eval-mode running stats folded into a per-position scale/shift (L, 1).
    gamma = 1.0 + nrm((win_size,))
    beta = nrm((win_size,))
    mean = nrm((win_size,))
    var = 1.0 + 0.1 * jnp.abs(jax.random.normal(next(keys), (win_size,),
                                                jnp.float32))
    scale = gamma / jnp.sqrt(var + 1e-5)
    shift = beta - mean * scale
    params["bn_scale"] = scale.reshape(win_size, 1)
    params["bn_shift"] = shift.reshape(win_size, 1)

    layers = []
    for _ in range(e_layers):
        layers.append({
            "wqkv": nrm((d4, 3 * d4), dtype=bf),      # merged Q|K|V projection
            "bqkv": nrm((1, 3 * d4)),
            "wo": nrm((d4, d4)),                      # f32: sliced per head
            "bo": nrm((1, d4)),
            "ln1_g": jnp.ones((1, d4), jnp.float32),
            "ln1_b": jnp.zeros((1, d4), jnp.float32),
            "w1": nrm((d4, d_ff), dtype=bf),
            "b1": nrm((1, d_ff)),
            "w2": nrm((d_ff, d4), dtype=bf),
            "b2": nrm((1, d4)),
            "ln2_g": jnp.ones((1, d4), jnp.float32),
            "ln2_b": jnp.zeros((1, d4), jnp.float32),
        })
    params["layers"] = layers
    return params


if __name__ == "__main__":
    # small shapes consistent with the module's forward
    B, win_size, feature_num = 2, 16, 8
    d_model, num_heads, e_layers, num_classes = 128, 4, 2, 3

    key = jax.random.PRNGKey(0)
    kx, kp = jax.random.split(key)
    x = jax.random.normal(kx, (B, win_size, feature_num), jnp.float32)
    params = init_params(kp, feature_num, d_model, num_heads, e_layers,
                         win_size, num_classes)

    fwd = jax.jit(functools.partial(cnn1d_transformer_forward,
                                    num_heads=num_heads))
    logits = fwd(x, params)
    jax.block_until_ready(logits)
    assert logits.shape == (B, num_classes), logits.shape
    print("KERNEL_OK")
</pallas_src>

<mosaic_0001>
module attributes {stable_mosaic.version = 11 : i64} {
  func.func @_embed_cnn_kernel(%arg0: i32, %arg1: memref<1x16x8xf32, #tpu.memory_space<vmem>>, %arg2: memref<3x8x128xbf16, #tpu.memory_space<vmem>>, %arg3: memref<16x128xf32, #tpu.memory_space<vmem>>, %arg4: memref<3x128x128xbf16, #tpu.memory_space<vmem>>, %arg5: memref<1x128xf32, #tpu.memory_space<vmem>>, %arg6: memref<3x64x64xbf16, #tpu.memory_space<vmem>>, %arg7: memref<1x64xf32, #tpu.memory_space<vmem>>, %arg8: memref<16x1xf32, #tpu.memory_space<vmem>>, %arg9: memref<16x1xf32, #tpu.memory_space<vmem>>, %arg10: memref<1x16x32xf32, #tpu.memory_space<vmem>>) attributes {dimension_semantics = [#tpu.dimension_semantics<parallel>], iteration_bounds = array<i64: 2>, scalar_prefetch = 0 : i64, scratch_operands = 0 : i64, tpu.core_type = #tpu.core_type<tc>, window_params = [{transform_indices = @transform_0, window_bounds = array<i64: 1, 16, 8>}, {pipeline_mode = #tpu.pipeline_mode<synchronous>, transform_indices = @transform_1, window_bounds = array<i64: 3, 8, 128>}, {pipeline_mode = #tpu.pipeline_mode<synchronous>, transform_indices = @transform_2, window_bounds = array<i64: 16, 128>}, {pipeline_mode = #tpu.pipeline_mode<synchronous>, transform_indices = @transform_3, window_bounds = array<i64: 3, 128, 128>}, {pipeline_mode = #tpu.pipeline_mode<synchronous>, transform_indices = @transform_4, window_bounds = array<i64: 1, 128>}, {pipeline_mode = #tpu.pipeline_mode<synchronous>, transform_indices = @transform_5, window_bounds = array<i64: 3, 64, 64>}, {pipeline_mode = #tpu.pipeline_mode<synchronous>, transform_indices = @transform_6, window_bounds = array<i64: 1, 64>}, {pipeline_mode = #tpu.pipeline_mode<synchronous>, transform_indices = @transform_7, window_bounds = array<i64: 16, 1>}, {pipeline_mode = #tpu.pipeline_mode<synchronous>, transform_indices = @transform_8, window_bounds = array<i64: 16, 1>}, {transform_indices = @transform_9, window_bounds = array<i64: 1, 16, 32>}]} {
    %c0 = arith.constant 0 : index
    %c0_0 = arith.constant 0 : index
    %c0_1 = arith.constant 0 : index
    %0 = vector.load %arg1[%c0, %c0_0, %c0_1] : memref<1x16x8xf32, #tpu.memory_space<vmem>>, vector<1x16x8xf32>
    %1 = vector.shape_cast %0 : vector<1x16x8xf32> to vector<16x8xf32>
    %c0_2 = arith.constant 0 : index
    %c0_3 = arith.constant 0 : index
    %2 = vector.load %arg8[%c0_2, %c0_3] : memref<16x1xf32, #tpu.memory_space<vmem>>, vector<16x1xf32>
    %c0_4 = arith.constant 0 : index
    %c0_5 = arith.constant 0 : index
    %3 = vector.load %arg9[%c0_4, %c0_5] : memref<16x1xf32, #tpu.memory_space<vmem>>, vector<16x1xf32>
    %c0_6 = arith.constant 0 : index
    %c0_7 = arith.constant 0 : index
    %c0_8 = arith.constant 0 : index
    %4 = vector.load %arg2[%c0_6, %c0_7, %c0_8] : memref<3x8x128xbf16, #tpu.memory_space<vmem>>, vector<3x8x128xbf16>
    %c1_i32 = arith.constant 1 : i32
    %5 = tpu.dynamic_rotate %1 by %c1_i32 dim 0 : vector<16x8xf32>, i32 -> vector<16x8xf32>
    %c15_i32 = arith.constant 15 : i32
    %6 = tpu.dynamic_rotate %1 by %c15_i32 dim 0 : vector<16x8xf32>, i32 -> vector<16x8xf32>
    %7 = arith.truncf %5 : vector<16x8xf32> to vector<16x8xbf16>
    %8 = vector.extract_strided_slice %4 {offsets = [0, 0, 0], sizes = [1, 8, 128], strides = [1, 1, 1]} : vector<3x8x128xbf16> to vector<1x8x128xbf16>
    %9 = vector.shape_cast %8 : vector<1x8x128xbf16> to vector<8x128xbf16>
    %cst = arith.constant dense<0.000000e+00> : vector<16x128xf32>
    %10 = tpu.matmul %7, %9, %cst {dimension_numbers = #tpu.dot_dimension_numbers<[1], [0], [0], [1], [0, 0, 1, 1], [], []>} : vector<16x8xbf16>, vector<8x128xbf16>, vector<16x128xf32> -> vector<16x128xf32>
    %11 = arith.truncf %1 : vector<16x8xf32> to vector<16x8xbf16>
    %12 = vector.extract_strided_slice %4 {offsets = [1, 0, 0], sizes = [1, 8, 128], strides = [1, 1, 1]} : vector<3x8x128xbf16> to vector<1x8x128xbf16>
    %13 = vector.shape_cast %12 : vector<1x8x128xbf16> to vector<8x128xbf16>
    %cst_9 = arith.constant dense<0.000000e+00> : vector<16x128xf32>
    %14 = tpu.matmul %11, %13, %cst_9 {dimension_numbers = #tpu.dot_dimension_numbers<[1], [0], [0], [1], [0, 0, 1, 1], [], []>} : vector<16x8xbf16>, vector<8x128xbf16>, vector<16x128xf32> -> vector<16x128xf32>
    %15 = arith.addf %10, %14 : vector<16x128xf32>
    %16 = arith.truncf %6 : vector<16x8xf32> to vector<16x8xbf16>
    %17 = vector.extract_strided_slice %4 {offsets = [2, 0, 0], sizes = [1, 8, 128], strides = [1, 1, 1]} : vector<3x8x128xbf16> to vector<1x8x128xbf16>
    %18 = vector.shape_cast %17 : vector<1x8x128xbf16> to vector<8x128xbf16>
    %cst_10 = arith.constant dense<0.000000e+00> : vector<16x128xf32>
    %19 = tpu.matmul %16, %18, %cst_10 {dimension_numbers = #tpu.dot_dimension_numbers<[1], [0], [0], [1], [0, 0, 1, 1], [], []>} : vector<16x8xbf16>, vector<8x128xbf16>, vector<16x128xf32> -> vector<16x128xf32>
    %20 = arith.addf %15, %19 : vector<16x128xf32>
    %c0_11 = arith.constant 0 : index
    %c0_12 = arith.constant 0 : index
    %21 = vector.load %arg3[%c0_11, %c0_12] : memref<16x128xf32, #tpu.memory_space<vmem>>, vector<16x128xf32>
    %22 = arith.addf %20, %21 : vector<16x128xf32>
    %c0_13 = arith.constant 0 : index
    %c0_14 = arith.constant 0 : index
    %c0_15 = arith.constant 0 : index
    %23 = vector.load %arg4[%c0_13, %c0_14, %c0_15] : memref<3x128x128xbf16, #tpu.memory_space<vmem>>, vector<3x128x128xbf16>
    %c1_i32_16 = arith.constant 1 : i32
    %24 = tpu.dynamic_rotate %22 by %c1_i32_16 dim 0 : vector<16x128xf32>, i32 -> vector<16x128xf32>
    %c15_i32_17 = arith.constant 15 : i32
    %25 = tpu.dynamic_rotate %22 by %c15_i32_17 dim 0 : vector<16x128xf32>, i32 -> vector<16x128xf32>
    %26 = tpu.iota {dimensions = array<i32: 0>} : vector<16x128xi32>
    %c0_i32 = arith.constant 0 : i32
    %27 = vector.broadcast %c0_i32 : i32 to vector<16x128xi32>
    %28 = arith.cmpi eq, %26, %27 : vector<16x128xi32>
    %cst_18 = arith.constant 0.000000e+00 : f32
    %29 = vector.broadcast %cst_18 : f32 to vector<16x128xf32>
    %30 = arith.select %28, %29, %24 : vector<16x128xi1>, vector<16x128xf32>
    %c15_i32_19 = arith.constant 15 : i32
    %31 = vector.broadcast %c15_i32_19 : i32 to vector<16x128xi32>
    %32 = arith.cmpi eq, %26, %31 : vector<16x128xi32>
    %cst_20 = arith.constant 0.000000e+00 : f32
    %33 = vector.broadcast %cst_20 : f32 to vector<16x128xf32>
    %34 = arith.select %32, %33, %25 : vector<16x128xi1>, vector<16x128xf32>
    %35 = arith.truncf %30 : vector<16x128xf32> to vector<16x128xbf16>
    %36 = vector.extract_strided_slice %23 {offsets = [0, 0, 0], sizes = [1, 128, 128], strides = [1, 1, 1]} : vector<3x128x128xbf16> to vector<1x128x128xbf16>
    %37 = vector.shape_cast %36 : vector<1x128x128xbf16> to vector<128x128xbf16>
    %cst_21 = arith.constant dense<0.000000e+00> : vector<16x128xf32>
    %38 = tpu.matmul %35, %37, %cst_21 {dimension_numbers = #tpu.dot_dimension_numbers<[1], [0], [0], [1], [0, 0, 1, 1], [], []>} : vector<16x128xbf16>, vector<128x128xbf16>, vector<16x128xf32> -> vector<16x128xf32>
    %39 = arith.truncf %22 : vector<16x128xf32> to vector<16x128xbf16>
    %40 = vector.extract_strided_slice %23 {offsets = [1, 0, 0], sizes = [1, 128, 128], strides = [1, 1, 1]} : vector<3x128x128xbf16> to vector<1x128x128xbf16>
    %41 = vector.shape_cast %40 : vector<1x128x128xbf16> to vector<128x128xbf16>
    %cst_22 = arith.constant dense<0.000000e+00> : vector<16x128xf32>
    %42 = tpu.matmul %39, %41, %cst_22 {dimension_numbers = #tpu.dot_dimension_numbers<[1], [0], [0], [1], [0, 0, 1, 1], [], []>} : vector<16x128xbf16>, vector<128x128xbf16>, vector<16x128xf32> -> vector<16x128xf32>
    %43 = arith.addf %38, %42 : vector<16x128xf32>
    %44 = arith.truncf %34 : vector<16x128xf32> to vector<16x128xbf16>
    %45 = vector.extract_strided_slice %23 {offsets = [2, 0, 0], sizes = [1, 128, 128], strides = [1, 1, 1]} : vector<3x128x128xbf16> to vector<1x128x128xbf16>
    %46 = vector.shape_cast %45 : vector<1x128x128xbf16> to vector<128x128xbf16>
    %cst_23 = arith.constant dense<0.000000e+00> : vector<16x128xf32>
    %47 = tpu.matmul %44, %46, %cst_23 {dimension_numbers = #tpu.dot_dimension_numbers<[1], [0], [0], [1], [0, 0, 1, 1], [], []>} : vector<16x128xbf16>, vector<128x128xbf16>, vector<16x128xf32> -> vector<16x128xf32>
    %48 = arith.addf %43, %47 : vector<16x128xf32>
    %c0_24 = arith.constant 0 : index
    %c0_25 = arith.constant 0 : index
    %49 = vector.load %arg5[%c0_24, %c0_25] : memref<1x128xf32, #tpu.memory_space<vmem>>, vector<1x128xf32>
    %50 = vector.broadcast %49 : vector<1x128xf32> to vector<16x128xf32>
    %51 = arith.addf %48, %50 : vector<16x128xf32>
    %52 = vector.broadcast %2 : vector<16x1xf32> to vector<16x128xf32>
    %53 = arith.mulf %51, %52 : vector<16x128xf32>
    %54 = vector.broadcast %3 : vector<16x1xf32> to vector<16x128xf32>
    %55 = arith.addf %53, %54 : vector<16x128xf32>
    %cst_26 = arith.constant 0.000000e+00 : f32
    %56 = vector.broadcast %cst_26 : f32 to vector<16x128xf32>
    %57 = arith.maximumf %55, %56 : vector<16x128xf32>
    %58 = tpu.iota {dimensions = array<i32: 0>} : vector<128x64xi32>
    %59 = tpu.iota {dimensions = array<i32: 1>} : vector<128x64xi32>
    %c2_i32 = arith.constant 2 : i32
    %60 = vector.broadcast %c2_i32 : i32 to vector<128x64xi32>
    %61 = arith.muli %60, %59 : vector<128x64xi32>
    %62 = arith.cmpi eq, %58, %61 : vector<128x64xi32>
    %63 = arith.extui %62 : vector<128x64xi1> to vector<128x64xi32>
    %64 = arith.sitofp %63 : vector<128x64xi32> to vector<128x64xf32>
    %cst_27 = arith.constant dense<0.000000e+00> : vector<16x64xf32>
    %65 = tpu.matmul %57, %64, %cst_27 {dimension_numbers = #tpu.dot_dimension_numbers<[1], [0], [0], [1], [0, 0, 1, 1], [], []>} : vector<16x128xf32>, vector<128x64xf32>, vector<16x64xf32> -> vector<16x64xf32>
    %c2_i32_28 = arith.constant 2 : i32
    %66 = vector.broadcast %c2_i32_28 : i32 to vector<128x64xi32>
    %67 = arith.muli %66, %59 : vector<128x64xi32>
    %c1_i32_29 = arith.constant 1 : i32
    %68 = vector.broadcast %c1_i32_29 : i32 to vector<128x64xi32>
    %69 = arith.addi %67, %68 : vector<128x64xi32>
    %70 = arith.cmpi eq, %58, %69 : vector<128x64xi32>
    %71 = arith.extui %70 : vector<128x64xi1> to vector<128x64xi32>
    %72 = arith.sitofp %71 : vector<128x64xi32> to vector<128x64xf32>
    %cst_30 = arith.constant dense<0.000000e+00> : vector<16x64xf32>
    %73 = tpu.matmul %57, %72, %cst_30 {dimension_numbers = #tpu.dot_dimension_numbers<[1], [0], [0], [1], [0, 0, 1, 1], [], []>} : vector<16x128xf32>, vector<128x64xf32>, vector<16x64xf32> -> vector<16x64xf32>
    %74 = arith.maximumf %65, %73 : vector<16x64xf32>
    %c0_31 = arith.constant 0 : index
    %c0_32 = arith.constant 0 : index
    %c0_33 = arith.constant 0 : index
    %75 = vector.load %arg6[%c0_31, %c0_32, %c0_33] : memref<3x64x64xbf16, #tpu.memory_space<vmem>>, vector<3x64x64xbf16>
    %c1_i32_34 = arith.constant 1 : i32
    %76 = tpu.dynamic_rotate %74 by %c1_i32_34 dim 0 : vector<16x64xf32>, i32 -> vector<16x64xf32>
    %c15_i32_35 = arith.constant 15 : i32
    %77 = tpu.dynamic_rotate %74 by %c15_i32_35 dim 0 : vector<16x64xf32>, i32 -> vector<16x64xf32>
    %78 = tpu.iota {dimensions = array<i32: 0>} : vector<16x64xi32>
    %c0_i32_36 = arith.constant 0 : i32
    %79 = vector.broadcast %c0_i32_36 : i32 to vector<16x64xi32>
    %80 = arith.cmpi eq, %78, %79 : vector<16x64xi32>
    %cst_37 = arith.constant 0.000000e+00 : f32
    %81 = vector.broadcast %cst_37 : f32 to vector<16x64xf32>
    %82 = arith.select %80, %81, %76 : vector<16x64xi1>, vector<16x64xf32>
    %c15_i32_38 = arith.constant 15 : i32
    %83 = vector.broadcast %c15_i32_38 : i32 to vector<16x64xi32>
    %84 = arith.cmpi eq, %78, %83 : vector<16x64xi32>
    %cst_39 = arith.constant 0.000000e+00 : f32
    %85 = vector.broadcast %cst_39 : f32 to vector<16x64xf32>
    %86 = arith.select %84, %85, %77 : vector<16x64xi1>, vector<16x64xf32>
    %87 = arith.truncf %82 : vector<16x64xf32> to vector<16x64xbf16>
    %88 = vector.extract_strided_slice %75 {offsets = [0, 0, 0], sizes = [1, 64, 64], strides = [1, 1, 1]} : vector<3x64x64xbf16> to vector<1x64x64xbf16>
    %89 = vector.shape_cast %88 : vector<1x64x64xbf16> to vector<64x64xbf16>
    %cst_40 = arith.constant dense<0.000000e+00> : vector<16x64xf32>
    %90 = tpu.matmul %87, %89, %cst_40 {dimension_numbers = #tpu.dot_dimension_numbers<[1], [0], [0], [1], [0, 0, 1, 1], [], []>} : vector<16x64xbf16>, vector<64x64xbf16>, vector<16x64xf32> -> vector<16x64xf32>
    %91 = arith.truncf %74 : vector<16x64xf32> to vector<16x64xbf16>
    %92 = vector.extract_strided_slice %75 {offsets = [1, 0, 0], sizes = [1, 64, 64], strides = [1, 1, 1]} : vector<3x64x64xbf16> to vector<1x64x64xbf16>
    %93 = vector.shape_cast %92 : vector<1x64x64xbf16> to vector<64x64xbf16>
    %cst_41 = arith.constant dense<0.000000e+00> : vector<16x64xf32>
    %94 = tpu.matmul %91, %93, %cst_41 {dimension_numbers = #tpu.dot_dimension_numbers<[1], [0], [0], [1], [0, 0, 1, 1], [], []>} : vector<16x64xbf16>, vector<64x64xbf16>, vector<16x64xf32> -> vector<16x64xf32>
    %95 = arith.addf %90, %94 : vector<16x64xf32>
    %96 = arith.truncf %86 : vector<16x64xf32> to vector<16x64xbf16>
    %97 = vector.extract_strided_slice %75 {offsets = [2, 0, 0], sizes = [1, 64, 64], strides = [1, 1, 1]} : vector<3x64x64xbf16> to vector<1x64x64xbf16>
    %98 = vector.shape_cast %97 : vector<1x64x64xbf16> to vector<64x64xbf16>
    %cst_42 = arith.constant dense<0.000000e+00> : vector<16x64xf32>
    %99 = tpu.matmul %96, %98, %cst_42 {dimension_numbers = #tpu.dot_dimension_numbers<[1], [0], [0], [1], [0, 0, 1, 1], [], []>} : vector<16x64xbf16>, vector<64x64xbf16>, vector<16x64xf32> -> vector<16x64xf32>
    %100 = arith.addf %95, %99 : vector<16x64xf32>
    %c0_43 = arith.constant 0 : index
    %c0_44 = arith.constant 0 : index
    %101 = vector.load %arg7[%c0_43, %c0_44] : memref<1x64xf32, #tpu.memory_space<vmem>>, vector<1x64xf32>
    %102 = vector.broadcast %101 : vector<1x64xf32> to vector<16x64xf32>
    %103 = arith.addf %100, %102 : vector<16x64xf32>
    %104 = vector.broadcast %2 : vector<16x1xf32> to vector<16x64xf32>
    %105 = arith.mulf %103, %104 : vector<16x64xf32>
    %106 = vector.broadcast %3 : vector<16x1xf32> to vector<16x64xf32>
    %107 = arith.addf %105, %106 : vector<16x64xf32>
    %cst_45 = arith.constant 0.000000e+00 : f32
    %108 = vector.broadcast %cst_45 : f32 to vector<16x64xf32>
    %109 = arith.maximumf %107, %108 : vector<16x64xf32>
    %110 = tpu.iota {dimensions = array<i32: 0>} : vector<64x32xi32>
    %111 = tpu.iota {dimensions = array<i32: 1>} : vector<64x32xi32>
    %c2_i32_46 = arith.constant 2 : i32
    %112 = vector.broadcast %c2_i32_46 : i32 to vector<64x32xi32>
    %113 = arith.muli %112, %111 : vector<64x32xi32>
    %114 = arith.cmpi eq, %110, %113 : vector<64x32xi32>
    %115 = arith.extui %114 : vector<64x32xi1> to vector<64x32xi32>
    %116 = arith.sitofp %115 : vector<64x32xi32> to vector<64x32xf32>
    %cst_47 = arith.constant dense<0.000000e+00> : vector<16x32xf32>
    %117 = tpu.matmul %109, %116, %cst_47 {dimension_numbers = #tpu.dot_dimension_numbers<[1], [0], [0], [1], [0, 0, 1, 1], [], []>} : vector<16x64xf32>, vector<64x32xf32>, vector<16x32xf32> -> vector<16x32xf32>
    %c2_i32_48 = arith.constant 2 : i32
    %118 = vector.broadcast %c2_i32_48 : i32 to vector<64x32xi32>
    %119 = arith.muli %118, %111 : vector<64x32xi32>
    %c1_i32_49 = arith.constant 1 : i32
    %120 = vector.broadcast %c1_i32_49 : i32 to vector<64x32xi32>
    %121 = arith.addi %119, %120 : vector<64x32xi32>
    %122 = arith.cmpi eq, %110, %121 : vector<64x32xi32>
    %123 = arith.extui %122 : vector<64x32xi1> to vector<64x32xi32>
    %124 = arith.sitofp %123 : vector<64x32xi32> to vector<64x32xf32>
    %cst_50 = arith.constant dense<0.000000e+00> : vector<16x32xf32>
    %125 = tpu.matmul %109, %124, %cst_50 {dimension_numbers = #tpu.dot_dimension_numbers<[1], [0], [0], [1], [0, 0, 1, 1], [], []>} : vector<16x64xf32>, vector<64x32xf32>, vector<16x32xf32> -> vector<16x32xf32>
    %126 = arith.maximumf %117, %125 : vector<16x32xf32>
    %127 = vector.shape_cast %126 : vector<16x32xf32> to vector<1x16x32xf32>
    %c0_51 = arith.constant 0 : index
    %c0_52 = arith.constant 0 : index
    %c0_53 = arith.constant 0 : index
    %128 = vector.load %arg10[%c0_51, %c0_52, %c0_53] : memref<1x16x32xf32, #tpu.memory_space<vmem>>, vector<1x16x32xf32>
    tpu.vector_store %arg10[%c0_51, %c0_52, %c0_53], %127 {strides = array<i32>} : memref<1x16x32xf32, #tpu.memory_space<vmem>>, vector<1x16x32xf32>,
    return
  }
  func.func @transform_0(%arg0: i32) -> (i32, i32, i32) {
    %c0_i32 = arith.constant 0 : i32
    %c0_i32_0 = arith.constant 0 : i32
    %c0_i32_1 = arith.constant 0 : i32
    return %arg0, %c0_i32, %c0_i32_0 : i32, i32, i32
  }
  func.func @transform_1(%arg0: i32) -> (i32, i32, i32) {
    %c0_i32 = arith.constant 0 : i32
    %c0_i32_0 = arith.constant 0 : i32
    %c0_i32_1 = arith.constant 0 : i32
    %c0_i32_2 = arith.constant 0 : i32
    return %c0_i32, %c0_i32_0, %c0_i32_1 : i32, i32, i32
  }
  func.func @transform_2(%arg0: i32) -> (i32, i32) {
    %c0_i32 = arith.constant 0 : i32
    %c0_i32_0 = arith.constant 0 : i32
    %c0_i32_1 = arith.constant 0 : i32
    return %c0_i32, %c0_i32_0 : i32, i32
  }
  func.func @transform_3(%arg0: i32) -> (i32, i32, i32) {
    %c0_i32 = arith.constant 0 : i32
    %c0_i32_0 = arith.constant 0 : i32
    %c0_i32_1 = arith.constant 0 : i32
    %c0_i32_2 = arith.constant 0 : i32
    return %c0_i32, %c0_i32_0, %c0_i32_1 : i32, i32, i32
  }
  func.func @transform_4(%arg0: i32) -> (i32, i32) {
    %c0_i32 = arith.constant 0 : i32
    %c0_i32_0 = arith.constant 0 : i32
    %c0_i32_1 = arith.constant 0 : i32
    return %c0_i32, %c0_i32_0 : i32, i32
  }
  func.func @transform_5(%arg0: i32) -> (i32, i32, i32) {
    %c0_i32 = arith.constant 0 : i32
    %c0_i32_0 = arith.constant 0 : i32
    %c0_i32_1 = arith.constant 0 : i32
    %c0_i32_2 = arith.constant 0 : i32
    return %c0_i32, %c0_i32_0, %c0_i32_1 : i32, i32, i32
  }
  func.func @transform_6(%arg0: i32) -> (i32, i32) {
    %c0_i32 = arith.constant 0 : i32
    %c0_i32_0 = arith.constant 0 : i32
    %c0_i32_1 = arith.constant 0 : i32
    return %c0_i32, %c0_i32_0 : i32, i32
  }
  func.func @transform_7(%arg0: i32) -> (i32, i32) {
    %c0_i32 = arith.constant 0 : i32
    %c0_i32_0 = arith.constant 0 : i32
    %c0_i32_1 = arith.constant 0 : i32
    return %c0_i32, %c0_i32_0 : i32, i32
  }
  func.func @transform_8(%arg0: i32) -> (i32, i32) {
    %c0_i32 = arith.constant 0 : i32
    %c0_i32_0 = arith.constant 0 : i32
    %c0_i32_1 = arith.constant 0 : i32
    return %c0_i32, %c0_i32_0 : i32, i32
  }
  func.func @transform_9(%arg0: i32) -> (i32, i32, i32) {
    %c0_i32 = arith.constant 0 : i32
    %c0_i32_0 = arith.constant 0 : i32
    %c0_i32_1 = arith.constant 0 : i32
    return %arg0, %c0_i32, %c0_i32_0 : i32, i32, i32
  }
}

module attributes {stable_mosaic.version = 11 : i64} {
  func.func @_encoder_layer_head_kernel(%arg0: i32, %arg1: memref<1x16x32xf32, #tpu.memory_space<vmem>>, %arg2: memref<32x96xbf16, #tpu.memory_space<vmem>>, %arg3: memref<1x96xf32, #tpu.memory_space<vmem>>, %arg4: memref<32x32xf32, #tpu.memory_space<vmem>>, %arg5: memref<1x32xf32, #tpu.memory_space<vmem>>, %arg6: memref<1x32xf32, #tpu.memory_space<vmem>>, %arg7: memref<1x32xf32, #tpu.memory_space<vmem>>, %arg8: memref<32x128xbf16, #tpu.memory_space<vmem>>, %arg9: memref<1x128xf32, #tpu.memory_space<vmem>>, %arg10: memref<128x32xbf16, #tpu.memory_space<vmem>>, %arg11: memref<1x32xf32, #tpu.memory_space<vmem>>, %arg12: memref<1x32xf32, #tpu.memory_space<vmem>>, %arg13: memref<1x32xf32, #tpu.memory_space<vmem>>, %arg14: memref<32x3xf32, #tpu.memory_space<vmem>>, %arg15: memref<1x3xf32, #tpu.memory_space<vmem>>, %arg16: memref<1x1x3xf32, #tpu.memory_space<vmem>>) attributes {dimension_semantics = [#tpu.dimension_semantics<parallel>], iteration_bounds = array<i64: 2>, scalar_prefetch = 0 : i64, scratch_operands = 0 : i64, tpu.core_type = #tpu.core_type<tc>, window_params = [{transform_indices = @transform_0, window_bounds = array<i64: 1, 16, 32>}, {pipeline_mode = #tpu.pipeline_mode<synchronous>, transform_indices = @transform_1, window_bounds = array<i64: 32, 96>}, {pipeline_mode = #tpu.pipeline_mode<synchronous>, transform_indices = @transform_2, window_bounds = array<i64: 1, 96>}, {pipeline_mode = #tpu.pipeline_mode<synchronous>, transform_indices = @transform_3, window_bounds = array<i64: 32, 32>}, {pipeline_mode = #tpu.pipeline_mode<synchronous>, transform_indices = @transform_4, window_bounds = array<i64: 1, 32>}, {pipeline_mode = #tpu.pipeline_mode<synchronous>, transform_indices = @transform_5, window_bounds = array<i64: 1, 32>}, {pipeline_mode = #tpu.pipeline_mode<synchronous>, transform_indices = @transform_6, window_bounds = array<i64: 1, 32>}, {pipeline_mode = #tpu.pipeline_mode<synchronous>, transform_indices = @transform_7, window_bounds = array<i64: 32, 128>}, {pipeline_mode = #tpu.pipeline_mode<synchronous>, transform_indices = @transform_8, window_bounds = array<i64: 1, 128>}, {pipeline_mode = #tpu.pipeline_mode<synchronous>, transform_indices = @transform_9, window_bounds = array<i64: 128, 32>}, {pipeline_mode = #tpu.pipeline_mode<synchronous>, transform_indices = @transform_10, window_bounds = array<i64: 1, 32>}, {pipeline_mode = #tpu.pipeline_mode<synchronous>, transform_indices = @transform_11, window_bounds = array<i64: 1, 32>}, {pipeline_mode = #tpu.pipeline_mode<synchronous>, transform_indices = @transform_12, window_bounds = array<i64: 1, 32>}, {pipeline_mode = #tpu.pipeline_mode<synchronous>, transform_indices = @transform_13, window_bounds = array<i64: 32, 3>}, {pipeline_mode = #tpu.pipeline_mode<synchronous>, transform_indices = @transform_14, window_bounds = array<i64: 1, 3>}, {transform_indices = @transform_15, window_bounds = array<i64: 1, 1, 3>}]} {
    %c0 = arith.constant 0 : index
    %c0_0 = arith.constant 0 : index
    %c0_1 = arith.constant 0 : index
    %0 = vector.load %arg1[%c0, %c0_0, %c0_1] : memref<1x16x32xf32, #tpu.memory_space<vmem>>, vector<1x16x32xf32>
    %1 = vector.shape_cast %0 : vector<1x16x32xf32> to vector<16x32xf32>
    %c0_2 = arith.constant 0 : index
    %c0_3 = arith.constant 0 : index
    %2 = vector.load %arg2[%c0_2, %c0_3] : memref<32x96xbf16, #tpu.memory_space<vmem>>, vector<32x96xbf16>
    %c0_4 = arith.constant 0 : index
    %c0_5 = arith.constant 0 : index
    %3 = vector.load %arg3[%c0_4, %c0_5] : memref<1x96xf32, #tpu.memory_space<vmem>>, vector<1x96xf32>
    %c0_6 = arith.constant 0 : index
    %c0_7 = arith.constant 0 : index
    %4 = vector.load %arg4[%c0_6, %c0_7] : memref<32x32xf32, #tpu.memory_space<vmem>>, vector<32x32xf32>
    %c0_8 = arith.constant 0 : index
    %c0_9 = arith.constant 0 : index
    %5 = vector.load %arg5[%c0_8, %c0_9] : memref<1x32xf32, #tpu.memory_space<vmem>>, vector<1x32xf32>
    %c0_10 = arith.constant 0 : index
    %c0_11 = arith.constant 0 : index
    %6 = vector.load %arg6[%c0_10, %c0_11] : memref<1x32xf32, #tpu.memory_space<vmem>>, vector<1x32xf32>
    %c0_12 = arith.constant 0 : index
    %c0_13 = arith.constant 0 : index
    %7 = vector.load %arg7[%c0_12, %c0_13] : memref<1x32xf32, #tpu.memory_space<vmem>>, vector<1x32xf32>
    %c0_14 = arith.constant 0 : index
    %c0_15 = arith.constant 0 : index
    %8 = vector.load %arg8[%c0_14, %c0_15] : memref<32x128xbf16, #tpu.memory_space<vmem>>, vector<32x128xbf16>
    %c0_16 = arith.constant 0 : index
    %c0_17 = arith.constant 0 : index
    %9 = vector.load %arg9[%c0_16, %c0_17] : memref<1x128xf32, #tpu.memory_space<vmem>>, vector<1x128xf32>
    %c0_18 = arith.constant 0 : index
    %c0_19 = arith.constant 0 : index
    %10 = vector.load %arg10[%c0_18, %c0_19] : memref<128x32xbf16, #tpu.memory_space<vmem>>, vector<128x32xbf16>
    %c0_20 = arith.constant 0 : index
    %c0_21 = arith.constant 0 : index
    %11 = vector.load %arg11[%c0_20, %c0_21] : memref<1x32xf32, #tpu.memory_space<vmem>>, vector<1x32xf32>
    %c0_22 = arith.constant 0 : index
    %c0_23 = arith.constant 0 : index
    %12 = vector.load %arg12[%c0_22, %c0_23] : memref<1x32xf32, #tpu.memory_space<vmem>>, vector<1x32xf32>
    %c0_24 = arith.constant 0 : index
    %c0_25 = arith.constant 0 : index
    %13 = vector.load %arg13[%c0_24, %c0_25] : memref<1x32xf32, #tpu.memory_space<vmem>>, vector<1x32xf32>
    %14 = arith.truncf %1 : vector<16x32xf32> to vector<16x32xbf16>
    %cst = arith.constant dense<0.000000e+00> : vector<16x96xf32>
    %15 = tpu.matmul %14, %2, %cst {dimension_numbers = #tpu.dot_dimension_numbers<[1], [0], [0], [1], [0, 0, 1, 1], [], []>} : vector<16x32xbf16>, vector<32x96xbf16>, vector<16x96xf32> -> vector<16x96xf32>
    %16 = vector.broadcast %3 : vector<1x96xf32> to vector<16x96xf32>
    %17 = arith.addf %15, %16 : vector<16x96xf32>
    %cst_26 = arith.constant 0.000000e+00 : f32
    %18 = vector.broadcast %cst_26 : f32 to vector<16x32xf32>
    %19 = tpu.iota {dimensions = array<i32: 0>} : vector<96x8xi32>
    %20 = tpu.iota {dimensions = array<i32: 1>} : vector<96x8xi32>
    %c0_i32 = arith.constant 0 : i32
    %21 = vector.broadcast %c0_i32 : i32 to vector<96x8xi32>
    %22 = arith.addi %20, %21 : vector<96x8xi32>
    %23 = arith.cmpi eq, %19, %22 : vector<96x8xi32>
    %24 = arith.extui %23 : vector<96x8xi1> to vector<96x8xi32>
    %25 = arith.sitofp %24 : vector<96x8xi32> to vector<96x8xf32>
    %cst_27 = arith.constant dense<0.000000e+00> : vector<16x8xf32>
    %26 = tpu.matmul %17, %25, %cst_27 {dimension_numbers = #tpu.dot_dimension_numbers<[1], [0], [0], [1], [0, 0, 1, 1], [], []>} : vector<16x96xf32>, vector<96x8xf32>, vector<16x8xf32> -> vector<16x8xf32>
    %27 = tpu.iota {dimensions = array<i32: 0>} : vector<96x8xi32>
    %28 = tpu.iota {dimensions = array<i32: 1>} : vector<96x8xi32>
    %c32_i32 = arith.constant 32 : i32
    %29 = vector.broadcast %c32_i32 : i32 to vector<96x8xi32>
    %30 = arith.addi %28, %29 : vector<96x8xi32>
    %31 = arith.cmpi eq, %27, %30 : vector<96x8xi32>
    %32 = arith.extui %31 : vector<96x8xi1> to vector<96x8xi32>
    %33 = arith.sitofp %32 : vector<96x8xi32> to vector<96x8xf32>
    %cst_28 = arith.constant dense<0.000000e+00> : vector<16x8xf32>
    %34 = tpu.matmul %17, %33, %cst_28 {dimension_numbers = #tpu.dot_dimension_numbers<[1], [0], [0], [1], [0, 0, 1, 1], [], []>} : vector<16x96xf32>, vector<96x8xf32>, vector<16x8xf32> -> vector<16x8xf32>
    %35 = tpu.iota {dimensions = array<i32: 0>} : vector<96x8xi32>
    %36 = tpu.iota {dimensions = array<i32: 1>} : vector<96x8xi32>
    %c64_i32 = arith.constant 64 : i32
    %37 = vector.broadcast %c64_i32 : i32 to vector<96x8xi32>
    %38 = arith.addi %36, %37 : vector<96x8xi32>
    %39 = arith.cmpi eq, %35, %38 : vector<96x8xi32>
    %40 = arith.extui %39 : vector<96x8xi1> to vector<96x8xi32>
    %41 = arith.sitofp %40 : vector<96x8xi32> to vector<96x8xf32>
    %cst_29 = arith.constant dense<0.000000e+00> : vector<16x8xf32>
    %42 = tpu.matmul %17, %41, %cst_29 {dimension_numbers = #tpu.dot_dimension_numbers<[1], [0], [0], [1], [0, 0, 1, 1], [], []>} : vector<16x96xf32>, vector<96x8xf32>, vector<16x8xf32> -> vector<16x8xf32>
    %cst_30 = arith.constant dense<0.000000e+00> : vector<16x16xf32>
    %43 = tpu.matmul %26, %34, %cst_30 {dimension_numbers = #tpu.dot_dimension_numbers<[1], [1], [0], [0], [0, 0, 1, 0], [], []>} : vector<16x8xf32>, vector<16x8xf32>, vector<16x16xf32> -> vector<16x16xf32>
    %cst_31 = arith.constant 0.353553385 : f32
    %44 = vector.broadcast %cst_31 : f32 to vector<16x16xf32>
    %45 = arith.mulf %43, %44 : vector<16x16xf32>
    %cst_32 = arith.constant dense<0xFF800000> : vector<16xf32>
    %46 = vector.multi_reduction <maximumf>, %45, %cst_32 [1] : vector<16x16xf32> to vector<16xf32>
    %47 = vector.shape_cast %46 : vector<16xf32> to vector<16x1xf32>
    %48 = vector.broadcast %47 : vector<16x1xf32> to vector<16x16xf32>
    %49 = arith.subf %45, %48 : vector<16x16xf32>
    %50 = math.exp %49 : vector<16x16xf32>
    %cst_33 = arith.constant dense<0.000000e+00> : vector<16xf32>
    %51 = vector.multi_reduction <add>, %50, %cst_33 [1] : vector<16x16xf32> to vector<16xf32>
    %52 = vector.shape_cast %51 : vector<16xf32> to vector<16x1xf32>
    %53 = tpu.reciprocal %52 {approx = true} : vector<16x1xf32> -> vector<16x1xf32>
    %54 = vector.broadcast %53 : vector<16x1xf32> to vector<16x16xf32>
    %55 = arith.mulf %50, %54 : vector<16x16xf32>
    %cst_34 = arith.constant dense<0.000000e+00> : vector<16x8xf32>
    %56 = tpu.matmul %55, %42, %cst_34 {dimension_numbers = #tpu.dot_dimension_numbers<[1], [0], [0], [1], [0, 0, 1, 1], [], []>} : vector<16x16xf32>, vector<16x8xf32>, vector<16x8xf32> -> vector<16x8xf32>
    %57 = vector.extract_strided_slice %4 {offsets = [0, 0], sizes = [8, 32], strides = [1, 1]} : vector<32x32xf32> to vector<8x32xf32>
    %cst_35 = arith.constant dense<0.000000e+00> : vector<16x32xf32>
    %58 = tpu.matmul %56, %57, %cst_35 {dimension_numbers = #tpu.dot_dimension_numbers<[1], [0], [0], [1], [0, 0, 1, 1], [], []>} : vector<16x8xf32>, vector<8x32xf32>, vector<16x32xf32> -> vector<16x32xf32>
    %59 = arith.addf %18, %58 : vector<16x32xf32>
    %60 = tpu.iota {dimensions = array<i32: 0>} : vector<96x8xi32>
    %61 = tpu.iota {dimensions = array<i32: 1>} : vector<96x8xi32>
    %c8_i32 = arith.constant 8 : i32
    %62 = vector.broadcast %c8_i32 : i32 to vector<96x8xi32>
    %63 = arith.addi %61, %62 : vector<96x8xi32>
    %64 = arith.cmpi eq, %60, %63 : vector<96x8xi32>
    %65 = arith.extui %64 : vector<96x8xi1> to vector<96x8xi32>
    %66 = arith.sitofp %65 : vector<96x8xi32> to vector<96x8xf32>
    %cst_36 = arith.constant dense<0.000000e+00> : vector<16x8xf32>
    %67 = tpu.matmul %17, %66, %cst_36 {dimension_numbers = #tpu.dot_dimension_numbers<[1], [0], [0], [1], [0, 0, 1, 1], [], []>} : vector<16x96xf32>, vector<96x8xf32>, vector<16x8xf32> -> vector<16x8xf32>
    %68 = tpu.iota {dimensions = array<i32: 0>} : vector<96x8xi32>
    %69 = tpu.iota {dimensions = array<i32: 1>} : vector<96x8xi32>
    %c40_i32 = arith.constant 40 : i32
    %70 = vector.broadcast %c40_i32 : i32 to vector<96x8xi32>
    %71 = arith.addi %69, %70 : vector<96x8xi32>
    %72 = arith.cmpi eq, %68, %71 : vector<96x8xi32>
    %73 = arith.extui %72 : vector<96x8xi1> to vector<96x8xi32>
    %74 = arith.sitofp %73 : vector<96x8xi32> to vector<96x8xf32>
    %cst_37 = arith.constant dense<0.000000e+00> : vector<16x8xf32>
    %75 = tpu.matmul %17, %74, %cst_37 {dimension_numbers = #tpu.dot_dimension_numbers<[1], [0], [0], [1], [0, 0, 1, 1], [], []>} : vector<16x96xf32>, vector<96x8xf32>, vector<16x8xf32> -> vector<16x8xf32>
    %76 = tpu.iota {dimensions = array<i32: 0>} : vector<96x8xi32>
    %77 = tpu.iota {dimensions = array<i32: 1>} : vector<96x8xi32>
    %c72_i32 = arith.constant 72 : i32
    %78 = vector.broadcast %c72_i32 : i32 to vector<96x8xi32>
    %79 = arith.addi %77, %78 : vector<96x8xi32>
    %80 = arith.cmpi eq, %76, %79 : vector<96x8xi32>
    %81 = arith.extui %80 : vector<96x8xi1> to vector<96x8xi32>
    %82 = arith.sitofp %81 : vector<96x8xi32> to vector<96x8xf32>
    %cst_38 = arith.constant dense<0.000000e+00> : vector<16x8xf32>
    %83 = tpu.matmul %17, %82, %cst_38 {dimension_numbers = #tpu.dot_dimension_numbers<[1], [0], [0], [1], [0, 0, 1, 1], [], []>} : vector<16x96xf32>, vector<96x8xf32>, vector<16x8xf32> -> vector<16x8xf32>
    %cst_39 = arith.constant dense<0.000000e+00> : vector<16x16xf32>
    %84 = tpu.matmul %67, %75, %cst_39 {dimension_numbers = #tpu.dot_dimension_numbers<[1], [1], [0], [0], [0, 0, 1, 0], [], []>} : vector<16x8xf32>, vector<16x8xf32>, vector<16x16xf32> -> vector<16x16xf32>
    %cst_40 = arith.constant 0.353553385 : f32
    %85 = vector.broadcast %cst_40 : f32 to vector<16x16xf32>
    %86 = arith.mulf %84, %85 : vector<16x16xf32>
    %cst_41 = arith.constant dense<0xFF800000> : vector<16xf32>
    %87 = vector.multi_reduction <maximumf>, %86, %cst_41 [1] : vector<16x16xf32> to vector<16xf32>
    %88 = vector.shape_cast %87 : vector<16xf32> to vector<16x1xf32>
    %89 = vector.broadcast %88 : vector<16x1xf32> to vector<16x16xf32>
    %90 = arith.subf %86, %89 : vector<16x16xf32>
    %91 = math.exp %90 : vector<16x16xf32>
    %cst_42 = arith.constant dense<0.000000e+00> : vector<16xf32>
    %92 = vector.multi_reduction <add>, %91, %cst_42 [1] : vector<16x16xf32> to vector<16xf32>
    %93 = vector.shape_cast %92 : vector<16xf32> to vector<16x1xf32>
    %94 = tpu.reciprocal %93 {approx = true} : vector<16x1xf32> -> vector<16x1xf32>
    %95 = vector.broadcast %94 : vector<16x1xf32> to vector<16x16xf32>
    %96 = arith.mulf %91, %95 : vector<16x16xf32>
    %cst_43 = arith.constant dense<0.000000e+00> : vector<16x8xf32>
    %97 = tpu.matmul %96, %83, %cst_43 {dimension_numbers = #tpu.dot_dimension_numbers<[1], [0], [0], [1], [0, 0, 1, 1], [], []>} : vector<16x16xf32>, vector<16x8xf32>, vector<16x8xf32> -> vector<16x8xf32>
    %98 = vector.extract_strided_slice %4 {offsets = [8, 0], sizes = [8, 32], strides = [1, 1]} : vector<32x32xf32> to vector<8x32xf32>
    %cst_44 = arith.constant dense<0.000000e+00> : vector<16x32xf32>
    %99 = tpu.matmul %97, %98, %cst_44 {dimension_numbers = #tpu.dot_dimension_numbers<[1], [0], [0], [1], [0, 0, 1, 1], [], []>} : vector<16x8xf32>, vector<8x32xf32>, vector<16x32xf32> -> vector<16x32xf32>
    %100 = arith.addf %59, %99 : vector<16x32xf32>
    %101 = tpu.iota {dimensions = array<i32: 0>} : vector<96x8xi32>
    %102 = tpu.iota {dimensions = array<i32: 1>} : vector<96x8xi32>
    %c16_i32 = arith.constant 16 : i32
    %103 = vector.broadcast %c16_i32 : i32 to vector<96x8xi32>
    %104 = arith.addi %102, %103 : vector<96x8xi32>
    %105 = arith.cmpi eq, %101, %104 : vector<96x8xi32>
    %106 = arith.extui %105 : vector<96x8xi1> to vector<96x8xi32>
    %107 = arith.sitofp %106 : vector<96x8xi32> to vector<96x8xf32>
    %cst_45 = arith.constant dense<0.000000e+00> : vector<16x8xf32>
    %108 = tpu.matmul %17, %107, %cst_45 {dimension_numbers = #tpu.dot_dimension_numbers<[1], [0], [0], [1], [0, 0, 1, 1], [], []>} : vector<16x96xf32>, vector<96x8xf32>, vector<16x8xf32> -> vector<16x8xf32>
    %109 = tpu.iota {dimensions = array<i32: 0>} : vector<96x8xi32>
    %110 = tpu.iota {dimensions = array<i32: 1>} : vector<96x8xi32>
    %c48_i32 = arith.constant 48 : i32
    %111 = vector.broadcast %c48_i32 : i32 to vector<96x8xi32>
    %112 = arith.addi %110, %111 : vector<96x8xi32>
    %113 = arith.cmpi eq, %109, %112 : vector<96x8xi32>
    %114 = arith.extui %113 : vector<96x8xi1> to vector<96x8xi32>
    %115 = arith.sitofp %114 : vector<96x8xi32> to vector<96x8xf32>
    %cst_46 = arith.constant dense<0.000000e+00> : vector<16x8xf32>
    %116 = tpu.matmul %17, %115, %cst_46 {dimension_numbers = #tpu.dot_dimension_numbers<[1], [0], [0], [1], [0, 0, 1, 1], [], []>} : vector<16x96xf32>, vector<96x8xf32>, vector<16x8xf32> -> vector<16x8xf32>
    %117 = tpu.iota {dimensions = array<i32: 0>} : vector<96x8xi32>
    %118 = tpu.iota {dimensions = array<i32: 1>} : vector<96x8xi32>
    %c80_i32 = arith.constant 80 : i32
    %119 = vector.broadcast %c80_i32 : i32 to vector<96x8xi32>
    %120 = arith.addi %118, %119 : vector<96x8xi32>
    %121 = arith.cmpi eq, %117, %120 : vector<96x8xi32>
    %122 = arith.extui %121 : vector<96x8xi1> to vector<96x8xi32>
    %123 = arith.sitofp %122 : vector<96x8xi32> to vector<96x8xf32>
    %cst_47 = arith.constant dense<0.000000e+00> : vector<16x8xf32>
    %124 = tpu.matmul %17, %123, %cst_47 {dimension_numbers = #tpu.dot_dimension_numbers<[1], [0], [0], [1], [0, 0, 1, 1], [], []>} : vector<16x96xf32>, vector<96x8xf32>, vector<16x8xf32> -> vector<16x8xf32>
    %cst_48 = arith.constant dense<0.000000e+00> : vector<16x16xf32>
    %125 = tpu.matmul %108, %116, %cst_48 {dimension_numbers = #tpu.dot_dimension_numbers<[1], [1], [0], [0], [0, 0, 1, 0], [], []>} : vector<16x8xf32>, vector<16x8xf32>, vector<16x16xf32> -> vector<16x16xf32>
    %cst_49 = arith.constant 0.353553385 : f32
    %126 = vector.broadcast %cst_49 : f32 to vector<16x16xf32>
    %127 = arith.mulf %125, %126 : vector<16x16xf32>
    %cst_50 = arith.constant dense<0xFF800000> : vector<16xf32>
    %128 = vector.multi_reduction <maximumf>, %127, %cst_50 [1] : vector<16x16xf32> to vector<16xf32>
    %129 = vector.shape_cast %128 : vector<16xf32> to vector<16x1xf32>
    %130 = vector.broadcast %129 : vector<16x1xf32> to vector<16x16xf32>
    %131 = arith.subf %127, %130 : vector<16x16xf32>
    %132 = math.exp %131 : vector<16x16xf32>
    %cst_51 = arith.constant dense<0.000000e+00> : vector<16xf32>
    %133 = vector.multi_reduction <add>, %132, %cst_51 [1] : vector<16x16xf32> to vector<16xf32>
    %134 = vector.shape_cast %133 : vector<16xf32> to vector<16x1xf32>
    %135 = tpu.reciprocal %134 {approx = true} : vector<16x1xf32> -> vector<16x1xf32>
    %136 = vector.broadcast %135 : vector<16x1xf32> to vector<16x16xf32>
    %137 = arith.mulf %132, %136 : vector<16x16xf32>
    %cst_52 = arith.constant dense<0.000000e+00> : vector<16x8xf32>
    %138 = tpu.matmul %137, %124, %cst_52 {dimension_numbers = #tpu.dot_dimension_numbers<[1], [0], [0], [1], [0, 0, 1, 1], [], []>} : vector<16x16xf32>, vector<16x8xf32>, vector<16x8xf32> -> vector<16x8xf32>
    %139 = vector.extract_strided_slice %4 {offsets = [16, 0], sizes = [8, 32], strides = [1, 1]} : vector<32x32xf32> to vector<8x32xf32>
    %cst_53 = arith.constant dense<0.000000e+00> : vector<16x32xf32>
    %140 = tpu.matmul %138, %139, %cst_53 {dimension_numbers = #tpu.dot_dimension_numbers<[1], [0], [0], [1], [0, 0, 1, 1], [], []>} : vector<16x8xf32>, vector<8x32xf32>, vector<16x32xf32> -> vector<16x32xf32>
    %141 = arith.addf %100, %140 : vector<16x32xf32>
    %142 = tpu.iota {dimensions = array<i32: 0>} : vector<96x8xi32>
    %143 = tpu.iota {dimensions = array<i32: 1>} : vector<96x8xi32>
    %c24_i32 = arith.constant 24 : i32
    %144 = vector.broadcast %c24_i32 : i32 to vector<96x8xi32>
    %145 = arith.addi %143, %144 : vector<96x8xi32>
    %146 = arith.cmpi eq, %142, %145 : vector<96x8xi32>
    %147 = arith.extui %146 : vector<96x8xi1> to vector<96x8xi32>
    %148 = arith.sitofp %147 : vector<96x8xi32> to vector<96x8xf32>
    %cst_54 = arith.constant dense<0.000000e+00> : vector<16x8xf32>
    %149 = tpu.matmul %17, %148, %cst_54 {dimension_numbers = #tpu.dot_dimension_numbers<[1], [0], [0], [1], [0, 0, 1, 1], [], []>} : vector<16x96xf32>, vector<96x8xf32>, vector<16x8xf32> -> vector<16x8xf32>
    %150 = tpu.iota {dimensions = array<i32: 0>} : vector<96x8xi32>
    %151 = tpu.iota {dimensions = array<i32: 1>} : vector<96x8xi32>
    %c56_i32 = arith.constant 56 : i32
    %152 = vector.broadcast %c56_i32 : i32 to vector<96x8xi32>
    %153 = arith.addi %151, %152 : vector<96x8xi32>
    %154 = arith.cmpi eq, %150, %153 : vector<96x8xi32>
    %155 = arith.extui %154 : vector<96x8xi1> to vector<96x8xi32>
    %156 = arith.sitofp %155 : vector<96x8xi32> to vector<96x8xf32>
    %cst_55 = arith.constant dense<0.000000e+00> : vector<16x8xf32>
    %157 = tpu.matmul %17, %156, %cst_55 {dimension_numbers = #tpu.dot_dimension_numbers<[1], [0], [0], [1], [0, 0, 1, 1], [], []>} : vector<16x96xf32>, vector<96x8xf32>, vector<16x8xf32> -> vector<16x8xf32>
    %158 = tpu.iota {dimensions = array<i32: 0>} : vector<96x8xi32>
    %159 = tpu.iota {dimensions = array<i32: 1>} : vector<96x8xi32>
    %c88_i32 = arith.constant 88 : i32
    %160 = vector.broadcast %c88_i32 : i32 to vector<96x8xi32>
    %161 = arith.addi %159, %160 : vector<96x8xi32>
    %162 = arith.cmpi eq, %158, %161 : vector<96x8xi32>
    %163 = arith.extui %162 : vector<96x8xi1> to vector<96x8xi32>
    %164 = arith.sitofp %163 : vector<96x8xi32> to vector<96x8xf32>
    %cst_56 = arith.constant dense<0.000000e+00> : vector<16x8xf32>
    %165 = tpu.matmul %17, %164, %cst_56 {dimension_numbers = #tpu.dot_dimension_numbers<[1], [0], [0], [1], [0, 0, 1, 1], [], []>} : vector<16x96xf32>, vector<96x8xf32>, vector<16x8xf32> -> vector<16x8xf32>
    %cst_57 = arith.constant dense<0.000000e+00> : vector<16x16xf32>
    %166 = tpu.matmul %149, %157, %cst_57 {dimension_numbers = #tpu.dot_dimension_numbers<[1], [1], [0], [0], [0, 0, 1, 0], [], []>} : vector<16x8xf32>, vector<16x8xf32>, vector<16x16xf32> -> vector<16x16xf32>
    %cst_58 = arith.constant 0.353553385 : f32
    %167 = vector.broadcast %cst_58 : f32 to vector<16x16xf32>
    %168 = arith.mulf %166, %167 : vector<16x16xf32>
    %cst_59 = arith.constant dense<0xFF800000> : vector<16xf32>
    %169 = vector.multi_reduction <maximumf>, %168, %cst_59 [1] : vector<16x16xf32> to vector<16xf32>
    %170 = vector.shape_cast %169 : vector<16xf32> to vector<16x1xf32>
    %171 = vector.broadcast %170 : vector<16x1xf32> to vector<16x16xf32>
    %172 = arith.subf %168, %171 : vector<16x16xf32>
    %173 = math.exp %172 : vector<16x16xf32>
    %cst_60 = arith.constant dense<0.000000e+00> : vector<16xf32>
    %174 = vector.multi_reduction <add>, %173, %cst_60 [1] : vector<16x16xf32> to vector<16xf32>
    %175 = vector.shape_cast %174 : vector<16xf32> to vector<16x1xf32>
    %176 = tpu.reciprocal %175 {approx = true} : vector<16x1xf32> -> vector<16x1xf32>
    %177 = vector.broadcast %176 : vector<16x1xf32> to vector<16x16xf32>
    %178 = arith.mulf %173, %177 : vector<16x16xf32>
    %cst_61 = arith.constant dense<0.000000e+00> : vector<16x8xf32>
    %179 = tpu.matmul %178, %165, %cst_61 {dimension_numbers = #tpu.dot_dimension_numbers<[1], [0], [0], [1], [0, 0, 1, 1], [], []>} : vector<16x16xf32>, vector<16x8xf32>, vector<16x8xf32> -> vector<16x8xf32>
    %180 = vector.extract_strided_slice %4 {offsets = [24, 0], sizes = [8, 32], strides = [1, 1]} : vector<32x32xf32> to vector<8x32xf32>
    %cst_62 = arith.constant dense<0.000000e+00> : vector<16x32xf32>
    %181 = tpu.matmul %179, %180, %cst_62 {dimension_numbers = #tpu.dot_dimension_numbers<[1], [0], [0], [1], [0, 0, 1, 1], [], []>} : vector<16x8xf32>, vector<8x32xf32>, vector<16x32xf32> -> vector<16x32xf32>
    %182 = arith.addf %141, %181 : vector<16x32xf32>
    %183 = vector.broadcast %5 : vector<1x32xf32> to vector<16x32xf32>
    %184 = arith.addf %182, %183 : vector<16x32xf32>
    %185 = arith.addf %1, %184 : vector<16x32xf32>
    %cst_63 = arith.constant dense<0.000000e+00> : vector<16xf32>
    %186 = vector.multi_reduction <add>, %185, %cst_63 [1] : vector<16x32xf32> to vector<16xf32>
    %187 = vector.shape_cast %186 : vector<16xf32> to vector<16x1xf32>
    %cst_64 = arith.constant 3.200000e+01 : f32
    %188 = vector.broadcast %cst_64 : f32 to vector<16x1xf32>
    %189 = arith.divf %187, %188 : vector<16x1xf32>
    %190 = vector.broadcast %189 : vector<16x1xf32> to vector<16x32xf32>
    %191 = arith.subf %185, %190 : vector<16x32xf32>
    %192 = arith.mulf %191, %191 : vector<16x32xf32>
    %cst_65 = arith.constant dense<0.000000e+00> : vector<16xf32>
    %193 = vector.multi_reduction <add>, %192, %cst_65 [1] : vector<16x32xf32> to vector<16xf32>
    %194 = vector.shape_cast %193 : vector<16xf32> to vector<16x1xf32>
    %cst_66 = arith.constant 3.200000e+01 : f32
    %195 = vector.broadcast %cst_66 : f32 to vector<16x1xf32>
    %196 = arith.divf %194, %195 : vector<16x1xf32>
    %cst_67 = arith.constant 9.99999974E-6 : f32
    %197 = vector.broadcast %cst_67 : f32 to vector<16x1xf32>
    %198 = arith.addf %196, %197 : vector<16x1xf32>
    %199 = math.rsqrt %198 : vector<16x1xf32>
    %200 = vector.broadcast %199 : vector<16x1xf32> to vector<16x32xf32>
    %201 = arith.mulf %191, %200 : vector<16x32xf32>
    %202 = vector.broadcast %6 : vector<1x32xf32> to vector<16x32xf32>
    %203 = arith.mulf %201, %202 : vector<16x32xf32>
    %204 = vector.broadcast %7 : vector<1x32xf32> to vector<16x32xf32>
    %205 = arith.addf %203, %204 : vector<16x32xf32>
    %206 = arith.truncf %205 : vector<16x32xf32> to vector<16x32xbf16>
    %cst_68 = arith.constant dense<0.000000e+00> : vector<16x128xf32>
    %207 = tpu.matmul %206, %8, %cst_68 {dimension_numbers = #tpu.dot_dimension_numbers<[1], [0], [0], [1], [0, 0, 1, 1], [], []>} : vector<16x32xbf16>, vector<32x128xbf16>, vector<16x128xf32> -> vector<16x128xf32>
    %208 = vector.broadcast %9 : vector<1x128xf32> to vector<16x128xf32>
    %209 = arith.addf %207, %208 : vector<16x128xf32>
    %cst_69 = arith.constant 0.000000e+00 : f32
    %210 = vector.broadcast %cst_69 : f32 to vector<16x128xf32>
    %211 = arith.maximumf %209, %210 : vector<16x128xf32>
    %212 = arith.truncf %211 : vector<16x128xf32> to vector<16x128xbf16>
    %cst_70 = arith.constant dense<0.000000e+00> : vector<16x32xf32>
    %213 = tpu.matmul %212, %10, %cst_70 {dimension_numbers = #tpu.dot_dimension_numbers<[1], [0], [0], [1], [0, 0, 1, 1], [], []>} : vector<16x128xbf16>, vector<128x32xbf16>, vector<16x32xf32> -> vector<16x32xf32>
    %214 = vector.broadcast %11 : vector<1x32xf32> to vector<16x32xf32>
    %215 = arith.addf %213, %214 : vector<16x32xf32>
    %216 = arith.addf %205, %215 : vector<16x32xf32>
    %cst_71 = arith.constant dense<0.000000e+00> : vector<16xf32>
    %217 = vector.multi_reduction <add>, %216, %cst_71 [1] : vector<16x32xf32> to vector<16xf32>
    %218 = vector.shape_cast %217 : vector<16xf32> to vector<16x1xf32>
    %cst_72 = arith.constant 3.200000e+01 : f32
    %219 = vector.broadcast %cst_72 : f32 to vector<16x1xf32>
    %220 = arith.divf %218, %219 : vector<16x1xf32>
    %221 = vector.broadcast %220 : vector<16x1xf32> to vector<16x32xf32>
    %222 = arith.subf %216, %221 : vector<16x32xf32>
    %223 = arith.mulf %222, %222 : vector<16x32xf32>
    %cst_73 = arith.constant dense<0.000000e+00> : vector<16xf32>
    %224 = vector.multi_reduction <add>, %223, %cst_73 [1] : vector<16x32xf32> to vector<16xf32>
    %225 = vector.shape_cast %224 : vector<16xf32> to vector<16x1xf32>
    %cst_74 = arith.constant 3.200000e+01 : f32
    %226 = vector.broadcast %cst_74 : f32 to vector<16x1xf32>
    %227 = arith.divf %225, %226 : vector<16x1xf32>
    %cst_75 = arith.constant 9.99999974E-6 : f32
    %228 = vector.broadcast %cst_75 : f32 to vector<16x1xf32>
    %229 = arith.addf %227, %228 : vector<16x1xf32>
    %230 = math.rsqrt %229 : vector<16x1xf32>
    %231 = vector.broadcast %230 : vector<16x1xf32> to vector<16x32xf32>
    %232 = arith.mulf %222, %231 : vector<16x32xf32>
    %233 = vector.broadcast %12 : vector<1x32xf32> to vector<16x32xf32>
    %234 = arith.mulf %232, %233 : vector<16x32xf32>
    %235 = vector.broadcast %13 : vector<1x32xf32> to vector<16x32xf32>
    %236 = arith.addf %234, %235 : vector<16x32xf32>
    %cst_76 = arith.constant dense<0.000000e+00> : vector<32xf32>
    %237 = vector.multi_reduction <add>, %236, %cst_76 [0] : vector<16x32xf32> to vector<32xf32>
    %238 = vector.shape_cast %237 : vector<32xf32> to vector<1x32xf32>
    %cst_77 = arith.constant 1.600000e+01 : f32
    %239 = vector.broadcast %cst_77 : f32 to vector<1x32xf32>
    %240 = arith.divf %238, %239 : vector<1x32xf32>
    %c0_78 = arith.constant 0 : index
    %c0_79 = arith.constant 0 : index
    %241 = vector.load %arg14[%c0_78, %c0_79] : memref<32x3xf32, #tpu.memory_space<vmem>>, vector<32x3xf32>
    %cst_80 = arith.constant dense<0.000000e+00> : vector<1x3xf32>
    %242 = tpu.matmul %240, %241, %cst_80 {dimension_numbers = #tpu.dot_dimension_numbers<[1], [0], [0], [1], [0, 0, 1, 1], [], []>} : vector<1x32xf32>, vector<32x3xf32>, vector<1x3xf32> -> vector<1x3xf32>
    %c0_81 = arith.constant 0 : index
    %c0_82 = arith.constant 0 : index
    %243 = vector.load %arg15[%c0_81, %c0_82] : memref<1x3xf32, #tpu.memory_space<vmem>>, vector<1x3xf32>
    %244 = arith.addf %242, %243 : vector<1x3xf32>
    %245 = vector.shape_cast %244 : vector<1x3xf32> to vector<1x1x3xf32>
    %c0_83 = arith.constant 0 : index
    %c0_84 = arith.constant 0 : index
    %c0_85 = arith.constant 0 : index
    %246 = vector.load %arg16[%c0_83, %c0_84, %c0_85] : memref<1x1x3xf32, #tpu.memory_space<vmem>>, vector<1x1x3xf32>
    tpu.vector_store %arg16[%c0_83, %c0_84, %c0_85], %245 {strides = array<i32>} : memref<1x1x3xf32, #tpu.memory_space<vmem>>, vector<1x1x3xf32>,
    return
  }
  func.func @transform_0(%arg0: i32) -> (i32, i32, i32) {
    %c0_i32 = arith.constant 0 : i32
    %c0_i32_0 = arith.constant 0 : i32
    %c0_i32_1 = arith.constant 0 : i32
    return %arg0, %c0_i32, %c0_i32_0 : i32, i32, i32
  }
  func.func @transform_1(%arg0: i32) -> (i32, i32) {
    %c0_i32 = arith.constant 0 : i32
    %c0_i32_0 = arith.constant 0 : i32
    %c0_i32_1 = arith.constant 0 : i32
    return %c0_i32, %c0_i32_0 : i32, i32
  }
  func.func @transform_2(%arg0: i32) -> (i32, i32) {
    %c0_i32 = arith.constant 0 : i32
    %c0_i32_0 = arith.constant 0 : i32
    %c0_i32_1 = arith.constant 0 : i32
    return %c0_i32, %c0_i32_0 : i32, i32
  }
  func.func @transform_3(%arg0: i32) -> (i32, i32) {
    %c0_i32 = arith.constant 0 : i32
    %c0_i32_0 = arith.constant 0 : i32
    %c0_i32_1 = arith.constant 0 : i32
    return %c0_i32, %c0_i32_0 : i32, i32
  }
  func.func @transform_4(%arg0: i32) -> (i32, i32) {
    %c0_i32 = arith.constant 0 : i32
    %c0_i32_0 = arith.constant 0 : i32
    %c0_i32_1 = arith.constant 0 : i32
    return %c0_i32, %c0_i32_0 : i32, i32
  }
  func.func @transform_5(%arg0: i32) -> (i32, i32) {
    %c0_i32 = arith.constant 0 : i32
    %c0_i32_0 = arith.constant 0 : i32
    %c0_i32_1 = arith.constant 0 : i32
    return %c0_i32, %c0_i32_0 : i32, i32
  }
  func.func @transform_6(%arg0: i32) -> (i32, i32) {
    %c0_i32 = arith.constant 0 : i32
    %c0_i32_0 = arith.constant 0 : i32
    %c0_i32_1 = arith.constant 0 : i32
    return %c0_i32, %c0_i32_0 : i32, i32
  }
  func.func @transform_7(%arg0: i32) -> (i32, i32) {
    %c0_i32 = arith.constant 0 : i32
    %c0_i32_0 = arith.constant 0 : i32
    %c0_i32_1 = arith.constant 0 : i32
    return %c0_i32, %c0_i32_0 : i32, i32
  }
  func.func @transform_8(%arg0: i32) -> (i32, i32) {
    %c0_i32 = arith.constant 0 : i32
    %c0_i32_0 = arith.constant 0 : i32
    %c0_i32_1 = arith.constant 0 : i32
    return %c0_i32, %c0_i32_0 : i32, i32
  }
  func.func @transform_9(%arg0: i32) -> (i32, i32) {
    %c0_i32 = arith.constant 0 : i32
    %c0_i32_0 = arith.constant 0 : i32
    %c0_i32_1 = arith.constant 0 : i32
    return %c0_i32, %c0_i32_0 : i32, i32
  }
  func.func @transform_10(%arg0: i32) -> (i32, i32) {
    %c0_i32 = arith.constant 0 : i32
    %c0_i32_0 = arith.constant 0 : i32
    %c0_i32_1 = arith.constant 0 : i32
    return %c0_i32, %c0_i32_0 : i32, i32
  }
  func.func @transform_11(%arg0: i32) -> (i32, i32) {
    %c0_i32 = arith.constant 0 : i32
    %c0_i32_0 = arith.constant 0 : i32
    %c0_i32_1 = arith.constant 0 : i32
    return %c0_i32, %c0_i32_0 : i32, i32
  }
  func.func @transform_12(%arg0: i32) -> (i32, i32) {
    %c0_i32 = arith.constant 0 : i32
    %c0_i32_0 = arith.constant 0 : i32
    %c0_i32_1 = arith.constant 0 : i32
    return %c0_i32, %c0_i32_0 : i32, i32
  }
  func.func @transform_13(%arg0: i32) -> (i32, i32) {
    %c0_i32 = arith.constant 0 : i32
    %c0_i32_0 = arith.constant 0 : i32
    %c0_i32_1 = arith.constant 0 : i32
    return %c0_i32, %c0_i32_0 : i32, i32
  }
  func.func @transform_14(%arg0: i32) -> (i32, i32) {
    %c0_i32 = arith.constant 0 : i32
    %c0_i32_0 = arith.constant 0 : i32
    %c0_i32_1 = arith.constant 0 : i32
    return %c0_i32, %c0_i32_0 : i32, i32
  }
  func.func @transform_15(%arg0: i32) -> (i32, i32, i32) {
    %c0_i32 = arith.constant 0 : i32
    %c0_i32_0 = arith.constant 0 : i32
    %c0_i32_1 = arith.constant 0 : i32
    return %arg0, %c0_i32, %c0_i32_0 : i32, i32, i32
  }
}

module attributes {stable_mosaic.version = 11 : i64} {
  func.func @_encoder_layer_kernel(%arg0: i32, %arg1: memref<1x16x32xf32, #tpu.memory_space<vmem>>, %arg2: memref<32x96xbf16, #tpu.memory_space<vmem>>, %arg3: memref<1x96xf32, #tpu.memory_space<vmem>>, %arg4: memref<32x32xf32, #tpu.memory_space<vmem>>, %arg5: memref<1x32xf32, #tpu.memory_space<vmem>>, %arg6: memref<1x32xf32, #tpu.memory_space<vmem>>, %arg7: memref<1x32xf32, #tpu.memory_space<vmem>>, %arg8: memref<32x128xbf16, #tpu.memory_space<vmem>>, %arg9: memref<1x128xf32, #tpu.memory_space<vmem>>, %arg10: memref<128x32xbf16, #tpu.memory_space<vmem>>, %arg11: memref<1x32xf32, #tpu.memory_space<vmem>>, %arg12: memref<1x32xf32, #tpu.memory_space<vmem>>, %arg13: memref<1x32xf32, #tpu.memory_space<vmem>>, %arg14: memref<1x16x32xf32, #tpu.memory_space<vmem>>) attributes {dimension_semantics = [#tpu.dimension_semantics<parallel>], iteration_bounds = array<i64: 2>, scalar_prefetch = 0 : i64, scratch_operands = 0 : i64, tpu.core_type = #tpu.core_type<tc>, window_params = [{transform_indices = @transform_0, window_bounds = array<i64: 1, 16, 32>}, {pipeline_mode = #tpu.pipeline_mode<synchronous>, transform_indices = @transform_1, window_bounds = array<i64: 32, 96>}, {pipeline_mode = #tpu.pipeline_mode<synchronous>, transform_indices = @transform_2, window_bounds = array<i64: 1, 96>}, {pipeline_mode = #tpu.pipeline_mode<synchronous>, transform_indices = @transform_3, window_bounds = array<i64: 32, 32>}, {pipeline_mode = #tpu.pipeline_mode<synchronous>, transform_indices = @transform_4, window_bounds = array<i64: 1, 32>}, {pipeline_mode = #tpu.pipeline_mode<synchronous>, transform_indices = @transform_5, window_bounds = array<i64: 1, 32>}, {pipeline_mode = #tpu.pipeline_mode<synchronous>, transform_indices = @transform_6, window_bounds = array<i64: 1, 32>}, {pipeline_mode = #tpu.pipeline_mode<synchronous>, transform_indices = @transform_7, window_bounds = array<i64: 32, 128>}, {pipeline_mode = #tpu.pipeline_mode<synchronous>, transform_indices = @transform_8, window_bounds = array<i64: 1, 128>}, {pipeline_mode = #tpu.pipeline_mode<synchronous>, transform_indices = @transform_9, window_bounds = array<i64: 128, 32>}, {pipeline_mode = #tpu.pipeline_mode<synchronous>, transform_indices = @transform_10, window_bounds = array<i64: 1, 32>}, {pipeline_mode = #tpu.pipeline_mode<synchronous>, transform_indices = @transform_11, window_bounds = array<i64: 1, 32>}, {pipeline_mode = #tpu.pipeline_mode<synchronous>, transform_indices = @transform_12, window_bounds = array<i64: 1, 32>}, {transform_indices = @transform_13, window_bounds = array<i64: 1, 16, 32>}]} {
    %c0 = arith.constant 0 : index
    %c0_0 = arith.constant 0 : index
    %c0_1 = arith.constant 0 : index
    %0 = vector.load %arg1[%c0, %c0_0, %c0_1] : memref<1x16x32xf32, #tpu.memory_space<vmem>>, vector<1x16x32xf32>
    %1 = vector.shape_cast %0 : vector<1x16x32xf32> to vector<16x32xf32>
    %c0_2 = arith.constant 0 : index
    %c0_3 = arith.constant 0 : index
    %2 = vector.load %arg2[%c0_2, %c0_3] : memref<32x96xbf16, #tpu.memory_space<vmem>>, vector<32x96xbf16>
    %c0_4 = arith.constant 0 : index
    %c0_5 = arith.constant 0 : index
    %3 = vector.load %arg3[%c0_4, %c0_5] : memref<1x96xf32, #tpu.memory_space<vmem>>, vector<1x96xf32>
    %c0_6 = arith.constant 0 : index
    %c0_7 = arith.constant 0 : index
    %4 = vector.load %arg4[%c0_6, %c0_7] : memref<32x32xf32, #tpu.memory_space<vmem>>, vector<32x32xf32>
    %c0_8 = arith.constant 0 : index
    %c0_9 = arith.constant 0 : index
    %5 = vector.load %arg5[%c0_8, %c0_9] : memref<1x32xf32, #tpu.memory_space<vmem>>, vector<1x32xf32>
    %c0_10 = arith.constant 0 : index
    %c0_11 = arith.constant 0 : index
    %6 = vector.load %arg6[%c0_10, %c0_11] : memref<1x32xf32, #tpu.memory_space<vmem>>, vector<1x32xf32>
    %c0_12 = arith.constant 0 : index
    %c0_13 = arith.constant 0 : index
    %7 = vector.load %arg7[%c0_12, %c0_13] : memref<1x32xf32, #tpu.memory_space<vmem>>, vector<1x32xf32>
    %c0_14 = arith.constant 0 : index
    %c0_15 = arith.constant 0 : index
    %8 = vector.load %arg8[%c0_14, %c0_15] : memref<32x128xbf16, #tpu.memory_space<vmem>>, vector<32x128xbf16>
    %c0_16 = arith.constant 0 : index
    %c0_17 = arith.constant 0 : index
    %9 = vector.load %arg9[%c0_16, %c0_17] : memref<1x128xf32, #tpu.memory_space<vmem>>, vector<1x128xf32>
    %c0_18 = arith.constant 0 : index
    %c0_19 = arith.constant 0 : index
    %10 = vector.load %arg10[%c0_18, %c0_19] : memref<128x32xbf16, #tpu.memory_space<vmem>>, vector<128x32xbf16>
    %c0_20 = arith.constant 0 : index
    %c0_21 = arith.constant 0 : index
    %11 = vector.load %arg11[%c0_20, %c0_21] : memref<1x32xf32, #tpu.memory_space<vmem>>, vector<1x32xf32>
    %c0_22 = arith.constant 0 : index
    %c0_23 = arith.constant 0 : index
    %12 = vector.load %arg12[%c0_22, %c0_23] : memref<1x32xf32, #tpu.memory_space<vmem>>, vector<1x32xf32>
    %c0_24 = arith.constant 0 : index
    %c0_25 = arith.constant 0 : index
    %13 = vector.load %arg13[%c0_24, %c0_25] : memref<1x32xf32, #tpu.memory_space<vmem>>, vector<1x32xf32>
    %14 = arith.truncf %1 : vector<16x32xf32> to vector<16x32xbf16>
    %cst = arith.constant dense<0.000000e+00> : vector<16x96xf32>
    %15 = tpu.matmul %14, %2, %cst {dimension_numbers = #tpu.dot_dimension_numbers<[1], [0], [0], [1], [0, 0, 1, 1], [], []>} : vector<16x32xbf16>, vector<32x96xbf16>, vector<16x96xf32> -> vector<16x96xf32>
    %16 = vector.broadcast %3 : vector<1x96xf32> to vector<16x96xf32>
    %17 = arith.addf %15, %16 : vector<16x96xf32>
    %cst_26 = arith.constant 0.000000e+00 : f32
    %18 = vector.broadcast %cst_26 : f32 to vector<16x32xf32>
    %19 = tpu.iota {dimensions = array<i32: 0>} : vector<96x8xi32>
    %20 = tpu.iota {dimensions = array<i32: 1>} : vector<96x8xi32>
    %c0_i32 = arith.constant 0 : i32
    %21 = vector.broadcast %c0_i32 : i32 to vector<96x8xi32>
    %22 = arith.addi %20, %21 : vector<96x8xi32>
    %23 = arith.cmpi eq, %19, %22 : vector<96x8xi32>
    %24 = arith.extui %23 : vector<96x8xi1> to vector<96x8xi32>
    %25 = arith.sitofp %24 : vector<96x8xi32> to vector<96x8xf32>
    %cst_27 = arith.constant dense<0.000000e+00> : vector<16x8xf32>
    %26 = tpu.matmul %17, %25, %cst_27 {dimension_numbers = #tpu.dot_dimension_numbers<[1], [0], [0], [1], [0, 0, 1, 1], [], []>} : vector<16x96xf32>, vector<96x8xf32>, vector<16x8xf32> -> vector<16x8xf32>
    %27 = tpu.iota {dimensions = array<i32: 0>} : vector<96x8xi32>
    %28 = tpu.iota {dimensions = array<i32: 1>} : vector<96x8xi32>
    %c32_i32 = arith.constant 32 : i32
    %29 = vector.broadcast %c32_i32 : i32 to vector<96x8xi32>
    %30 = arith.addi %28, %29 : vector<96x8xi32>
    %31 = arith.cmpi eq, %27, %30 : vector<96x8xi32>
    %32 = arith.extui %31 : vector<96x8xi1> to vector<96x8xi32>
    %33 = arith.sitofp %32 : vector<96x8xi32> to vector<96x8xf32>
    %cst_28 = arith.constant dense<0.000000e+00> : vector<16x8xf32>
    %34 = tpu.matmul %17, %33, %cst_28 {dimension_numbers = #tpu.dot_dimension_numbers<[1], [0], [0], [1], [0, 0, 1, 1], [], []>} : vector<16x96xf32>, vector<96x8xf32>, vector<16x8xf32> -> vector<16x8xf32>
    %35 = tpu.iota {dimensions = array<i32: 0>} : vector<96x8xi32>
    %36 = tpu.iota {dimensions = array<i32: 1>} : vector<96x8xi32>
    %c64_i32 = arith.constant 64 : i32
    %37 = vector.broadcast %c64_i32 : i32 to vector<96x8xi32>
    %38 = arith.addi %36, %37 : vector<96x8xi32>
    %39 = arith.cmpi eq, %35, %38 : vector<96x8xi32>
    %40 = arith.extui %39 : vector<96x8xi1> to vector<96x8xi32>
    %41 = arith.sitofp %40 : vector<96x8xi32> to vector<96x8xf32>
    %cst_29 = arith.constant dense<0.000000e+00> : vector<16x8xf32>
    %42 = tpu.matmul %17, %41, %cst_29 {dimension_numbers = #tpu.dot_dimension_numbers<[1], [0], [0], [1], [0, 0, 1, 1], [], []>} : vector<16x96xf32>, vector<96x8xf32>, vector<16x8xf32> -> vector<16x8xf32>
    %cst_30 = arith.constant dense<0.000000e+00> : vector<16x16xf32>
    %43 = tpu.matmul %26, %34, %cst_30 {dimension_numbers = #tpu.dot_dimension_numbers<[1], [1], [0], [0], [0, 0, 1, 0], [], []>} : vector<16x8xf32>, vector<16x8xf32>, vector<16x16xf32> -> vector<16x16xf32>
    %cst_31 = arith.constant 0.353553385 : f32
    %44 = vector.broadcast %cst_31 : f32 to vector<16x16xf32>
    %45 = arith.mulf %43, %44 : vector<16x16xf32>
    %cst_32 = arith.constant dense<0xFF800000> : vector<16xf32>
    %46 = vector.multi_reduction <maximumf>, %45, %cst_32 [1] : vector<16x16xf32> to vector<16xf32>
    %47 = vector.shape_cast %46 : vector<16xf32> to vector<16x1xf32>
    %48 = vector.broadcast %47 : vector<16x1xf32> to vector<16x16xf32>
    %49 = arith.subf %45, %48 : vector<16x16xf32>
    %50 = math.exp %49 : vector<16x16xf32>
    %cst_33 = arith.constant dense<0.000000e+00> : vector<16xf32>
    %51 = vector.multi_reduction <add>, %50, %cst_33 [1] : vector<16x16xf32> to vector<16xf32>
    %52 = vector.shape_cast %51 : vector<16xf32> to vector<16x1xf32>
    %53 = tpu.reciprocal %52 {approx = true} : vector<16x1xf32> -> vector<16x1xf32>
    %54 = vector.broadcast %53 : vector<16x1xf32> to vector<16x16xf32>
    %55 = arith.mulf %50, %54 : vector<16x16xf32>
    %cst_34 = arith.constant dense<0.000000e+00> : vector<16x8xf32>
    %56 = tpu.matmul %55, %42, %cst_34 {dimension_numbers = #tpu.dot_dimension_numbers<[1], [0], [0], [1], [0, 0, 1, 1], [], []>} : vector<16x16xf32>, vector<16x8xf32>, vector<16x8xf32> -> vector<16x8xf32>
    %57 = vector.extract_strided_slice %4 {offsets = [0, 0], sizes = [8, 32], strides = [1, 1]} : vector<32x32xf32> to vector<8x32xf32>
    %cst_35 = arith.constant dense<0.000000e+00> : vector<16x32xf32>
    %58 = tpu.matmul %56, %57, %cst_35 {dimension_numbers = #tpu.dot_dimension_numbers<[1], [0], [0], [1], [0, 0, 1, 1], [], []>} : vector<16x8xf32>, vector<8x32xf32>, vector<16x32xf32> -> vector<16x32xf32>
    %59 = arith.addf %18, %58 : vector<16x32xf32>
    %60 = tpu.iota {dimensions = array<i32: 0>} : vector<96x8xi32>
    %61 = tpu.iota {dimensions = array<i32: 1>} : vector<96x8xi32>
    %c8_i32 = arith.constant 8 : i32
    %62 = vector.broadcast %c8_i32 : i32 to vector<96x8xi32>
    %63 = arith.addi %61, %62 : vector<96x8xi32>
    %64 = arith.cmpi eq, %60, %63 : vector<96x8xi32>
    %65 = arith.extui %64 : vector<96x8xi1> to vector<96x8xi32>
    %66 = arith.sitofp %65 : vector<96x8xi32> to vector<96x8xf32>
    %cst_36 = arith.constant dense<0.000000e+00> : vector<16x8xf32>
    %67 = tpu.matmul %17, %66, %cst_36 {dimension_numbers = #tpu.dot_dimension_numbers<[1], [0], [0], [1], [0, 0, 1, 1], [], []>} : vector<16x96xf32>, vector<96x8xf32>, vector<16x8xf32> -> vector<16x8xf32>
    %68 = tpu.iota {dimensions = array<i32: 0>} : vector<96x8xi32>
    %69 = tpu.iota {dimensions = array<i32: 1>} : vector<96x8xi32>
    %c40_i32 = arith.constant 40 : i32
    %70 = vector.broadcast %c40_i32 : i32 to vector<96x8xi32>
    %71 = arith.addi %69, %70 : vector<96x8xi32>
    %72 = arith.cmpi eq, %68, %71 : vector<96x8xi32>
    %73 = arith.extui %72 : vector<96x8xi1> to vector<96x8xi32>
    %74 = arith.sitofp %73 : vector<96x8xi32> to vector<96x8xf32>
    %cst_37 = arith.constant dense<0.000000e+00> : vector<16x8xf32>
    %75 = tpu.matmul %17, %74, %cst_37 {dimension_numbers = #tpu.dot_dimension_numbers<[1], [0], [0], [1], [0, 0, 1, 1], [], []>} : vector<16x96xf32>, vector<96x8xf32>, vector<16x8xf32> -> vector<16x8xf32>
    %76 = tpu.iota {dimensions = array<i32: 0>} : vector<96x8xi32>
    %77 = tpu.iota {dimensions = array<i32: 1>} : vector<96x8xi32>
    %c72_i32 = arith.constant 72 : i32
    %78 = vector.broadcast %c72_i32 : i32 to vector<96x8xi32>
    %79 = arith.addi %77, %78 : vector<96x8xi32>
    %80 = arith.cmpi eq, %76, %79 : vector<96x8xi32>
    %81 = arith.extui %80 : vector<96x8xi1> to vector<96x8xi32>
    %82 = arith.sitofp %81 : vector<96x8xi32> to vector<96x8xf32>
    %cst_38 = arith.constant dense<0.000000e+00> : vector<16x8xf32>
    %83 = tpu.matmul %17, %82, %cst_38 {dimension_numbers = #tpu.dot_dimension_numbers<[1], [0], [0], [1], [0, 0, 1, 1], [], []>} : vector<16x96xf32>, vector<96x8xf32>, vector<16x8xf32> -> vector<16x8xf32>
    %cst_39 = arith.constant dense<0.000000e+00> : vector<16x16xf32>
    %84 = tpu.matmul %67, %75, %cst_39 {dimension_numbers = #tpu.dot_dimension_numbers<[1], [1], [0], [0], [0, 0, 1, 0], [], []>} : vector<16x8xf32>, vector<16x8xf32>, vector<16x16xf32> -> vector<16x16xf32>
    %cst_40 = arith.constant 0.353553385 : f32
    %85 = vector.broadcast %cst_40 : f32 to vector<16x16xf32>
    %86 = arith.mulf %84, %85 : vector<16x16xf32>
    %cst_41 = arith.constant dense<0xFF800000> : vector<16xf32>
    %87 = vector.multi_reduction <maximumf>, %86, %cst_41 [1] : vector<16x16xf32> to vector<16xf32>
    %88 = vector.shape_cast %87 : vector<16xf32> to vector<16x1xf32>
    %89 = vector.broadcast %88 : vector<16x1xf32> to vector<16x16xf32>
    %90 = arith.subf %86, %89 : vector<16x16xf32>
    %91 = math.exp %90 : vector<16x16xf32>
    %cst_42 = arith.constant dense<0.000000e+00> : vector<16xf32>
    %92 = vector.multi_reduction <add>, %91, %cst_42 [1] : vector<16x16xf32> to vector<16xf32>
    %93 = vector.shape_cast %92 : vector<16xf32> to vector<16x1xf32>
    %94 = tpu.reciprocal %93 {approx = true} : vector<16x1xf32> -> vector<16x1xf32>
    %95 = vector.broadcast %94 : vector<16x1xf32> to vector<16x16xf32>
    %96 = arith.mulf %91, %95 : vector<16x16xf32>
    %cst_43 = arith.constant dense<0.000000e+00> : vector<16x8xf32>
    %97 = tpu.matmul %96, %83, %cst_43 {dimension_numbers = #tpu.dot_dimension_numbers<[1], [0], [0], [1], [0, 0, 1, 1], [], []>} : vector<16x16xf32>, vector<16x8xf32>, vector<16x8xf32> -> vector<16x8xf32>
    %98 = vector.extract_strided_slice %4 {offsets = [8, 0], sizes = [8, 32], strides = [1, 1]} : vector<32x32xf32> to vector<8x32xf32>
    %cst_44 = arith.constant dense<0.000000e+00> : vector<16x32xf32>
    %99 = tpu.matmul %97, %98, %cst_44 {dimension_numbers = #tpu.dot_dimension_numbers<[1], [0], [0], [1], [0, 0, 1, 1], [], []>} : vector<16x8xf32>, vector<8x32xf32>, vector<16x32xf32> -> vector<16x32xf32>
    %100 = arith.addf %59, %99 : vector<16x32xf32>
    %101 = tpu.iota {dimensions = array<i32: 0>} : vector<96x8xi32>
    %102 = tpu.iota {dimensions = array<i32: 1>} : vector<96x8xi32>
    %c16_i32 = arith.constant 16 : i32
    %103 = vector.broadcast %c16_i32 : i32 to vector<96x8xi32>
    %104 = arith.addi %102, %103 : vector<96x8xi32>
    %105 = arith.cmpi eq, %101, %104 : vector<96x8xi32>
    %106 = arith.extui %105 : vector<96x8xi1> to vector<96x8xi32>
    %107 = arith.sitofp %106 : vector<96x8xi32> to vector<96x8xf32>
    %cst_45 = arith.constant dense<0.000000e+00> : vector<16x8xf32>
    %108 = tpu.matmul %17, %107, %cst_45 {dimension_numbers = #tpu.dot_dimension_numbers<[1], [0], [0], [1], [0, 0, 1, 1], [], []>} : vector<16x96xf32>, vector<96x8xf32>, vector<16x8xf32> -> vector<16x8xf32>
    %109 = tpu.iota {dimensions = array<i32: 0>} : vector<96x8xi32>
    %110 = tpu.iota {dimensions = array<i32: 1>} : vector<96x8xi32>
    %c48_i32 = arith.constant 48 : i32
    %111 = vector.broadcast %c48_i32 : i32 to vector<96x8xi32>
    %112 = arith.addi %110, %111 : vector<96x8xi32>
    %113 = arith.cmpi eq, %109, %112 : vector<96x8xi32>
    %114 = arith.extui %113 : vector<96x8xi1> to vector<96x8xi32>
    %115 = arith.sitofp %114 : vector<96x8xi32> to vector<96x8xf32>
    %cst_46 = arith.constant dense<0.000000e+00> : vector<16x8xf32>
    %116 = tpu.matmul %17, %115, %cst_46 {dimension_numbers = #tpu.dot_dimension_numbers<[1], [0], [0], [1], [0, 0, 1, 1], [], []>} : vector<16x96xf32>, vector<96x8xf32>, vector<16x8xf32> -> vector<16x8xf32>
    %117 = tpu.iota {dimensions = array<i32: 0>} : vector<96x8xi32>
    %118 = tpu.iota {dimensions = array<i32: 1>} : vector<96x8xi32>
    %c80_i32 = arith.constant 80 : i32
    %119 = vector.broadcast %c80_i32 : i32 to vector<96x8xi32>
    %120 = arith.addi %118, %119 : vector<96x8xi32>
    %121 = arith.cmpi eq, %117, %120 : vector<96x8xi32>
    %122 = arith.extui %121 : vector<96x8xi1> to vector<96x8xi32>
    %123 = arith.sitofp %122 : vector<96x8xi32> to vector<96x8xf32>
    %cst_47 = arith.constant dense<0.000000e+00> : vector<16x8xf32>
    %124 = tpu.matmul %17, %123, %cst_47 {dimension_numbers = #tpu.dot_dimension_numbers<[1], [0], [0], [1], [0, 0, 1, 1], [], []>} : vector<16x96xf32>, vector<96x8xf32>, vector<16x8xf32> -> vector<16x8xf32>
    %cst_48 = arith.constant dense<0.000000e+00> : vector<16x16xf32>
    %125 = tpu.matmul %108, %116, %cst_48 {dimension_numbers = #tpu.dot_dimension_numbers<[1], [1], [0], [0], [0, 0, 1, 0], [], []>} : vector<16x8xf32>, vector<16x8xf32>, vector<16x16xf32> -> vector<16x16xf32>
    %cst_49 = arith.constant 0.353553385 : f32
    %126 = vector.broadcast %cst_49 : f32 to vector<16x16xf32>
    %127 = arith.mulf %125, %126 : vector<16x16xf32>
    %cst_50 = arith.constant dense<0xFF800000> : vector<16xf32>
    %128 = vector.multi_reduction <maximumf>, %127, %cst_50 [1] : vector<16x16xf32> to vector<16xf32>
    %129 = vector.shape_cast %128 : vector<16xf32> to vector<16x1xf32>
    %130 = vector.broadcast %129 : vector<16x1xf32> to vector<16x16xf32>
    %131 = arith.subf %127, %130 : vector<16x16xf32>
    %132 = math.exp %131 : vector<16x16xf32>
    %cst_51 = arith.constant dense<0.000000e+00> : vector<16xf32>
    %133 = vector.multi_reduction <add>, %132, %cst_51 [1] : vector<16x16xf32> to vector<16xf32>
    %134 = vector.shape_cast %133 : vector<16xf32> to vector<16x1xf32>
    %135 = tpu.reciprocal %134 {approx = true} : vector<16x1xf32> -> vector<16x1xf32>
    %136 = vector.broadcast %135 : vector<16x1xf32> to vector<16x16xf32>
    %137 = arith.mulf %132, %136 : vector<16x16xf32>
    %cst_52 = arith.constant dense<0.000000e+00> : vector<16x8xf32>
    %138 = tpu.matmul %137, %124, %cst_52 {dimension_numbers = #tpu.dot_dimension_numbers<[1], [0], [0], [1], [0, 0, 1, 1], [], []>} : vector<16x16xf32>, vector<16x8xf32>, vector<16x8xf32> -> vector<16x8xf32>
    %139 = vector.extract_strided_slice %4 {offsets = [16, 0], sizes = [8, 32], strides = [1, 1]} : vector<32x32xf32> to vector<8x32xf32>
    %cst_53 = arith.constant dense<0.000000e+00> : vector<16x32xf32>
    %140 = tpu.matmul %138, %139, %cst_53 {dimension_numbers = #tpu.dot_dimension_numbers<[1], [0], [0], [1], [0, 0, 1, 1], [], []>} : vector<16x8xf32>, vector<8x32xf32>, vector<16x32xf32> -> vector<16x32xf32>
    %141 = arith.addf %100, %140 : vector<16x32xf32>
    %142 = tpu.iota {dimensions = array<i32: 0>} : vector<96x8xi32>
    %143 = tpu.iota {dimensions = array<i32: 1>} : vector<96x8xi32>
    %c24_i32 = arith.constant 24 : i32
    %144 = vector.broadcast %c24_i32 : i32 to vector<96x8xi32>
    %145 = arith.addi %143, %144 : vector<96x8xi32>
    %146 = arith.cmpi eq, %142, %145 : vector<96x8xi32>
    %147 = arith.extui %146 : vector<96x8xi1> to vector<96x8xi32>
    %148 = arith.sitofp %147 : vector<96x8xi32> to vector<96x8xf32>
    %cst_54 = arith.constant dense<0.000000e+00> : vector<16x8xf32>
    %149 = tpu.matmul %17, %148, %cst_54 {dimension_numbers = #tpu.dot_dimension_numbers<[1], [0], [0], [1], [0, 0, 1, 1], [], []>} : vector<16x96xf32>, vector<96x8xf32>, vector<16x8xf32> -> vector<16x8xf32>
    %150 = tpu.iota {dimensions = array<i32: 0>} : vector<96x8xi32>
    %151 = tpu.iota {dimensions = array<i32: 1>} : vector<96x8xi32>
    %c56_i32 = arith.constant 56 : i32
    %152 = vector.broadcast %c56_i32 : i32 to vector<96x8xi32>
    %153 = arith.addi %151, %152 : vector<96x8xi32>
    %154 = arith.cmpi eq, %150, %153 : vector<96x8xi32>
    %155 = arith.extui %154 : vector<96x8xi1> to vector<96x8xi32>
    %156 = arith.sitofp %155 : vector<96x8xi32> to vector<96x8xf32>
    %cst_55 = arith.constant dense<0.000000e+00> : vector<16x8xf32>
    %157 = tpu.matmul %17, %156, %cst_55 {dimension_numbers = #tpu.dot_dimension_numbers<[1], [0], [0], [1], [0, 0, 1, 1], [], []>} : vector<16x96xf32>, vector<96x8xf32>, vector<16x8xf32> -> vector<16x8xf32>
    %158 = tpu.iota {dimensions = array<i32: 0>} : vector<96x8xi32>
    %159 = tpu.iota {dimensions = array<i32: 1>} : vector<96x8xi32>
    %c88_i32 = arith.constant 88 : i32
    %160 = vector.broadcast %c88_i32 : i32 to vector<96x8xi32>
    %161 = arith.addi %159, %160 : vector<96x8xi32>
    %162 = arith.cmpi eq, %158, %161 : vector<96x8xi32>
    %163 = arith.extui %162 : vector<96x8xi1> to vector<96x8xi32>
    %164 = arith.sitofp %163 : vector<96x8xi32> to vector<96x8xf32>
    %cst_56 = arith.constant dense<0.000000e+00> : vector<16x8xf32>
    %165 = tpu.matmul %17, %164, %cst_56 {dimension_numbers = #tpu.dot_dimension_numbers<[1], [0], [0], [1], [0, 0, 1, 1], [], []>} : vector<16x96xf32>, vector<96x8xf32>, vector<16x8xf32> -> vector<16x8xf32>
    %cst_57 = arith.constant dense<0.000000e+00> : vector<16x16xf32>
    %166 = tpu.matmul %149, %157, %cst_57 {dimension_numbers = #tpu.dot_dimension_numbers<[1], [1], [0], [0], [0, 0, 1, 0], [], []>} : vector<16x8xf32>, vector<16x8xf32>, vector<16x16xf32> -> vector<16x16xf32>
    %cst_58 = arith.constant 0.353553385 : f32
    %167 = vector.broadcast %cst_58 : f32 to vector<16x16xf32>
    %168 = arith.mulf %166, %167 : vector<16x16xf32>
    %cst_59 = arith.constant dense<0xFF800000> : vector<16xf32>
    %169 = vector.multi_reduction <maximumf>, %168, %cst_59 [1] : vector<16x16xf32> to vector<16xf32>
    %170 = vector.shape_cast %169 : vector<16xf32> to vector<16x1xf32>
    %171 = vector.broadcast %170 : vector<16x1xf32> to vector<16x16xf32>
    %172 = arith.subf %168, %171 : vector<16x16xf32>
    %173 = math.exp %172 : vector<16x16xf32>
    %cst_60 = arith.constant dense<0.000000e+00> : vector<16xf32>
    %174 = vector.multi_reduction <add>, %173, %cst_60 [1] : vector<16x16xf32> to vector<16xf32>
    %175 = vector.shape_cast %174 : vector<16xf32> to vector<16x1xf32>
    %176 = tpu.reciprocal %175 {approx = true} : vector<16x1xf32> -> vector<16x1xf32>
    %177 = vector.broadcast %176 : vector<16x1xf32> to vector<16x16xf32>
    %178 = arith.mulf %173, %177 : vector<16x16xf32>
    %cst_61 = arith.constant dense<0.000000e+00> : vector<16x8xf32>
    %179 = tpu.matmul %178, %165, %cst_61 {dimension_numbers = #tpu.dot_dimension_numbers<[1], [0], [0], [1], [0, 0, 1, 1], [], []>} : vector<16x16xf32>, vector<16x8xf32>, vector<16x8xf32> -> vector<16x8xf32>
    %180 = vector.extract_strided_slice %4 {offsets = [24, 0], sizes = [8, 32], strides = [1, 1]} : vector<32x32xf32> to vector<8x32xf32>
    %cst_62 = arith.constant dense<0.000000e+00> : vector<16x32xf32>
    %181 = tpu.matmul %179, %180, %cst_62 {dimension_numbers = #tpu.dot_dimension_numbers<[1], [0], [0], [1], [0, 0, 1, 1], [], []>} : vector<16x8xf32>, vector<8x32xf32>, vector<16x32xf32> -> vector<16x32xf32>
    %182 = arith.addf %141, %181 : vector<16x32xf32>
    %183 = vector.broadcast %5 : vector<1x32xf32> to vector<16x32xf32>
    %184 = arith.addf %182, %183 : vector<16x32xf32>
    %185 = arith.addf %1, %184 : vector<16x32xf32>
    %cst_63 = arith.constant dense<0.000000e+00> : vector<16xf32>
    %186 = vector.multi_reduction <add>, %185, %cst_63 [1] : vector<16x32xf32> to vector<16xf32>
    %187 = vector.shape_cast %186 : vector<16xf32> to vector<16x1xf32>
    %cst_64 = arith.constant 3.200000e+01 : f32
    %188 = vector.broadcast %cst_64 : f32 to vector<16x1xf32>
    %189 = arith.divf %187, %188 : vector<16x1xf32>
    %190 = vector.broadcast %189 : vector<16x1xf32> to vector<16x32xf32>
    %191 = arith.subf %185, %190 : vector<16x32xf32>
    %192 = arith.mulf %191, %191 : vector<16x32xf32>
    %cst_65 = arith.constant dense<0.000000e+00> : vector<16xf32>
    %193 = vector.multi_reduction <add>, %192, %cst_65 [1] : vector<16x32xf32> to vector<16xf32>
    %194 = vector.shape_cast %193 : vector<16xf32> to vector<16x1xf32>
    %cst_66 = arith.constant 3.200000e+01 : f32
    %195 = vector.broadcast %cst_66 : f32 to vector<16x1xf32>
    %196 = arith.divf %194, %195 : vector<16x1xf32>
    %cst_67 = arith.constant 9.99999974E-6 : f32
    %197 = vector.broadcast %cst_67 : f32 to vector<16x1xf32>
    %198 = arith.addf %196, %197 : vector<16x1xf32>
    %199 = math.rsqrt %198 : vector<16x1xf32>
    %200 = vector.broadcast %199 : vector<16x1xf32> to vector<16x32xf32>
    %201 = arith.mulf %191, %200 : vector<16x32xf32>
    %202 = vector.broadcast %6 : vector<1x32xf32> to vector<16x32xf32>
    %203 = arith.mulf %201, %202 : vector<16x32xf32>
    %204 = vector.broadcast %7 : vector<1x32xf32> to vector<16x32xf32>
    %205 = arith.addf %203, %204 : vector<16x32xf32>
    %206 = arith.truncf %205 : vector<16x32xf32> to vector<16x32xbf16>
    %cst_68 = arith.constant dense<0.000000e+00> : vector<16x128xf32>
    %207 = tpu.matmul %206, %8, %cst_68 {dimension_numbers = #tpu.dot_dimension_numbers<[1], [0], [0], [1], [0, 0, 1, 1], [], []>} : vector<16x32xbf16>, vector<32x128xbf16>, vector<16x128xf32> -> vector<16x128xf32>
    %208 = vector.broadcast %9 : vector<1x128xf32> to vector<16x128xf32>
    %209 = arith.addf %207, %208 : vector<16x128xf32>
    %cst_69 = arith.constant 0.000000e+00 : f32
    %210 = vector.broadcast %cst_69 : f32 to vector<16x128xf32>
    %211 = arith.maximumf %209, %210 : vector<16x128xf32>
    %212 = arith.truncf %211 : vector<16x128xf32> to vector<16x128xbf16>
    %cst_70 = arith.constant dense<0.000000e+00> : vector<16x32xf32>
    %213 = tpu.matmul %212, %10, %cst_70 {dimension_numbers = #tpu.dot_dimension_numbers<[1], [0], [0], [1], [0, 0, 1, 1], [], []>} : vector<16x128xbf16>, vector<128x32xbf16>, vector<16x32xf32> -> vector<16x32xf32>
    %214 = vector.broadcast %11 : vector<1x32xf32> to vector<16x32xf32>
    %215 = arith.addf %213, %214 : vector<16x32xf32>
    %216 = arith.addf %205, %215 : vector<16x32xf32>
    %cst_71 = arith.constant dense<0.000000e+00> : vector<16xf32>
    %217 = vector.multi_reduction <add>, %216, %cst_71 [1] : vector<16x32xf32> to vector<16xf32>
    %218 = vector.shape_cast %217 : vector<16xf32> to vector<16x1xf32>
    %cst_72 = arith.constant 3.200000e+01 : f32
    %219 = vector.broadcast %cst_72 : f32 to vector<16x1xf32>
    %220 = arith.divf %218, %219 : vector<16x1xf32>
    %221 = vector.broadcast %220 : vector<16x1xf32> to vector<16x32xf32>
    %222 = arith.subf %216, %221 : vector<16x32xf32>
    %223 = arith.mulf %222, %222 : vector<16x32xf32>
    %cst_73 = arith.constant dense<0.000000e+00> : vector<16xf32>
    %224 = vector.multi_reduction <add>, %223, %cst_73 [1] : vector<16x32xf32> to vector<16xf32>
    %225 = vector.shape_cast %224 : vector<16xf32> to vector<16x1xf32>
    %cst_74 = arith.constant 3.200000e+01 : f32
    %226 = vector.broadcast %cst_74 : f32 to vector<16x1xf32>
    %227 = arith.divf %225, %226 : vector<16x1xf32>
    %cst_75 = arith.constant 9.99999974E-6 : f32
    %228 = vector.broadcast %cst_75 : f32 to vector<16x1xf32>
    %229 = arith.addf %227, %228 : vector<16x1xf32>
    %230 = math.rsqrt %229 : vector<16x1xf32>
    %231 = vector.broadcast %230 : vector<16x1xf32> to vector<16x32xf32>
    %232 = arith.mulf %222, %231 : vector<16x32xf32>
    %233 = vector.broadcast %12 : vector<1x32xf32> to vector<16x32xf32>
    %234 = arith.mulf %232, %233 : vector<16x32xf32>
    %235 = vector.broadcast %13 : vector<1x32xf32> to vector<16x32xf32>
    %236 = arith.addf %234, %235 : vector<16x32xf32>
    %237 = vector.shape_cast %236 : vector<16x32xf32> to vector<1x16x32xf32>
    %c0_76 = arith.constant 0 : index
    %c0_77 = arith.constant 0 : index
    %c0_78 = arith.constant 0 : index
    %238 = vector.load %arg14[%c0_76, %c0_77, %c0_78] : memref<1x16x32xf32, #tpu.memory_space<vmem>>, vector<1x16x32xf32>
    tpu.vector_store %arg14[%c0_76, %c0_77, %c0_78], %237 {strides = array<i32>} : memref<1x16x32xf32, #tpu.memory_space<vmem>>, vector<1x16x32xf32>,
    return
  }
  func.func @transform_0(%arg0: i32) -> (i32, i32, i32) {
    %c0_i32 = arith.constant 0 : i32
    %c0_i32_0 = arith.constant 0 : i32
    %c0_i32_1 = arith.constant 0 : i32
    return %arg0, %c0_i32, %c0_i32_0 : i32, i32, i32
  }
  func.func @transform_1(%arg0: i32) -> (i32, i32) {
    %c0_i32 = arith.constant 0 : i32
    %c0_i32_0 = arith.constant 0 : i32
    %c0_i32_1 = arith.constant 0 : i32
    return %c0_i32, %c0_i32_0 : i32, i32
  }
  func.func @transform_2(%arg0: i32) -> (i32, i32) {
    %c0_i32 = arith.constant 0 : i32
    %c0_i32_0 = arith.constant 0 : i32
    %c0_i32_1 = arith.constant 0 : i32
    return %c0_i32, %c0_i32_0 : i32, i32
  }
  func.func @transform_3(%arg0: i32) -> (i32, i32) {
    %c0_i32 = arith.constant 0 : i32
    %c0_i32_0 = arith.constant 0 : i32
    %c0_i32_1 = arith.constant 0 : i32
    return %c0_i32, %c0_i32_0 : i32, i32
  }
  func.func @transform_4(%arg0: i32) -> (i32, i32) {
    %c0_i32 = arith.constant 0 : i32
    %c0_i32_0 = arith.constant 0 : i32
    %c0_i32_1 = arith.constant 0 : i32
    return %c0_i32, %c0_i32_0 : i32, i32
  }
  func.func @transform_5(%arg0: i32) -> (i32, i32) {
    %c0_i32 = arith.constant 0 : i32
    %c0_i32_0 = arith.constant 0 : i32
    %c0_i32_1 = arith.constant 0 : i32
    return %c0_i32, %c0_i32_0 : i32, i32
  }
  func.func @transform_6(%arg0: i32) -> (i32, i32) {
    %c0_i32 = arith.constant 0 : i32
    %c0_i32_0 = arith.constant 0 : i32
    %c0_i32_1 = arith.constant 0 : i32
    return %c0_i32, %c0_i32_0 : i32, i32
  }
  func.func @transform_7(%arg0: i32) -> (i32, i32) {
    %c0_i32 = arith.constant 0 : i32
    %c0_i32_0 = arith.constant 0 : i32
    %c0_i32_1 = arith.constant 0 : i32
    return %c0_i32, %c0_i32_0 : i32, i32
  }
  func.func @transform_8(%arg0: i32) -> (i32, i32) {
    %c0_i32 = arith.constant 0 : i32
    %c0_i32_0 = arith.constant 0 : i32
    %c0_i32_1 = arith.constant 0 : i32
    return %c0_i32, %c0_i32_0 : i32, i32
  }
  func.func @transform_9(%arg0: i32) -> (i32, i32) {
    %c0_i32 = arith.constant 0 : i32
    %c0_i32_0 = arith.constant 0 : i32
    %c0_i32_1 = arith.constant 0 : i32
    return %c0_i32, %c0_i32_0 : i32, i32
  }
  func.func @transform_10(%arg0: i32) -> (i32, i32) {
    %c0_i32 = arith.constant 0 : i32
    %c0_i32_0 = arith.constant 0 : i32
    %c0_i32_1 = arith.constant 0 : i32
    return %c0_i32, %c0_i32_0 : i32, i32
  }
  func.func @transform_11(%arg0: i32) -> (i32, i32) {
    %c0_i32 = arith.constant 0 : i32
    %c0_i32_0 = arith.constant 0 : i32
    %c0_i32_1 = arith.constant 0 : i32
    return %c0_i32, %c0_i32_0 : i32, i32
  }
  func.func @transform_12(%arg0: i32) -> (i32, i32) {
    %c0_i32 = arith.constant 0 : i32
    %c0_i32_0 = arith.constant 0 : i32
    %c0_i32_1 = arith.constant 0 : i32
    return %c0_i32, %c0_i32_0 : i32, i32
  }
  func.func @transform_13(%arg0: i32) -> (i32, i32, i32) {
    %c0_i32 = arith.constant 0 : i32
    %c0_i32_0 = arith.constant 0 : i32
    %c0_i32_1 = arith.constant 0 : i32
    return %arg0, %c0_i32, %c0_i32_0 : i32, i32, i32
  }
}

</mosaic_0001>

<llo_original>
// kernel: cnn1d_transformer_forward.3
$region0: #{cnn1d_transformer_forward.3}
  #allocation0 [shape = 'u32[]', space=smem, size = 0x4, offset = 0x4, fixed_abs, tag = 'smem constant byte address 0x4 - core index']
  #allocation1 [shape = 'u32[144,128]{1,0:T(1,128)}', space=vmem, size = 0x12000, scoped, tag = 'internal scratch']
  %s0 = inlined_call_operand.vmem [shape: f32[2,16,8], index: 0, kind: input, shape index: {}]
  %s1 = inlined_call_operand.hbm [shape: bf16[3,8,128], index: 1, kind: input, shape index: {}]
  %s2 = inlined_call_operand.hbm [shape: f32[16,128], index: 2, kind: input, shape index: {}]
  %s3 = inlined_call_operand.vmem [shape: bf16[3,128,128], index: 3, kind: input, shape index: {}]
  %s4 = inlined_call_operand.vmem [shape: f32[1,128], index: 4, kind: input, shape index: {}]
  %s5 = inlined_call_operand.hbm [shape: bf16[3,64,64], index: 5, kind: input, shape index: {}]
  %s6 = inlined_call_operand.vmem [shape: f32[1,64], index: 6, kind: input, shape index: {}]
  %s7 = inlined_call_operand.vmem [shape: f32[16,1], index: 7, kind: input, shape index: {}]
  %s8 = inlined_call_operand.vmem [shape: f32[16,1], index: 8, kind: input, shape index: {}]
  %s9 = inlined_call_operand.vmem [shape: f32[2,16,32], index: 9, kind: output, shape index: {}]
  %s10 = sld [smem:[#allocation0]]
  $region81: #{cnn1d_transformer_forward.3} parent=0
    _
  %s12 = ssub.s32 1, %s10
  %s13 = scalar_select 0, %s12, %s10
  $region1: #{cnn1d_transformer_forward.3} parent=0
    #allocation2 [shape = 'u8[6144]{0}', space=vmem, size = 0x1800, scoped, tag = 'input window, operand 1, single buffered']
    #allocation3 [shape = 's32[2]{0}', space=sflag, size = 0x8, scoped, tag = 'scoped memory for cnn1d_transformer_forward.3']
    #allocation4 [shape = 'u8[8192]{0}', space=vmem, size = 0x2000, scoped, tag = 'input window, operand 2, single buffered']
    #allocation5 [shape = 's32[1]{0}', space=sflag, size = 0x4, scoped, tag = 'scoped memory for cnn1d_transformer_forward.3']
    #allocation6 [shape = 'u8[49152]{0}', space=vmem, size = 0xc000, scoped, tag = 'input window, operand 5, single buffered']
    %14 = vsyncpa [#allocation3], 0
    %15 = vsyncpa [#allocation5], 0
    loop: start=0, step=1, limit=4
    $region2: #{cnn1d_transformer_forward.3} parent=1 // loop_pre_header
      _
    $region3: #{cnn1d_transformer_forward.3} parent=1 // loop_header
      %s17 = sphi 0, %s21
      %p18 = scmp.ge.s32.totalorder %s17, 4
      %s27 = sphi 0, %s29
      %s30 = sphi 0, %s27
      %s31 = sphi 0, %s30
      %s47 = sphi 0, %s31
      %s51 = sphi 0, %s51
      %s53 = sphi 0, %s51
      %s54 = sphi 0, %s53
      %s68 = sphi 0, %s54
      %s72 = sphi 0, %s72
      %s74 = sphi 0, %s72
      %s75 = sphi 0, %s74
      %s89 = sphi 0, %s75
      %s93 = sphi 0, %s93
      %s95 = sphi 0, %s93
      %s96 = sphi 0, %s95
      %s110 = sphi 0, %s96
      %s114 = sphi 0, %s114
      %s116 = sphi 0, %s114
      %s117 = sphi 0, %s116
      %s131 = sphi 0, %s117
      %s135 = sphi 0, %s135
      %s137 = sphi 0, %s135
      %s138 = sphi 0, %s137
      %s152 = sphi 0, %s138
      %s156 = sphi 0, %s156
      %s158 = sphi 0, %s156
      %s159 = sphi 0, %s158
      %s173 = sphi 0, %s159
      %s177 = sphi 0, %s177
      %s179 = sphi 0, %s177
      %s180 = sphi 0, %s179
      %s194 = sphi 0, %s180
      %s198 = sphi 0, %s198
      %s200 = sphi 0, %s198
      %s201 = sphi 0, %s200
      %s215 = sphi 0, %s201
      %s221 = sphi 0, %s223
      %s224 = sphi 0, %s221
      %s225 = sphi 0, %s224
      %s241 = sphi 0, %s225
    $region4: #{cnn1d_transformer_forward.3} parent=1 // loop_header_branch
      %20 = sbr.rel (%p18) target = $region8
    $region5: #{cnn1d_transformer_forward.3} parent=1 // loop_body
      %s22 = ssub.s32 %s17, 1
      %s23 = ssub.s32 %s17, 2
      %s24 = sadd.s32 %s17, 1
      %s25 = ssub.s32 %s17, %s24
      %p26 = scmp.eq.s32.totalorder %s25, 0
      %s28 = sadd.s32 %s27, 1
      %s29 = scalar_select %p26, %s27, %s28
      %p32 = pneg %p26
      %p33 = scmp.eq.s32.totalorder %s17, 1
      %p34 = por %p32, %p33
      %p35 = scmp.ne.s32.totalorder %s27, %s30
      %p36 = scmp.eq.s32.totalorder %s17, 0
      %p37 = por %p35, %p36
      %p38 = scmp.ne.s32.totalorder %s27, %s30
      %p39 = scmp.eq.s32.totalorder %s22, 1
      %p40 = por %p38, %p39
      %p41 = scmp.ne.s32.totalorder %s30, %s31
      %p42 = scmp.eq.s32.totalorder %s22, 0
      %p43 = por %p41, %p42
      %p44 = scmp.ne.s32.totalorder %s30, %s31
      %p45 = scmp.eq.s32.totalorder %s23, 1
      %p46 = por %p44, %p45
      %p48 = scmp.ne.s32.totalorder %s31, %s47
      %p49 = scmp.eq.s32.totalorder %s23, 0
      %p50 = por %p48, %p49
      %s52 = sadd.s32 %s51, 1
      %p55 = scmp.eq.s32.totalorder %s17, 1
      %p56 = scmp.ne.s32.totalorder %s51, %s53
      %p57 = scmp.eq.s32.totalorder %s17, 0
      %p58 = por %p56, %p57
      %p59 = scmp.ne.s32.totalorder %s51, %s53
      %p60 = scmp.eq.s32.totalorder %s22, 1
      %p61 = por %p59, %p60
      %p62 = scmp.ne.s32.totalorder %s53, %s54
      %p63 = scmp.eq.s32.totalorder %s22, 0
      %p64 = por %p62, %p63
      %p65 = scmp.ne.s32.totalorder %s53, %s54
      %p66 = scmp.eq.s32.totalorder %s23, 1
      %p67 = por %p65, %p66
      %p69 = scmp.ne.s32.totalorder %s54, %s68
      %p70 = scmp.eq.s32.totalorder %s23, 0
      %p71 = por %p69, %p70
      %s73 = sadd.s32 %s72, 1
      %p76 = scmp.eq.s32.totalorder %s17, 1
      %p77 = scmp.ne.s32.totalorder %s72, %s74
      %p78 = scmp.eq.s32.totalorder %s17, 0
      %p79 = por %p77, %p78
      %p80 = scmp.ne.s32.totalorder %s72, %s74
      %p81 = scmp.eq.s32.totalorder %s22, 1
      %p82 = por %p80, %p81
      %p83 = scmp.ne.s32.totalorder %s74, %s75
      %p84 = scmp.eq.s32.totalorder %s22, 0
      %p85 = por %p83, %p84
      %p86 = scmp.ne.s32.totalorder %s74, %s75
      %p87 = scmp.eq.s32.totalorder %s23, 1
      %p88 = por %p86, %p87
      %p90 = scmp.ne.s32.totalorder %s75, %s89
      %p91 = scmp.eq.s32.totalorder %s23, 0
      %p92 = por %p90, %p91
      %s94 = sadd.s32 %s93, 1
      %p97 = scmp.eq.s32.totalorder %s17, 1
      %p98 = scmp.ne.s32.totalorder %s93, %s95
      %p99 = scmp.eq.s32.totalorder %s17, 0
      %p100 = por %p98, %p99
      %p101 = scmp.ne.s32.totalorder %s93, %s95
      %p102 = scmp.eq.s32.totalorder %s22, 1
      %p103 = por %p101, %p102
      %p104 = scmp.ne.s32.totalorder %s95, %s96
      %p105 = scmp.eq.s32.totalorder %s22, 0
      %p106 = por %p104, %p105
      %p107 = scmp.ne.s32.totalorder %s95, %s96
      %p108 = scmp.eq.s32.totalorder %s23, 1
      %p109 = por %p107, %p108
      %p111 = scmp.ne.s32.totalorder %s96, %s110
      %p112 = scmp.eq.s32.totalorder %s23, 0
      %p113 = por %p111, %p112
      %s115 = sadd.s32 %s114, 1
      %p118 = scmp.eq.s32.totalorder %s17, 1
      %p119 = scmp.ne.s32.totalorder %s114, %s116
      %p120 = scmp.eq.s32.totalorder %s17, 0
      %p121 = por %p119, %p120
      %p122 = scmp.ne.s32.totalorder %s114, %s116
      %p123 = scmp.eq.s32.totalorder %s22, 1
      %p124 = por %p122, %p123
      %p125 = scmp.ne.s32.totalorder %s116, %s117
      %p126 = scmp.eq.s32.totalorder %s22, 0
      %p127 = por %p125, %p126
      %p128 = scmp.ne.s32.totalorder %s116, %s117
      %p129 = scmp.eq.s32.totalorder %s23, 1
      %p130 = por %p128, %p129
      %p132 = scmp.ne.s32.totalorder %s117, %s131
      %p133 = scmp.eq.s32.totalorder %s23, 0
      %p134 = por %p132, %p133
      %s136 = sadd.s32 %s135, 1
      %p139 = scmp.eq.s32.totalorder %s17, 1
      %p140 = scmp.ne.s32.totalorder %s135, %s137
      %p141 = scmp.eq.s32.totalorder %s17, 0
      %p142 = por %p140, %p141
      %p143 = scmp.ne.s32.totalorder %s135, %s137
      %p144 = scmp.eq.s32.totalorder %s22, 1
      %p145 = por %p143, %p144
      %p146 = scmp.ne.s32.totalorder %s137, %s138
      %p147 = scmp.eq.s32.totalorder %s22, 0
      %p148 = por %p146, %p147
      %p149 = scmp.ne.s32.totalorder %s137, %s138
      %p150 = scmp.eq.s32.totalorder %s23, 1
      %p151 = por %p149, %p150
      %p153 = scmp.ne.s32.totalorder %s138, %s152
      %p154 = scmp.eq.s32.totalorder %s23, 0
      %p155 = por %p153, %p154
      %s157 = sadd.s32 %s156, 1
      %p160 = scmp.eq.s32.totalorder %s17, 1
      %p161 = scmp.ne.s32.totalorder %s156, %s158
      %p162 = scmp.eq.s32.totalorder %s17, 0
      %p163 = por %p161, %p162
      %p164 = scmp.ne.s32.totalorder %s156, %s158
      %p165 = scmp.eq.s32.totalorder %s22, 1
      %p166 = por %p164, %p165
      %p167 = scmp.ne.s32.totalorder %s158, %s159
      %p168 = scmp.eq.s32.totalorder %s22, 0
      %p169 = por %p167, %p168
      %p170 = scmp.ne.s32.totalorder %s158, %s159
      %p171 = scmp.eq.s32.totalorder %s23, 1
      %p172 = por %p170, %p171
      %p174 = scmp.ne.s32.totalorder %s159, %s173
      %p175 = scmp.eq.s32.totalorder %s23, 0
      %p176 = por %p174, %p175
      %s178 = sadd.s32 %s177, 1
      %p181 = scmp.eq.s32.totalorder %s17, 1
      %p182 = scmp.ne.s32.totalorder %s177, %s179
      %p183 = scmp.eq.s32.totalorder %s17, 0
      %p184 = por %p182, %p183
      %p185 = scmp.ne.s32.totalorder %s177, %s179
      %p186 = scmp.eq.s32.totalorder %s22, 1
      %p187 = por %p185, %p186
      %p188 = scmp.ne.s32.totalorder %s179, %s180
      %p189 = scmp.eq.s32.totalorder %s22, 0
      %p190 = por %p188, %p189
      %p191 = scmp.ne.s32.totalorder %s179, %s180
      %p192 = scmp.eq.s32.totalorder %s23, 1
      %p193 = por %p191, %p192
      %p195 = scmp.ne.s32.totalorder %s180, %s194
      %p196 = scmp.eq.s32.totalorder %s23, 0
      %p197 = por %p195, %p196
      %s199 = sadd.s32 %s198, 1
      %p202 = scmp.eq.s32.totalorder %s17, 1
      %p203 = scmp.ne.s32.totalorder %s198, %s200
      %p204 = scmp.eq.s32.totalorder %s17, 0
      %p205 = por %p203, %p204
      %p206 = scmp.ne.s32.totalorder %s198, %s200
      %p207 = scmp.eq.s32.totalorder %s22, 1
      %p208 = por %p206, %p207
      %p209 = scmp.ne.s32.totalorder %s200, %s201
      %p210 = scmp.eq.s32.totalorder %s22, 0
      %p211 = por %p209, %p210
      %p212 = scmp.ne.s32.totalorder %s200, %s201
      %p213 = scmp.eq.s32.totalorder %s23, 1
      %p214 = por %p212, %p213
      %p216 = scmp.ne.s32.totalorder %s201, %s215
      %p217 = scmp.eq.s32.totalorder %s23, 0
      %p218 = por %p216, %p217
      %s219 = ssub.s32 %s17, %s24
      %p220 = scmp.eq.s32.totalorder %s219, 0
      %s222 = sadd.s32 %s221, 1
      %s223 = scalar_select %p220, %s221, %s222
      %p226 = pneg %p220
      %p227 = scmp.eq.s32.totalorder %s17, 1
      %p228 = por %p226, %p227
      %p229 = scmp.ne.s32.totalorder %s221, %s224
      %p230 = scmp.eq.s32.totalorder %s17, 0
      %p231 = por %p229, %p230
      %p232 = scmp.ne.s32.totalorder %s221, %s224
      %p233 = scmp.eq.s32.totalorder %s22, 1
      %p234 = por %p232, %p233
      %p235 = scmp.ne.s32.totalorder %s224, %s225
      %p236 = scmp.eq.s32.totalorder %s22, 0
      %p237 = por %p235, %p236
      %p238 = scmp.ne.s32.totalorder %s224, %s225
      %p239 = scmp.eq.s32.totalorder %s23, 1
      %p240 = por %p238, %p239
      %p242 = scmp.ne.s32.totalorder %s225, %s241
      %p243 = scmp.eq.s32.totalorder %s23, 0
      %p244 = por %p242, %p243
      %p245 = scmp.le.s32.totalorder 1, %s17
      %p246 = scmp.lt.s32.totalorder %s17, 3
      %p247 = pnand %p245, %p246
      %p248 = pneg %p247
      // Predicated region
      $region9: #{cnn1d_transformer_forward.3} parent=5 // pred_check
        _
      $region10: #{cnn1d_transformer_forward.3} parent=5 // pred_check_branch
        %250 = sbr.rel (%p247) target = $region12
      $region11: #{cnn1d_transformer_forward.3} parent=5 // pred_region
        %s251 = ssub.s32 %s17, 1
        // Predicated region
        $region13: #{cnn1d_transformer_forward.3} parent=11 // pred_check
          %p252 = pneg %p64
        $region14: #{cnn1d_transformer_forward.3} parent=11 // pred_check_branch
          %254 = sbr.rel (%p252) target = $region16
        $region15: #{cnn1d_transformer_forward.3} parent=11 // pred_region
          %s256 = ssub.s32 192, 192
          %257 = vsyncadd [#allocation3], %s256
          %s258 = sshll.u32 [#allocation2], 4
          %s259 = int_to_ptr.vmem [resolvable:$true] %s258
          %264 = dma.hbm_to_vmem [thread:$0]  %s1, 192, %s259, [#allocation3], 64, 64, 4
        $region16: #{cnn1d_transformer_forward.3} parent=11 // pred_fallthru
          _
        // Predicated region
        $region17: #{cnn1d_transformer_forward.3} parent=11 // pred_check
          %p265 = pneg %p85
        $region18: #{cnn1d_transformer_forward.3} parent=11 // pred_check_branch
          %267 = sbr.rel (%p265) target = $region20
        $region19: #{cnn1d_transformer_forward.3} parent=11 // pred_region
          %s269 = ssub.s32 256, 256
          %270 = vsyncadd [#allocation5], %s269
          %s271 = sshll.u32 [#allocation4], 4
          %s272 = int_to_ptr.vmem [resolvable:$true] %s271
          %277 = dma.hbm_to_vmem [thread:$0]  %s2, 256, %s272, [#allocation5], 128, 128, 8
        $region20: #{cnn1d_transformer_forward.3} parent=11 // pred_fallthru
          _
        // Predicated region
        $region21: #{cnn1d_transformer_forward.3} parent=11 // pred_check
          %p278 = pneg %p106
        $region22: #{cnn1d_transformer_forward.3} parent=11 // pred_check_branch
          %280 = sbr.rel (%p278) target = $region24
        $region23: #{cnn1d_transformer_forward.3} parent=11 // pred_region
          _
        $region24: #{cnn1d_transformer_forward.3} parent=11 // pred_fallthru
          _
        // Predicated region
        $region25: #{cnn1d_transformer_forward.3} parent=11 // pred_check
          %p281 = pneg %p127
        $region26: #{cnn1d_transformer_forward.3} parent=11 // pred_check_branch
          %283 = sbr.rel (%p281) target = $region28
        $region27: #{cnn1d_transformer_forward.3} parent=11 // pred_region
          _
        $region28: #{cnn1d_transformer_forward.3} parent=11 // pred_fallthru
          _
        // Predicated region
        $region29: #{cnn1d_transformer_forward.3} parent=11 // pred_check
          %p284 = pneg %p148
        $region30: #{cnn1d_transformer_forward.3} parent=11 // pred_check_branch
          %286 = sbr.rel (%p284) target = $region32
        $region31: #{cnn1d_transformer_forward.3} parent=11 // pred_region
          %s288 = ssub.s32 1536, 1536
          %289 = vsyncadd [#allocation5], %s288
          %s290 = sshll.u32 [#allocation6], 4
          %s291 = int_to_ptr.vmem [resolvable:$true] %s290
          %296 = dma.hbm_to_vmem [thread:$0]  %s5, 1536, %s291, [#allocation5], 64, 64, 4
        $region32: #{cnn1d_transformer_forward.3} parent=11 // pred_fallthru
          _
        // Predicated region
        $region33: #{cnn1d_transformer_forward.3} parent=11 // pred_check
          %p297 = pneg %p169
        $region34: #{cnn1d_transformer_forward.3} parent=11 // pred_check_branch
          %299 = sbr.rel (%p297) target = $region36
        $region35: #{cnn1d_transformer_forward.3} parent=11 // pred_region
          _
        $region36: #{cnn1d_transformer_forward.3} parent=11 // pred_fallthru
          _
        // Predicated region
        $region37: #{cnn1d_transformer_forward.3} parent=11 // pred_check
          %p300 = pneg %p190
        $region38: #{cnn1d_transformer_forward.3} parent=11 // pred_check_branch
          %302 = sbr.rel (%p300) target = $region40
        $region39: #{cnn1d_transformer_forward.3} parent=11 // pred_region
          _
        $region40: #{cnn1d_transformer_forward.3} parent=11 // pred_fallthru
          _
        // Predicated region
        $region41: #{cnn1d_transformer_forward.3} parent=11 // pred_check
          %p303 = pneg %p211
        $region42: #{cnn1d_transformer_forward.3} parent=11 // pred_check_branch
          %305 = sbr.rel (%p303) target = $region44
        $region43: #{cnn1d_transformer_forward.3} parent=11 // pred_region
          _
        $region44: #{cnn1d_transformer_forward.3} parent=11 // pred_fallthru
          _
      $region12: #{cnn1d_transformer_forward.3} parent=5 // pred_fallthru
        _
      %p306 = scmp.lt.s32.totalorder %s17, 2
      // Predicated region
      $region45: #{cnn1d_transformer_forward.3} parent=5 // pred_check
        %p307 = pneg %p306
      $region46: #{cnn1d_transformer_forward.3} parent=5 // pred_check_branch
        %309 = sbr.rel (%p307) target = $region48
      $region47: #{cnn1d_transformer_forward.3} parent=5 // pred_region
        // Predicated region
        $region49: #{cnn1d_transformer_forward.3} parent=47 // pred_check
          %p310 = pneg %p37
        $region50: #{cnn1d_transformer_forward.3} parent=47 // pred_check_branch
          %312 = sbr.rel (%p310) target = $region52
        $region51: #{cnn1d_transformer_forward.3} parent=47 // pred_region
          %p313 = scmp.lt.s32.totalorder %s17, 1
          %s314 = scalar_select %p313, %s17, 1
          %s315 = smul.addr %s314, 2
          %s316 = smul.addr %s315, 8
          %s317 = scalar_lea.vmem %s0, %s316
        $region52: #{cnn1d_transformer_forward.3} parent=47 // pred_fallthru
          _
      $region48: #{cnn1d_transformer_forward.3} parent=5 // pred_fallthru
        _
      %p318 = scmp.le.s32.totalorder 1, %s17
      %p319 = scmp.lt.s32.totalorder %s17, 3
      %p320 = pnand %p318, %p319
      %p321 = pneg %p320
      // Predicated region
      $region53: #{cnn1d_transformer_forward.3} parent=5 // pred_check
        _
      $region54: #{cnn1d_transformer_forward.3} parent=5 // pred_check_branch
        %323 = sbr.rel (%p320) target = $region56
      $region55: #{cnn1d_transformer_forward.3} parent=5 // pred_region
        %s324 = ssub.s32 %s17, 1
        // Predicated region
        $region57: #{cnn1d_transformer_forward.3} parent=55 // pred_check
          %p325 = pneg %p64
        $region58: #{cnn1d_transformer_forward.3} parent=55 // pred_check_branch
          %327 = sbr.rel (%p325) target = $region60
        $region59: #{cnn1d_transformer_forward.3} parent=55 // pred_region
          %328 = dma.done [#allocation3], 192
        $region60: #{cnn1d_transformer_forward.3} parent=55 // pred_fallthru
          _
        // Predicated region
        $region61: #{cnn1d_transformer_forward.3} parent=55 // pred_check
          %p329 = pneg %p85
        $region62: #{cnn1d_transformer_forward.3} parent=55 // pred_check_branch
          %331 = sbr.rel (%p329) target = $region64
        $region63: #{cnn1d_transformer_forward.3} parent=55 // pred_region
          %332 = dma.done [#allocation5], 256
        $region64: #{cnn1d_transformer_forward.3} parent=55 // pred_fallthru
          _
        // Predicated region
        $region65: #{cnn1d_transformer_forward.3} parent=55 // pred_check
          %p333 = pneg %p148
        $region66: #{cnn1d_transformer_forward.3} parent=55 // pred_check_branch
          %335 = sbr.rel (%p333) target = $region68
        $region67: #{cnn1d_transformer_forward.3} parent=55 // pred_region
          %336 = dma.done [#allocation5], 1536
        $region68: #{cnn1d_transformer_forward.3} parent=55 // pred_fallthru
          _
        %p337 = scmp.lt.s32.totalorder %s22, 1
        %s338 = scalar_select %p337, %s22, 1
        %s339 = smul.addr %s338, 2
        %s340 = smul.addr %s339, 8
        %s341 = scalar_lea.vmem %s0, %s340
        %p342 = pneg %p43
        %p343 = pneg %p40
        %p344 = pneg %p64
        %p345 = pneg %p61
        %p346 = pneg %p85
        %p347 = pneg %p82
        %p348 = pneg %p106
        %p349 = pneg %p103
        %p350 = pneg %p127
        %p351 = pneg %p124
        %p352 = pneg %p148
        %p353 = pneg %p145
        %p354 = pneg %p169
        %p355 = pneg %p166
        %p356 = pneg %p190
        %p357 = pneg %p187
        %p358 = pneg %p211
        %p359 = pneg %p208
        %p360 = pneg %p237
        %p361 = pneg %p234
        %p362 = scmp.lt.s32.totalorder %s22, 1
        %s363 = scalar_select %p362, %s22, 1
        %s364 = smul.addr %s363, 2
        %s365 = smul.addr %s364, 8
        %s366 = scalar_lea.vmem %s9, %s365
        %p367 = scmp.lt.s32.totalorder %s22, 1
        %s368 = scalar_select %p367, %s22, 1
        %s369 = smul.addr %s368, 2
        %s370 = smul.addr %s369, 8
        %s371 = scalar_lea.vmem %s0, %s370
        %p372 = scmp.lt.s32.totalorder %s22, 1
        %s373 = scalar_select %p372, %s22, 1
        %s374 = smul.addr %s373, 2
        %s375 = smul.addr %s374, 8
        %s376 = scalar_lea.vmem %s9, %s375
        %v378 = vld [vmem:[%s371] sm:$0xff]
        %v379 = vld [vmem:[%s371 + $0x8] sm:$0xff]
        %v380 = vld [vmem:[%s7] sm:$0xff]
        %v381 = vld [vmem:[%s7 + $0x8] sm:$0xff]
        %v382 = vld [vmem:[%s8] sm:$0xff]
        %v383 = vld [vmem:[%s8 + $0x8] sm:$0xff]
        %v384 = vld [vmem:[#allocation2] sm:$0xf]
        %v385 = vld [vmem:[#allocation2 + $0x4] sm:$0xf]
        %v386 = vld [vmem:[#allocation2 + $0x8] sm:$0xf]
        %v387 = vrot.slane %v378, 7
        %v388 = vrot.slane %v379, 7
        %v389 = vlaneseq
        %v390 = vshrl.u32 %v389, 7
        %vm391 = vcmp.lt.s32.totalorder %v390, 1
        %v392 = vsel %vm391, %v387, %v388
        %v393 = vsel %vm391, %v388, %v387
        %v394 = vrot.slane %v378, 1
        %v395 = vrot.slane %v379, 1
        %vm396 = vcmp.lt.s32.totalorder %v390, 7
        %v397 = vsel %vm396, %v394, %v395
        %v398 = vsel %vm396, %v395, %v394
        %v399 = vpack.c.bf16 %v392, %v393
        %v400 = vpack.c.bf16 %v379, %v378
        %vm401 = vcmask 64512
        %v403 = vsel %vm401, %v400, 0
        %vm405 = vcmask 1043456
        %v407 = vsel %vm405, %v385, 0
        %409 = vmatprep.subr.bf16.mxu0 0
        %410 = vmatpush1.bf16.msra.mxu0 %v407
        %411 = vmatprep.subr.bf16.mxu0 0
        %412 = vmatpush1.bf16.msra.mxu0 0
        %413 = vmatprep.subr.bf16.mxu0 0
        %414 = vmatpush1.bf16.msra.mxu0 0
        %415 = vmatprep.subr.bf16.mxu0 0
        %416 = vmatpush1.bf16.msra.mxu0 0
        %417 = vmatprep.subr.bf16.mxu0 0
        %418 = vmatpush1.bf16.msra.mxu0 0
        %419 = vmatprep.subr.bf16.mxu0 0
        %420 = vmatpush1.bf16.msra.mxu0 0
        %421 = vmatprep.subr.bf16.mxu0 0
        %422 = vmatpush1.bf16.msra.mxu0 0
        %423 = vmatprep.subr.bf16.mxu0 0
        %424 = vmatpush1.bf16.msra.mxu0 0
        %425 = vmatprep.subr.bf16.mxu0 0
        %426 = vmatpush1.bf16.msra.mxu0 0
        %427 = vmatprep.subr.bf16.mxu0 0
        %428 = vmatpush1.bf16.msra.mxu0 0
        %429 = vmatprep.subr.bf16.mxu0 0
        %430 = vmatpush1.bf16.msra.mxu0 0
        %431 = vmatprep.subr.bf16.mxu0 0
        %432 = vmatpush1.bf16.msra.mxu0 0
        %433 = vmatprep.subr.bf16.mxu0 0
        %434 = vmatpush1.bf16.msra.mxu0 0
        %435 = vmatprep.subr.bf16.mxu0 0
        %436 = vmatpush1.bf16.msra.mxu0 0
        %437 = vmatprep.subr.bf16.mxu0 0
        %438 = vmatpush1.bf16.msra.mxu0 0
        %439 = vmatprep.subr.bf16.mxu0 0
        %440 = vmatpush1.bf16.msra.mxu0 0
        %441 = vmatprep.mubr.bf16.mxu0 0
        %442 = vmatmul.mubr.bf16.gmra.mrb[0].mxu0 %v403
        %v443 = vpop.f32.mrb[0].mxu0
        %v444 = vadd.f32 0.0, %v443
        %v445 = vpop.f32.mrb[0].mxu0
        %v446 = vpop.f32.mrb[0].mxu0
        %v447 = vadd.f32 0.0, %v446
        %v448 = vpop.f32.mrb[0].mxu0
        %449 = vdwg.mxu0
        %v451 = vsel %vm401, %v399, 0
        %v454 = vsel %vm405, %v384, 0
        %456 = vmatprep.subr.bf16.mxu0 0
        %457 = vmatpush1.bf16.msra.mxu0 %v454
        %458 = vmatprep.subr.bf16.mxu0 0
        %459 = vmatpush1.bf16.msra.mxu0 0
        %460 = vmatprep.subr.bf16.mxu0 0
        %461 = vmatpush1.bf16.msra.mxu0 0
        %462 = vmatprep.subr.bf16.mxu0 0
        %463 = vmatpush1.bf16.msra.mxu0 0
        %464 = vmatprep.subr.bf16.mxu0 0
        %465 = vmatpush1.bf16.msra.mxu0 0
        %466 = vmatprep.subr.bf16.mxu0 0
        %467 = vmatpush1.bf16.msra.mxu0 0
        %468 = vmatprep.subr.bf16.mxu0 0
        %469 = vmatpush1.bf16.msra.mxu0 0
        %470 = vmatprep.subr.bf16.mxu0 0
        %471 = vmatpush1.bf16.msra.mxu0 0
        %472 = vmatprep.subr.bf16.mxu0 0
        %473 = vmatpush1.bf16.msra.mxu0 0
        %474 = vmatprep.subr.bf16.mxu0 0
        %475 = vmatpush1.bf16.msra.mxu0 0
        %476 = vmatprep.subr.bf16.mxu0 0
        %477 = vmatpush1.bf16.msra.mxu0 0
        %478 = vmatprep.subr.bf16.mxu0 0
        %479 = vmatpush1.bf16.msra.mxu0 0
        %480 = vmatprep.subr.bf16.mxu0 0
        %481 = vmatpush1.bf16.msra.mxu0 0
        %482 = vmatprep.subr.bf16.mxu0 0
        %483 = vmatpush1.bf16.msra.mxu0 0
        %484 = vmatprep.subr.bf16.mxu0 0
        %485 = vmatpush1.bf16.msra.mxu0 0
        %486 = vmatprep.subr.bf16.mxu0 0
        %487 = vmatpush1.bf16.msra.mxu0 0
        %488 = vmatprep.mubr.bf16.mxu0 0
        %489 = vmatmul.mubr.bf16.gmra.mrb[0].mxu0 %v451
        %v490 = vpop.f32.mrb[0].mxu0
        %v491 = vadd.f32 %v444, %v490
        %v492 = vpop.f32.mrb[0].mxu0
        %v493 = vpop.f32.mrb[0].mxu0
        %v494 = vadd.f32 %v447, %v493
        %v495 = vpop.f32.mrb[0].mxu0
        %496 = vdwg.mxu0
        %v497 = vpack.c.bf16 %v398, %v397
        %v499 = vsel %vm401, %v497, 0
        %v502 = vsel %vm405, %v386, 0
        %504 = vmatprep.subr.bf16.mxu0 0
        %505 = vmatpush1.bf16.msra.mxu0 %v502
        %506 = vmatprep.subr.bf16.mxu0 0
        %507 = vmatpush1.bf16.msra.mxu0 0
        %508 = vmatprep.subr.bf16.mxu0 0
        %509 = vmatpush1.bf16.msra.mxu0 0
        %510 = vmatprep.subr.bf16.mxu0 0
        %511 = vmatpush1.bf16.msra.mxu0 0
        %512 = vmatprep.subr.bf16.mxu0 0
        %513 = vmatpush1.bf16.msra.mxu0 0
        %514 = vmatprep.subr.bf16.mxu0 0
        %515 = vmatpush1.bf16.msra.mxu0 0
        %516 = vmatprep.subr.bf16.mxu0 0
        %517 = vmatpush1.bf16.msra.mxu0 0
        %518 = vmatprep.subr.bf16.mxu0 0
        %519 = vmatpush1.bf16.msra.mxu0 0
        %520 = vmatprep.subr.bf16.mxu0 0
        %521 = vmatpush1.bf16.msra.mxu0 0
        %522 = vmatprep.subr.bf16.mxu0 0
        %523 = vmatpush1.bf16.msra.mxu0 0
        %524 = vmatprep.subr.bf16.mxu0 0
        %525 = vmatpush1.bf16.msra.mxu0 0
        %526 = vmatprep.subr.bf16.mxu0 0
        %527 = vmatpush1.bf16.msra.mxu0 0
        %528 = vmatprep.subr.bf16.mxu0 0
        %529 = vmatpush1.bf16.msra.mxu0 0
        %530 = vmatprep.subr.bf16.mxu0 0
        %531 = vmatpush1.bf16.msra.mxu0 0
        %532 = vmatprep.subr.bf16.mxu0 0
        %533 = vmatpush1.bf16.msra.mxu0 0
        %534 = vmatprep.subr.bf16.mxu0 0
        %535 = vmatpush1.bf16.msra.mxu0 0
        %536 = vmatprep.mubr.bf16.mxu0 0
        %537 = vmatmul.mubr.bf16.gmra.mrb[0].mxu0 %v499
        %v538 = vpop.f32.mrb[0].mxu0
        %v539 = vadd.f32 0.0, %v538
        %v540 = vpop.f32.mrb[0].mxu0
        %v541 = vpop.f32.mrb[0].mxu0
        %v542 = vadd.f32 0.0, %v541
        %v543 = vpop.f32.mrb[0].mxu0
        %544 = vdwg.mxu0
        %v545 = vadd.f32 %v491, %v539
        %v546 = vadd.f32 %v494, %v542
        %v547 = vld [vmem:[#allocation4] sm:$0xff]
        %v548 = vld [vmem:[#allocation4 + $0x8] sm:$0xff]
        %v549 = vadd.f32 %v545, %v547
        %v550 = vadd.f32 %v546, %v548
        %v551 = vld [vmem:[%s3] sm:$0xf]
        %v552 = vld [vmem:[%s3 + $0x4] sm:$0xf]
        %v553 = vld [vmem:[%s3 + $0x8] sm:$0xf]
        %v554 = vld [vmem:[%s3 + $0xc] sm:$0xf]
        %v555 = vld [vmem:[%s3 + $0x10] sm:$0xf]
        %v556 = vld [vmem:[%s3 + $0x14] sm:$0xf]
        %v557 = vld [vmem:[%s3 + $0x18] sm:$0xf]
        %v558 = vld [vmem:[%s3 + $0x1c] sm:$0xf]
        %v559 = vld [vmem:[%s3 + $0x20] sm:$0xf]
        %v560 = vld [vmem:[%s3 + $0x24] sm:$0xf]
        %v561 = vld [vmem:[%s3 + $0x28] sm:$0xf]
        %v562 = vld [vmem:[%s3 + $0x2c] sm:$0xf]
        %v563 = vld [vmem:[%s3 + $0x30] sm:$0xf]
        %v564 = vld [vmem:[%s3 + $0x34] sm:$0xf]
        %v565 = vld [vmem:[%s3 + $0x38] sm:$0xf]
        %v566 = vld [vmem:[%s3 + $0x3c] sm:$0xf]
        %v567 = vld [vmem:[%s3 + $0x40] sm:$0xf]
        %v568 = vld [vmem:[%s3 + $0x44] sm:$0xf]
        %v569 = vld [vmem:[%s3 + $0x48] sm:$0xf]
        %v570 = vld [vmem:[%s3 + $0x4c] sm:$0xf]
        %v571 = vld [vmem:[%s3 + $0x50] sm:$0xf]
        %v572 = vld [vmem:[%s3 + $0x54] sm:$0xf]
        %v573 = vld [vmem:[%s3 + $0x58] sm:$0xf]
        %v574 = vld [vmem:[%s3 + $0x5c] sm:$0xf]
        %v575 = vld [vmem:[%s3 + $0x60] sm:$0xf]
        %v576 = vld [vmem:[%s3 + $0x64] sm:$0xf]
        %v577 = vld [vmem:[%s3 + $0x68] sm:$0xf]
        %v578 = vld [vmem:[%s3 + $0x6c] sm:$0xf]
        %v579 = vld [vmem:[%s3 + $0x70] sm:$0xf]
        %v580 = vld [vmem:[%s3 + $0x74] sm:$0xf]
        %v581 = vld [vmem:[%s3 + $0x78] sm:$0xf]
        %v582 = vld [vmem:[%s3 + $0x7c] sm:$0xf]
        %v583 = vld [vmem:[%s3 + $0x80] sm:$0xf]
        %v584 = vld [vmem:[%s3 + $0x84] sm:$0xf]
        %v585 = vld [vmem:[%s3 + $0x88] sm:$0xf]
        %v586 = vld [vmem:[%s3 + $0x8c] sm:$0xf]
        %v587 = vld [vmem:[%s3 + $0x90] sm:$0xf]
        %v588 = vld [vmem:[%s3 + $0x94] sm:$0xf]
        %v589 = vld [vmem:[%s3 + $0x98] sm:$0xf]
        %v590 = vld [vmem:[%s3 + $0x9c] sm:$0xf]
        %v591 = vld [vmem:[%s3 + $0xa0] sm:$0xf]
        %v592 = vld [vmem:[%s3 + $0xa4] sm:$0xf]
        %v593 = vld [vmem:[%s3 + $0xa8] sm:$0xf]
        %v594 = vld [vmem:[%s3 + $0xac] sm:$0xf]
        %v595 = vld [vmem:[%s3 + $0xb0] sm:$0xf]
        %v596 = vld [vmem:[%s3 + $0xb4] sm:$0xf]
        %v597 = vld [vmem:[%s3 + $0xb8] sm:$0xf]
        %v598 = vld [vmem:[%s3 + $0xbc] sm:$0xf]
        %v599 = vrot.slane %v549, 7
        %v600 = vrot.slane %v550, 7
        %v601 = vsel %vm391, %v599, %v600
        %v602 = vsel %vm391, %v600, %v599
        %v603 = vrot.slane %v549, 1
        %v604 = vrot.slane %v550, 1
        %v605 = vsel %vm396, %v603, %v604
        %v606 = vsel %vm396, %v604, %v603
        %v607 = vadd.s32 %v390, 8
        %vm608 = vcmp.eq.s32.totalorder %v390, 0
        %vm609 = vcmp.eq.s32.totalorder %v607, 0
        %v610 = vsel %vm608, 0.0, %v602
        %v611 = vsel %vm609, 0.0, %v601
        %vm612 = vcmp.eq.s32.totalorder %v390, 15
        %vm613 = vcmp.eq.s32.totalorder %v607, 15
        %v614 = vsel %vm612, 0.0, %v605
        %v615 = vsel %vm613, 0.0, %v606
        %v616 = vpack.c.bf16 %v611, %v610
        %v617 = vpack.c.bf16 %v550, %v549
        %v634 = vunpack.c.l.b16 %v567
        %v635 = vunpack.c.l.b16 %v568
        %v636 = vunpack.c.l.b16 %v569
        %v637 = vunpack.c.l.b16 %v570
        %v638 = vunpack.c.l.b16 %v571
        %v639 = vunpack.c.l.b16 %v572
        %v640 = vunpack.c.l.b16 %v573
        %v641 = vunpack.c.l.b16 %v574
        %v642 = vunpack.c.l.b16 %v575
        %v643 = vunpack.c.l.b16 %v576
        %v644 = vunpack.c.l.b16 %v577
        %v645 = vunpack.c.l.b16 %v578
        %v646 = vunpack.c.l.b16 %v579
        %v647 = vunpack.c.l.b16 %v580
        %v648 = vunpack.c.l.b16 %v581
        %v649 = vunpack.c.l.b16 %v582
        %v650 = vpack.c.b16 %v635, %v634
        %v651 = vpack.c.b16 %v637, %v636
        %v652 = vpack.c.b16 %v639, %v638
        %v653 = vpack.c.b16 %v641, %v640
        %v654 = vpack.c.b16 %v643, %v642
        %v655 = vpack.c.b16 %v645, %v644
        %v656 = vpack.c.b16 %v647, %v646
        %v657 = vpack.c.b16 %v649, %v648
        %666 = vmatprep.subr.bf16.mxu0 0
        %667 = vmatpush1.bf16.msra.mxu0 %v650
        %668 = vmatprep.subr.bf16.mxu0 0
        %669 = vmatpush1.bf16.msra.mxu0 %v651
        %670 = vmatprep.subr.bf16.mxu0 0
        %671 = vmatpush1.bf16.msra.mxu0 %v652
        %672 = vmatprep.subr.bf16.mxu0 0
        %673 = vmatpush1.bf16.msra.mxu0 %v653
        %674 = vmatprep.subr.bf16.mxu0 0
        %675 = vmatpush1.bf16.msra.mxu0 %v654
        %676 = vmatprep.subr.bf16.mxu0 0
        %677 = vmatpush1.bf16.msra.mxu0 %v655
        %678 = vmatprep.subr.bf16.mxu0 0
        %679 = vmatpush1.bf16.msra.mxu0 %v656
        %680 = vmatprep.subr.bf16.mxu0 0
        %681 = vmatpush1.bf16.msra.mxu0 %v657
        %682 = vmatprep.subr.bf16.mxu0 0
        %683 = vmatpush1.bf16.msra.mxu0 0
        %684 = vmatprep.subr.bf16.mxu0 0
        %685 = vmatpush1.bf16.msra.mxu0 0
        %686 = vmatprep.subr.bf16.mxu0 0
        %687 = vmatpush1.bf16.msra.mxu0 0
        %688 = vmatprep.subr.bf16.mxu0 0
        %689 = vmatpush1.bf16.msra.mxu0 0
        %690 = vmatprep.subr.bf16.mxu0 0
        %691 = vmatpush1.bf16.msra.mxu0 0
        %692 = vmatprep.subr.bf16.mxu0 0
        %693 = vmatpush1.bf16.msra.mxu0 0
        %694 = vmatprep.subr.bf16.mxu0 0
        %695 = vmatpush1.bf16.msra.mxu0 0
        %696 = vmatprep.subr.bf16.mxu0 0
        %697 = vmatpush1.bf16.msra.mxu0 0
        %698 = vmatprep.mubr.bf16.mxu0 0
        %699 = vmatmul.mubr.bf16.gmra.mrb[0].mxu0 %v617
        %v700 = vpop.f32.mrb[0].mxu0
        %v701 = vadd.f32 0.0, %v700
        %v702 = vpop.f32.mrb[0].mxu0
        %v703 = vpop.f32.mrb[0].mxu0
        %v704 = vadd.f32 0.0, %v703
        %v705 = vpop.f32.mrb[0].mxu0
        %706 = vdwg.mxu0
        %v723 = vunpack.c.l.b16 %v551
        %v724 = vunpack.c.l.b16 %v552
        %v725 = vunpack.c.l.b16 %v553
        %v726 = vunpack.c.l.b16 %v554
        %v727 = vunpack.c.l.b16 %v555
        %v728 = vunpack.c.l.b16 %v556
        %v729 = vunpack.c.l.b16 %v557
        %v730 = vunpack.c.l.b16 %v558
        %v731 = vunpack.c.l.b16 %v559
        %v732 = vunpack.c.l.b16 %v560
        %v733 = vunpack.c.l.b16 %v561
        %v734 = vunpack.c.l.b16 %v562
        %v735 = vunpack.c.l.b16 %v563
        %v736 = vunpack.c.l.b16 %v564
        %v737 = vunpack.c.l.b16 %v565
        %v738 = vunpack.c.l.b16 %v566
        %v739 = vpack.c.b16 %v724, %v723
        %v740 = vpack.c.b16 %v726, %v725
        %v741 = vpack.c.b16 %v728, %v727
        %v742 = vpack.c.b16 %v730, %v729
        %v743 = vpack.c.b16 %v732, %v731
        %v744 = vpack.c.b16 %v734, %v733
        %v745 = vpack.c.b16 %v736, %v735
        %v746 = vpack.c.b16 %v738, %v737
        %755 = vmatprep.subr.bf16.mxu0 0
        %756 = vmatpush1.bf16.msra.mxu0 %v739
        %757 = vmatprep.subr.bf16.mxu0 0
        %758 = vmatpush1.bf16.msra.mxu0 %v740
        %759 = vmatprep.subr.bf16.mxu0 0
        %760 = vmatpush1.bf16.msra.mxu0 %v741
        %761 = vmatprep.subr.bf16.mxu0 0
        %762 = vmatpush1.bf16.msra.mxu0 %v742
        %763 = vmatprep.subr.bf16.mxu0 0
        %764 = vmatpush1.bf16.msra.mxu0 %v743
        %765 = vmatprep.subr.bf16.mxu0 0
        %766 = vmatpush1.bf16.msra.mxu0 %v744
        %767 = vmatprep.subr.bf16.mxu0 0
        %768 = vmatpush1.bf16.msra.mxu0 %v745
        %769 = vmatprep.subr.bf16.mxu0 0
        %770 = vmatpush1.bf16.msra.mxu0 %v746
        %771 = vmatprep.subr.bf16.mxu0 0
        %772 = vmatpush1.bf16.msra.mxu0 0
        %773 = vmatprep.subr.bf16.mxu0 0
        %774 = vmatpush1.bf16.msra.mxu0 0
        %775 = vmatprep.subr.bf16.mxu0 0
        %776 = vmatpush1.bf16.msra.mxu0 0
        %777 = vmatprep.subr.bf16.mxu0 0
        %778 = vmatpush1.bf16.msra.mxu0 0
        %779 = vmatprep.subr.bf16.mxu0 0
        %780 = vmatpush1.bf16.msra.mxu0 0
        %781 = vmatprep.subr.bf16.mxu0 0
        %782 = vmatpush1.bf16.msra.mxu0 0
        %783 = vmatprep.subr.bf16.mxu0 0
        %784 = vmatpush1.bf16.msra.mxu0 0
        %785 = vmatprep.subr.bf16.mxu0 0
        %786 = vmatpush1.bf16.msra.mxu0 0
        %787 = vmatprep.mubr.bf16.mxu0 0
        %788 = vmatmul.mubr.bf16.gmra.mrb[0].mxu0 %v616
        %v789 = vpop.f32.mrb[0].mxu0
        %v790 = vadd.f32 %v701, %v789
        %v791 = vpop.f32.mrb[0].mxu0
        %v792 = vpop.f32.mrb[0].mxu0
        %v793 = vadd.f32 %v704, %v792
        %v794 = vpop.f32.mrb[0].mxu0
        %795 = vdwg.mxu0
        %v796 = vpack.c.bf16 %v615, %v614
        %v813 = vunpack.c.l.b16 %v583
        %v814 = vunpack.c.l.b16 %v584
        %v815 = vunpack.c.l.b16 %v585
        %v816 = vunpack.c.l.b16 %v586
        %v817 = vunpack.c.l.b16 %v587
        %v818 = vunpack.c.l.b16 %v588
        %v819 = vunpack.c.l.b16 %v589
        %v820 = vunpack.c.l.b16 %v590
        %v821 = vunpack.c.l.b16 %v591
        %v822 = vunpack.c.l.b16 %v592
        %v823 = vunpack.c.l.b16 %v593
        %v824 = vunpack.c.l.b16 %v594
        %v825 = vunpack.c.l.b16 %v595
        %v826 = vunpack.c.l.b16 %v596
        %v827 = vunpack.c.l.b16 %v597
        %v828 = vunpack.c.l.b16 %v598
        %v829 = vpack.c.b16 %v814, %v813
        %v830 = vpack.c.b16 %v816, %v815
        %v831 = vpack.c.b16 %v818, %v817
        %v832 = vpack.c.b16 %v820, %v819
        %v833 = vpack.c.b16 %v822, %v821
        %v834 = vpack.c.b16 %v824, %v823
        %v835 = vpack.c.b16 %v826, %v825
        %v836 = vpack.c.b16 %v828, %v827
        %845 = vmatprep.subr.bf16.mxu0 0
        %846 = vmatpush1.bf16.msra.mxu0 %v829
        %847 = vmatprep.subr.bf16.mxu0 0
        %848 = vmatpush1.bf16.msra.mxu0 %v830
        %849 = vmatprep.subr.bf16.mxu0 0
        %850 = vmatpush1.bf16.msra.mxu0 %v831
        %851 = vmatprep.subr.bf16.mxu0 0
        %852 = vmatpush1.bf16.msra.mxu0 %v832
        %853 = vmatprep.subr.bf16.mxu0 0
        %854 = vmatpush1.bf16.msra.mxu0 %v833
        %855 = vmatprep.subr.bf16.mxu0 0
        %856 = vmatpush1.bf16.msra.mxu0 %v834
        %857 = vmatprep.subr.bf16.mxu0 0
        %858 = vmatpush1.bf16.msra.mxu0 %v835
        %859 = vmatprep.subr.bf16.mxu0 0
        %860 = vmatpush1.bf16.msra.mxu0 %v836
        %861 = vmatprep.subr.bf16.mxu0 0
        %862 = vmatpush1.bf16.msra.mxu0 0
        %863 = vmatprep.subr.bf16.mxu0 0
        %864 = vmatpush1.bf16.msra.mxu0 0
        %865 = vmatprep.subr.bf16.mxu0 0
        %866 = vmatpush1.bf16.msra.mxu0 0
        %867 = vmatprep.subr.bf16.mxu0 0
        %868 = vmatpush1.bf16.msra.mxu0 0
        %869 = vmatprep.subr.bf16.mxu0 0
        %870 = vmatpush1.bf16.msra.mxu0 0
        %871 = vmatprep.subr.bf16.mxu0 0
        %872 = vmatpush1.bf16.msra.mxu0 0
        %873 = vmatprep.subr.bf16.mxu0 0
        %874 = vmatpush1.bf16.msra.mxu0 0
        %875 = vmatprep.subr.bf16.mxu0 0
        %876 = vmatpush1.bf16.msra.mxu0 0
        %877 = vmatprep.mubr.bf16.mxu0 0
        %878 = vmatmul.mubr.bf16.gmra.mrb[0].mxu0 %v796
        %v879 = vpop.f32.mrb[0].mxu0
        %v880 = vadd.f32 0.0, %v879
        %v881 = vpop.f32.mrb[0].mxu0
        %v882 = vpop.f32.mrb[0].mxu0
        %v883 = vadd.f32 0.0, %v882
        %v884 = vpop.f32.mrb[0].mxu0
        %885 = vdwg.mxu0
        %v886 = vadd.f32 %v790, %v880
        %v887 = vadd.f32 %v793, %v883
        %v888 = vld [vmem:[%s4] sm:$0x1]
        %v890 = vlaneseq
        %v891 = vshrl.u32 %v890, 7
        %v892 = vsub.s32 0, %v891
        %v893 = vrot.slane %v888, %v892
        %v895 = vadd.f32 %v886, %v893
        %v896 = vadd.f32 %v887, %v893
        %898 = vset.pattern.permute.xlu0 0
        %899 = vperm.xlu0 %898, %v380
        %v900 = vpop.permute.xlu0 %899
        %903 = vset.pattern.permute.xlu0 0
        %904 = vperm.xlu0 %903, %v381
        %v905 = vpop.permute.xlu0 %904
        %v907 = vmul.f32 %v895, %v900
        %v908 = vmul.f32 %v896, %v905
        %910 = vset.pattern.permute.xlu0 0
        %911 = vperm.xlu0 %910, %v382
        %v912 = vpop.permute.xlu0 %911
        %915 = vset.pattern.permute.xlu0 0
        %916 = vperm.xlu0 %915, %v383
        %v917 = vpop.permute.xlu0 %916
        %v919 = vadd.f32 %v907, %v912
        %v920 = vadd.f32 %v908, %v917
        %v921 = vmax.f32 %v919, 0.0
        %v922 = vmax.f32 %v920, 0.0
        %v923 = vadd.s32 %v390, 16
        %v924 = vadd.s32 %v390, 24
        %v925 = vadd.s32 %v390, 32
        %v926 = vadd.s32 %v390, 40
        %v927 = vadd.s32 %v390, 48
        %v928 = vadd.s32 %v390, 56
        %v929 = vadd.s32 %v390, 64
        %v930 = vadd.s32 %v390, 72
        %v931 = vadd.s32 %v390, 80
        %v932 = vadd.s32 %v390, 88
        %v933 = vadd.s32 %v390, 96
        %v934 = vadd.s32 %v390, 104
        %v935 = vadd.s32 %v390, 112
        %v936 = vadd.s32 %v390, 120
        %v937 = vlaneseq
        %v938 = vand.u32 %v937, 127
        %v939 = vmul.u32 %v938, 2
        %vm940 = vcmp.eq.s32.totalorder %v390, %v939
        %vm941 = vcmp.eq.s32.totalorder %v607, %v939
        %vm942 = vcmp.eq.s32.totalorder %v923, %v939
        %vm943 = vcmp.eq.s32.totalorder %v924, %v939
        %vm944 = vcmp.eq.s32.totalorder %v925, %v939
        %vm945 = vcmp.eq.s32.totalorder %v926, %v939
        %vm946 = vcmp.eq.s32.totalorder %v927, %v939
        %vm947 = vcmp.eq.s32.totalorder %v928, %v939
        %vm948 = vcmp.eq.s32.totalorder %v929, %v939
        %vm949 = vcmp.eq.s32.totalorder %v930, %v939
        %vm950 = vcmp.eq.s32.totalorder %v931, %v939
        %vm951 = vcmp.eq.s32.totalorder %v932, %v939
        %vm952 = vcmp.eq.s32.totalorder %v933, %v939
        %vm953 = vcmp.eq.s32.totalorder %v934, %v939
        %vm954 = vcmp.eq.s32.totalorder %v935, %v939
        %vm955 = vcmp.eq.s32.totalorder %v936, %v939
        %v956 = vsel %vm940, 1, 0
        %v957 = vsel %vm941, 1, 0
        %v958 = vsel %vm942, 1, 0
        %v959 = vsel %vm943, 1, 0
        %v960 = vsel %vm944, 1, 0
        %v961 = vsel %vm945, 1, 0
        %v962 = vsel %vm946, 1, 0
        %v963 = vsel %vm947, 1, 0
        %v964 = vsel %vm948, 1, 0
        %v965 = vsel %vm949, 1, 0
        %v966 = vsel %vm950, 1, 0
        %v967 = vsel %vm951, 1, 0
        %v968 = vsel %vm952, 1, 0
        %v969 = vsel %vm953, 1, 0
        %v970 = vsel %vm954, 1, 0
        %v971 = vsel %vm955, 1, 0
        %v972 = vcvt.s32.f32 %v956
        %v973 = vcvt.s32.f32 %v957
        %v974 = vcvt.s32.f32 %v958
        %v975 = vcvt.s32.f32 %v959
        %v976 = vcvt.s32.f32 %v960
        %v977 = vcvt.s32.f32 %v961
        %v978 = vcvt.s32.f32 %v962
        %v979 = vcvt.s32.f32 %v963
        %v980 = vcvt.s32.f32 %v964
        %v981 = vcvt.s32.f32 %v965
        %v982 = vcvt.s32.f32 %v966
        %v983 = vcvt.s32.f32 %v967
        %v984 = vcvt.s32.f32 %v968
        %v985 = vcvt.s32.f32 %v969
        %v986 = vcvt.s32.f32 %v970
        %v987 = vcvt.s32.f32 %v971
        %988 = vmatprep.subr.mxu0 0.0
        %989 = vmatpush1.msra.mxu0 %v972
        %990 = vmatprep.subr.mxu0 0.0
        %991 = vmatpush1.msra.mxu0 %v973
        %992 = vmatprep.subr.mxu0 0.0
        %993 = vmatpush1.msra.mxu0 %v974
        %994 = vmatprep.subr.mxu0 0.0
        %995 = vmatpush1.msra.mxu0 %v975
        %996 = vmatprep.subr.mxu0 0.0
        %997 = vmatpush1.msra.mxu0 %v976
        %998 = vmatprep.subr.mxu0 0.0
        %999 = vmatpush1.msra.mxu0 %v977
        %1000 = vmatprep.subr.mxu0 0.0
        %1001 = vmatpush1.msra.mxu0 %v978
        %1002 = vmatprep.subr.mxu0 0.0
        %1003 = vmatpush1.msra.mxu0 %v979
        %1004 = vmatprep.subr.mxu0 0.0
        %1005 = vmatpush1.msra.mxu0 %v980
        %1006 = vmatprep.subr.mxu0 0.0
        %1007 = vmatpush1.msra.mxu0 %v981
        %1008 = vmatprep.subr.mxu0 0.0
        %1009 = vmatpush1.msra.mxu0 %v982
        %1010 = vmatprep.subr.mxu0 0.0
        %1011 = vmatpush1.msra.mxu0 %v983
        %1012 = vmatprep.subr.mxu0 0.0
        %1013 = vmatpush1.msra.mxu0 %v984
        %1014 = vmatprep.subr.mxu0 0.0
        %1015 = vmatpush1.msra.mxu0 %v985
        %1016 = vmatprep.subr.mxu0 0.0
        %1017 = vmatpush1.msra.mxu0 %v986
        %1018 = vmatprep.subr.mxu0 0.0
        %1019 = vmatpush1.msra.mxu0 %v987
        %1020 = vmatprep.subr.mxu0 0.0
        %1021 = vmatpush1.msra.mxu0 0.0
        %1022 = vmatprep.subr.mxu0 0.0
        %1023 = vmatpush1.msra.mxu0 0.0
        %1024 = vmatprep.subr.mxu0 0.0
        %1025 = vmatpush1.msra.mxu0 0.0
        %1026 = vmatprep.subr.mxu0 0.0
        %1027 = vmatpush1.msra.mxu0 0.0
        %1028 = vmatprep.subr.mxu0 0.0
        %1029 = vmatpush1.msra.mxu0 0.0
        %1030 = vmatprep.subr.mxu0 0.0
        %1031 = vmatpush1.msra.mxu0 0.0
        %1032 = vmatprep.subr.mxu0 0.0
        %1033 = vmatpush1.msra.mxu0 0.0
        %1034 = vmatprep.subr.mxu0 0.0
        %1035 = vmatpush1.msra.mxu0 0.0
        %1036 = vmatprep.subr.mxu0 0.0
        %1037 = vmatpush1.msra.mxu0 0.0
        %1038 = vmatprep.subr.mxu0 0.0
        %1039 = vmatpush1.msra.mxu0 0.0
        %1040 = vmatprep.subr.mxu0 0.0
        %1041 = vmatpush1.msra.mxu0 0.0
        %1042 = vmatprep.subr.mxu0 0.0
        %1043 = vmatpush1.msra.mxu0 0.0
        %1044 = vmatprep.subr.mxu0 0.0
        %1045 = vmatpush1.msra.mxu0 0.0
        %1046 = vmatprep.subr.mxu0 0.0
        %1047 = vmatpush1.msra.mxu0 0.0
        %1048 = vmatprep.subr.mxu0 0.0
        %1049 = vmatpush1.msra.mxu0 0.0
        %1050 = vmatprep.subr.mxu0 0.0
        %1051 = vmatpush1.msra.mxu0 0.0
        %1052 = vmatprep.mubr.f32.mxu0 0.0
        %1053 = vmatmul.mubr.f32.gmra.mrb[0].mxu0 %v921
        %v1054 = vpop.f32.mrb[0].mxu0
        %v1055 = vadd.f32 0.0, %v1054
        %v1056 = vpop.f32.mrb[0].mxu0
        %1057 = vmatprep.mubr.f32.mxu0 0.0
        %1058 = vmatmul.mubr.f32.gmra.mrb[0].mxu0 %v922
        %v1059 = vpop.f32.mrb[0].mxu0
        %v1060 = vadd.f32 0.0, %v1059
        %v1061 = vpop.f32.mrb[0].mxu0
        %1062 = vdwg.mxu0
        %v1063 = vadd.s32 %v939, 1
        %vm1064 = vcmp.eq.s32.totalorder %v390, %v1063
        %vm1065 = vcmp.eq.s32.totalorder %v607, %v1063
        %vm1066 = vcmp.eq.s32.totalorder %v923, %v1063
        %vm1067 = vcmp.eq.s32.totalorder %v924, %v1063
        %vm1068 = vcmp.eq.s32.totalorder %v925, %v1063
        %vm1069 = vcmp.eq.s32.totalorder %v926, %v1063
        %vm1070 = vcmp.eq.s32.totalorder %v927, %v1063
        %vm1071 = vcmp.eq.s32.totalorder %v928, %v1063
        %vm1072 = vcmp.eq.s32.totalorder %v929, %v1063
        %vm1073 = vcmp.eq.s32.totalorder %v930, %v1063
        %vm1074 = vcmp.eq.s32.totalorder %v931, %v1063
        %vm1075 = vcmp.eq.s32.totalorder %v932, %v1063
        %vm1076 = vcmp.eq.s32.totalorder %v933, %v1063
        %vm1077 = vcmp.eq.s32.totalorder %v934, %v1063
        %vm1078 = vcmp.eq.s32.totalorder %v935, %v1063
        %vm1079 = vcmp.eq.s32.totalorder %v936, %v1063
        %v1080 = vsel %vm1064, 1, 0
        %v1081 = vsel %vm1065, 1, 0
        %v1082 = vsel %vm1066, 1, 0
        %v1083 = vsel %vm1067, 1, 0
        %v1084 = vsel %vm1068, 1, 0
        %v1085 = vsel %vm1069, 1, 0
        %v1086 = vsel %vm1070, 1, 0
        %v1087 = vsel %vm1071, 1, 0
        %v1088 = vsel %vm1072, 1, 0
        %v1089 = vsel %vm1073, 1, 0
        %v1090 = vsel %vm1074, 1, 0
        %v1091 = vsel %vm1075, 1, 0
        %v1092 = vsel %vm1076, 1, 0
        %v1093 = vsel %vm1077, 1, 0
        %v1094 = vsel %vm1078, 1, 0
        %v1095 = vsel %vm1079, 1, 0
        %v1096 = vcvt.s32.f32 %v1080
        %v1097 = vcvt.s32.f32 %v1081
        %v1098 = vcvt.s32.f32 %v1082
        %v1099 = vcvt.s32.f32 %v1083
        %v1100 = vcvt.s32.f32 %v1084
        %v1101 = vcvt.s32.f32 %v1085
        %v1102 = vcvt.s32.f32 %v1086
        %v1103 = vcvt.s32.f32 %v1087
        %v1104 = vcvt.s32.f32 %v1088
        %v1105 = vcvt.s32.f32 %v1089
        %v1106 = vcvt.s32.f32 %v1090
        %v1107 = vcvt.s32.f32 %v1091
        %v1108 = vcvt.s32.f32 %v1092
        %v1109 = vcvt.s32.f32 %v1093
        %v1110 = vcvt.s32.f32 %v1094
        %v1111 = vcvt.s32.f32 %v1095
        %1112 = vmatprep.subr.mxu0 0.0
        %1113 = vmatpush1.msra.mxu0 %v1096
        %1114 = vmatprep.subr.mxu0 0.0
        %1115 = vmatpush1.msra.mxu0 %v1097
        %1116 = vmatprep.subr.mxu0 0.0
        %1117 = vmatpush1.msra.mxu0 %v1098
        %1118 = vmatprep.subr.mxu0 0.0
        %1119 = vmatpush1.msra.mxu0 %v1099
        %1120 = vmatprep.subr.mxu0 0.0
        %1121 = vmatpush1.msra.mxu0 %v1100
        %1122 = vmatprep.subr.mxu0 0.0
        %1123 = vmatpush1.msra.mxu0 %v1101
        %1124 = vmatprep.subr.mxu0 0.0
        %1125 = vmatpush1.msra.mxu0 %v1102
        %1126 = vmatprep.subr.mxu0 0.0
        %1127 = vmatpush1.msra.mxu0 %v1103
        %1128 = vmatprep.subr.mxu0 0.0
        %1129 = vmatpush1.msra.mxu0 %v1104
        %1130 = vmatprep.subr.mxu0 0.0
        %1131 = vmatpush1.msra.mxu0 %v1105
        %1132 = vmatprep.subr.mxu0 0.0
        %1133 = vmatpush1.msra.mxu0 %v1106
        %1134 = vmatprep.subr.mxu0 0.0
        %1135 = vmatpush1.msra.mxu0 %v1107
        %1136 = vmatprep.subr.mxu0 0.0
        %1137 = vmatpush1.msra.mxu0 %v1108
        %1138 = vmatprep.subr.mxu0 0.0
        %1139 = vmatpush1.msra.mxu0 %v1109
        %1140 = vmatprep.subr.mxu0 0.0
        %1141 = vmatpush1.msra.mxu0 %v1110
        %1142 = vmatprep.subr.mxu0 0.0
        %1143 = vmatpush1.msra.mxu0 %v1111
        %1144 = vmatprep.subr.mxu0 0.0
        %1145 = vmatpush1.msra.mxu0 0.0
        %1146 = vmatprep.subr.mxu0 0.0
        %1147 = vmatpush1.msra.mxu0 0.0
        %1148 = vmatprep.subr.mxu0 0.0
        %1149 = vmatpush1.msra.mxu0 0.0
        %1150 = vmatprep.subr.mxu0 0.0
        %1151 = vmatpush1.msra.mxu0 0.0
        %1152 = vmatprep.subr.mxu0 0.0
        %1153 = vmatpush1.msra.mxu0 0.0
        %1154 = vmatprep.subr.mxu0 0.0
        %1155 = vmatpush1.msra.mxu0 0.0
        %1156 = vmatprep.subr.mxu0 0.0
        %1157 = vmatpush1.msra.mxu0 0.0
        %1158 = vmatprep.subr.mxu0 0.0
        %1159 = vmatpush1.msra.mxu0 0.0
        %1160 = vmatprep.subr.mxu0 0.0
        %1161 = vmatpush1.msra.mxu0 0.0
        %1162 = vmatprep.subr.mxu0 0.0
        %1163 = vmatpush1.msra.mxu0 0.0
        %1164 = vmatprep.subr.mxu0 0.0
        %1165 = vmatpush1.msra.mxu0 0.0
        %1166 = vmatprep.subr.mxu0 0.0
        %1167 = vmatpush1.msra.mxu0 0.0
        %1168 = vmatprep.subr.mxu0 0.0
        %1169 = vmatpush1.msra.mxu0 0.0
        %1170 = vmatprep.subr.mxu0 0.0
        %1171 = vmatpush1.msra.mxu0 0.0
        %1172 = vmatprep.subr.mxu0 0.0
        %1173 = vmatpush1.msra.mxu0 0.0
        %1174 = vmatprep.subr.mxu0 0.0
        %1175 = vmatpush1.msra.mxu0 0.0
        %1176 = vmatprep.mubr.f32.mxu0 0.0
        %1177 = vmatmul.mubr.f32.gmra.mrb[0].mxu0 %v921
        %v1178 = vpop.f32.mrb[0].mxu0
        %v1179 = vadd.f32 0.0, %v1178
        %v1180 = vpop.f32.mrb[0].mxu0
        %1181 = vmatprep.mubr.f32.mxu0 0.0
        %1182 = vmatmul.mubr.f32.gmra.mrb[0].mxu0 %v922
        %v1183 = vpop.f32.mrb[0].mxu0
        %v1184 = vadd.f32 0.0, %v1183
        %v1185 = vpop.f32.mrb[0].mxu0
        %1186 = vdwg.mxu0
        %v1187 = vmax.f32 %v1055, %v1179
        %v1188 = vmax.f32 %v1060, %v1184
        %v1189 = vld [vmem:[#allocation6] sm:$0xf]
        %v1190 = vld [vmem:[#allocation6 + $0x4] sm:$0xf]
        %v1191 = vld [vmem:[#allocation6 + $0x8] sm:$0xf]
        %v1192 = vld [vmem:[#allocation6 + $0xc] sm:$0xf]
        %v1193 = vld [vmem:[#allocation6 + $0x10] sm:$0xf]
        %v1194 = vld [vmem:[#allocation6 + $0x14] sm:$0xf]
        %v1195 = vld [vmem:[#allocation6 + $0x18] sm:$0xf]
        %v1196 = vld [vmem:[#allocation6 + $0x1c] sm:$0xf]
        %v1197 = vld [vmem:[#allocation6 + $0x20] sm:$0xf]
        %v1198 = vld [vmem:[#allocation6 + $0x24] sm:$0xf]
        %v1199 = vld [vmem:[#allocation6 + $0x28] sm:$0xf]
        %v1200 = vld [vmem:[#allocation6 + $0x2c] sm:$0xf]
        %v1201 = vld [vmem:[#allocation6 + $0x30] sm:$0xf]
        %v1202 = vld [vmem:[#allocation6 + $0x34] sm:$0xf]
        %v1203 = vld [vmem:[#allocation6 + $0x38] sm:$0xf]
        %v1204 = vld [vmem:[#allocation6 + $0x3c] sm:$0xf]
        %v1205 = vld [vmem:[#allocation6 + $0x40] sm:$0xf]
        %v1206 = vld [vmem:[#allocation6 + $0x44] sm:$0xf]
        %v1207 = vld [vmem:[#allocation6 + $0x48] sm:$0xf]
        %v1208 = vld [vmem:[#allocation6 + $0x4c] sm:$0xf]
        %v1209 = vld [vmem:[#allocation6 + $0x50] sm:$0xf]
        %v1210 = vld [vmem:[#allocation6 + $0x54] sm:$0xf]
        %v1211 = vld [vmem:[#allocation6 + $0x58] sm:$0xf]
        %v1212 = vld [vmem:[#allocation6 + $0x5c] sm:$0xf]
        %v1213 = vrot.slane %v1187, 7
        %v1214 = vrot.slane %v1188, 7
        %v1215 = vsel %vm391, %v1213, %v1214
        %v1216 = vsel %vm391, %v1214, %v1213
        %v1217 = vrot.slane %v1187, 1
        %v1218 = vrot.slane %v1188, 1
        %v1219 = vsel %vm396, %v1217, %v1218
        %v1220 = vsel %vm396, %v1218, %v1217
        %v1221 = vsel %vm608, 0.0, %v1216
        %v1222 = vsel %vm609, 0.0, %v1215
        %v1223 = vsel %vm612, 0.0, %v1219
        %v1224 = vsel %vm613, 0.0, %v1220
        %v1225 = vpack.c.bf16 %v1222, %v1221
        %v1226 = vpack.c.bf16 %v1188, %v1187
        %v1235 = vunpack.c.l.b16 %v1197
        %v1236 = vunpack.c.l.b16 %v1198
        %v1237 = vunpack.c.l.b16 %v1199
        %v1238 = vunpack.c.l.b16 %v1200
        %v1239 = vunpack.c.l.b16 %v1201
        %v1240 = vunpack.c.l.b16 %v1202
        %v1241 = vunpack.c.l.b16 %v1203
        %v1242 = vunpack.c.l.b16 %v1204
        %v1243 = vpack.c.b16 %v1236, %v1235
        %v1244 = vpack.c.b16 %v1238, %v1237
        %v1245 = vpack.c.b16 %v1240, %v1239
        %v1246 = vpack.c.b16 %v1242, %v1241
        %vm1251 = vcmask 523264
        %v1253 = vsel %vm1251, %v1226, 0
        %1255 = vmatprep.subr.bf16.mxu0 0
        %1256 = vmatpush1.bf16.msra.mxu0 %v1243
        %1257 = vmatprep.subr.bf16.mxu0 0
        %1258 = vmatpush1.bf16.msra.mxu0 %v1244
        %1259 = vmatprep.subr.bf16.mxu0 0
        %1260 = vmatpush1.bf16.msra.mxu0 %v1245
        %1261 = vmatprep.subr.bf16.mxu0 0
        %1262 = vmatpush1.bf16.msra.mxu0 %v1246
        %1263 = vmatprep.subr.bf16.mxu0 0
        %1264 = vmatpush1.bf16.msra.mxu0 0
        %1265 = vmatprep.subr.bf16.mxu0 0
        %1266 = vmatpush1.bf16.msra.mxu0 0
        %1267 = vmatprep.subr.bf16.mxu0 0
        %1268 = vmatpush1.bf16.msra.mxu0 0
        %1269 = vmatprep.subr.bf16.mxu0 0
        %1270 = vmatpush1.bf16.msra.mxu0 0
        %1271 = vmatprep.subr.bf16.mxu0 0
        %1272 = vmatpush1.bf16.msra.mxu0 0
        %1273 = vmatprep.subr.bf16.mxu0 0
        %1274 = vmatpush1.bf16.msra.mxu0 0
        %1275 = vmatprep.subr.bf16.mxu0 0
        %1276 = vmatpush1.bf16.msra.mxu0 0
        %1277 = vmatprep.subr.bf16.mxu0 0
        %1278 = vmatpush1.bf16.msra.mxu0 0
        %1279 = vmatprep.subr.bf16.mxu0 0
        %1280 = vmatpush1.bf16.msra.mxu0 0
        %1281 = vmatprep.subr.bf16.mxu0 0
        %1282 = vmatpush1.bf16.msra.mxu0 0
        %1283 = vmatprep.subr.bf16.mxu0 0
        %1284 = vmatpush1.bf16.msra.mxu0 0
        %1285 = vmatprep.subr.bf16.mxu0 0
        %1286 = vmatpush1.bf16.msra.mxu0 0
        %1287 = vmatprep.mubr.bf16.mxu0 0
        %1288 = vmatmul.mubr.bf16.gmra.mrb[0].mxu0 %v1253
        %v1289 = vpop.f32.mrb[0].mxu0
        %v1290 = vadd.f32 0.0, %v1289
        %v1291 = vpop.f32.mrb[0].mxu0
        %v1292 = vpop.f32.mrb[0].mxu0
        %v1293 = vadd.f32 0.0, %v1292
        %v1294 = vpop.f32.mrb[0].mxu0
        %1295 = vdwg.mxu0
        %v1304 = vunpack.c.l.b16 %v1189
        %v1305 = vunpack.c.l.b16 %v1190
        %v1306 = vunpack.c.l.b16 %v1191
        %v1307 = vunpack.c.l.b16 %v1192
        %v1308 = vunpack.c.l.b16 %v1193
        %v1309 = vunpack.c.l.b16 %v1194
        %v1310 = vunpack.c.l.b16 %v1195
        %v1311 = vunpack.c.l.b16 %v1196
        %v1312 = vpack.c.b16 %v1305, %v1304
        %v1313 = vpack.c.b16 %v1307, %v1306
        %v1314 = vpack.c.b16 %v1309, %v1308
        %v1315 = vpack.c.b16 %v1311, %v1310
        %v1321 = vsel %vm1251, %v1225, 0
        %1323 = vmatprep.subr.bf16.mxu0 0
        %1324 = vmatpush1.bf16.msra.mxu0 %v1312
        %1325 = vmatprep.subr.bf16.mxu0 0
        %1326 = vmatpush1.bf16.msra.mxu0 %v1313
        %1327 = vmatprep.subr.bf16.mxu0 0
        %1328 = vmatpush1.bf16.msra.mxu0 %v1314
        %1329 = vmatprep.subr.bf16.mxu0 0
        %1330 = vmatpush1.bf16.msra.mxu0 %v1315
        %1331 = vmatprep.subr.bf16.mxu0 0
        %1332 = vmatpush1.bf16.msra.mxu0 0
        %1333 = vmatprep.subr.bf16.mxu0 0
        %1334 = vmatpush1.bf16.msra.mxu0 0
        %1335 = vmatprep.subr.bf16.mxu0 0
        %1336 = vmatpush1.bf16.msra.mxu0 0
        %1337 = vmatprep.subr.bf16.mxu0 0
        %1338 = vmatpush1.bf16.msra.mxu0 0
        %1339 = vmatprep.subr.bf16.mxu0 0
        %1340 = vmatpush1.bf16.msra.mxu0 0
        %1341 = vmatprep.subr.bf16.mxu0 0
        %1342 = vmatpush1.bf16.msra.mxu0 0
        %1343 = vmatprep.subr.bf16.mxu0 0
        %1344 = vmatpush1.bf16.msra.mxu0 0
        %1345 = vmatprep.subr.bf16.mxu0 0
        %1346 = vmatpush1.bf16.msra.mxu0 0
        %1347 = vmatprep.subr.bf16.mxu0 0
        %1348 = vmatpush1.bf16.msra.mxu0 0
        %1349 = vmatprep.subr.bf16.mxu0 0
        %1350 = vmatpush1.bf16.msra.mxu0 0
        %1351 = vmatprep.subr.bf16.mxu0 0
        %1352 = vmatpush1.bf16.msra.mxu0 0
        %1353 = vmatprep.subr.bf16.mxu0 0
        %1354 = vmatpush1.bf16.msra.mxu0 0
        %1355 = vmatprep.mubr.bf16.mxu0 0
        %1356 = vmatmul.mubr.bf16.gmra.mrb[0].mxu0 %v1321
        %v1357 = vpop.f32.mrb[0].mxu0
        %v1358 = vadd.f32 %v1290, %v1357
        %v1359 = vpop.f32.mrb[0].mxu0
        %v1360 = vpop.f32.mrb[0].mxu0
        %v1361 = vadd.f32 %v1293, %v1360
        %v1362 = vpop.f32.mrb[0].mxu0
        %1363 = vdwg.mxu0
        %v1364 = vpack.c.bf16 %v1224, %v1223
        %v1373 = vunpack.c.l.b16 %v1205
        %v1374 = vunpack.c.l.b16 %v1206
        %v1375 = vunpack.c.l.b16 %v1207
        %v1376 = vunpack.c.l.b16 %v1208
        %v1377 = vunpack.c.l.b16 %v1209
        %v1378 = vunpack.c.l.b16 %v1210
        %v1379 = vunpack.c.l.b16 %v1211
        %v1380 = vunpack.c.l.b16 %v1212
        %v1381 = vpack.c.b16 %v1374, %v1373
        %v1382 = vpack.c.b16 %v1376, %v1375
        %v1383 = vpack.c.b16 %v1378, %v1377
        %v1384 = vpack.c.b16 %v1380, %v1379
        %v1390 = vsel %vm1251, %v1364, 0
        %1392 = vmatprep.subr.bf16.mxu0 0
        %1393 = vmatpush1.bf16.msra.mxu0 %v1381
        %1394 = vmatprep.subr.bf16.mxu0 0
        %1395 = vmatpush1.bf16.msra.mxu0 %v1382
        %1396 = vmatprep.subr.bf16.mxu0 0
        %1397 = vmatpush1.bf16.msra.mxu0 %v1383
        %1398 = vmatprep.subr.bf16.mxu0 0
        %1399 = vmatpush1.bf16.msra.mxu0 %v1384
        %1400 = vmatprep.subr.bf16.mxu0 0
        %1401 = vmatpush1.bf16.msra.mxu0 0
        %1402 = vmatprep.subr.bf16.mxu0 0
        %1403 = vmatpush1.bf16.msra.mxu0 0
        %1404 = vmatprep.subr.bf16.mxu0 0
        %1405 = vmatpush1.bf16.msra.mxu0 0
        %1406 = vmatprep.subr.bf16.mxu0 0
        %1407 = vmatpush1.bf16.msra.mxu0 0
        %1408 = vmatprep.subr.bf16.mxu0 0
        %1409 = vmatpush1.bf16.msra.mxu0 0
        %1410 = vmatprep.subr.bf16.mxu0 0
        %1411 = vmatpush1.bf16.msra.mxu0 0
        %1412 = vmatprep.subr.bf16.mxu0 0
        %1413 = vmatpush1.bf16.msra.mxu0 0
        %1414 = vmatprep.subr.bf16.mxu0 0
        %1415 = vmatpush1.bf16.msra.mxu0 0
        %1416 = vmatprep.subr.bf16.mxu0 0
        %1417 = vmatpush1.bf16.msra.mxu0 0
        %1418 = vmatprep.subr.bf16.mxu0 0
        %1419 = vmatpush1.bf16.msra.mxu0 0
        %1420 = vmatprep.subr.bf16.mxu0 0
        %1421 = vmatpush1.bf16.msra.mxu0 0
        %1422 = vmatprep.subr.bf16.mxu0 0
        %1423 = vmatpush1.bf16.msra.mxu0 0
        %1424 = vmatprep.mubr.bf16.mxu0 0
        %1425 = vmatmul.mubr.bf16.gmra.mrb[0].mxu0 %v1390
        %v1426 = vpop.f32.mrb[0].mxu0
        %v1427 = vadd.f32 0.0, %v1426
        %v1428 = vpop.f32.mrb[0].mxu0
        %v1429 = vpop.f32.mrb[0].mxu0
        %v1430 = vadd.f32 0.0, %v1429
        %v1431 = vpop.f32.mrb[0].mxu0
        %1432 = vdwg.mxu0
        %v1433 = vadd.f32 %v1358, %v1427
        %v1434 = vadd.f32 %v1361, %v1430
        %v1435 = vld [vmem:[%s6] sm:$0x1]
        %v1437 = vlaneseq
        %v1438 = vshrl.u32 %v1437, 7
        %v1439 = vsub.s32 0, %v1438
        %v1440 = vrot.slane %v1435, %v1439
        %v1442 = vadd.f32 %v1433, %v1440
        %v1443 = vadd.f32 %v1434, %v1440
        %v1444 = vmul.f32 %v1442, %v900
        %v1445 = vmul.f32 %v1443, %v905
        %v1446 = vadd.f32 %v1444, %v912
        %v1447 = vadd.f32 %v1445, %v917
        %v1448 = vmax.f32 %v1446, 0.0
        %v1449 = vmax.f32 %v1447, 0.0
        %v1451 = vsel %vm1251, %v1448, 0
        %v1454 = vsel %vm1251, %v1449, 0
        %1456 = vmatprep.subr.mxu0 0.0
        %1457 = vmatpush1.msra.mxu0 %v972
        %1458 = vmatprep.subr.mxu0 0.0
        %1459 = vmatpush1.msra.mxu0 %v973
        %1460 = vmatprep.subr.mxu0 0.0
        %1461 = vmatpush1.msra.mxu0 %v974
        %1462 = vmatprep.subr.mxu0 0.0
        %1463 = vmatpush1.msra.mxu0 %v975
        %1464 = vmatprep.subr.mxu0 0.0
        %1465 = vmatpush1.msra.mxu0 %v976
        %1466 = vmatprep.subr.mxu0 0.0
        %1467 = vmatpush1.msra.mxu0 %v977
        %1468 = vmatprep.subr.mxu0 0.0
        %1469 = vmatpush1.msra.mxu0 %v978
        %1470 = vmatprep.subr.mxu0 0.0
        %1471 = vmatpush1.msra.mxu0 %v979
        %1472 = vmatprep.subr.mxu0 0.0
        %1473 = vmatpush1.msra.mxu0 0.0
        %1474 = vmatprep.subr.mxu0 0.0
        %1475 = vmatpush1.msra.mxu0 0.0
        %1476 = vmatprep.subr.mxu0 0.0
        %1477 = vmatpush1.msra.mxu0 0.0
        %1478 = vmatprep.subr.mxu0 0.0
        %1479 = vmatpush1.msra.mxu0 0.0
        %1480 = vmatprep.subr.mxu0 0.0
        %1481 = vmatpush1.msra.mxu0 0.0
        %1482 = vmatprep.subr.mxu0 0.0
        %1483 = vmatpush1.msra.mxu0 0.0
        %1484 = vmatprep.subr.mxu0 0.0
        %1485 = vmatpush1.msra.mxu0 0.0
        %1486 = vmatprep.subr.mxu0 0.0
        %1487 = vmatpush1.msra.mxu0 0.0
        %1488 = vmatprep.subr.mxu0 0.0
        %1489 = vmatpush1.msra.mxu0 0.0
        %1490 = vmatprep.subr.mxu0 0.0
        %1491 = vmatpush1.msra.mxu0 0.0
        %1492 = vmatprep.subr.mxu0 0.0
        %1493 = vmatpush1.msra.mxu0 0.0
        %1494 = vmatprep.subr.mxu0 0.0
        %1495 = vmatpush1.msra.mxu0 0.0
        %1496 = vmatprep.subr.mxu0 0.0
        %1497 = vmatpush1.msra.mxu0 0.0
        %1498 = vmatprep.subr.mxu0 0.0
        %1499 = vmatpush1.msra.mxu0 0.0
        %1500 = vmatprep.subr.mxu0 0.0
        %1501 = vmatpush1.msra.mxu0 0.0
        %1502 = vmatprep.subr.mxu0 0.0
        %1503 = vmatpush1.msra.mxu0 0.0
        %1504 = vmatprep.subr.mxu0 0.0
        %1505 = vmatpush1.msra.mxu0 0.0
        %1506 = vmatprep.subr.mxu0 0.0
        %1507 = vmatpush1.msra.mxu0 0.0
        %1508 = vmatprep.subr.mxu0 0.0
        %1509 = vmatpush1.msra.mxu0 0.0
        %1510 = vmatprep.subr.mxu0 0.0
        %1511 = vmatpush1.msra.mxu0 0.0
        %1512 = vmatprep.subr.mxu0 0.0
        %1513 = vmatpush1.msra.mxu0 0.0
        %1514 = vmatprep.subr.mxu0 0.0
        %1515 = vmatpush1.msra.mxu0 0.0
        %1516 = vmatprep.subr.mxu0 0.0
        %1517 = vmatpush1.msra.mxu0 0.0
        %1518 = vmatprep.subr.mxu0 0.0
        %1519 = vmatpush1.msra.mxu0 0.0
        %1520 = vmatprep.mubr.f32.mxu0 0.0
        %1521 = vmatmul.mubr.f32.gmra.mrb[0].mxu0 %v1451
        %v1522 = vpop.f32.mrb[0].mxu0
        %v1523 = vadd.f32 0.0, %v1522
        %v1524 = vpop.f32.mrb[0].mxu0
        %1525 = vmatprep.mubr.f32.mxu0 0.0
        %1526 = vmatmul.mubr.f32.gmra.mrb[0].mxu0 %v1454
        %v1527 = vpop.f32.mrb[0].mxu0
        %v1528 = vadd.f32 0.0, %v1527
        %v1529 = vpop.f32.mrb[0].mxu0
        %1530 = vdwg.mxu0
        %1531 = vmatprep.subr.mxu0 0.0
        %1532 = vmatpush1.msra.mxu0 %v1096
        %1533 = vmatprep.subr.mxu0 0.0
        %1534 = vmatpush1.msra.mxu0 %v1097
        %1535 = vmatprep.subr.mxu0 0.0
        %1536 = vmatpush1.msra.mxu0 %v1098
        %1537 = vmatprep.subr.mxu0 0.0
        %1538 = vmatpush1.msra.mxu0 %v1099
        %1539 = vmatprep.subr.mxu0 0.0
        %1540 = vmatpush1.msra.mxu0 %v1100
        %1541 = vmatprep.subr.mxu0 0.0
        %1542 = vmatpush1.msra.mxu0 %v1101
        %1543 = vmatprep.subr.mxu0 0.0
        %1544 = vmatpush1.msra.mxu0 %v1102
        %1545 = vmatprep.subr.mxu0 0.0
        %1546 = vmatpush1.msra.mxu0 %v1103
        %1547 = vmatprep.subr.mxu0 0.0
        %1548 = vmatpush1.msra.mxu0 0.0
        %1549 = vmatprep.subr.mxu0 0.0
        %1550 = vmatpush1.msra.mxu0 0.0
        %1551 = vmatprep.subr.mxu0 0.0
        %1552 = vmatpush1.msra.mxu0 0.0
        %1553 = vmatprep.subr.mxu0 0.0
        %1554 = vmatpush1.msra.mxu0 0.0
        %1555 = vmatprep.subr.mxu0 0.0
        %1556 = vmatpush1.msra.mxu0 0.0
        %1557 = vmatprep.subr.mxu0 0.0
        %1558 = vmatpush1.msra.mxu0 0.0
        %1559 = vmatprep.subr.mxu0 0.0
        %1560 = vmatpush1.msra.mxu0 0.0
        %1561 = vmatprep.subr.mxu0 0.0
        %1562 = vmatpush1.msra.mxu0 0.0
        %1563 = vmatprep.subr.mxu0 0.0
        %1564 = vmatpush1.msra.mxu0 0.0
        %1565 = vmatprep.subr.mxu0 0.0
        %1566 = vmatpush1.msra.mxu0 0.0
        %1567 = vmatprep.subr.mxu0 0.0
        %1568 = vmatpush1.msra.mxu0 0.0
        %1569 = vmatprep.subr.mxu0 0.0
        %1570 = vmatpush1.msra.mxu0 0.0
        %1571 = vmatprep.subr.mxu0 0.0
        %1572 = vmatpush1.msra.mxu0 0.0
        %1573 = vmatprep.subr.mxu0 0.0
        %1574 = vmatpush1.msra.mxu0 0.0
        %1575 = vmatprep.subr.mxu0 0.0
        %1576 = vmatpush1.msra.mxu0 0.0
        %1577 = vmatprep.subr.mxu0 0.0
        %1578 = vmatpush1.msra.mxu0 0.0
        %1579 = vmatprep.subr.mxu0 0.0
        %1580 = vmatpush1.msra.mxu0 0.0
        %1581 = vmatprep.subr.mxu0 0.0
        %1582 = vmatpush1.msra.mxu0 0.0
        %1583 = vmatprep.subr.mxu0 0.0
        %1584 = vmatpush1.msra.mxu0 0.0
        %1585 = vmatprep.subr.mxu0 0.0
        %1586 = vmatpush1.msra.mxu0 0.0
        %1587 = vmatprep.subr.mxu0 0.0
        %1588 = vmatpush1.msra.mxu0 0.0
        %1589 = vmatprep.subr.mxu0 0.0
        %1590 = vmatpush1.msra.mxu0 0.0
        %1591 = vmatprep.subr.mxu0 0.0
        %1592 = vmatpush1.msra.mxu0 0.0
        %1593 = vmatprep.subr.mxu0 0.0
        %1594 = vmatpush1.msra.mxu0 0.0
        %1595 = vmatprep.mubr.f32.mxu0 0.0
        %1596 = vmatmul.mubr.f32.gmra.mrb[0].mxu0 %v1451
        %v1597 = vpop.f32.mrb[0].mxu0
        %v1598 = vadd.f32 0.0, %v1597
        %v1599 = vpop.f32.mrb[0].mxu0
        %1600 = vmatprep.mubr.f32.mxu0 0.0
        %1601 = vmatmul.mubr.f32.gmra.mrb[0].mxu0 %v1454
        %v1602 = vpop.f32.mrb[0].mxu0
        %v1603 = vadd.f32 0.0, %v1602
        %v1604 = vpop.f32.mrb[0].mxu0
        %1605 = vdwg.mxu0
        %v1606 = vmax.f32 %v1523, %v1598
        %v1607 = vmax.f32 %v1528, %v1603
        %vm1608 = vcmask 261120
        %1609 = vst.msk [vmem:[%s376] sm:$0xff] %vm1608, %v1606
        %1610 = vst.msk [vmem:[%s376 + $0x8] sm:$0xff] %vm1608, %v1607
        %p1611 = scmp.lt.s32.totalorder %s22, 1
        %s1612 = scalar_select %p1611, %s22, 1
        %s1613 = smul.addr %s1612, 2
        %s1614 = smul.addr %s1613, 8
        %s1615 = scalar_lea.vmem %s9, %s1614
        // Predicated region
        $region69: #{cnn1d_transformer_forward.3} parent=55 // pred_check
          %p1616 = pneg %p234
        $region70: #{cnn1d_transformer_forward.3} parent=55 // pred_check_branch
          %1618 = sbr.rel (%p1616) target = $region72
        $region71: #{cnn1d_transformer_forward.3} parent=55 // pred_region
          _
        $region72: #{cnn1d_transformer_forward.3} parent=55 // pred_fallthru
          _
      $region56: #{cnn1d_transformer_forward.3} parent=5 // pred_fallthru
        _
      %p1619 = scmp.le.s32.totalorder 2, %s17
      // Predicated region
      $region73: #{cnn1d_transformer_forward.3} parent=5 // pred_check
        %p1620 = pneg %p1619
      $region74: #{cnn1d_transformer_forward.3} parent=5 // pred_check_branch
        %1622 = sbr.rel (%p1620) target = $region76
      $region75: #{cnn1d_transformer_forward.3} parent=5 // pred_region
        %s1623 = ssub.s32 %s17, 2
        // Predicated region
        $region77: #{cnn1d_transformer_forward.3} parent=75 // pred_check
          %p1624 = pneg %p240
        $region78: #{cnn1d_transformer_forward.3} parent=75 // pred_check_branch
          %1626 = sbr.rel (%p1624) target = $region80
        $region79: #{cnn1d_transformer_forward.3} parent=75 // pred_region
          %p1627 = scmp.lt.s32.totalorder %s23, 1
          %s1628 = scalar_select %p1627, %s23, 1
          %s1629 = smul.addr %s1628, 2
          %s1630 = smul.addr %s1629, 8
          %s1631 = scalar_lea.vmem %s9, %s1630
        $region80: #{cnn1d_transformer_forward.3} parent=75 // pred_fallthru
          _
      $region76: #{cnn1d_transformer_forward.3} parent=5 // pred_fallthru
        _
    $region6: #{cnn1d_transformer_forward.3} parent=1 // loop_footer
      %s21 = sadd.s32 1, %s17
    $region7: #{cnn1d_transformer_forward.3} parent=1 // loop_footer_branch
      %16 = sbr.rel target = $region3
    $region8: #{cnn1d_transformer_forward.3} parent=1 // loop_exit
      _
    %1632 = vsyncpa [#allocation3], 1
    %s1633 = scalar_lea.sflag [#allocation3], 1
    %1634 = vsyncpa %s1633, 1
    %1635 = vsyncpa [#allocation5], 1

// kernel: cnn1d_transformer_forward.5
$region0: #{cnn1d_transformer_forward.5}
  #allocation0 [shape = 'u32[]', space=smem, size = 0x4, offset = 0x4, fixed_abs, tag = 'smem constant byte address 0x4 - core index']
  #allocation1 [shape = 'u32[144,128]{1,0:T(1,128)}', space=vmem, size = 0x12000, scoped, tag = 'internal scratch']
  %s0 = inlined_call_operand.vmem [shape: f32[2,16,32], index: 0, kind: input, shape index: {}]
  %s1 = inlined_call_operand.vmem [shape: bf16[32,96], index: 1, kind: input, shape index: {}]
  %s2 = inlined_call_operand.vmem [shape: f32[1,96], index: 2, kind: input, shape index: {}]
  %s3 = inlined_call_operand.vmem [shape: f32[32,32], index: 3, kind: input, shape index: {}]
  %s4 = inlined_call_operand.vmem [shape: f32[1,32], index: 4, kind: input, shape index: {}]
  %s5 = inlined_call_operand.vmem [shape: f32[1,32], index: 5, kind: input, shape index: {}]
  %s6 = inlined_call_operand.vmem [shape: f32[1,32], index: 6, kind: input, shape index: {}]
  %s7 = inlined_call_operand.vmem [shape: bf16[32,128], index: 7, kind: input, shape index: {}]
  %s8 = inlined_call_operand.vmem [shape: f32[1,128], index: 8, kind: input, shape index: {}]
  %s9 = inlined_call_operand.vmem [shape: bf16[128,32], index: 9, kind: input, shape index: {}]
  %s10 = inlined_call_operand.vmem [shape: f32[1,32], index: 10, kind: input, shape index: {}]
  %s11 = inlined_call_operand.vmem [shape: f32[1,32], index: 11, kind: input, shape index: {}]
  %s12 = inlined_call_operand.vmem [shape: f32[1,32], index: 12, kind: input, shape index: {}]
  %s13 = inlined_call_operand.vmem [shape: f32[32,3], index: 13, kind: input, shape index: {}]
  %s14 = inlined_call_operand.vmem [shape: f32[1,3], index: 14, kind: input, shape index: {}]
  %s15 = inlined_call_operand.hbm [shape: f32[2,1,3], index: 15, kind: output, shape index: {}]
  %s16 = sld [smem:[#allocation0]]
  $region93: #{cnn1d_transformer_forward.5} parent=0
    _
  %s18 = ssub.s32 1, %s16
  %s19 = scalar_select 0, %s18, %s16
  $region1: #{cnn1d_transformer_forward.5} parent=0
    #allocation2 [shape = 'u8[1024]{0}', space=vmem, size = 0x400, scoped, tag = 'output window, operand 0']
    #allocation3 [shape = 's32[2]{0}', space=sflag, size = 0x8, scoped, tag = 'scoped memory for cnn1d_transformer_forward.5']
    %20 = vsyncpa [#allocation3], 0
    %s21 = scalar_lea.sflag [#allocation3], 1
    %22 = vsyncpa %s21, 0
    loop: start=0, step=1, limit=4
    $region2: #{cnn1d_transformer_forward.5} parent=1 // loop_pre_header
      _
    $region3: #{cnn1d_transformer_forward.5} parent=1 // loop_header
      %s24 = sphi 0, %s28
      %p25 = scmp.ge.s32.totalorder %s24, 4
      %s34 = sphi 0, %s36
      %s37 = sphi 0, %s34
      %s38 = sphi 0, %s37
      %s54 = sphi 0, %s38
      %s58 = sphi 0, %s58
      %s60 = sphi 0, %s58
      %s61 = sphi 0, %s60
      %s75 = sphi 0, %s61
      %s79 = sphi 0, %s79
      %s81 = sphi 0, %s79
      %s82 = sphi 0, %s81
      %s96 = sphi 0, %s82
      %s100 = sphi 0, %s100
      %s102 = sphi 0, %s100
      %s103 = sphi 0, %s102
      %s117 = sphi 0, %s103
      %s121 = sphi 0, %s121
      %s123 = sphi 0, %s121
      %s124 = sphi 0, %s123
      %s138 = sphi 0, %s124
      %s142 = sphi 0, %s142
      %s144 = sphi 0, %s142
      %s145 = sphi 0, %s144
      %s159 = sphi 0, %s145
      %s163 = sphi 0, %s163
      %s165 = sphi 0, %s163
      %s166 = sphi 0, %s165
      %s180 = sphi 0, %s166
      %s184 = sphi 0, %s184
      %s186 = sphi 0, %s184
      %s187 = sphi 0, %s186
      %s201 = sphi 0, %s187
      %s205 = sphi 0, %s205
      %s207 = sphi 0, %s205
      %s208 = sphi 0, %s207
      %s222 = sphi 0, %s208
      %s226 = sphi 0, %s226
      %s228 = sphi 0, %s226
      %s229 = sphi 0, %s228
      %s243 = sphi 0, %s229
      %s247 = sphi 0, %s247
      %s249 = sphi 0, %s247
      %s250 = sphi 0, %s249
      %s264 = sphi 0, %s250
      %s268 = sphi 0, %s268
      %s270 = sphi 0, %s268
      %s271 = sphi 0, %s270
      %s285 = sphi 0, %s271
      %s289 = sphi 0, %s289
      %s291 = sphi 0, %s289
      %s292 = sphi 0, %s291
      %s306 = sphi 0, %s292
      %s310 = sphi 0, %s310
      %s312 = sphi 0, %s310
      %s313 = sphi 0, %s312
      %s327 = sphi 0, %s313
      %s331 = sphi 0, %s331
      %s333 = sphi 0, %s331
      %s334 = sphi 0, %s333
      %s348 = sphi 0, %s334
      %s354 = sphi 0, %s356
      %s357 = sphi 0, %s354
      %s358 = sphi 0, %s357
      %s374 = sphi 0, %s358
    $region4: #{cnn1d_transformer_forward.5} parent=1 // loop_header_branch
      %27 = sbr.rel (%p25) target = $region8
    $region5: #{cnn1d_transformer_forward.5} parent=1 // loop_body
      %s29 = ssub.s32 %s24, 1
      %s30 = ssub.s32 %s24, 2
      %s31 = sadd.s32 %s24, 1
      %s32 = ssub.s32 %s24, %s31
      %p33 = scmp.eq.s32.totalorder %s32, 0
      %s35 = sadd.s32 %s34, 1
      %s36 = scalar_select %p33, %s34, %s35
      %p39 = pneg %p33
      %p40 = scmp.eq.s32.totalorder %s24, 1
      %p41 = por %p39, %p40
      %p42 = scmp.ne.s32.totalorder %s34, %s37
      %p43 = scmp.eq.s32.totalorder %s24, 0
      %p44 = por %p42, %p43
      %p45 = scmp.ne.s32.totalorder %s34, %s37
      %p46 = scmp.eq.s32.totalorder %s29, 1
      %p47 = por %p45, %p46
      %p48 = scmp.ne.s32.totalorder %s37, %s38
      %p49 = scmp.eq.s32.totalorder %s29, 0
      %p50 = por %p48, %p49
      %p51 = scmp.ne.s32.totalorder %s37, %s38
      %p52 = scmp.eq.s32.totalorder %s30, 1
      %p53 = por %p51, %p52
      %p55 = scmp.ne.s32.totalorder %s38, %s54
      %p56 = scmp.eq.s32.totalorder %s30, 0
      %p57 = por %p55, %p56
      %s59 = sadd.s32 %s58, 1
      %p62 = scmp.eq.s32.totalorder %s24, 1
      %p63 = scmp.ne.s32.totalorder %s58, %s60
      %p64 = scmp.eq.s32.totalorder %s24, 0
      %p65 = por %p63, %p64
      %p66 = scmp.ne.s32.totalorder %s58, %s60
      %p67 = scmp.eq.s32.totalorder %s29, 1
      %p68 = por %p66, %p67
      %p69 = scmp.ne.s32.totalorder %s60, %s61
      %p70 = scmp.eq.s32.totalorder %s29, 0
      %p71 = por %p69, %p70
      %p72 = scmp.ne.s32.totalorder %s60, %s61
      %p73 = scmp.eq.s32.totalorder %s30, 1
      %p74 = por %p72, %p73
      %p76 = scmp.ne.s32.totalorder %s61, %s75
      %p77 = scmp.eq.s32.totalorder %s30, 0
      %p78 = por %p76, %p77
      %s80 = sadd.s32 %s79, 1
      %p83 = scmp.eq.s32.totalorder %s24, 1
      %p84 = scmp.ne.s32.totalorder %s79, %s81
      %p85 = scmp.eq.s32.totalorder %s24, 0
      %p86 = por %p84, %p85
      %p87 = scmp.ne.s32.totalorder %s79, %s81
      %p88 = scmp.eq.s32.totalorder %s29, 1
      %p89 = por %p87, %p88
      %p90 = scmp.ne.s32.totalorder %s81, %s82
      %p91 = scmp.eq.s32.totalorder %s29, 0
      %p92 = por %p90, %p91
      %p93 = scmp.ne.s32.totalorder %s81, %s82
      %p94 = scmp.eq.s32.totalorder %s30, 1
      %p95 = por %p93, %p94
      %p97 = scmp.ne.s32.totalorder %s82, %s96
      %p98 = scmp.eq.s32.totalorder %s30, 0
      %p99 = por %p97, %p98
      %s101 = sadd.s32 %s100, 1
      %p104 = scmp.eq.s32.totalorder %s24, 1
      %p105 = scmp.ne.s32.totalorder %s100, %s102
      %p106 = scmp.eq.s32.totalorder %s24, 0
      %p107 = por %p105, %p106
      %p108 = scmp.ne.s32.totalorder %s100, %s102
      %p109 = scmp.eq.s32.totalorder %s29, 1
      %p110 = por %p108, %p109
      %p111 = scmp.ne.s32.totalorder %s102, %s103
      %p112 = scmp.eq.s32.totalorder %s29, 0
      %p113 = por %p111, %p112
      %p114 = scmp.ne.s32.totalorder %s102, %s103
      %p115 = scmp.eq.s32.totalorder %s30, 1
      %p116 = por %p114, %p115
      %p118 = scmp.ne.s32.totalorder %s103, %s117
      %p119 = scmp.eq.s32.totalorder %s30, 0
      %p120 = por %p118, %p119
      %s122 = sadd.s32 %s121, 1
      %p125 = scmp.eq.s32.totalorder %s24, 1
      %p126 = scmp.ne.s32.totalorder %s121, %s123
      %p127 = scmp.eq.s32.totalorder %s24, 0
      %p128 = por %p126, %p127
      %p129 = scmp.ne.s32.totalorder %s121, %s123
      %p130 = scmp.eq.s32.totalorder %s29, 1
      %p131 = por %p129, %p130
      %p132 = scmp.ne.s32.totalorder %s123, %s124
      %p133 = scmp.eq.s32.totalorder %s29, 0
      %p134 = por %p132, %p133
      %p135 = scmp.ne.s32.totalorder %s123, %s124
      %p136 = scmp.eq.s32.totalorder %s30, 1
      %p137 = por %p135, %p136
      %p139 = scmp.ne.s32.totalorder %s124, %s138
      %p140 = scmp.eq.s32.totalorder %s30, 0
      %p141 = por %p139, %p140
      %s143 = sadd.s32 %s142, 1
      %p146 = scmp.eq.s32.totalorder %s24, 1
      %p147 = scmp.ne.s32.totalorder %s142, %s144
      %p148 = scmp.eq.s32.totalorder %s24, 0
      %p149 = por %p147, %p148
      %p150 = scmp.ne.s32.totalorder %s142, %s144
      %p151 = scmp.eq.s32.totalorder %s29, 1
      %p152 = por %p150, %p151
      %p153 = scmp.ne.s32.totalorder %s144, %s145
      %p154 = scmp.eq.s32.totalorder %s29, 0
      %p155 = por %p153, %p154
      %p156 = scmp.ne.s32.totalorder %s144, %s145
      %p157 = scmp.eq.s32.totalorder %s30, 1
      %p158 = por %p156, %p157
      %p160 = scmp.ne.s32.totalorder %s145, %s159
      %p161 = scmp.eq.s32.totalorder %s30, 0
      %p162 = por %p160, %p161
      %s164 = sadd.s32 %s163, 1
      %p167 = scmp.eq.s32.totalorder %s24, 1
      %p168 = scmp.ne.s32.totalorder %s163, %s165
      %p169 = scmp.eq.s32.totalorder %s24, 0
      %p170 = por %p168, %p169
      %p171 = scmp.ne.s32.totalorder %s163, %s165
      %p172 = scmp.eq.s32.totalorder %s29, 1
      %p173 = por %p171, %p172
      %p174 = scmp.ne.s32.totalorder %s165, %s166
      %p175 = scmp.eq.s32.totalorder %s29, 0
      %p176 = por %p174, %p175
      %p177 = scmp.ne.s32.totalorder %s165, %s166
      %p178 = scmp.eq.s32.totalorder %s30, 1
      %p179 = por %p177, %p178
      %p181 = scmp.ne.s32.totalorder %s166, %s180
      %p182 = scmp.eq.s32.totalorder %s30, 0
      %p183 = por %p181, %p182
      %s185 = sadd.s32 %s184, 1
      %p188 = scmp.eq.s32.totalorder %s24, 1
      %p189 = scmp.ne.s32.totalorder %s184, %s186
      %p190 = scmp.eq.s32.totalorder %s24, 0
      %p191 = por %p189, %p190
      %p192 = scmp.ne.s32.totalorder %s184, %s186
      %p193 = scmp.eq.s32.totalorder %s29, 1
      %p194 = por %p192, %p193
      %p195 = scmp.ne.s32.totalorder %s186, %s187
      %p196 = scmp.eq.s32.totalorder %s29, 0
      %p197 = por %p195, %p196
      %p198 = scmp.ne.s32.totalorder %s186, %s187
      %p199 = scmp.eq.s32.totalorder %s30, 1
      %p200 = por %p198, %p199
      %p202 = scmp.ne.s32.totalorder %s187, %s201
      %p203 = scmp.eq.s32.totalorder %s30, 0
      %p204 = por %p202, %p203
      %s206 = sadd.s32 %s205, 1
      %p209 = scmp.eq.s32.totalorder %s24, 1
      %p210 = scmp.ne.s32.totalorder %s205, %s207
      %p211 = scmp.eq.s32.totalorder %s24, 0
      %p212 = por %p210, %p211
      %p213 = scmp.ne.s32.totalorder %s205, %s207
      %p214 = scmp.eq.s32.totalorder %s29, 1
      %p215 = por %p213, %p214
      %p216 = scmp.ne.s32.totalorder %s207, %s208
      %p217 = scmp.eq.s32.totalorder %s29, 0
      %p218 = por %p216, %p217
      %p219 = scmp.ne.s32.totalorder %s207, %s208
      %p220 = scmp.eq.s32.totalorder %s30, 1
      %p221 = por %p219, %p220
      %p223 = scmp.ne.s32.totalorder %s208, %s222
      %p224 = scmp.eq.s32.totalorder %s30, 0
      %p225 = por %p223, %p224
      %s227 = sadd.s32 %s226, 1
      %p230 = scmp.eq.s32.totalorder %s24, 1
      %p231 = scmp.ne.s32.totalorder %s226, %s228
      %p232 = scmp.eq.s32.totalorder %s24, 0
      %p233 = por %p231, %p232
      %p234 = scmp.ne.s32.totalorder %s226, %s228
      %p235 = scmp.eq.s32.totalorder %s29, 1
      %p236 = por %p234, %p235
      %p237 = scmp.ne.s32.totalorder %s228, %s229
      %p238 = scmp.eq.s32.totalorder %s29, 0
      %p239 = por %p237, %p238
      %p240 = scmp.ne.s32.totalorder %s228, %s229
      %p241 = scmp.eq.s32.totalorder %s30, 1
      %p242 = por %p240, %p241
      %p244 = scmp.ne.s32.totalorder %s229, %s243
      %p245 = scmp.eq.s32.totalorder %s30, 0
      %p246 = por %p244, %p245
      %s248 = sadd.s32 %s247, 1
      %p251 = scmp.eq.s32.totalorder %s24, 1
      %p252 = scmp.ne.s32.totalorder %s247, %s249
      %p253 = scmp.eq.s32.totalorder %s24, 0
      %p254 = por %p252, %p253
      %p255 = scmp.ne.s32.totalorder %s247, %s249
      %p256 = scmp.eq.s32.totalorder %s29, 1
      %p257 = por %p255, %p256
      %p258 = scmp.ne.s32.totalorder %s249, %s250
      %p259 = scmp.eq.s32.totalorder %s29, 0
      %p260 = por %p258, %p259
      %p261 = scmp.ne.s32.totalorder %s249, %s250
      %p262 = scmp.eq.s32.totalorder %s30, 1
      %p263 = por %p261, %p262
      %p265 = scmp.ne.s32.totalorder %s250, %s264
      %p266 = scmp.eq.s32.totalorder %s30, 0
      %p267 = por %p265, %p266
      %s269 = sadd.s32 %s268, 1
      %p272 = scmp.eq.s32.totalorder %s24, 1
      %p273 = scmp.ne.s32.totalorder %s268, %s270
      %p274 = scmp.eq.s32.totalorder %s24, 0
      %p275 = por %p273, %p274
      %p276 = scmp.ne.s32.totalorder %s268, %s270
      %p277 = scmp.eq.s32.totalorder %s29, 1
      %p278 = por %p276, %p277
      %p279 = scmp.ne.s32.totalorder %s270, %s271
      %p280 = scmp.eq.s32.totalorder %s29, 0
      %p281 = por %p279, %p280
      %p282 = scmp.ne.s32.totalorder %s270, %s271
      %p283 = scmp.eq.s32.totalorder %s30, 1
      %p284 = por %p282, %p283
      %p286 = scmp.ne.s32.totalorder %s271, %s285
      %p287 = scmp.eq.s32.totalorder %s30, 0
      %p288 = por %p286, %p287
      %s290 = sadd.s32 %s289, 1
      %p293 = scmp.eq.s32.totalorder %s24, 1
      %p294 = scmp.ne.s32.totalorder %s289, %s291
      %p295 = scmp.eq.s32.totalorder %s24, 0
      %p296 = por %p294, %p295
      %p297 = scmp.ne.s32.totalorder %s289, %s291
      %p298 = scmp.eq.s32.totalorder %s29, 1
      %p299 = por %p297, %p298
      %p300 = scmp.ne.s32.totalorder %s291, %s292
      %p301 = scmp.eq.s32.totalorder %s29, 0
      %p302 = por %p300, %p301
      %p303 = scmp.ne.s32.totalorder %s291, %s292
      %p304 = scmp.eq.s32.totalorder %s30, 1
      %p305 = por %p303, %p304
      %p307 = scmp.ne.s32.totalorder %s292, %s306
      %p308 = scmp.eq.s32.totalorder %s30, 0
      %p309 = por %p307, %p308
      %s311 = sadd.s32 %s310, 1
      %p314 = scmp.eq.s32.totalorder %s24, 1
      %p315 = scmp.ne.s32.totalorder %s310, %s312
      %p316 = scmp.eq.s32.totalorder %s24, 0
      %p317 = por %p315, %p316
      %p318 = scmp.ne.s32.totalorder %s310, %s312
      %p319 = scmp.eq.s32.totalorder %s29, 1
      %p320 = por %p318, %p319
      %p321 = scmp.ne.s32.totalorder %s312, %s313
      %p322 = scmp.eq.s32.totalorder %s29, 0
      %p323 = por %p321, %p322
      %p324 = scmp.ne.s32.totalorder %s312, %s313
      %p325 = scmp.eq.s32.totalorder %s30, 1
      %p326 = por %p324, %p325
      %p328 = scmp.ne.s32.totalorder %s313, %s327
      %p329 = scmp.eq.s32.totalorder %s30, 0
      %p330 = por %p328, %p329
      %s332 = sadd.s32 %s331, 1
      %p335 = scmp.eq.s32.totalorder %s24, 1
      %p336 = scmp.ne.s32.totalorder %s331, %s333
      %p337 = scmp.eq.s32.totalorder %s24, 0
      %p338 = por %p336, %p337
      %p339 = scmp.ne.s32.totalorder %s331, %s333
      %p340 = scmp.eq.s32.totalorder %s29, 1
      %p341 = por %p339, %p340
      %p342 = scmp.ne.s32.totalorder %s333, %s334
      %p343 = scmp.eq.s32.totalorder %s29, 0
      %p344 = por %p342, %p343
      %p345 = scmp.ne.s32.totalorder %s333, %s334
      %p346 = scmp.eq.s32.totalorder %s30, 1
      %p347 = por %p345, %p346
      %p349 = scmp.ne.s32.totalorder %s334, %s348
      %p350 = scmp.eq.s32.totalorder %s30, 0
      %p351 = por %p349, %p350
      %s352 = ssub.s32 %s24, %s31
      %p353 = scmp.eq.s32.totalorder %s352, 0
      %s355 = sadd.s32 %s354, 1
      %s356 = scalar_select %p353, %s354, %s355
      %p359 = pneg %p353
      %p360 = scmp.eq.s32.totalorder %s24, 1
      %p361 = por %p359, %p360
      %p362 = scmp.ne.s32.totalorder %s354, %s357
      %p363 = scmp.eq.s32.totalorder %s24, 0
      %p364 = por %p362, %p363
      %p365 = scmp.ne.s32.totalorder %s354, %s357
      %p366 = scmp.eq.s32.totalorder %s29, 1
      %p367 = por %p365, %p366
      %p368 = scmp.ne.s32.totalorder %s357, %s358
      %p369 = scmp.eq.s32.totalorder %s29, 0
      %p370 = por %p368, %p369
      %p371 = scmp.ne.s32.totalorder %s357, %s358
      %p372 = scmp.eq.s32.totalorder %s30, 1
      %p373 = por %p371, %p372
      %p375 = scmp.ne.s32.totalorder %s358, %s374
      %p376 = scmp.eq.s32.totalorder %s30, 0
      %p377 = por %p375, %p376
      %p378 = scmp.le.s32.totalorder 1, %s24
      %p379 = scmp.lt.s32.totalorder %s24, 3
      %p380 = pnand %p378, %p379
      %p381 = pneg %p380
      // Predicated region
      $region9: #{cnn1d_transformer_forward.5} parent=5 // pred_check
        _
      $region10: #{cnn1d_transformer_forward.5} parent=5 // pred_check_branch
        %383 = sbr.rel (%p380) target = $region12
      $region11: #{cnn1d_transformer_forward.5} parent=5 // pred_region
        %s384 = ssub.s32 %s24, 1
        // Predicated region
        $region13: #{cnn1d_transformer_forward.5} parent=11 // pred_check
          %p385 = pneg %p71
        $region14: #{cnn1d_transformer_forward.5} parent=11 // pred_check_branch
          %387 = sbr.rel (%p385) target = $region16
        $region15: #{cnn1d_transformer_forward.5} parent=11 // pred_region
          _
        $region16: #{cnn1d_transformer_forward.5} parent=11 // pred_fallthru
          _
        // Predicated region
        $region17: #{cnn1d_transformer_forward.5} parent=11 // pred_check
          %p388 = pneg %p92
        $region18: #{cnn1d_transformer_forward.5} parent=11 // pred_check_branch
          %390 = sbr.rel (%p388) target = $region20
        $region19: #{cnn1d_transformer_forward.5} parent=11 // pred_region
          _
        $region20: #{cnn1d_transformer_forward.5} parent=11 // pred_fallthru
          _
        // Predicated region
        $region21: #{cnn1d_transformer_forward.5} parent=11 // pred_check
          %p391 = pneg %p113
        $region22: #{cnn1d_transformer_forward.5} parent=11 // pred_check_branch
          %393 = sbr.rel (%p391) target = $region24
        $region23: #{cnn1d_transformer_forward.5} parent=11 // pred_region
          _
        $region24: #{cnn1d_transformer_forward.5} parent=11 // pred_fallthru
          _
        // Predicated region
        $region25: #{cnn1d_transformer_forward.5} parent=11 // pred_check
          %p394 = pneg %p134
        $region26: #{cnn1d_transformer_forward.5} parent=11 // pred_check_branch
          %396 = sbr.rel (%p394) target = $region28
        $region27: #{cnn1d_transformer_forward.5} parent=11 // pred_region
          _
        $region28: #{cnn1d_transformer_forward.5} parent=11 // pred_fallthru
          _
        // Predicated region
        $region29: #{cnn1d_transformer_forward.5} parent=11 // pred_check
          %p397 = pneg %p155
        $region30: #{cnn1d_transformer_forward.5} parent=11 // pred_check_branch
          %399 = sbr.rel (%p397) target = $region32
        $region31: #{cnn1d_transformer_forward.5} parent=11 // pred_region
          _
        $region32: #{cnn1d_transformer_forward.5} parent=11 // pred_fallthru
          _
        // Predicated region
        $region33: #{cnn1d_transformer_forward.5} parent=11 // pred_check
          %p400 = pneg %p176
        $region34: #{cnn1d_transformer_forward.5} parent=11 // pred_check_branch
          %402 = sbr.rel (%p400) target = $region36
        $region35: #{cnn1d_transformer_forward.5} parent=11 // pred_region
          _
        $region36: #{cnn1d_transformer_forward.5} parent=11 // pred_fallthru
          _
        // Predicated region
        $region37: #{cnn1d_transformer_forward.5} parent=11 // pred_check
          %p403 = pneg %p197
        $region38: #{cnn1d_transformer_forward.5} parent=11 // pred_check_branch
          %405 = sbr.rel (%p403) target = $region40
        $region39: #{cnn1d_transformer_forward.5} parent=11 // pred_region
          _
        $region40: #{cnn1d_transformer_forward.5} parent=11 // pred_fallthru
          _
        // Predicated region
        $region41: #{cnn1d_transformer_forward.5} parent=11 // pred_check
          %p406 = pneg %p218
        $region42: #{cnn1d_transformer_forward.5} parent=11 // pred_check_branch
          %408 = sbr.rel (%p406) target = $region44
        $region43: #{cnn1d_transformer_forward.5} parent=11 // pred_region
          _
        $region44: #{cnn1d_transformer_forward.5} parent=11 // pred_fallthru
          _
        // Predicated region
        $region45: #{cnn1d_transformer_forward.5} parent=11 // pred_check
          %p409 = pneg %p239
        $region46: #{cnn1d_transformer_forward.5} parent=11 // pred_check_branch
          %411 = sbr.rel (%p409) target = $region48
        $region47: #{cnn1d_transformer_forward.5} parent=11 // pred_region
          _
        $region48: #{cnn1d_transformer_forward.5} parent=11 // pred_fallthru
          _
        // Predicated region
        $region49: #{cnn1d_transformer_forward.5} parent=11 // pred_check
          %p412 = pneg %p260
        $region50: #{cnn1d_transformer_forward.5} parent=11 // pred_check_branch
          %414 = sbr.rel (%p412) target = $region52
        $region51: #{cnn1d_transformer_forward.5} parent=11 // pred_region
          _
        $region52: #{cnn1d_transformer_forward.5} parent=11 // pred_fallthru
          _
        // Predicated region
        $region53: #{cnn1d_transformer_forward.5} parent=11 // pred_check
          %p415 = pneg %p281
        $region54: #{cnn1d_transformer_forward.5} parent=11 // pred_check_branch
          %417 = sbr.rel (%p415) target = $region56
        $region55: #{cnn1d_transformer_forward.5} parent=11 // pred_region
          _
        $region56: #{cnn1d_transformer_forward.5} parent=11 // pred_fallthru
          _
        // Predicated region
        $region57: #{cnn1d_transformer_forward.5} parent=11 // pred_check
          %p418 = pneg %p302
        $region58: #{cnn1d_transformer_forward.5} parent=11 // pred_check_branch
          %420 = sbr.rel (%p418) target = $region60
        $region59: #{cnn1d_transformer_forward.5} parent=11 // pred_region
          _
        $region60: #{cnn1d_transformer_forward.5} parent=11 // pred_fallthru
          _
        // Predicated region
        $region61: #{cnn1d_transformer_forward.5} parent=11 // pred_check
          %p421 = pneg %p323
        $region62: #{cnn1d_transformer_forward.5} parent=11 // pred_check_branch
          %423 = sbr.rel (%p421) target = $region64
        $region63: #{cnn1d_transformer_forward.5} parent=11 // pred_region
          _
        $region64: #{cnn1d_transformer_forward.5} parent=11 // pred_fallthru
          _
        // Predicated region
        $region65: #{cnn1d_transformer_forward.5} parent=11 // pred_check
          %p424 = pneg %p344
        $region66: #{cnn1d_transformer_forward.5} parent=11 // pred_check_branch
          %426 = sbr.rel (%p424) target = $region68
        $region67: #{cnn1d_transformer_forward.5} parent=11 // pred_region
          _
        $region68: #{cnn1d_transformer_forward.5} parent=11 // pred_fallthru
          _
      $region12: #{cnn1d_transformer_forward.5} parent=5 // pred_fallthru
        _
      %p427 = scmp.lt.s32.totalorder %s24, 2
      // Predicated region
      $region69: #{cnn1d_transformer_forward.5} parent=5 // pred_check
        %p428 = pneg %p427
      $region70: #{cnn1d_transformer_forward.5} parent=5 // pred_check_branch
        %430 = sbr.rel (%p428) target = $region72
      $region71: #{cnn1d_transformer_forward.5} parent=5 // pred_region
        // Predicated region
        $region73: #{cnn1d_transformer_forward.5} parent=71 // pred_check
          %p431 = pneg %p44
        $region74: #{cnn1d_transformer_forward.5} parent=71 // pred_check_branch
          %433 = sbr.rel (%p431) target = $region76
        $region75: #{cnn1d_transformer_forward.5} parent=71 // pred_region
          %p434 = scmp.lt.s32.totalorder %s24, 1
          %s435 = scalar_select %p434, %s24, 1
          %s436 = smul.addr %s435, 2
          %s437 = smul.addr %s436, 8
          %s438 = scalar_lea.vmem %s0, %s437
        $region76: #{cnn1d_transformer_forward.5} parent=71 // pred_fallthru
          _
      $region72: #{cnn1d_transformer_forward.5} parent=5 // pred_fallthru
        _
      %p439 = scmp.le.s32.totalorder 1, %s24
      %p440 = scmp.lt.s32.totalorder %s24, 3
      %p441 = pnand %p439, %p440
      %p442 = pneg %p441
      // Predicated region
      $region77: #{cnn1d_transformer_forward.5} parent=5 // pred_check
        _
      $region78: #{cnn1d_transformer_forward.5} parent=5 // pred_check_branch
        %444 = sbr.rel (%p441) target = $region80
      $region79: #{cnn1d_transformer_forward.5} parent=5 // pred_region
        %s445 = ssub.s32 %s24, 1
        %p446 = scmp.lt.s32.totalorder %s29, 1
        %s447 = scalar_select %p446, %s29, 1
        %s448 = smul.addr %s447, 2
        %s449 = smul.addr %s448, 8
        %s450 = scalar_lea.vmem %s0, %s449
        %p451 = pneg %p50
        %p452 = pneg %p47
        %p453 = pneg %p71
        %p454 = pneg %p68
        %p455 = pneg %p92
        %p456 = pneg %p89
        %p457 = pneg %p113
        %p458 = pneg %p110
        %p459 = pneg %p134
        %p460 = pneg %p131
        %p461 = pneg %p155
        %p462 = pneg %p152
        %p463 = pneg %p176
        %p464 = pneg %p173
        %p465 = pneg %p197
        %p466 = pneg %p194
        %p467 = pneg %p218
        %p468 = pneg %p215
        %p469 = pneg %p239
        %p470 = pneg %p236
        %p471 = pneg %p260
        %p472 = pneg %p257
        %p473 = pneg %p281
        %p474 = pneg %p278
        %p475 = pneg %p302
        %p476 = pneg %p299
        %p477 = pneg %p323
        %p478 = pneg %p320
        %p479 = pneg %p344
        %p480 = pneg %p341
        %p481 = pneg %p370
        %p482 = pneg %p367
        %s483 = sand.u32 %s357, 1
        %s484 = scalar_lea.sflag [#allocation3], %s483
        %s485 = sand.u32 %s357, 1
        %s486 = scalar_lea.vmem [#allocation2], %s485
        %p487 = scmp.lt.s32.totalorder %s29, 1
        %s488 = scalar_select %p487, %s29, 1
        %s489 = smul.addr %s488, 2
        %s490 = smul.addr %s489, 8
        %s491 = scalar_lea.vmem %s0, %s490
        %v493 = vld [vmem:[%s491] sm:$0xff]
        %v494 = vld [vmem:[%s491 + $0x8] sm:$0xff]
        %v495 = vld [vmem:[%s1] sm:$0xf]
        %v496 = vld [vmem:[%s1 + $0x4] sm:$0xf]
        %v497 = vld [vmem:[%s1 + $0x8] sm:$0xf]
        %v498 = vld [vmem:[%s1 + $0xc] sm:$0xf]
        %v499 = vld [vmem:[%s2] sm:$0x1]
        %v500 = vld [vmem:[%s3] sm:$0xff]
        %v501 = vld [vmem:[%s3 + $0x8] sm:$0xff]
        %v502 = vld [vmem:[%s3 + $0x10] sm:$0xff]
        %v503 = vld [vmem:[%s3 + $0x18] sm:$0xff]
        %v504 = vld [vmem:[%s4] sm:$0x1]
        %v505 = vld [vmem:[%s5] sm:$0x1]
        %v506 = vld [vmem:[%s6] sm:$0x1]
        %v507 = vld [vmem:[%s7] sm:$0xf]
        %v508 = vld [vmem:[%s7 + $0x4] sm:$0xf]
        %v509 = vld [vmem:[%s7 + $0x8] sm:$0xf]
        %v510 = vld [vmem:[%s7 + $0xc] sm:$0xf]
        %v511 = vld [vmem:[%s8] sm:$0x1]
        %v512 = vld [vmem:[%s9] sm:$0xf]
        %v513 = vld [vmem:[%s9 + $0x4] sm:$0xf]
        %v514 = vld [vmem:[%s9 + $0x8] sm:$0xf]
        %v515 = vld [vmem:[%s9 + $0xc] sm:$0xf]
        %v516 = vld [vmem:[%s9 + $0x10] sm:$0xf]
        %v517 = vld [vmem:[%s9 + $0x14] sm:$0xf]
        %v518 = vld [vmem:[%s9 + $0x18] sm:$0xf]
        %v519 = vld [vmem:[%s9 + $0x1c] sm:$0xf]
        %v520 = vld [vmem:[%s9 + $0x20] sm:$0xf]
        %v521 = vld [vmem:[%s9 + $0x24] sm:$0xf]
        %v522 = vld [vmem:[%s9 + $0x28] sm:$0xf]
        %v523 = vld [vmem:[%s9 + $0x2c] sm:$0xf]
        %v524 = vld [vmem:[%s9 + $0x30] sm:$0xf]
        %v525 = vld [vmem:[%s9 + $0x34] sm:$0xf]
        %v526 = vld [vmem:[%s9 + $0x38] sm:$0xf]
        %v527 = vld [vmem:[%s9 + $0x3c] sm:$0xf]
        %v528 = vld [vmem:[%s10] sm:$0x1]
        %v529 = vld [vmem:[%s11] sm:$0x1]
        %v530 = vld [vmem:[%s12] sm:$0x1]
        %v531 = vpack.c.bf16 %v494, %v493
        %v533 = vlaneseq
        %v534 = vshrl.u32 %v533, 7
        %v535 = vsub.s32 0, %v534
        %v536 = vrot.slane %v499, %v535
        %v542 = vunpack.c.l.b16 %v495
        %v543 = vunpack.c.l.b16 %v496
        %v544 = vunpack.c.l.b16 %v497
        %v545 = vunpack.c.l.b16 %v498
        %v546 = vpack.c.b16 %v543, %v542
        %v547 = vpack.c.b16 %v545, %v544
        %vm550 = vcmask 261120
        %v552 = vsel %vm550, %v531, 0
        %554 = vmatprep.subr.bf16.mxu0 0
        %555 = vmatpush1.bf16.msra.mxu0 %v546
        %556 = vmatprep.subr.bf16.mxu0 0
        %557 = vmatpush1.bf16.msra.mxu0 %v547
        %558 = vmatprep.subr.bf16.mxu0 0
        %559 = vmatpush1.bf16.msra.mxu0 0
        %560 = vmatprep.subr.bf16.mxu0 0
        %561 = vmatpush1.bf16.msra.mxu0 0
        %562 = vmatprep.subr.bf16.mxu0 0
        %563 = vmatpush1.bf16.msra.mxu0 0
        %564 = vmatprep.subr.bf16.mxu0 0
        %565 = vmatpush1.bf16.msra.mxu0 0
        %566 = vmatprep.subr.bf16.mxu0 0
        %567 = vmatpush1.bf16.msra.mxu0 0
        %568 = vmatprep.subr.bf16.mxu0 0
        %569 = vmatpush1.bf16.msra.mxu0 0
        %570 = vmatprep.subr.bf16.mxu0 0
        %571 = vmatpush1.bf16.msra.mxu0 0
        %572 = vmatprep.subr.bf16.mxu0 0
        %573 = vmatpush1.bf16.msra.mxu0 0
        %574 = vmatprep.subr.bf16.mxu0 0
        %575 = vmatpush1.bf16.msra.mxu0 0
        %576 = vmatprep.subr.bf16.mxu0 0
        %577 = vmatpush1.bf16.msra.mxu0 0
        %578 = vmatprep.subr.bf16.mxu0 0
        %579 = vmatpush1.bf16.msra.mxu0 0
        %580 = vmatprep.subr.bf16.mxu0 0
        %581 = vmatpush1.bf16.msra.mxu0 0
        %582 = vmatprep.subr.bf16.mxu0 0
        %583 = vmatpush1.bf16.msra.mxu0 0
        %584 = vmatprep.subr.bf16.mxu0 0
        %585 = vmatpush1.bf16.msra.mxu0 0
        %586 = vmatprep.mubr.bf16.mxu0 0
        %587 = vmatmul.mubr.bf16.gmra.mrb[0].mxu0 %v552
        %v588 = vpop.f32.mrb[0].mxu0
        %v589 = vadd.f32 %v536, %v588
        %v590 = vpop.f32.mrb[0].mxu0
        %v591 = vpop.f32.mrb[0].mxu0
        %v592 = vadd.f32 %v536, %v591
        %v593 = vpop.f32.mrb[0].mxu0
        %594 = vdwg.mxu0
        %v595 = vlaneseq
        %v596 = vshrl.u32 %v595, 7
        %v597 = vadd.s32 %v596, 8
        %v598 = vadd.s32 %v596, 16
        %v599 = vadd.s32 %v596, 24
        %v600 = vadd.s32 %v596, 32
        %v601 = vadd.s32 %v596, 40
        %v602 = vadd.s32 %v596, 48
        %v603 = vadd.s32 %v596, 56
        %v604 = vadd.s32 %v596, 64
        %v605 = vadd.s32 %v596, 72
        %v606 = vadd.s32 %v596, 80
        %v607 = vadd.s32 %v596, 88
        %v608 = vlaneseq
        %v609 = vand.u32 %v608, 127
        %vm610 = vcmp.eq.s32.totalorder %v596, %v609
        %vm611 = vcmp.eq.s32.totalorder %v597, %v609
        %vm612 = vcmp.eq.s32.totalorder %v598, %v609
        %vm613 = vcmp.eq.s32.totalorder %v599, %v609
        %vm614 = vcmp.eq.s32.totalorder %v600, %v609
        %vm615 = vcmp.eq.s32.totalorder %v601, %v609
        %vm616 = vcmp.eq.s32.totalorder %v602, %v609
        %vm617 = vcmp.eq.s32.totalorder %v603, %v609
        %vm618 = vcmp.eq.s32.totalorder %v604, %v609
        %vm619 = vcmp.eq.s32.totalorder %v605, %v609
        %vm620 = vcmp.eq.s32.totalorder %v606, %v609
        %vm621 = vcmp.eq.s32.totalorder %v607, %v609
        %v622 = vsel %vm610, 1, 0
        %v623 = vsel %vm611, 1, 0
        %v624 = vsel %vm612, 1, 0
        %v625 = vsel %vm613, 1, 0
        %v626 = vsel %vm614, 1, 0
        %v627 = vsel %vm615, 1, 0
        %v628 = vsel %vm616, 1, 0
        %v629 = vsel %vm617, 1, 0
        %v630 = vsel %vm618, 1, 0
        %v631 = vsel %vm619, 1, 0
        %v632 = vsel %vm620, 1, 0
        %v633 = vsel %vm621, 1, 0
        %v634 = vcvt.s32.f32 %v622
        %v635 = vcvt.s32.f32 %v623
        %v636 = vcvt.s32.f32 %v624
        %v637 = vcvt.s32.f32 %v625
        %v638 = vcvt.s32.f32 %v626
        %v639 = vcvt.s32.f32 %v627
        %v640 = vcvt.s32.f32 %v628
        %v641 = vcvt.s32.f32 %v629
        %v642 = vcvt.s32.f32 %v630
        %v643 = vcvt.s32.f32 %v631
        %v644 = vcvt.s32.f32 %v632
        %v645 = vcvt.s32.f32 %v633
        %vm646 = vcmask 785408
        %v648 = vsel %vm646, %v589, 0
        %v651 = vsel %vm646, %v592, 0
        %653 = vmatprep.subr.mxu0 0.0
        %654 = vmatpush1.msra.mxu0 %v634
        %655 = vmatprep.subr.mxu0 0.0
        %656 = vmatpush1.msra.mxu0 %v635
        %657 = vmatprep.subr.mxu0 0.0
        %658 = vmatpush1.msra.mxu0 %v636
        %659 = vmatprep.subr.mxu0 0.0
        %660 = vmatpush1.msra.mxu0 %v637
        %661 = vmatprep.subr.mxu0 0.0
        %662 = vmatpush1.msra.mxu0 %v638
        %663 = vmatprep.subr.mxu0 0.0
        %664 = vmatpush1.msra.mxu0 %v639
        %665 = vmatprep.subr.mxu0 0.0
        %666 = vmatpush1.msra.mxu0 %v640
        %667 = vmatprep.subr.mxu0 0.0
        %668 = vmatpush1.msra.mxu0 %v641
        %669 = vmatprep.subr.mxu0 0.0
        %670 = vmatpush1.msra.mxu0 %v642
        %671 = vmatprep.subr.mxu0 0.0
        %672 = vmatpush1.msra.mxu0 %v643
        %673 = vmatprep.subr.mxu0 0.0
        %674 = vmatpush1.msra.mxu0 %v644
        %675 = vmatprep.subr.mxu0 0.0
        %676 = vmatpush1.msra.mxu0 %v645
        %677 = vmatprep.subr.mxu0 0.0
        %678 = vmatpush1.msra.mxu0 0.0
        %679 = vmatprep.subr.mxu0 0.0
        %680 = vmatpush1.msra.mxu0 0.0
        %681 = vmatprep.subr.mxu0 0.0
        %682 = vmatpush1.msra.mxu0 0.0
        %683 = vmatprep.subr.mxu0 0.0
        %684 = vmatpush1.msra.mxu0 0.0
        %685 = vmatprep.subr.mxu0 0.0
        %686 = vmatpush1.msra.mxu0 0.0
        %687 = vmatprep.subr.mxu0 0.0
        %688 = vmatpush1.msra.mxu0 0.0
        %689 = vmatprep.subr.mxu0 0.0
        %690 = vmatpush1.msra.mxu0 0.0
        %691 = vmatprep.subr.mxu0 0.0
        %692 = vmatpush1.msra.mxu0 0.0
        %693 = vmatprep.subr.mxu0 0.0
        %694 = vmatpush1.msra.mxu0 0.0
        %695 = vmatprep.subr.mxu0 0.0
        %696 = vmatpush1.msra.mxu0 0.0
        %697 = vmatprep.subr.mxu0 0.0
        %698 = vmatpush1.msra.mxu0 0.0
        %699 = vmatprep.subr.mxu0 0.0
        %700 = vmatpush1.msra.mxu0 0.0
        %701 = vmatprep.subr.mxu0 0.0
        %702 = vmatpush1.msra.mxu0 0.0
        %703 = vmatprep.subr.mxu0 0.0
        %704 = vmatpush1.msra.mxu0 0.0
        %705 = vmatprep.subr.mxu0 0.0
        %706 = vmatpush1.msra.mxu0 0.0
        %707 = vmatprep.subr.mxu0 0.0
        %708 = vmatpush1.msra.mxu0 0.0
        %709 = vmatprep.subr.mxu0 0.0
        %710 = vmatpush1.msra.mxu0 0.0
        %711 = vmatprep.subr.mxu0 0.0
        %712 = vmatpush1.msra.mxu0 0.0
        %713 = vmatprep.subr.mxu0 0.0
        %714 = vmatpush1.msra.mxu0 0.0
        %715 = vmatprep.subr.mxu0 0.0
        %716 = vmatpush1.msra.mxu0 0.0
        %717 = vmatprep.mubr.f32.mxu0 0.0
        %718 = vmatmul.mubr.f32.gmra.mrb[0].mxu0 %v648
        %v719 = vpop.f32.mrb[0].mxu0
        %v720 = vadd.f32 0.0, %v719
        %v721 = vpop.f32.mrb[0].mxu0
        %722 = vmatprep.mubr.f32.mxu0 0.0
        %723 = vmatmul.mubr.f32.gmra.mrb[0].mxu0 %v651
        %v724 = vpop.f32.mrb[0].mxu0
        %v725 = vadd.f32 0.0, %v724
        %v726 = vpop.f32.mrb[0].mxu0
        %727 = vdwg.mxu0
        %v728 = vadd.s32 %v609, 32
        %vm729 = vcmp.eq.s32.totalorder %v596, %v728
        %vm730 = vcmp.eq.s32.totalorder %v597, %v728
        %vm731 = vcmp.eq.s32.totalorder %v598, %v728
        %vm732 = vcmp.eq.s32.totalorder %v599, %v728
        %vm733 = vcmp.eq.s32.totalorder %v600, %v728
        %vm734 = vcmp.eq.s32.totalorder %v601, %v728
        %vm735 = vcmp.eq.s32.totalorder %v602, %v728
        %vm736 = vcmp.eq.s32.totalorder %v603, %v728
        %vm737 = vcmp.eq.s32.totalorder %v604, %v728
        %vm738 = vcmp.eq.s32.totalorder %v605, %v728
        %vm739 = vcmp.eq.s32.totalorder %v606, %v728
        %vm740 = vcmp.eq.s32.totalorder %v607, %v728
        %v741 = vsel %vm729, 1, 0
        %v742 = vsel %vm730, 1, 0
        %v743 = vsel %vm731, 1, 0
        %v744 = vsel %vm732, 1, 0
        %v745 = vsel %vm733, 1, 0
        %v746 = vsel %vm734, 1, 0
        %v747 = vsel %vm735, 1, 0
        %v748 = vsel %vm736, 1, 0
        %v749 = vsel %vm737, 1, 0
        %v750 = vsel %vm738, 1, 0
        %v751 = vsel %vm739, 1, 0
        %v752 = vsel %vm740, 1, 0
        %v753 = vcvt.s32.f32 %v741
        %v754 = vcvt.s32.f32 %v742
        %v755 = vcvt.s32.f32 %v743
        %v756 = vcvt.s32.f32 %v744
        %v757 = vcvt.s32.f32 %v745
        %v758 = vcvt.s32.f32 %v746
        %v759 = vcvt.s32.f32 %v747
        %v760 = vcvt.s32.f32 %v748
        %v761 = vcvt.s32.f32 %v749
        %v762 = vcvt.s32.f32 %v750
        %v763 = vcvt.s32.f32 %v751
        %v764 = vcvt.s32.f32 %v752
        %765 = vmatprep.subr.mxu0 0.0
        %766 = vmatpush1.msra.mxu0 %v753
        %767 = vmatprep.subr.mxu0 0.0
        %768 = vmatpush1.msra.mxu0 %v754
        %769 = vmatprep.subr.mxu0 0.0
        %770 = vmatpush1.msra.mxu0 %v755
        %771 = vmatprep.subr.mxu0 0.0
        %772 = vmatpush1.msra.mxu0 %v756
        %773 = vmatprep.subr.mxu0 0.0
        %774 = vmatpush1.msra.mxu0 %v757
        %775 = vmatprep.subr.mxu0 0.0
        %776 = vmatpush1.msra.mxu0 %v758
        %777 = vmatprep.subr.mxu0 0.0
        %778 = vmatpush1.msra.mxu0 %v759
        %779 = vmatprep.subr.mxu0 0.0
        %780 = vmatpush1.msra.mxu0 %v760
        %781 = vmatprep.subr.mxu0 0.0
        %782 = vmatpush1.msra.mxu0 %v761
        %783 = vmatprep.subr.mxu0 0.0
        %784 = vmatpush1.msra.mxu0 %v762
        %785 = vmatprep.subr.mxu0 0.0
        %786 = vmatpush1.msra.mxu0 %v763
        %787 = vmatprep.subr.mxu0 0.0
        %788 = vmatpush1.msra.mxu0 %v764
        %789 = vmatprep.subr.mxu0 0.0
        %790 = vmatpush1.msra.mxu0 0.0
        %791 = vmatprep.subr.mxu0 0.0
        %792 = vmatpush1.msra.mxu0 0.0
        %793 = vmatprep.subr.mxu0 0.0
        %794 = vmatpush1.msra.mxu0 0.0
        %795 = vmatprep.subr.mxu0 0.0
        %796 = vmatpush1.msra.mxu0 0.0
        %797 = vmatprep.subr.mxu0 0.0
        %798 = vmatpush1.msra.mxu0 0.0
        %799 = vmatprep.subr.mxu0 0.0
        %800 = vmatpush1.msra.mxu0 0.0
        %801 = vmatprep.subr.mxu0 0.0
        %802 = vmatpush1.msra.mxu0 0.0
        %803 = vmatprep.subr.mxu0 0.0
        %804 = vmatpush1.msra.mxu0 0.0
        %805 = vmatprep.subr.mxu0 0.0
        %806 = vmatpush1.msra.mxu0 0.0
        %807 = vmatprep.subr.mxu0 0.0
        %808 = vmatpush1.msra.mxu0 0.0
        %809 = vmatprep.subr.mxu0 0.0
        %810 = vmatpush1.msra.mxu0 0.0
        %811 = vmatprep.subr.mxu0 0.0
        %812 = vmatpush1.msra.mxu0 0.0
        %813 = vmatprep.subr.mxu0 0.0
        %814 = vmatpush1.msra.mxu0 0.0
        %815 = vmatprep.subr.mxu0 0.0
        %816 = vmatpush1.msra.mxu0 0.0
        %817 = vmatprep.subr.mxu0 0.0
        %818 = vmatpush1.msra.mxu0 0.0
        %819 = vmatprep.subr.mxu0 0.0
        %820 = vmatpush1.msra.mxu0 0.0
        %821 = vmatprep.subr.mxu0 0.0
        %822 = vmatpush1.msra.mxu0 0.0
        %823 = vmatprep.subr.mxu0 0.0
        %824 = vmatpush1.msra.mxu0 0.0
        %825 = vmatprep.subr.mxu0 0.0
        %826 = vmatpush1.msra.mxu0 0.0
        %827 = vmatprep.subr.mxu0 0.0
        %828 = vmatpush1.msra.mxu0 0.0
        %829 = vmatprep.mubr.f32.mxu0 0.0
        %830 = vmatmul.mubr.f32.gmra.mrb[0].mxu0 %v648
        %v831 = vpop.f32.mrb[0].mxu0
        %v832 = vadd.f32 0.0, %v831
        %v833 = vpop.f32.mrb[0].mxu0
        %834 = vmatprep.mubr.f32.mxu0 0.0
        %835 = vmatmul.mubr.f32.gmra.mrb[0].mxu0 %v651
        %v836 = vpop.f32.mrb[0].mxu0
        %v837 = vadd.f32 0.0, %v836
        %v838 = vpop.f32.mrb[0].mxu0
        %839 = vdwg.mxu0
        %v840 = vadd.s32 %v609, 64
        %vm841 = vcmp.eq.s32.totalorder %v596, %v840
        %vm842 = vcmp.eq.s32.totalorder %v597, %v840
        %vm843 = vcmp.eq.s32.totalorder %v598, %v840
        %vm844 = vcmp.eq.s32.totalorder %v599, %v840
        %vm845 = vcmp.eq.s32.totalorder %v600, %v840
        %vm846 = vcmp.eq.s32.totalorder %v601, %v840
        %vm847 = vcmp.eq.s32.totalorder %v602, %v840
        %vm848 = vcmp.eq.s32.totalorder %v603, %v840
        %vm849 = vcmp.eq.s32.totalorder %v604, %v840
        %vm850 = vcmp.eq.s32.totalorder %v605, %v840
        %vm851 = vcmp.eq.s32.totalorder %v606, %v840
        %vm852 = vcmp.eq.s32.totalorder %v607, %v840
        %v853 = vsel %vm841, 1, 0
        %v854 = vsel %vm842, 1, 0
        %v855 = vsel %vm843, 1, 0
        %v856 = vsel %vm844, 1, 0
        %v857 = vsel %vm845, 1, 0
        %v858 = vsel %vm846, 1, 0
        %v859 = vsel %vm847, 1, 0
        %v860 = vsel %vm848, 1, 0
        %v861 = vsel %vm849, 1, 0
        %v862 = vsel %vm850, 1, 0
        %v863 = vsel %vm851, 1, 0
        %v864 = vsel %vm852, 1, 0
        %v865 = vcvt.s32.f32 %v853
        %v866 = vcvt.s32.f32 %v854
        %v867 = vcvt.s32.f32 %v855
        %v868 = vcvt.s32.f32 %v856
        %v869 = vcvt.s32.f32 %v857
        %v870 = vcvt.s32.f32 %v858
        %v871 = vcvt.s32.f32 %v859
        %v872 = vcvt.s32.f32 %v860
        %v873 = vcvt.s32.f32 %v861
        %v874 = vcvt.s32.f32 %v862
        %v875 = vcvt.s32.f32 %v863
        %v876 = vcvt.s32.f32 %v864
        %877 = vmatprep.subr.mxu0 0.0
        %878 = vmatpush1.msra.mxu0 %v865
        %879 = vmatprep.subr.mxu0 0.0
        %880 = vmatpush1.msra.mxu0 %v866
        %881 = vmatprep.subr.mxu0 0.0
        %882 = vmatpush1.msra.mxu0 %v867
        %883 = vmatprep.subr.mxu0 0.0
        %884 = vmatpush1.msra.mxu0 %v868
        %885 = vmatprep.subr.mxu0 0.0
        %886 = vmatpush1.msra.mxu0 %v869
        %887 = vmatprep.subr.mxu0 0.0
        %888 = vmatpush1.msra.mxu0 %v870
        %889 = vmatprep.subr.mxu0 0.0
        %890 = vmatpush1.msra.mxu0 %v871
        %891 = vmatprep.subr.mxu0 0.0
        %892 = vmatpush1.msra.mxu0 %v872
        %893 = vmatprep.subr.mxu0 0.0
        %894 = vmatpush1.msra.mxu0 %v873
        %895 = vmatprep.subr.mxu0 0.0
        %896 = vmatpush1.msra.mxu0 %v874
        %897 = vmatprep.subr.mxu0 0.0
        %898 = vmatpush1.msra.mxu0 %v875
        %899 = vmatprep.subr.mxu0 0.0
        %900 = vmatpush1.msra.mxu0 %v876
        %901 = vmatprep.subr.mxu0 0.0
        %902 = vmatpush1.msra.mxu0 0.0
        %903 = vmatprep.subr.mxu0 0.0
        %904 = vmatpush1.msra.mxu0 0.0
        %905 = vmatprep.subr.mxu0 0.0
        %906 = vmatpush1.msra.mxu0 0.0
        %907 = vmatprep.subr.mxu0 0.0
        %908 = vmatpush1.msra.mxu0 0.0
        %909 = vmatprep.subr.mxu0 0.0
        %910 = vmatpush1.msra.mxu0 0.0
        %911 = vmatprep.subr.mxu0 0.0
        %912 = vmatpush1.msra.mxu0 0.0
        %913 = vmatprep.subr.mxu0 0.0
        %914 = vmatpush1.msra.mxu0 0.0
        %915 = vmatprep.subr.mxu0 0.0
        %916 = vmatpush1.msra.mxu0 0.0
        %917 = vmatprep.subr.mxu0 0.0
        %918 = vmatpush1.msra.mxu0 0.0
        %919 = vmatprep.subr.mxu0 0.0
        %920 = vmatpush1.msra.mxu0 0.0
        %921 = vmatprep.subr.mxu0 0.0
        %922 = vmatpush1.msra.mxu0 0.0
        %923 = vmatprep.subr.mxu0 0.0
        %924 = vmatpush1.msra.mxu0 0.0
        %925 = vmatprep.subr.mxu0 0.0
        %926 = vmatpush1.msra.mxu0 0.0
        %927 = vmatprep.subr.mxu0 0.0
        %928 = vmatpush1.msra.mxu0 0.0
        %929 = vmatprep.subr.mxu0 0.0
        %930 = vmatpush1.msra.mxu0 0.0
        %931 = vmatprep.subr.mxu0 0.0
        %932 = vmatpush1.msra.mxu0 0.0
        %933 = vmatprep.subr.mxu0 0.0
        %934 = vmatpush1.msra.mxu0 0.0
        %935 = vmatprep.subr.mxu0 0.0
        %936 = vmatpush1.msra.mxu0 0.0
        %937 = vmatprep.subr.mxu0 0.0
        %938 = vmatpush1.msra.mxu0 0.0
        %939 = vmatprep.subr.mxu0 0.0
        %940 = vmatpush1.msra.mxu0 0.0
        %941 = vmatprep.mubr.f32.mxu0 0.0
        %942 = vmatmul.mubr.f32.gmra.mrb[0].mxu0 %v648
        %v943 = vpop.f32.mrb[0].mxu0
        %v944 = vadd.f32 0.0, %v943
        %v945 = vpop.f32.mrb[0].mxu0
        %946 = vmatprep.mubr.f32.mxu0 0.0
        %947 = vmatmul.mubr.f32.gmra.mrb[0].mxu0 %v651
        %v948 = vpop.f32.mrb[0].mxu0
        %v949 = vadd.f32 0.0, %v948
        %v950 = vpop.f32.mrb[0].mxu0
        %951 = vdwg.mxu0
        %vm952 = vcmask 64512
        %v954 = vsel %vm952, %v720, 0
        %v957 = vsel %vm952, %v725, 0
        %v960 = vsel %vm952, %v832, 0
        %v963 = vsel %vm952, %v837, 0
        %965 = vmatprep.subr.mxu0 0.0
        %966 = vmatpush1.xpose.msra.mxu0 %v960
        %967 = vmatprep.subr.mxu0 0.0
        %968 = vmatpush1.xpose.msra.mxu0 %v963
        %969 = vmatprep.subr.mxu0 0.0
        %970 = vmatpush1.xpose.msra.mxu0 0.0
        %971 = vmatprep.subr.mxu0 0.0
        %972 = vmatpush1.xpose.msra.mxu0 0.0
        %973 = vmatprep.subr.mxu0 0.0
        %974 = vmatpush1.xpose.msra.mxu0 0.0
        %975 = vmatprep.subr.mxu0 0.0
        %976 = vmatpush1.xpose.msra.mxu0 0.0
        %977 = vmatprep.subr.mxu0 0.0
        %978 = vmatpush1.xpose.msra.mxu0 0.0
        %979 = vmatprep.subr.mxu0 0.0
        %980 = vmatpush1.xpose.msra.mxu0 0.0
        %981 = vmatprep.subr.mxu0 0.0
        %982 = vmatpush1.xpose.msra.mxu0 0.0
        %983 = vmatprep.subr.mxu0 0.0
        %984 = vmatpush1.xpose.msra.mxu0 0.0
        %985 = vmatprep.subr.mxu0 0.0
        %986 = vmatpush1.xpose.msra.mxu0 0.0
        %987 = vmatprep.subr.mxu0 0.0
        %988 = vmatpush1.xpose.msra.mxu0 0.0
        %989 = vmatprep.subr.mxu0 0.0
        %990 = vmatpush1.xpose.msra.mxu0 0.0
        %991 = vmatprep.subr.mxu0 0.0
        %992 = vmatpush1.xpose.msra.mxu0 0.0
        %993 = vmatprep.subr.mxu0 0.0
        %994 = vmatpush1.xpose.msra.mxu0 0.0
        %995 = vmatprep.subr.mxu0 0.0
        %996 = vmatpush1.xpose.msra.mxu0 0.0
        %997 = vmatprep.subr.mxu0 0.0
        %998 = vmatpush1.xpose.msra.mxu0 0.0
        %999 = vmatprep.subr.mxu0 0.0
        %1000 = vmatpush1.xpose.msra.mxu0 0.0
        %1001 = vmatprep.subr.mxu0 0.0
        %1002 = vmatpush1.xpose.msra.mxu0 0.0
        %1003 = vmatprep.subr.mxu0 0.0
        %1004 = vmatpush1.xpose.msra.mxu0 0.0
        %1005 = vmatprep.subr.mxu0 0.0
        %1006 = vmatpush1.xpose.msra.mxu0 0.0
        %1007 = vmatprep.subr.mxu0 0.0
        %1008 = vmatpush1.xpose.msra.mxu0 0.0
        %1009 = vmatprep.subr.mxu0 0.0
        %1010 = vmatpush1.xpose.msra.mxu0 0.0
        %1011 = vmatprep.subr.mxu0 0.0
        %1012 = vmatpush1.xpose.msra.mxu0 0.0
        %1013 = vmatprep.subr.mxu0 0.0
        %1014 = vmatpush1.xpose.msra.mxu0 0.0
        %1015 = vmatprep.subr.mxu0 0.0
        %1016 = vmatpush1.xpose.msra.mxu0 0.0
        %1017 = vmatprep.subr.mxu0 0.0
        %1018 = vmatpush1.xpose.msra.mxu0 0.0
        %1019 = vmatprep.subr.mxu0 0.0
        %1020 = vmatpush1.xpose.msra.mxu0 0.0
        %1021 = vmatprep.subr.mxu0 0.0
        %1022 = vmatpush1.xpose.msra.mxu0 0.0
        %1023 = vmatprep.subr.mxu0 0.0
        %1024 = vmatpush1.xpose.msra.mxu0 0.0
        %1025 = vmatprep.subr.mxu0 0.0
        %1026 = vmatpush1.xpose.msra.mxu0 0.0
        %1027 = vmatprep.subr.mxu0 0.0
        %1028 = vmatpush1.xpose.msra.mxu0 0.0
        %1029 = vmatprep.mubr.f32.mxu0 0.0
        %1030 = vmatmul.mubr.f32.gmra.mrb[0].mxu0 %v954
        %v1031 = vpop.f32.mrb[0].mxu0
        %v1032 = vadd.f32 0.0, %v1031
        %v1033 = vpop.f32.mrb[0].mxu0
        %1034 = vmatprep.mubr.f32.mxu0 0.0
        %1035 = vmatmul.mubr.f32.gmra.mrb[0].mxu0 %v957
        %v1036 = vpop.f32.mrb[0].mxu0
        %v1037 = vadd.f32 0.0, %v1036
        %v1038 = vpop.f32.mrb[0].mxu0
        %1039 = vdwg.mxu0
        %v1040 = vmul.f32 %v1032, 0.35355338
        %v1041 = vmul.f32 %v1037, 0.35355338
        %vm1042 = vcmask 130048
        %v1043 = vsel %vm1042, %v1040, -inf
        %1044 = vmax.xlane.f32.xlu0 %v1043
        %v1045 = vpop.xlane.xlu0 %1044
        %v1046 = vsel %vm1042, %v1041, -inf
        %1047 = vmax.xlane.f32.xlu0 %v1046
        %v1048 = vpop.xlane.xlu0 %1047
        %v1049 = vsub.f32 %v1040, %v1045
        %v1050 = vsub.f32 %v1041, %v1048
        %v1051 = vmul.f32 %v1049, 1.442695
        %v1052 = vpow.pop %v1051
        %v1053 = vmul.f32 %v1050, 1.442695
        %v1054 = vpow.pop %v1053
        %v1055 = vsel %vm1042, %v1052, 0.0
        %1056 = vadd.xlane.f32.xlu0 %v1055
        %v1057 = vpop.xlane.xlu0 %1056
        %v1058 = vsel %vm1042, %v1054, 0.0
        %1059 = vadd.xlane.f32.xlu0 %v1058
        %v1060 = vpop.xlane.xlu0 %1059
        %v1061 = vrcp.pop %v1057
        %v1062 = vrcp.pop %v1060
        %v1063 = vmul.f32 %v1052, %v1061
        %v1064 = vmul.f32 %v1054, %v1062
        %v1066 = vsel %vm1042, %v1063, 0
        %v1069 = vsel %vm1042, %v1064, 0
        %1071 = vmatprep.subr.mxu0 0.0
        %1072 = vmatpush1.msra.mxu0 %v944
        %1073 = vmatprep.subr.mxu0 0.0
        %1074 = vmatpush1.msra.mxu0 %v949
        %1075 = vmatprep.subr.mxu0 0.0
        %1076 = vmatpush1.msra.mxu0 0.0
        %1077 = vmatprep.subr.mxu0 0.0
        %1078 = vmatpush1.msra.mxu0 0.0
        %1079 = vmatprep.subr.mxu0 0.0
        %1080 = vmatpush1.msra.mxu0 0.0
        %1081 = vmatprep.subr.mxu0 0.0
        %1082 = vmatpush1.msra.mxu0 0.0
        %1083 = vmatprep.subr.mxu0 0.0
        %1084 = vmatpush1.msra.mxu0 0.0
        %1085 = vmatprep.subr.mxu0 0.0
        %1086 = vmatpush1.msra.mxu0 0.0
        %1087 = vmatprep.subr.mxu0 0.0
        %1088 = vmatpush1.msra.mxu0 0.0
        %1089 = vmatprep.subr.mxu0 0.0
        %1090 = vmatpush1.msra.mxu0 0.0
        %1091 = vmatprep.subr.mxu0 0.0
        %1092 = vmatpush1.msra.mxu0 0.0
        %1093 = vmatprep.subr.mxu0 0.0
        %1094 = vmatpush1.msra.mxu0 0.0
        %1095 = vmatprep.subr.mxu0 0.0
        %1096 = vmatpush1.msra.mxu0 0.0
        %1097 = vmatprep.subr.mxu0 0.0
        %1098 = vmatpush1.msra.mxu0 0.0
        %1099 = vmatprep.subr.mxu0 0.0
        %1100 = vmatpush1.msra.mxu0 0.0
        %1101 = vmatprep.subr.mxu0 0.0
        %1102 = vmatpush1.msra.mxu0 0.0
        %1103 = vmatprep.subr.mxu0 0.0
        %1104 = vmatpush1.msra.mxu0 0.0
        %1105 = vmatprep.subr.mxu0 0.0
        %1106 = vmatpush1.msra.mxu0 0.0
        %1107 = vmatprep.subr.mxu0 0.0
        %1108 = vmatpush1.msra.mxu0 0.0
        %1109 = vmatprep.subr.mxu0 0.0
        %1110 = vmatpush1.msra.mxu0 0.0
        %1111 = vmatprep.subr.mxu0 0.0
        %1112 = vmatpush1.msra.mxu0 0.0
        %1113 = vmatprep.subr.mxu0 0.0
        %1114 = vmatpush1.msra.mxu0 0.0
        %1115 = vmatprep.subr.mxu0 0.0
        %1116 = vmatpush1.msra.mxu0 0.0
        %1117 = vmatprep.subr.mxu0 0.0
        %1118 = vmatpush1.msra.mxu0 0.0
        %1119 = vmatprep.subr.mxu0 0.0
        %1120 = vmatpush1.msra.mxu0 0.0
        %1121 = vmatprep.subr.mxu0 0.0
        %1122 = vmatpush1.msra.mxu0 0.0
        %1123 = vmatprep.subr.mxu0 0.0
        %1124 = vmatpush1.msra.mxu0 0.0
        %1125 = vmatprep.subr.mxu0 0.0
        %1126 = vmatpush1.msra.mxu0 0.0
        %1127 = vmatprep.subr.mxu0 0.0
        %1128 = vmatpush1.msra.mxu0 0.0
        %1129 = vmatprep.subr.mxu0 0.0
        %1130 = vmatpush1.msra.mxu0 0.0
        %1131 = vmatprep.subr.mxu0 0.0
        %1132 = vmatpush1.msra.mxu0 0.0
        %1133 = vmatprep.subr.mxu0 0.0
        %1134 = vmatpush1.msra.mxu0 0.0
        %1135 = vmatprep.mubr.f32.mxu0 0.0
        %1136 = vmatmul.mubr.f32.gmra.mrb[0].mxu0 %v1066
        %v1137 = vpop.f32.mrb[0].mxu0
        %v1138 = vadd.f32 0.0, %v1137
        %v1139 = vpop.f32.mrb[0].mxu0
        %1140 = vmatprep.mubr.f32.mxu0 0.0
        %1141 = vmatmul.mubr.f32.gmra.mrb[0].mxu0 %v1069
        %v1142 = vpop.f32.mrb[0].mxu0
        %v1143 = vadd.f32 0.0, %v1142
        %v1144 = vpop.f32.mrb[0].mxu0
        %1145 = vdwg.mxu0
        %v1146 = vadd.s32 %v609, 8
        %vm1147 = vcmp.eq.s32.totalorder %v596, %v1146
        %vm1148 = vcmp.eq.s32.totalorder %v597, %v1146
        %vm1149 = vcmp.eq.s32.totalorder %v598, %v1146
        %vm1150 = vcmp.eq.s32.totalorder %v599, %v1146
        %vm1151 = vcmp.eq.s32.totalorder %v600, %v1146
        %vm1152 = vcmp.eq.s32.totalorder %v601, %v1146
        %vm1153 = vcmp.eq.s32.totalorder %v602, %v1146
        %vm1154 = vcmp.eq.s32.totalorder %v603, %v1146
        %vm1155 = vcmp.eq.s32.totalorder %v604, %v1146
        %vm1156 = vcmp.eq.s32.totalorder %v605, %v1146
        %vm1157 = vcmp.eq.s32.totalorder %v606, %v1146
        %vm1158 = vcmp.eq.s32.totalorder %v607, %v1146
        %v1159 = vsel %vm1147, 1, 0
        %v1160 = vsel %vm1148, 1, 0
        %v1161 = vsel %vm1149, 1, 0
        %v1162 = vsel %vm1150, 1, 0
        %v1163 = vsel %vm1151, 1, 0
        %v1164 = vsel %vm1152, 1, 0
        %v1165 = vsel %vm1153, 1, 0
        %v1166 = vsel %vm1154, 1, 0
        %v1167 = vsel %vm1155, 1, 0
        %v1168 = vsel %vm1156, 1, 0
        %v1169 = vsel %vm1157, 1, 0
        %v1170 = vsel %vm1158, 1, 0
        %v1171 = vcvt.s32.f32 %v1159
        %v1172 = vcvt.s32.f32 %v1160
        %v1173 = vcvt.s32.f32 %v1161
        %v1174 = vcvt.s32.f32 %v1162
        %v1175 = vcvt.s32.f32 %v1163
        %v1176 = vcvt.s32.f32 %v1164
        %v1177 = vcvt.s32.f32 %v1165
        %v1178 = vcvt.s32.f32 %v1166
        %v1179 = vcvt.s32.f32 %v1167
        %v1180 = vcvt.s32.f32 %v1168
        %v1181 = vcvt.s32.f32 %v1169
        %v1182 = vcvt.s32.f32 %v1170
        %1183 = vmatprep.subr.mxu0 0.0
        %1184 = vmatpush1.msra.mxu0 %v1171
        %1185 = vmatprep.subr.mxu0 0.0
        %1186 = vmatpush1.msra.mxu0 %v1172
        %1187 = vmatprep.subr.mxu0 0.0
        %1188 = vmatpush1.msra.mxu0 %v1173
        %1189 = vmatprep.subr.mxu0 0.0
        %1190 = vmatpush1.msra.mxu0 %v1174
        %1191 = vmatprep.subr.mxu0 0.0
        %1192 = vmatpush1.msra.mxu0 %v1175
        %1193 = vmatprep.subr.mxu0 0.0
        %1194 = vmatpush1.msra.mxu0 %v1176
        %1195 = vmatprep.subr.mxu0 0.0
        %1196 = vmatpush1.msra.mxu0 %v1177
        %1197 = vmatprep.subr.mxu0 0.0
        %1198 = vmatpush1.msra.mxu0 %v1178
        %1199 = vmatprep.subr.mxu0 0.0
        %1200 = vmatpush1.msra.mxu0 %v1179
        %1201 = vmatprep.subr.mxu0 0.0
        %1202 = vmatpush1.msra.mxu0 %v1180
        %1203 = vmatprep.subr.mxu0 0.0
        %1204 = vmatpush1.msra.mxu0 %v1181
        %1205 = vmatprep.subr.mxu0 0.0
        %1206 = vmatpush1.msra.mxu0 %v1182
        %1207 = vmatprep.subr.mxu0 0.0
        %1208 = vmatpush1.msra.mxu0 0.0
        %1209 = vmatprep.subr.mxu0 0.0
        %1210 = vmatpush1.msra.mxu0 0.0
        %1211 = vmatprep.subr.mxu0 0.0
        %1212 = vmatpush1.msra.mxu0 0.0
        %1213 = vmatprep.subr.mxu0 0.0
        %1214 = vmatpush1.msra.mxu0 0.0
        %1215 = vmatprep.subr.mxu0 0.0
        %1216 = vmatpush1.msra.mxu0 0.0
        %1217 = vmatprep.subr.mxu0 0.0
        %1218 = vmatpush1.msra.mxu0 0.0
        %1219 = vmatprep.subr.mxu0 0.0
        %1220 = vmatpush1.msra.mxu0 0.0
        %1221 = vmatprep.subr.mxu0 0.0
        %1222 = vmatpush1.msra.mxu0 0.0
        %1223 = vmatprep.subr.mxu0 0.0
        %1224 = vmatpush1.msra.mxu0 0.0
        %1225 = vmatprep.subr.mxu0 0.0
        %1226 = vmatpush1.msra.mxu0 0.0
        %1227 = vmatprep.subr.mxu0 0.0
        %1228 = vmatpush1.msra.mxu0 0.0
        %1229 = vmatprep.subr.mxu0 0.0
        %1230 = vmatpush1.msra.mxu0 0.0
        %1231 = vmatprep.subr.mxu0 0.0
        %1232 = vmatpush1.msra.mxu0 0.0
        %1233 = vmatprep.subr.mxu0 0.0
        %1234 = vmatpush1.msra.mxu0 0.0
        %1235 = vmatprep.subr.mxu0 0.0
        %1236 = vmatpush1.msra.mxu0 0.0
        %1237 = vmatprep.subr.mxu0 0.0
        %1238 = vmatpush1.msra.mxu0 0.0
        %1239 = vmatprep.subr.mxu0 0.0
        %1240 = vmatpush1.msra.mxu0 0.0
        %1241 = vmatprep.subr.mxu0 0.0
        %1242 = vmatpush1.msra.mxu0 0.0
        %1243 = vmatprep.subr.mxu0 0.0
        %1244 = vmatpush1.msra.mxu0 0.0
        %1245 = vmatprep.subr.mxu0 0.0
        %1246 = vmatpush1.msra.mxu0 0.0
        %1247 = vmatprep.mubr.f32.mxu0 0.0
        %1248 = vmatmul.mubr.f32.gmra.mrb[0].mxu0 %v648
        %v1249 = vpop.f32.mrb[0].mxu0
        %v1250 = vadd.f32 0.0, %v1249
        %v1251 = vpop.f32.mrb[0].mxu0
        %1252 = vmatprep.mubr.f32.mxu0 0.0
        %1253 = vmatmul.mubr.f32.gmra.mrb[0].mxu0 %v651
        %v1254 = vpop.f32.mrb[0].mxu0
        %v1255 = vadd.f32 0.0, %v1254
        %v1256 = vpop.f32.mrb[0].mxu0
        %1257 = vdwg.mxu0
        %v1258 = vadd.s32 %v609, 40
        %vm1259 = vcmp.eq.s32.totalorder %v596, %v1258
        %vm1260 = vcmp.eq.s32.totalorder %v597, %v1258
        %vm1261 = vcmp.eq.s32.totalorder %v598, %v1258
        %vm1262 = vcmp.eq.s32.totalorder %v599, %v1258
        %vm1263 = vcmp.eq.s32.totalorder %v600, %v1258
        %vm1264 = vcmp.eq.s32.totalorder %v601, %v1258
        %vm1265 = vcmp.eq.s32.totalorder %v602, %v1258
        %vm1266 = vcmp.eq.s32.totalorder %v603, %v1258
        %vm1267 = vcmp.eq.s32.totalorder %v604, %v1258
        %vm1268 = vcmp.eq.s32.totalorder %v605, %v1258
        %vm1269 = vcmp.eq.s32.totalorder %v606, %v1258
        %vm1270 = vcmp.eq.s32.totalorder %v607, %v1258
        %v1271 = vsel %vm1259, 1, 0
        %v1272 = vsel %vm1260, 1, 0
        %v1273 = vsel %vm1261, 1, 0
        %v1274 = vsel %vm1262, 1, 0
        %v1275 = vsel %vm1263, 1, 0
        %v1276 = vsel %vm1264, 1, 0
        %v1277 = vsel %vm1265, 1, 0
        %v1278 = vsel %vm1266, 1, 0
        %v1279 = vsel %vm1267, 1, 0
        %v1280 = vsel %vm1268, 1, 0
        %v1281 = vsel %vm1269, 1, 0
        %v1282 = vsel %vm1270, 1, 0
        %v1283 = vcvt.s32.f32 %v1271
        %v1284 = vcvt.s32.f32 %v1272
        %v1285 = vcvt.s32.f32 %v1273
        %v1286 = vcvt.s32.f32 %v1274
        %v1287 = vcvt.s32.f32 %v1275
        %v1288 = vcvt.s32.f32 %v1276
        %v1289 = vcvt.s32.f32 %v1277
        %v1290 = vcvt.s32.f32 %v1278
        %v1291 = vcvt.s32.f32 %v1279
        %v1292 = vcvt.s32.f32 %v1280
        %v1293 = vcvt.s32.f32 %v1281
        %v1294 = vcvt.s32.f32 %v1282
        %1295 = vmatprep.subr.mxu0 0.0
        %1296 = vmatpush1.msra.mxu0 %v1283
        %1297 = vmatprep.subr.mxu0 0.0
        %1298 = vmatpush1.msra.mxu0 %v1284
        %1299 = vmatprep.subr.mxu0 0.0
        %1300 = vmatpush1.msra.mxu0 %v1285
        %1301 = vmatprep.subr.mxu0 0.0
        %1302 = vmatpush1.msra.mxu0 %v1286
        %1303 = vmatprep.subr.mxu0 0.0
        %1304 = vmatpush1.msra.mxu0 %v1287
        %1305 = vmatprep.subr.mxu0 0.0
        %1306 = vmatpush1.msra.mxu0 %v1288
        %1307 = vmatprep.subr.mxu0 0.0
        %1308 = vmatpush1.msra.mxu0 %v1289
        %1309 = vmatprep.subr.mxu0 0.0
        %1310 = vmatpush1.msra.mxu0 %v1290
        %1311 = vmatprep.subr.mxu0 0.0
        %1312 = vmatpush1.msra.mxu0 %v1291
        %1313 = vmatprep.subr.mxu0 0.0
        %1314 = vmatpush1.msra.mxu0 %v1292
        %1315 = vmatprep.subr.mxu0 0.0
        %1316 = vmatpush1.msra.mxu0 %v1293
        %1317 = vmatprep.subr.mxu0 0.0
        %1318 = vmatpush1.msra.mxu0 %v1294
        %1319 = vmatprep.subr.mxu0 0.0
        %1320 = vmatpush1.msra.mxu0 0.0
        %1321 = vmatprep.subr.mxu0 0.0
        %1322 = vmatpush1.msra.mxu0 0.0
        %1323 = vmatprep.subr.mxu0 0.0
        %1324 = vmatpush1.msra.mxu0 0.0
        %1325 = vmatprep.subr.mxu0 0.0
        %1326 = vmatpush1.msra.mxu0 0.0
        %1327 = vmatprep.subr.mxu0 0.0
        %1328 = vmatpush1.msra.mxu0 0.0
        %1329 = vmatprep.subr.mxu0 0.0
        %1330 = vmatpush1.msra.mxu0 0.0
        %1331 = vmatprep.subr.mxu0 0.0
        %1332 = vmatpush1.msra.mxu0 0.0
        %1333 = vmatprep.subr.mxu0 0.0
        %1334 = vmatpush1.msra.mxu0 0.0
        %1335 = vmatprep.subr.mxu0 0.0
        %1336 = vmatpush1.msra.mxu0 0.0
        %1337 = vmatprep.subr.mxu0 0.0
        %1338 = vmatpush1.msra.mxu0 0.0
        %1339 = vmatprep.subr.mxu0 0.0
        %1340 = vmatpush1.msra.mxu0 0.0
        %1341 = vmatprep.subr.mxu0 0.0
        %1342 = vmatpush1.msra.mxu0 0.0
        %1343 = vmatprep.subr.mxu0 0.0
        %1344 = vmatpush1.msra.mxu0 0.0
        %1345 = vmatprep.subr.mxu0 0.0
        %1346 = vmatpush1.msra.mxu0 0.0
        %1347 = vmatprep.subr.mxu0 0.0
        %1348 = vmatpush1.msra.mxu0 0.0
        %1349 = vmatprep.subr.mxu0 0.0
        %1350 = vmatpush1.msra.mxu0 0.0
        %1351 = vmatprep.subr.mxu0 0.0
        %1352 = vmatpush1.msra.mxu0 0.0
        %1353 = vmatprep.subr.mxu0 0.0
        %1354 = vmatpush1.msra.mxu0 0.0
        %1355 = vmatprep.subr.mxu0 0.0
        %1356 = vmatpush1.msra.mxu0 0.0
        %1357 = vmatprep.subr.mxu0 0.0
        %1358 = vmatpush1.msra.mxu0 0.0
        %1359 = vmatprep.mubr.f32.mxu0 0.0
        %1360 = vmatmul.mubr.f32.gmra.mrb[0].mxu0 %v648
        %v1361 = vpop.f32.mrb[0].mxu0
        %v1362 = vadd.f32 0.0, %v1361
        %v1363 = vpop.f32.mrb[0].mxu0
        %1364 = vmatprep.mubr.f32.mxu0 0.0
        %1365 = vmatmul.mubr.f32.gmra.mrb[0].mxu0 %v651
        %v1366 = vpop.f32.mrb[0].mxu0
        %v1367 = vadd.f32 0.0, %v1366
        %v1368 = vpop.f32.mrb[0].mxu0
        %1369 = vdwg.mxu0
        %v1370 = vadd.s32 %v609, 72
        %vm1371 = vcmp.eq.s32.totalorder %v596, %v1370
        %vm1372 = vcmp.eq.s32.totalorder %v597, %v1370
        %vm1373 = vcmp.eq.s32.totalorder %v598, %v1370
        %vm1374 = vcmp.eq.s32.totalorder %v599, %v1370
        %vm1375 = vcmp.eq.s32.totalorder %v600, %v1370
        %vm1376 = vcmp.eq.s32.totalorder %v601, %v1370
        %vm1377 = vcmp.eq.s32.totalorder %v602, %v1370
        %vm1378 = vcmp.eq.s32.totalorder %v603, %v1370
        %vm1379 = vcmp.eq.s32.totalorder %v604, %v1370
        %vm1380 = vcmp.eq.s32.totalorder %v605, %v1370
        %vm1381 = vcmp.eq.s32.totalorder %v606, %v1370
        %vm1382 = vcmp.eq.s32.totalorder %v607, %v1370
        %v1383 = vsel %vm1371, 1, 0
        %v1384 = vsel %vm1372, 1, 0
        %v1385 = vsel %vm1373, 1, 0
        %v1386 = vsel %vm1374, 1, 0
        %v1387 = vsel %vm1375, 1, 0
        %v1388 = vsel %vm1376, 1, 0
        %v1389 = vsel %vm1377, 1, 0
        %v1390 = vsel %vm1378, 1, 0
        %v1391 = vsel %vm1379, 1, 0
        %v1392 = vsel %vm1380, 1, 0
        %v1393 = vsel %vm1381, 1, 0
        %v1394 = vsel %vm1382, 1, 0
        %v1395 = vcvt.s32.f32 %v1383
        %v1396 = vcvt.s32.f32 %v1384
        %v1397 = vcvt.s32.f32 %v1385
        %v1398 = vcvt.s32.f32 %v1386
        %v1399 = vcvt.s32.f32 %v1387
        %v1400 = vcvt.s32.f32 %v1388
        %v1401 = vcvt.s32.f32 %v1389
        %v1402 = vcvt.s32.f32 %v1390
        %v1403 = vcvt.s32.f32 %v1391
        %v1404 = vcvt.s32.f32 %v1392
        %v1405 = vcvt.s32.f32 %v1393
        %v1406 = vcvt.s32.f32 %v1394
        %1407 = vmatprep.subr.mxu0 0.0
        %1408 = vmatpush1.msra.mxu0 %v1395
        %1409 = vmatprep.subr.mxu0 0.0
        %1410 = vmatpush1.msra.mxu0 %v1396
        %1411 = vmatprep.subr.mxu0 0.0
        %1412 = vmatpush1.msra.mxu0 %v1397
        %1413 = vmatprep.subr.mxu0 0.0
        %1414 = vmatpush1.msra.mxu0 %v1398
        %1415 = vmatprep.subr.mxu0 0.0
        %1416 = vmatpush1.msra.mxu0 %v1399
        %1417 = vmatprep.subr.mxu0 0.0
        %1418 = vmatpush1.msra.mxu0 %v1400
        %1419 = vmatprep.subr.mxu0 0.0
        %1420 = vmatpush1.msra.mxu0 %v1401
        %1421 = vmatprep.subr.mxu0 0.0
        %1422 = vmatpush1.msra.mxu0 %v1402
        %1423 = vmatprep.subr.mxu0 0.0
        %1424 = vmatpush1.msra.mxu0 %v1403
        %1425 = vmatprep.subr.mxu0 0.0
        %1426 = vmatpush1.msra.mxu0 %v1404
        %1427 = vmatprep.subr.mxu0 0.0
        %1428 = vmatpush1.msra.mxu0 %v1405
        %1429 = vmatprep.subr.mxu0 0.0
        %1430 = vmatpush1.msra.mxu0 %v1406
        %1431 = vmatprep.subr.mxu0 0.0
        %1432 = vmatpush1.msra.mxu0 0.0
        %1433 = vmatprep.subr.mxu0 0.0
        %1434 = vmatpush1.msra.mxu0 0.0
        %1435 = vmatprep.subr.mxu0 0.0
        %1436 = vmatpush1.msra.mxu0 0.0
        %1437 = vmatprep.subr.mxu0 0.0
        %1438 = vmatpush1.msra.mxu0 0.0
        %1439 = vmatprep.subr.mxu0 0.0
        %1440 = vmatpush1.msra.mxu0 0.0
        %1441 = vmatprep.subr.mxu0 0.0
        %1442 = vmatpush1.msra.mxu0 0.0
        %1443 = vmatprep.subr.mxu0 0.0
        %1444 = vmatpush1.msra.mxu0 0.0
        %1445 = vmatprep.subr.mxu0 0.0
        %1446 = vmatpush1.msra.mxu0 0.0
        %1447 = vmatprep.subr.mxu0 0.0
        %1448 = vmatpush1.msra.mxu0 0.0
        %1449 = vmatprep.subr.mxu0 0.0
        %1450 = vmatpush1.msra.mxu0 0.0
        %1451 = vmatprep.subr.mxu0 0.0
        %1452 = vmatpush1.msra.mxu0 0.0
        %1453 = vmatprep.subr.mxu0 0.0
        %1454 = vmatpush1.msra.mxu0 0.0
        %1455 = vmatprep.subr.mxu0 0.0
        %1456 = vmatpush1.msra.mxu0 0.0
        %1457 = vmatprep.subr.mxu0 0.0
        %1458 = vmatpush1.msra.mxu0 0.0
        %1459 = vmatprep.subr.mxu0 0.0
        %1460 = vmatpush1.msra.mxu0 0.0
        %1461 = vmatprep.subr.mxu0 0.0
        %1462 = vmatpush1.msra.mxu0 0.0
        %1463 = vmatprep.subr.mxu0 0.0
        %1464 = vmatpush1.msra.mxu0 0.0
        %1465 = vmatprep.subr.mxu0 0.0
        %1466 = vmatpush1.msra.mxu0 0.0
        %1467 = vmatprep.subr.mxu0 0.0
        %1468 = vmatpush1.msra.mxu0 0.0
        %1469 = vmatprep.subr.mxu0 0.0
        %1470 = vmatpush1.msra.mxu0 0.0
        %1471 = vmatprep.mubr.f32.mxu0 0.0
        %1472 = vmatmul.mubr.f32.gmra.mrb[0].mxu0 %v648
        %v1473 = vpop.f32.mrb[0].mxu0
        %v1474 = vadd.f32 0.0, %v1473
        %v1475 = vpop.f32.mrb[0].mxu0
        %1476 = vmatprep.mubr.f32.mxu0 0.0
        %1477 = vmatmul.mubr.f32.gmra.mrb[0].mxu0 %v651
        %v1478 = vpop.f32.mrb[0].mxu0
        %v1479 = vadd.f32 0.0, %v1478
        %v1480 = vpop.f32.mrb[0].mxu0
        %1481 = vdwg.mxu0
        %v1483 = vsel %vm952, %v1250, 0
        %v1486 = vsel %vm952, %v1255, 0
        %v1489 = vsel %vm952, %v1362, 0
        %v1492 = vsel %vm952, %v1367, 0
        %1494 = vmatprep.subr.mxu0 0.0
        %1495 = vmatpush1.xpose.msra.mxu0 %v1489
        %1496 = vmatprep.subr.mxu0 0.0
        %1497 = vmatpush1.xpose.msra.mxu0 %v1492
        %1498 = vmatprep.subr.mxu0 0.0
        %1499 = vmatpush1.xpose.msra.mxu0 0.0
        %1500 = vmatprep.subr.mxu0 0.0
        %1501 = vmatpush1.xpose.msra.mxu0 0.0
        %1502 = vmatprep.subr.mxu0 0.0
        %1503 = vmatpush1.xpose.msra.mxu0 0.0
        %1504 = vmatprep.subr.mxu0 0.0
        %1505 = vmatpush1.xpose.msra.mxu0 0.0
        %1506 = vmatprep.subr.mxu0 0.0
        %1507 = vmatpush1.xpose.msra.mxu0 0.0
        %1508 = vmatprep.subr.mxu0 0.0
        %1509 = vmatpush1.xpose.msra.mxu0 0.0
        %1510 = vmatprep.subr.mxu0 0.0
        %1511 = vmatpush1.xpose.msra.mxu0 0.0
        %1512 = vmatprep.subr.mxu0 0.0
        %1513 = vmatpush1.xpose.msra.mxu0 0.0
        %1514 = vmatprep.subr.mxu0 0.0
        %1515 = vmatpush1.xpose.msra.mxu0 0.0
        %1516 = vmatprep.subr.mxu0 0.0
        %1517 = vmatpush1.xpose.msra.mxu0 0.0
        %1518 = vmatprep.subr.mxu0 0.0
        %1519 = vmatpush1.xpose.msra.mxu0 0.0
        %1520 = vmatprep.subr.mxu0 0.0
        %1521 = vmatpush1.xpose.msra.mxu0 0.0
        %1522 = vmatprep.subr.mxu0 0.0
        %1523 = vmatpush1.xpose.msra.mxu0 0.0
        %1524 = vmatprep.subr.mxu0 0.0
        %1525 = vmatpush1.xpose.msra.mxu0 0.0
        %1526 = vmatprep.subr.mxu0 0.0
        %1527 = vmatpush1.xpose.msra.mxu0 0.0
        %1528 = vmatprep.subr.mxu0 0.0
        %1529 = vmatpush1.xpose.msra.mxu0 0.0
        %1530 = vmatprep.subr.mxu0 0.0
        %1531 = vmatpush1.xpose.msra.mxu0 0.0
        %1532 = vmatprep.subr.mxu0 0.0
        %1533 = vmatpush1.xpose.msra.mxu0 0.0
        %1534 = vmatprep.subr.mxu0 0.0
        %1535 = vmatpush1.xpose.msra.mxu0 0.0
        %1536 = vmatprep.subr.mxu0 0.0
        %1537 = vmatpush1.xpose.msra.mxu0 0.0
        %1538 = vmatprep.subr.mxu0 0.0
        %1539 = vmatpush1.xpose.msra.mxu0 0.0
        %1540 = vmatprep.subr.mxu0 0.0
        %1541 = vmatpush1.xpose.msra.mxu0 0.0
        %1542 = vmatprep.subr.mxu0 0.0
        %1543 = vmatpush1.xpose.msra.mxu0 0.0
        %1544 = vmatprep.subr.mxu0 0.0
        %1545 = vmatpush1.xpose.msra.mxu0 0.0
        %1546 = vmatprep.subr.mxu0 0.0
        %1547 = vmatpush1.xpose.msra.mxu0 0.0
        %1548 = vmatprep.subr.mxu0 0.0
        %1549 = vmatpush1.xpose.msra.mxu0 0.0
        %1550 = vmatprep.subr.mxu0 0.0
        %1551 = vmatpush1.xpose.msra.mxu0 0.0
        %1552 = vmatprep.subr.mxu0 0.0
        %1553 = vmatpush1.xpose.msra.mxu0 0.0
        %1554 = vmatprep.subr.mxu0 0.0
        %1555 = vmatpush1.xpose.msra.mxu0 0.0
        %1556 = vmatprep.subr.mxu0 0.0
        %1557 = vmatpush1.xpose.msra.mxu0 0.0
        %1558 = vmatprep.mubr.f32.mxu0 0.0
        %1559 = vmatmul.mubr.f32.gmra.mrb[0].mxu0 %v1483
        %v1560 = vpop.f32.mrb[0].mxu0
        %v1561 = vadd.f32 0.0, %v1560
        %v1562 = vpop.f32.mrb[0].mxu0
        %1563 = vmatprep.mubr.f32.mxu0 0.0
        %1564 = vmatmul.mubr.f32.gmra.mrb[0].mxu0 %v1486
        %v1565 = vpop.f32.mrb[0].mxu0
        %v1566 = vadd.f32 0.0, %v1565
        %v1567 = vpop.f32.mrb[0].mxu0
        %1568 = vdwg.mxu0
        %v1569 = vmul.f32 %v1561, 0.35355338
        %v1570 = vmul.f32 %v1566, 0.35355338
        %v1571 = vsel %vm1042, %v1569, -inf
        %1572 = vmax.xlane.f32.xlu0 %v1571
        %v1573 = vpop.xlane.xlu0 %1572
        %v1574 = vsel %vm1042, %v1570, -inf
        %1575 = vmax.xlane.f32.xlu0 %v1574
        %v1576 = vpop.xlane.xlu0 %1575
        %v1577 = vsub.f32 %v1569, %v1573
        %v1578 = vsub.f32 %v1570, %v1576
        %v1579 = vmul.f32 %v1577, 1.442695
        %v1580 = vpow.pop %v1579
        %v1581 = vmul.f32 %v1578, 1.442695
        %v1582 = vpow.pop %v1581
        %v1583 = vsel %vm1042, %v1580, 0.0
        %1584 = vadd.xlane.f32.xlu0 %v1583
        %v1585 = vpop.xlane.xlu0 %1584
        %v1586 = vsel %vm1042, %v1582, 0.0
        %1587 = vadd.xlane.f32.xlu0 %v1586
        %v1588 = vpop.xlane.xlu0 %1587
        %v1589 = vrcp.pop %v1585
        %v1590 = vrcp.pop %v1588
        %v1591 = vmul.f32 %v1580, %v1589
        %v1592 = vmul.f32 %v1582, %v1590
        %v1594 = vsel %vm1042, %v1591, 0
        %v1597 = vsel %vm1042, %v1592, 0
        %1599 = vmatprep.subr.mxu0 0.0
        %1600 = vmatpush1.msra.mxu0 %v1474
        %1601 = vmatprep.subr.mxu0 0.0
        %1602 = vmatpush1.msra.mxu0 %v1479
        %1603 = vmatprep.subr.mxu0 0.0
        %1604 = vmatpush1.msra.mxu0 0.0
        %1605 = vmatprep.subr.mxu0 0.0
        %1606 = vmatpush1.msra.mxu0 0.0
        %1607 = vmatprep.subr.mxu0 0.0
        %1608 = vmatpush1.msra.mxu0 0.0
        %1609 = vmatprep.subr.mxu0 0.0
        %1610 = vmatpush1.msra.mxu0 0.0
        %1611 = vmatprep.subr.mxu0 0.0
        %1612 = vmatpush1.msra.mxu0 0.0
        %1613 = vmatprep.subr.mxu0 0.0
        %1614 = vmatpush1.msra.mxu0 0.0
        %1615 = vmatprep.subr.mxu0 0.0
        %1616 = vmatpush1.msra.mxu0 0.0
        %1617 = vmatprep.subr.mxu0 0.0
        %1618 = vmatpush1.msra.mxu0 0.0
        %1619 = vmatprep.subr.mxu0 0.0
        %1620 = vmatpush1.msra.mxu0 0.0
        %1621 = vmatprep.subr.mxu0 0.0
        %1622 = vmatpush1.msra.mxu0 0.0
        %1623 = vmatprep.subr.mxu0 0.0
        %1624 = vmatpush1.msra.mxu0 0.0
        %1625 = vmatprep.subr.mxu0 0.0
        %1626 = vmatpush1.msra.mxu0 0.0
        %1627 = vmatprep.subr.mxu0 0.0
        %1628 = vmatpush1.msra.mxu0 0.0
        %1629 = vmatprep.subr.mxu0 0.0
        %1630 = vmatpush1.msra.mxu0 0.0
        %1631 = vmatprep.subr.mxu0 0.0
        %1632 = vmatpush1.msra.mxu0 0.0
        %1633 = vmatprep.subr.mxu0 0.0
        %1634 = vmatpush1.msra.mxu0 0.0
        %1635 = vmatprep.subr.mxu0 0.0
        %1636 = vmatpush1.msra.mxu0 0.0
        %1637 = vmatprep.subr.mxu0 0.0
        %1638 = vmatpush1.msra.mxu0 0.0
        %1639 = vmatprep.subr.mxu0 0.0
        %1640 = vmatpush1.msra.mxu0 0.0
        %1641 = vmatprep.subr.mxu0 0.0
        %1642 = vmatpush1.msra.mxu0 0.0
        %1643 = vmatprep.subr.mxu0 0.0
        %1644 = vmatpush1.msra.mxu0 0.0
        %1645 = vmatprep.subr.mxu0 0.0
        %1646 = vmatpush1.msra.mxu0 0.0
        %1647 = vmatprep.subr.mxu0 0.0
        %1648 = vmatpush1.msra.mxu0 0.0
        %1649 = vmatprep.subr.mxu0 0.0
        %1650 = vmatpush1.msra.mxu0 0.0
        %1651 = vmatprep.subr.mxu0 0.0
        %1652 = vmatpush1.msra.mxu0 0.0
        %1653 = vmatprep.subr.mxu0 0.0
        %1654 = vmatpush1.msra.mxu0 0.0
        %1655 = vmatprep.subr.mxu0 0.0
        %1656 = vmatpush1.msra.mxu0 0.0
        %1657 = vmatprep.subr.mxu0 0.0
        %1658 = vmatpush1.msra.mxu0 0.0
        %1659 = vmatprep.subr.mxu0 0.0
        %1660 = vmatpush1.msra.mxu0 0.0
        %1661 = vmatprep.subr.mxu0 0.0
        %1662 = vmatpush1.msra.mxu0 0.0
        %1663 = vmatprep.mubr.f32.mxu0 0.0
        %1664 = vmatmul.mubr.f32.gmra.mrb[0].mxu0 %v1594
        %v1665 = vpop.f32.mrb[0].mxu0
        %v1666 = vadd.f32 0.0, %v1665
        %v1667 = vpop.f32.mrb[0].mxu0
        %1668 = vmatprep.mubr.f32.mxu0 0.0
        %1669 = vmatmul.mubr.f32.gmra.mrb[0].mxu0 %v1597
        %v1670 = vpop.f32.mrb[0].mxu0
        %v1671 = vadd.f32 0.0, %v1670
        %v1672 = vpop.f32.mrb[0].mxu0
        %1673 = vdwg.mxu0
        %v1675 = vsel %vm952, %v1666, 0
        %v1678 = vsel %vm952, %v1671, 0
        %1680 = vmatprep.subr.mxu0 0.0
        %1681 = vmatpush1.msra.mxu0 %v501
        %1682 = vmatprep.subr.mxu0 0.0
        %1683 = vmatpush1.msra.mxu0 0.0
        %1684 = vmatprep.subr.mxu0 0.0
        %1685 = vmatpush1.msra.mxu0 0.0
        %1686 = vmatprep.subr.mxu0 0.0
        %1687 = vmatpush1.msra.mxu0 0.0
        %1688 = vmatprep.subr.mxu0 0.0
        %1689 = vmatpush1.msra.mxu0 0.0
        %1690 = vmatprep.subr.mxu0 0.0
        %1691 = vmatpush1.msra.mxu0 0.0
        %1692 = vmatprep.subr.mxu0 0.0
        %1693 = vmatpush1.msra.mxu0 0.0
        %1694 = vmatprep.subr.mxu0 0.0
        %1695 = vmatpush1.msra.mxu0 0.0
        %1696 = vmatprep.subr.mxu0 0.0
        %1697 = vmatpush1.msra.mxu0 0.0
        %1698 = vmatprep.subr.mxu0 0.0
        %1699 = vmatpush1.msra.mxu0 0.0
        %1700 = vmatprep.subr.mxu0 0.0
        %1701 = vmatpush1.msra.mxu0 0.0
        %1702 = vmatprep.subr.mxu0 0.0
        %1703 = vmatpush1.msra.mxu0 0.0
        %1704 = vmatprep.subr.mxu0 0.0
        %1705 = vmatpush1.msra.mxu0 0.0
        %1706 = vmatprep.subr.mxu0 0.0
        %1707 = vmatpush1.msra.mxu0 0.0
        %1708 = vmatprep.subr.mxu0 0.0
        %1709 = vmatpush1.msra.mxu0 0.0
        %1710 = vmatprep.subr.mxu0 0.0
        %1711 = vmatpush1.msra.mxu0 0.0
        %1712 = vmatprep.subr.mxu0 0.0
        %1713 = vmatpush1.msra.mxu0 0.0
        %1714 = vmatprep.subr.mxu0 0.0
        %1715 = vmatpush1.msra.mxu0 0.0
        %1716 = vmatprep.subr.mxu0 0.0
        %1717 = vmatpush1.msra.mxu0 0.0
        %1718 = vmatprep.subr.mxu0 0.0
        %1719 = vmatpush1.msra.mxu0 0.0
        %1720 = vmatprep.subr.mxu0 0.0
        %1721 = vmatpush1.msra.mxu0 0.0
        %1722 = vmatprep.subr.mxu0 0.0
        %1723 = vmatpush1.msra.mxu0 0.0
        %1724 = vmatprep.subr.mxu0 0.0
        %1725 = vmatpush1.msra.mxu0 0.0
        %1726 = vmatprep.subr.mxu0 0.0
        %1727 = vmatpush1.msra.mxu0 0.0
        %1728 = vmatprep.subr.mxu0 0.0
        %1729 = vmatpush1.msra.mxu0 0.0
        %1730 = vmatprep.subr.mxu0 0.0
        %1731 = vmatpush1.msra.mxu0 0.0
        %1732 = vmatprep.subr.mxu0 0.0
        %1733 = vmatpush1.msra.mxu0 0.0
        %1734 = vmatprep.subr.mxu0 0.0
        %1735 = vmatpush1.msra.mxu0 0.0
        %1736 = vmatprep.subr.mxu0 0.0
        %1737 = vmatpush1.msra.mxu0 0.0
        %1738 = vmatprep.subr.mxu0 0.0
        %1739 = vmatpush1.msra.mxu0 0.0
        %1740 = vmatprep.subr.mxu0 0.0
        %1741 = vmatpush1.msra.mxu0 0.0
        %1742 = vmatprep.subr.mxu0 0.0
        %1743 = vmatpush1.msra.mxu0 0.0
        %1744 = vmatprep.mubr.f32.mxu0 0.0
        %1745 = vmatmul.mubr.f32.gmra.mrb[0].mxu0 %v1675
        %v1746 = vpop.f32.mrb[0].mxu0
        %v1747 = vadd.f32 0.0, %v1746
        %v1748 = vpop.f32.mrb[0].mxu0
        %1749 = vmatprep.mubr.f32.mxu0 0.0
        %1750 = vmatmul.mubr.f32.gmra.mrb[0].mxu0 %v1678
        %v1751 = vpop.f32.mrb[0].mxu0
        %v1752 = vadd.f32 0.0, %v1751
        %v1753 = vpop.f32.mrb[0].mxu0
        %1754 = vdwg.mxu0
        %v1756 = vsel %vm952, %v1138, 0
        %v1759 = vsel %vm952, %v1143, 0
        %1761 = vmatprep.subr.mxu0 0.0
        %1762 = vmatpush1.msra.mxu0 %v500
        %1763 = vmatprep.subr.mxu0 0.0
        %1764 = vmatpush1.msra.mxu0 0.0
        %1765 = vmatprep.subr.mxu0 0.0
        %1766 = vmatpush1.msra.mxu0 0.0
        %1767 = vmatprep.subr.mxu0 0.0
        %1768 = vmatpush1.msra.mxu0 0.0
        %1769 = vmatprep.subr.mxu0 0.0
        %1770 = vmatpush1.msra.mxu0 0.0
        %1771 = vmatprep.subr.mxu0 0.0
        %1772 = vmatpush1.msra.mxu0 0.0
        %1773 = vmatprep.subr.mxu0 0.0
        %1774 = vmatpush1.msra.mxu0 0.0
        %1775 = vmatprep.subr.mxu0 0.0
        %1776 = vmatpush1.msra.mxu0 0.0
        %1777 = vmatprep.subr.mxu0 0.0
        %1778 = vmatpush1.msra.mxu0 0.0
        %1779 = vmatprep.subr.mxu0 0.0
        %1780 = vmatpush1.msra.mxu0 0.0
        %1781 = vmatprep.subr.mxu0 0.0
        %1782 = vmatpush1.msra.mxu0 0.0
        %1783 = vmatprep.subr.mxu0 0.0
        %1784 = vmatpush1.msra.mxu0 0.0
        %1785 = vmatprep.subr.mxu0 0.0
        %1786 = vmatpush1.msra.mxu0 0.0
        %1787 = vmatprep.subr.mxu0 0.0
        %1788 = vmatpush1.msra.mxu0 0.0
        %1789 = vmatprep.subr.mxu0 0.0
        %1790 = vmatpush1.msra.mxu0 0.0
        %1791 = vmatprep.subr.mxu0 0.0
        %1792 = vmatpush1.msra.mxu0 0.0
        %1793 = vmatprep.subr.mxu0 0.0
        %1794 = vmatpush1.msra.mxu0 0.0
        %1795 = vmatprep.subr.mxu0 0.0
        %1796 = vmatpush1.msra.mxu0 0.0
        %1797 = vmatprep.subr.mxu0 0.0
        %1798 = vmatpush1.msra.mxu0 0.0
        %1799 = vmatprep.subr.mxu0 0.0
        %1800 = vmatpush1.msra.mxu0 0.0
        %1801 = vmatprep.subr.mxu0 0.0
        %1802 = vmatpush1.msra.mxu0 0.0
        %1803 = vmatprep.subr.mxu0 0.0
        %1804 = vmatpush1.msra.mxu0 0.0
        %1805 = vmatprep.subr.mxu0 0.0
        %1806 = vmatpush1.msra.mxu0 0.0
        %1807 = vmatprep.subr.mxu0 0.0
        %1808 = vmatpush1.msra.mxu0 0.0
        %1809 = vmatprep.subr.mxu0 0.0
        %1810 = vmatpush1.msra.mxu0 0.0
        %1811 = vmatprep.subr.mxu0 0.0
        %1812 = vmatpush1.msra.mxu0 0.0
        %1813 = vmatprep.subr.mxu0 0.0
        %1814 = vmatpush1.msra.mxu0 0.0
        %1815 = vmatprep.subr.mxu0 0.0
        %1816 = vmatpush1.msra.mxu0 0.0
        %1817 = vmatprep.subr.mxu0 0.0
        %1818 = vmatpush1.msra.mxu0 0.0
        %1819 = vmatprep.subr.mxu0 0.0
        %1820 = vmatpush1.msra.mxu0 0.0
        %1821 = vmatprep.subr.mxu0 0.0
        %1822 = vmatpush1.msra.mxu0 0.0
        %1823 = vmatprep.subr.mxu0 0.0
        %1824 = vmatpush1.msra.mxu0 0.0
        %1825 = vmatprep.mubr.f32.mxu0 0.0
        %1826 = vmatmul.mubr.f32.gmra.mrb[0].mxu0 %v1756
        %v1827 = vpop.f32.mrb[0].mxu0
        %v1828 = vadd.f32 %v1747, %v1827
        %v1829 = vpop.f32.mrb[0].mxu0
        %1830 = vmatprep.mubr.f32.mxu0 0.0
        %1831 = vmatmul.mubr.f32.gmra.mrb[0].mxu0 %v1759
        %v1832 = vpop.f32.mrb[0].mxu0
        %v1833 = vadd.f32 %v1752, %v1832
        %v1834 = vpop.f32.mrb[0].mxu0
        %1835 = vdwg.mxu0
        %v1836 = vadd.s32 %v609, 16
        %vm1837 = vcmp.eq.s32.totalorder %v596, %v1836
        %vm1838 = vcmp.eq.s32.totalorder %v597, %v1836
        %vm1839 = vcmp.eq.s32.totalorder %v598, %v1836
        %vm1840 = vcmp.eq.s32.totalorder %v599, %v1836
        %vm1841 = vcmp.eq.s32.totalorder %v600, %v1836
        %vm1842 = vcmp.eq.s32.totalorder %v601, %v1836
        %vm1843 = vcmp.eq.s32.totalorder %v602, %v1836
        %vm1844 = vcmp.eq.s32.totalorder %v603, %v1836
        %vm1845 = vcmp.eq.s32.totalorder %v604, %v1836
        %vm1846 = vcmp.eq.s32.totalorder %v605, %v1836
        %vm1847 = vcmp.eq.s32.totalorder %v606, %v1836
        %vm1848 = vcmp.eq.s32.totalorder %v607, %v1836
        %v1849 = vsel %vm1837, 1, 0
        %v1850 = vsel %vm1838, 1, 0
        %v1851 = vsel %vm1839, 1, 0
        %v1852 = vsel %vm1840, 1, 0
        %v1853 = vsel %vm1841, 1, 0
        %v1854 = vsel %vm1842, 1, 0
        %v1855 = vsel %vm1843, 1, 0
        %v1856 = vsel %vm1844, 1, 0
        %v1857 = vsel %vm1845, 1, 0
        %v1858 = vsel %vm1846, 1, 0
        %v1859 = vsel %vm1847, 1, 0
        %v1860 = vsel %vm1848, 1, 0
        %v1861 = vcvt.s32.f32 %v1849
        %v1862 = vcvt.s32.f32 %v1850
        %v1863 = vcvt.s32.f32 %v1851
        %v1864 = vcvt.s32.f32 %v1852
        %v1865 = vcvt.s32.f32 %v1853
        %v1866 = vcvt.s32.f32 %v1854
        %v1867 = vcvt.s32.f32 %v1855
        %v1868 = vcvt.s32.f32 %v1856
        %v1869 = vcvt.s32.f32 %v1857
        %v1870 = vcvt.s32.f32 %v1858
        %v1871 = vcvt.s32.f32 %v1859
        %v1872 = vcvt.s32.f32 %v1860
        %1873 = vmatprep.subr.mxu0 0.0
        %1874 = vmatpush1.msra.mxu0 %v1861
        %1875 = vmatprep.subr.mxu0 0.0
        %1876 = vmatpush1.msra.mxu0 %v1862
        %1877 = vmatprep.subr.mxu0 0.0
        %1878 = vmatpush1.msra.mxu0 %v1863
        %1879 = vmatprep.subr.mxu0 0.0
        %1880 = vmatpush1.msra.mxu0 %v1864
        %1881 = vmatprep.subr.mxu0 0.0
        %1882 = vmatpush1.msra.mxu0 %v1865
        %1883 = vmatprep.subr.mxu0 0.0
        %1884 = vmatpush1.msra.mxu0 %v1866
        %1885 = vmatprep.subr.mxu0 0.0
        %1886 = vmatpush1.msra.mxu0 %v1867
        %1887 = vmatprep.subr.mxu0 0.0
        %1888 = vmatpush1.msra.mxu0 %v1868
        %1889 = vmatprep.subr.mxu0 0.0
        %1890 = vmatpush1.msra.mxu0 %v1869
        %1891 = vmatprep.subr.mxu0 0.0
        %1892 = vmatpush1.msra.mxu0 %v1870
        %1893 = vmatprep.subr.mxu0 0.0
        %1894 = vmatpush1.msra.mxu0 %v1871
        %1895 = vmatprep.subr.mxu0 0.0
        %1896 = vmatpush1.msra.mxu0 %v1872
        %1897 = vmatprep.subr.mxu0 0.0
        %1898 = vmatpush1.msra.mxu0 0.0
        %1899 = vmatprep.subr.mxu0 0.0
        %1900 = vmatpush1.msra.mxu0 0.0
        %1901 = vmatprep.subr.mxu0 0.0
        %1902 = vmatpush1.msra.mxu0 0.0
        %1903 = vmatprep.subr.mxu0 0.0
        %1904 = vmatpush1.msra.mxu0 0.0
        %1905 = vmatprep.subr.mxu0 0.0
        %1906 = vmatpush1.msra.mxu0 0.0
        %1907 = vmatprep.subr.mxu0 0.0
        %1908 = vmatpush1.msra.mxu0 0.0
        %1909 = vmatprep.subr.mxu0 0.0
        %1910 = vmatpush1.msra.mxu0 0.0
        %1911 = vmatprep.subr.mxu0 0.0
        %1912 = vmatpush1.msra.mxu0 0.0
        %1913 = vmatprep.subr.mxu0 0.0
        %1914 = vmatpush1.msra.mxu0 0.0
        %1915 = vmatprep.subr.mxu0 0.0
        %1916 = vmatpush1.msra.mxu0 0.0
        %1917 = vmatprep.subr.mxu0 0.0
        %1918 = vmatpush1.msra.mxu0 0.0
        %1919 = vmatprep.subr.mxu0 0.0
        %1920 = vmatpush1.msra.mxu0 0.0
        %1921 = vmatprep.subr.mxu0 0.0
        %1922 = vmatpush1.msra.mxu0 0.0
        %1923 = vmatprep.subr.mxu0 0.0
        %1924 = vmatpush1.msra.mxu0 0.0
        %1925 = vmatprep.subr.mxu0 0.0
        %1926 = vmatpush1.msra.mxu0 0.0
        %1927 = vmatprep.subr.mxu0 0.0
        %1928 = vmatpush1.msra.mxu0 0.0
        %1929 = vmatprep.subr.mxu0 0.0
        %1930 = vmatpush1.msra.mxu0 0.0
        %1931 = vmatprep.subr.mxu0 0.0
        %1932 = vmatpush1.msra.mxu0 0.0
        %1933 = vmatprep.subr.mxu0 0.0
        %1934 = vmatpush1.msra.mxu0 0.0
        %1935 = vmatprep.subr.mxu0 0.0
        %1936 = vmatpush1.msra.mxu0 0.0
        %1937 = vmatprep.mubr.f32.mxu0 0.0
        %1938 = vmatmul.mubr.f32.gmra.mrb[0].mxu0 %v648
        %v1939 = vpop.f32.mrb[0].mxu0
        %v1940 = vadd.f32 0.0, %v1939
        %v1941 = vpop.f32.mrb[0].mxu0
        %1942 = vmatprep.mubr.f32.mxu0 0.0
        %1943 = vmatmul.mubr.f32.gmra.mrb[0].mxu0 %v651
        %v1944 = vpop.f32.mrb[0].mxu0
        %v1945 = vadd.f32 0.0, %v1944
        %v1946 = vpop.f32.mrb[0].mxu0
        %1947 = vdwg.mxu0
        %v1948 = vadd.s32 %v609, 48
        %vm1949 = vcmp.eq.s32.totalorder %v596, %v1948
        %vm1950 = vcmp.eq.s32.totalorder %v597, %v1948
        %vm1951 = vcmp.eq.s32.totalorder %v598, %v1948
        %vm1952 = vcmp.eq.s32.totalorder %v599, %v1948
        %vm1953 = vcmp.eq.s32.totalorder %v600, %v1948
        %vm1954 = vcmp.eq.s32.totalorder %v601, %v1948
        %vm1955 = vcmp.eq.s32.totalorder %v602, %v1948
        %vm1956 = vcmp.eq.s32.totalorder %v603, %v1948
        %vm1957 = vcmp.eq.s32.totalorder %v604, %v1948
        %vm1958 = vcmp.eq.s32.totalorder %v605, %v1948
        %vm1959 = vcmp.eq.s32.totalorder %v606, %v1948
        %vm1960 = vcmp.eq.s32.totalorder %v607, %v1948
        %v1961 = vsel %vm1949, 1, 0
        %v1962 = vsel %vm1950, 1, 0
        %v1963 = vsel %vm1951, 1, 0
        %v1964 = vsel %vm1952, 1, 0
        %v1965 = vsel %vm1953, 1, 0
        %v1966 = vsel %vm1954, 1, 0
        %v1967 = vsel %vm1955, 1, 0
        %v1968 = vsel %vm1956, 1, 0
        %v1969 = vsel %vm1957, 1, 0
        %v1970 = vsel %vm1958, 1, 0
        %v1971 = vsel %vm1959, 1, 0
        %v1972 = vsel %vm1960, 1, 0
        %v1973 = vcvt.s32.f32 %v1961
        %v1974 = vcvt.s32.f32 %v1962
        %v1975 = vcvt.s32.f32 %v1963
        %v1976 = vcvt.s32.f32 %v1964
        %v1977 = vcvt.s32.f32 %v1965
        %v1978 = vcvt.s32.f32 %v1966
        %v1979 = vcvt.s32.f32 %v1967
        %v1980 = vcvt.s32.f32 %v1968
        %v1981 = vcvt.s32.f32 %v1969
        %v1982 = vcvt.s32.f32 %v1970
        %v1983 = vcvt.s32.f32 %v1971
        %v1984 = vcvt.s32.f32 %v1972
        %1985 = vmatprep.subr.mxu0 0.0
        %1986 = vmatpush1.msra.mxu0 %v1973
        %1987 = vmatprep.subr.mxu0 0.0
        %1988 = vmatpush1.msra.mxu0 %v1974
        %1989 = vmatprep.subr.mxu0 0.0
        %1990 = vmatpush1.msra.mxu0 %v1975
        %1991 = vmatprep.subr.mxu0 0.0
        %1992 = vmatpush1.msra.mxu0 %v1976
        %1993 = vmatprep.subr.mxu0 0.0
        %1994 = vmatpush1.msra.mxu0 %v1977
        %1995 = vmatprep.subr.mxu0 0.0
        %1996 = vmatpush1.msra.mxu0 %v1978
        %1997 = vmatprep.subr.mxu0 0.0
        %1998 = vmatpush1.msra.mxu0 %v1979
        %1999 = vmatprep.subr.mxu0 0.0
        %2000 = vmatpush1.msra.mxu0 %v1980
        %2001 = vmatprep.subr.mxu0 0.0
        %2002 = vmatpush1.msra.mxu0 %v1981
        %2003 = vmatprep.subr.mxu0 0.0
        %2004 = vmatpush1.msra.mxu0 %v1982
        %2005 = vmatprep.subr.mxu0 0.0
        %2006 = vmatpush1.msra.mxu0 %v1983
        %2007 = vmatprep.subr.mxu0 0.0
        %2008 = vmatpush1.msra.mxu0 %v1984
        %2009 = vmatprep.subr.mxu0 0.0
        %2010 = vmatpush1.msra.mxu0 0.0
        %2011 = vmatprep.subr.mxu0 0.0
        %2012 = vmatpush1.msra.mxu0 0.0
        %2013 = vmatprep.subr.mxu0 0.0
        %2014 = vmatpush1.msra.mxu0 0.0
        %2015 = vmatprep.subr.mxu0 0.0
        %2016 = vmatpush1.msra.mxu0 0.0
        %2017 = vmatprep.subr.mxu0 0.0
        %2018 = vmatpush1.msra.mxu0 0.0
        %2019 = vmatprep.subr.mxu0 0.0
        %2020 = vmatpush1.msra.mxu0 0.0
        %2021 = vmatprep.subr.mxu0 0.0
        %2022 = vmatpush1.msra.mxu0 0.0
        %2023 = vmatprep.subr.mxu0 0.0
        %2024 = vmatpush1.msra.mxu0 0.0
        %2025 = vmatprep.subr.mxu0 0.0
        %2026 = vmatpush1.msra.mxu0 0.0
        %2027 = vmatprep.subr.mxu0 0.0
        %2028 = vmatpush1.msra.mxu0 0.0
        %2029 = vmatprep.subr.mxu0 0.0
        %2030 = vmatpush1.msra.mxu0 0.0
        %2031 = vmatprep.subr.mxu0 0.0
        %2032 = vmatpush1.msra.mxu0 0.0
        %2033 = vmatprep.subr.mxu0 0.0
        %2034 = vmatpush1.msra.mxu0 0.0
        %2035 = vmatprep.subr.mxu0 0.0
        %2036 = vmatpush1.msra.mxu0 0.0
        %2037 = vmatprep.subr.mxu0 0.0
        %2038 = vmatpush1.msra.mxu0 0.0
        %2039 = vmatprep.subr.mxu0 0.0
        %2040 = vmatpush1.msra.mxu0 0.0
        %2041 = vmatprep.subr.mxu0 0.0
        %2042 = vmatpush1.msra.mxu0 0.0
        %2043 = vmatprep.subr.mxu0 0.0
        %2044 = vmatpush1.msra.mxu0 0.0
        %2045 = vmatprep.subr.mxu0 0.0
        %2046 = vmatpush1.msra.mxu0 0.0
        %2047 = vmatprep.subr.mxu0 0.0
        %2048 = vmatpush1.msra.mxu0 0.0
        %2049 = vmatprep.mubr.f32.mxu0 0.0
        %2050 = vmatmul.mubr.f32.gmra.mrb[0].mxu0 %v648
        %v2051 = vpop.f32.mrb[0].mxu0
        %v2052 = vadd.f32 0.0, %v2051
        %v2053 = vpop.f32.mrb[0].mxu0
        %2054 = vmatprep.mubr.f32.mxu0 0.0
        %2055 = vmatmul.mubr.f32.gmra.mrb[0].mxu0 %v651
        %v2056 = vpop.f32.mrb[0].mxu0
        %v2057 = vadd.f32 0.0, %v2056
        %v2058 = vpop.f32.mrb[0].mxu0
        %2059 = vdwg.mxu0
        %v2060 = vadd.s32 %v609, 80
        %vm2061 = vcmp.eq.s32.totalorder %v596, %v2060
        %vm2062 = vcmp.eq.s32.totalorder %v597, %v2060
        %vm2063 = vcmp.eq.s32.totalorder %v598, %v2060
        %vm2064 = vcmp.eq.s32.totalorder %v599, %v2060
        %vm2065 = vcmp.eq.s32.totalorder %v600, %v2060
        %vm2066 = vcmp.eq.s32.totalorder %v601, %v2060
        %vm2067 = vcmp.eq.s32.totalorder %v602, %v2060
        %vm2068 = vcmp.eq.s32.totalorder %v603, %v2060
        %vm2069 = vcmp.eq.s32.totalorder %v604, %v2060
        %vm2070 = vcmp.eq.s32.totalorder %v605, %v2060
        %vm2071 = vcmp.eq.s32.totalorder %v606, %v2060
        %vm2072 = vcmp.eq.s32.totalorder %v607, %v2060
        %v2073 = vsel %vm2061, 1, 0
        %v2074 = vsel %vm2062, 1, 0
        %v2075 = vsel %vm2063, 1, 0
        %v2076 = vsel %vm2064, 1, 0
        %v2077 = vsel %vm2065, 1, 0
        %v2078 = vsel %vm2066, 1, 0
        %v2079 = vsel %vm2067, 1, 0
        %v2080 = vsel %vm2068, 1, 0
        %v2081 = vsel %vm2069, 1, 0
        %v2082 = vsel %vm2070, 1, 0
        %v2083 = vsel %vm2071, 1, 0
        %v2084 = vsel %vm2072, 1, 0
        %v2085 = vcvt.s32.f32 %v2073
        %v2086 = vcvt.s32.f32 %v2074
        %v2087 = vcvt.s32.f32 %v2075
        %v2088 = vcvt.s32.f32 %v2076
        %v2089 = vcvt.s32.f32 %v2077
        %v2090 = vcvt.s32.f32 %v2078
        %v2091 = vcvt.s32.f32 %v2079
        %v2092 = vcvt.s32.f32 %v2080
        %v2093 = vcvt.s32.f32 %v2081
        %v2094 = vcvt.s32.f32 %v2082
        %v2095 = vcvt.s32.f32 %v2083
        %v2096 = vcvt.s32.f32 %v2084
        %2097 = vmatprep.subr.mxu0 0.0
        %2098 = vmatpush1.msra.mxu0 %v2085
        %2099 = vmatprep.subr.mxu0 0.0
        %2100 = vmatpush1.msra.mxu0 %v2086
        %2101 = vmatprep.subr.mxu0 0.0
        %2102 = vmatpush1.msra.mxu0 %v2087
        %2103 = vmatprep.subr.mxu0 0.0
        %2104 = vmatpush1.msra.mxu0 %v2088
        %2105 = vmatprep.subr.mxu0 0.0
        %2106 = vmatpush1.msra.mxu0 %v2089
        %2107 = vmatprep.subr.mxu0 0.0
        %2108 = vmatpush1.msra.mxu0 %v2090
        %2109 = vmatprep.subr.mxu0 0.0
        %2110 = vmatpush1.msra.mxu0 %v2091
        %2111 = vmatprep.subr.mxu0 0.0
        %2112 = vmatpush1.msra.mxu0 %v2092
        %2113 = vmatprep.subr.mxu0 0.0
        %2114 = vmatpush1.msra.mxu0 %v2093
        %2115 = vmatprep.subr.mxu0 0.0
        %2116 = vmatpush1.msra.mxu0 %v2094
        %2117 = vmatprep.subr.mxu0 0.0
        %2118 = vmatpush1.msra.mxu0 %v2095
        %2119 = vmatprep.subr.mxu0 0.0
        %2120 = vmatpush1.msra.mxu0 %v2096
        %2121 = vmatprep.subr.mxu0 0.0
        %2122 = vmatpush1.msra.mxu0 0.0
        %2123 = vmatprep.subr.mxu0 0.0
        %2124 = vmatpush1.msra.mxu0 0.0
        %2125 = vmatprep.subr.mxu0 0.0
        %2126 = vmatpush1.msra.mxu0 0.0
        %2127 = vmatprep.subr.mxu0 0.0
        %2128 = vmatpush1.msra.mxu0 0.0
        %2129 = vmatprep.subr.mxu0 0.0
        %2130 = vmatpush1.msra.mxu0 0.0
        %2131 = vmatprep.subr.mxu0 0.0
        %2132 = vmatpush1.msra.mxu0 0.0
        %2133 = vmatprep.subr.mxu0 0.0
        %2134 = vmatpush1.msra.mxu0 0.0
        %2135 = vmatprep.subr.mxu0 0.0
        %2136 = vmatpush1.msra.mxu0 0.0
        %2137 = vmatprep.subr.mxu0 0.0
        %2138 = vmatpush1.msra.mxu0 0.0
        %2139 = vmatprep.subr.mxu0 0.0
        %2140 = vmatpush1.msra.mxu0 0.0
        %2141 = vmatprep.subr.mxu0 0.0
        %2142 = vmatpush1.msra.mxu0 0.0
        %2143 = vmatprep.subr.mxu0 0.0
        %2144 = vmatpush1.msra.mxu0 0.0
        %2145 = vmatprep.subr.mxu0 0.0
        %2146 = vmatpush1.msra.mxu0 0.0
        %2147 = vmatprep.subr.mxu0 0.0
        %2148 = vmatpush1.msra.mxu0 0.0
        %2149 = vmatprep.subr.mxu0 0.0
        %2150 = vmatpush1.msra.mxu0 0.0
        %2151 = vmatprep.subr.mxu0 0.0
        %2152 = vmatpush1.msra.mxu0 0.0
        %2153 = vmatprep.subr.mxu0 0.0
        %2154 = vmatpush1.msra.mxu0 0.0
        %2155 = vmatprep.subr.mxu0 0.0
        %2156 = vmatpush1.msra.mxu0 0.0
        %2157 = vmatprep.subr.mxu0 0.0
        %2158 = vmatpush1.msra.mxu0 0.0
        %2159 = vmatprep.subr.mxu0 0.0
        %2160 = vmatpush1.msra.mxu0 0.0
        %2161 = vmatprep.mubr.f32.mxu0 0.0
        %2162 = vmatmul.mubr.f32.gmra.mrb[0].mxu0 %v648
        %v2163 = vpop.f32.mrb[0].mxu0
        %v2164 = vadd.f32 0.0, %v2163
        %v2165 = vpop.f32.mrb[0].mxu0
        %2166 = vmatprep.mubr.f32.mxu0 0.0
        %2167 = vmatmul.mubr.f32.gmra.mrb[0].mxu0 %v651
        %v2168 = vpop.f32.mrb[0].mxu0
        %v2169 = vadd.f32 0.0, %v2168
        %v2170 = vpop.f32.mrb[0].mxu0
        %2171 = vdwg.mxu0
        %v2173 = vsel %vm952, %v1940, 0
        %v2176 = vsel %vm952, %v1945, 0
        %v2179 = vsel %vm952, %v2052, 0
        %v2182 = vsel %vm952, %v2057, 0
        %2184 = vmatprep.subr.mxu0 0.0
        %2185 = vmatpush1.xpose.msra.mxu0 %v2179
        %2186 = vmatprep.subr.mxu0 0.0
        %2187 = vmatpush1.xpose.msra.mxu0 %v2182
        %2188 = vmatprep.subr.mxu0 0.0
        %2189 = vmatpush1.xpose.msra.mxu0 0.0
        %2190 = vmatprep.subr.mxu0 0.0
        %2191 = vmatpush1.xpose.msra.mxu0 0.0
        %2192 = vmatprep.subr.mxu0 0.0
        %2193 = vmatpush1.xpose.msra.mxu0 0.0
        %2194 = vmatprep.subr.mxu0 0.0
        %2195 = vmatpush1.xpose.msra.mxu0 0.0
        %2196 = vmatprep.subr.mxu0 0.0
        %2197 = vmatpush1.xpose.msra.mxu0 0.0
        %2198 = vmatprep.subr.mxu0 0.0
        %2199 = vmatpush1.xpose.msra.mxu0 0.0
        %2200 = vmatprep.subr.mxu0 0.0
        %2201 = vmatpush1.xpose.msra.mxu0 0.0
        %2202 = vmatprep.subr.mxu0 0.0
        %2203 = vmatpush1.xpose.msra.mxu0 0.0
        %2204 = vmatprep.subr.mxu0 0.0
        %2205 = vmatpush1.xpose.msra.mxu0 0.0
        %2206 = vmatprep.subr.mxu0 0.0
        %2207 = vmatpush1.xpose.msra.mxu0 0.0
        %2208 = vmatprep.subr.mxu0 0.0
        %2209 = vmatpush1.xpose.msra.mxu0 0.0
        %2210 = vmatprep.subr.mxu0 0.0
        %2211 = vmatpush1.xpose.msra.mxu0 0.0
        %2212 = vmatprep.subr.mxu0 0.0
        %2213 = vmatpush1.xpose.msra.mxu0 0.0
        %2214 = vmatprep.subr.mxu0 0.0
        %2215 = vmatpush1.xpose.msra.mxu0 0.0
        %2216 = vmatprep.subr.mxu0 0.0
        %2217 = vmatpush1.xpose.msra.mxu0 0.0
        %2218 = vmatprep.subr.mxu0 0.0
        %2219 = vmatpush1.xpose.msra.mxu0 0.0
        %2220 = vmatprep.subr.mxu0 0.0
        %2221 = vmatpush1.xpose.msra.mxu0 0.0
        %2222 = vmatprep.subr.mxu0 0.0
        %2223 = vmatpush1.xpose.msra.mxu0 0.0
        %2224 = vmatprep.subr.mxu0 0.0
        %2225 = vmatpush1.xpose.msra.mxu0 0.0
        %2226 = vmatprep.subr.mxu0 0.0
        %2227 = vmatpush1.xpose.msra.mxu0 0.0
        %2228 = vmatprep.subr.mxu0 0.0
        %2229 = vmatpush1.xpose.msra.mxu0 0.0
        %2230 = vmatprep.subr.mxu0 0.0
        %2231 = vmatpush1.xpose.msra.mxu0 0.0
        %2232 = vmatprep.subr.mxu0 0.0
        %2233 = vmatpush1.xpose.msra.mxu0 0.0
        %2234 = vmatprep.subr.mxu0 0.0
        %2235 = vmatpush1.xpose.msra.mxu0 0.0
        %2236 = vmatprep.subr.mxu0 0.0
        %2237 = vmatpush1.xpose.msra.mxu0 0.0
        %2238 = vmatprep.subr.mxu0 0.0
        %2239 = vmatpush1.xpose.msra.mxu0 0.0
        %2240 = vmatprep.subr.mxu0 0.0
        %2241 = vmatpush1.xpose.msra.mxu0 0.0
        %2242 = vmatprep.subr.mxu0 0.0
        %2243 = vmatpush1.xpose.msra.mxu0 0.0
        %2244 = vmatprep.subr.mxu0 0.0
        %2245 = vmatpush1.xpose.msra.mxu0 0.0
        %2246 = vmatprep.subr.mxu0 0.0
        %2247 = vmatpush1.xpose.msra.mxu0 0.0
        %2248 = vmatprep.mubr.f32.mxu0 0.0
        %2249 = vmatmul.mubr.f32.gmra.mrb[0].mxu0 %v2173
        %v2250 = vpop.f32.mrb[0].mxu0
        %v2251 = vadd.f32 0.0, %v2250
        %v2252 = vpop.f32.mrb[0].mxu0
        %2253 = vmatprep.mubr.f32.mxu0 0.0
        %2254 = vmatmul.mubr.f32.gmra.mrb[0].mxu0 %v2176
        %v2255 = vpop.f32.mrb[0].mxu0
        %v2256 = vadd.f32 0.0, %v2255
        %v2257 = vpop.f32.mrb[0].mxu0
        %2258 = vdwg.mxu0
        %v2259 = vmul.f32 %v2251, 0.35355338
        %v2260 = vmul.f32 %v2256, 0.35355338
        %v2261 = vsel %vm1042, %v2259, -inf
        %2262 = vmax.xlane.f32.xlu0 %v2261
        %v2263 = vpop.xlane.xlu0 %2262
        %v2264 = vsel %vm1042, %v2260, -inf
        %2265 = vmax.xlane.f32.xlu0 %v2264
        %v2266 = vpop.xlane.xlu0 %2265
        %v2267 = vsub.f32 %v2259, %v2263
        %v2268 = vsub.f32 %v2260, %v2266
        %v2269 = vmul.f32 %v2267, 1.442695
        %v2270 = vpow.pop %v2269
        %v2271 = vmul.f32 %v2268, 1.442695
        %v2272 = vpow.pop %v2271
        %v2273 = vsel %vm1042, %v2270, 0.0
        %2274 = vadd.xlane.f32.xlu0 %v2273
        %v2275 = vpop.xlane.xlu0 %2274
        %v2276 = vsel %vm1042, %v2272, 0.0
        %2277 = vadd.xlane.f32.xlu0 %v2276
        %v2278 = vpop.xlane.xlu0 %2277
        %v2279 = vrcp.pop %v2275
        %v2280 = vrcp.pop %v2278
        %v2281 = vmul.f32 %v2270, %v2279
        %v2282 = vmul.f32 %v2272, %v2280
        %v2284 = vsel %vm1042, %v2281, 0
        %v2287 = vsel %vm1042, %v2282, 0
        %2289 = vmatprep.subr.mxu0 0.0
        %2290 = vmatpush1.msra.mxu0 %v2164
        %2291 = vmatprep.subr.mxu0 0.0
        %2292 = vmatpush1.msra.mxu0 %v2169
        %2293 = vmatprep.subr.mxu0 0.0
        %2294 = vmatpush1.msra.mxu0 0.0
        %2295 = vmatprep.subr.mxu0 0.0
        %2296 = vmatpush1.msra.mxu0 0.0
        %2297 = vmatprep.subr.mxu0 0.0
        %2298 = vmatpush1.msra.mxu0 0.0
        %2299 = vmatprep.subr.mxu0 0.0
        %2300 = vmatpush1.msra.mxu0 0.0
        %2301 = vmatprep.subr.mxu0 0.0
        %2302 = vmatpush1.msra.mxu0 0.0
        %2303 = vmatprep.subr.mxu0 0.0
        %2304 = vmatpush1.msra.mxu0 0.0
        %2305 = vmatprep.subr.mxu0 0.0
        %2306 = vmatpush1.msra.mxu0 0.0
        %2307 = vmatprep.subr.mxu0 0.0
        %2308 = vmatpush1.msra.mxu0 0.0
        %2309 = vmatprep.subr.mxu0 0.0
        %2310 = vmatpush1.msra.mxu0 0.0
        %2311 = vmatprep.subr.mxu0 0.0
        %2312 = vmatpush1.msra.mxu0 0.0
        %2313 = vmatprep.subr.mxu0 0.0
        %2314 = vmatpush1.msra.mxu0 0.0
        %2315 = vmatprep.subr.mxu0 0.0
        %2316 = vmatpush1.msra.mxu0 0.0
        %2317 = vmatprep.subr.mxu0 0.0
        %2318 = vmatpush1.msra.mxu0 0.0
        %2319 = vmatprep.subr.mxu0 0.0
        %2320 = vmatpush1.msra.mxu0 0.0
        %2321 = vmatprep.subr.mxu0 0.0
        %2322 = vmatpush1.msra.mxu0 0.0
        %2323 = vmatprep.subr.mxu0 0.0
        %2324 = vmatpush1.msra.mxu0 0.0
        %2325 = vmatprep.subr.mxu0 0.0
        %2326 = vmatpush1.msra.mxu0 0.0
        %2327 = vmatprep.subr.mxu0 0.0
        %2328 = vmatpush1.msra.mxu0 0.0
        %2329 = vmatprep.subr.mxu0 0.0
        %2330 = vmatpush1.msra.mxu0 0.0
        %2331 = vmatprep.subr.mxu0 0.0
        %2332 = vmatpush1.msra.mxu0 0.0
        %2333 = vmatprep.subr.mxu0 0.0
        %2334 = vmatpush1.msra.mxu0 0.0
        %2335 = vmatprep.subr.mxu0 0.0
        %2336 = vmatpush1.msra.mxu0 0.0
        %2337 = vmatprep.subr.mxu0 0.0
        %2338 = vmatpush1.msra.mxu0 0.0
        %2339 = vmatprep.subr.mxu0 0.0
        %2340 = vmatpush1.msra.mxu0 0.0
        %2341 = vmatprep.subr.mxu0 0.0
        %2342 = vmatpush1.msra.mxu0 0.0
        %2343 = vmatprep.subr.mxu0 0.0
        %2344 = vmatpush1.msra.mxu0 0.0
        %2345 = vmatprep.subr.mxu0 0.0
        %2346 = vmatpush1.msra.mxu0 0.0
        %2347 = vmatprep.subr.mxu0 0.0
        %2348 = vmatpush1.msra.mxu0 0.0
        %2349 = vmatprep.subr.mxu0 0.0
        %2350 = vmatpush1.msra.mxu0 0.0
        %2351 = vmatprep.subr.mxu0 0.0
        %2352 = vmatpush1.msra.mxu0 0.0
        %2353 = vmatprep.mubr.f32.mxu0 0.0
        %2354 = vmatmul.mubr.f32.gmra.mrb[0].mxu0 %v2284
        %v2355 = vpop.f32.mrb[0].mxu0
        %v2356 = vadd.f32 0.0, %v2355
        %v2357 = vpop.f32.mrb[0].mxu0
        %2358 = vmatprep.mubr.f32.mxu0 0.0
        %2359 = vmatmul.mubr.f32.gmra.mrb[0].mxu0 %v2287
        %v2360 = vpop.f32.mrb[0].mxu0
        %v2361 = vadd.f32 0.0, %v2360
        %v2362 = vpop.f32.mrb[0].mxu0
        %2363 = vdwg.mxu0
        %v2365 = vsel %vm952, %v2356, 0
        %v2368 = vsel %vm952, %v2361, 0
        %2370 = vmatprep.subr.mxu0 0.0
        %2371 = vmatpush1.msra.mxu0 %v502
        %2372 = vmatprep.subr.mxu0 0.0
        %2373 = vmatpush1.msra.mxu0 0.0
        %2374 = vmatprep.subr.mxu0 0.0
        %2375 = vmatpush1.msra.mxu0 0.0
        %2376 = vmatprep.subr.mxu0 0.0
        %2377 = vmatpush1.msra.mxu0 0.0
        %2378 = vmatprep.subr.mxu0 0.0
        %2379 = vmatpush1.msra.mxu0 0.0
        %2380 = vmatprep.subr.mxu0 0.0
        %2381 = vmatpush1.msra.mxu0 0.0
        %2382 = vmatprep.subr.mxu0 0.0
        %2383 = vmatpush1.msra.mxu0 0.0
        %2384 = vmatprep.subr.mxu0 0.0
        %2385 = vmatpush1.msra.mxu0 0.0
        %2386 = vmatprep.subr.mxu0 0.0
        %2387 = vmatpush1.msra.mxu0 0.0
        %2388 = vmatprep.subr.mxu0 0.0
        %2389 = vmatpush1.msra.mxu0 0.0
        %2390 = vmatprep.subr.mxu0 0.0
        %2391 = vmatpush1.msra.mxu0 0.0
        %2392 = vmatprep.subr.mxu0 0.0
        %2393 = vmatpush1.msra.mxu0 0.0
        %2394 = vmatprep.subr.mxu0 0.0
        %2395 = vmatpush1.msra.mxu0 0.0
        %2396 = vmatprep.subr.mxu0 0.0
        %2397 = vmatpush1.msra.mxu0 0.0
        %2398 = vmatprep.subr.mxu0 0.0
        %2399 = vmatpush1.msra.mxu0 0.0
        %2400 = vmatprep.subr.mxu0 0.0
        %2401 = vmatpush1.msra.mxu0 0.0
        %2402 = vmatprep.subr.mxu0 0.0
        %2403 = vmatpush1.msra.mxu0 0.0
        %2404 = vmatprep.subr.mxu0 0.0
        %2405 = vmatpush1.msra.mxu0 0.0
        %2406 = vmatprep.subr.mxu0 0.0
        %2407 = vmatpush1.msra.mxu0 0.0
        %2408 = vmatprep.subr.mxu0 0.0
        %2409 = vmatpush1.msra.mxu0 0.0
        %2410 = vmatprep.subr.mxu0 0.0
        %2411 = vmatpush1.msra.mxu0 0.0
        %2412 = vmatprep.subr.mxu0 0.0
        %2413 = vmatpush1.msra.mxu0 0.0
        %2414 = vmatprep.subr.mxu0 0.0
        %2415 = vmatpush1.msra.mxu0 0.0
        %2416 = vmatprep.subr.mxu0 0.0
        %2417 = vmatpush1.msra.mxu0 0.0
        %2418 = vmatprep.subr.mxu0 0.0
        %2419 = vmatpush1.msra.mxu0 0.0
        %2420 = vmatprep.subr.mxu0 0.0
        %2421 = vmatpush1.msra.mxu0 0.0
        %2422 = vmatprep.subr.mxu0 0.0
        %2423 = vmatpush1.msra.mxu0 0.0
        %2424 = vmatprep.subr.mxu0 0.0
        %2425 = vmatpush1.msra.mxu0 0.0
        %2426 = vmatprep.subr.mxu0 0.0
        %2427 = vmatpush1.msra.mxu0 0.0
        %2428 = vmatprep.subr.mxu0 0.0
        %2429 = vmatpush1.msra.mxu0 0.0
        %2430 = vmatprep.subr.mxu0 0.0
        %2431 = vmatpush1.msra.mxu0 0.0
        %2432 = vmatprep.subr.mxu0 0.0
        %2433 = vmatpush1.msra.mxu0 0.0
        %2434 = vmatprep.mubr.f32.mxu0 0.0
        %2435 = vmatmul.mubr.f32.gmra.mrb[0].mxu0 %v2365
        %v2436 = vpop.f32.mrb[0].mxu0
        %v2437 = vadd.f32 0.0, %v2436
        %v2438 = vpop.f32.mrb[0].mxu0
        %2439 = vmatprep.mubr.f32.mxu0 0.0
        %2440 = vmatmul.mubr.f32.gmra.mrb[0].mxu0 %v2368
        %v2441 = vpop.f32.mrb[0].mxu0
        %v2442 = vadd.f32 0.0, %v2441
        %v2443 = vpop.f32.mrb[0].mxu0
        %2444 = vdwg.mxu0
        %v2445 = vadd.f32 %v1828, %v2437
        %v2446 = vadd.f32 %v1833, %v2442
        %v2447 = vadd.s32 %v609, 24
        %vm2448 = vcmp.eq.s32.totalorder %v596, %v2447
        %vm2449 = vcmp.eq.s32.totalorder %v597, %v2447
        %vm2450 = vcmp.eq.s32.totalorder %v598, %v2447
        %vm2451 = vcmp.eq.s32.totalorder %v599, %v2447
        %vm2452 = vcmp.eq.s32.totalorder %v600, %v2447
        %vm2453 = vcmp.eq.s32.totalorder %v601, %v2447
        %vm2454 = vcmp.eq.s32.totalorder %v602, %v2447
        %vm2455 = vcmp.eq.s32.totalorder %v603, %v2447
        %vm2456 = vcmp.eq.s32.totalorder %v604, %v2447
        %vm2457 = vcmp.eq.s32.totalorder %v605, %v2447
        %vm2458 = vcmp.eq.s32.totalorder %v606, %v2447
        %vm2459 = vcmp.eq.s32.totalorder %v607, %v2447
        %v2460 = vsel %vm2448, 1, 0
        %v2461 = vsel %vm2449, 1, 0
        %v2462 = vsel %vm2450, 1, 0
        %v2463 = vsel %vm2451, 1, 0
        %v2464 = vsel %vm2452, 1, 0
        %v2465 = vsel %vm2453, 1, 0
        %v2466 = vsel %vm2454, 1, 0
        %v2467 = vsel %vm2455, 1, 0
        %v2468 = vsel %vm2456, 1, 0
        %v2469 = vsel %vm2457, 1, 0
        %v2470 = vsel %vm2458, 1, 0
        %v2471 = vsel %vm2459, 1, 0
        %v2472 = vcvt.s32.f32 %v2460
        %v2473 = vcvt.s32.f32 %v2461
        %v2474 = vcvt.s32.f32 %v2462
        %v2475 = vcvt.s32.f32 %v2463
        %v2476 = vcvt.s32.f32 %v2464
        %v2477 = vcvt.s32.f32 %v2465
        %v2478 = vcvt.s32.f32 %v2466
        %v2479 = vcvt.s32.f32 %v2467
        %v2480 = vcvt.s32.f32 %v2468
        %v2481 = vcvt.s32.f32 %v2469
        %v2482 = vcvt.s32.f32 %v2470
        %v2483 = vcvt.s32.f32 %v2471
        %2484 = vmatprep.subr.mxu0 0.0
        %2485 = vmatpush1.msra.mxu0 %v2472
        %2486 = vmatprep.subr.mxu0 0.0
        %2487 = vmatpush1.msra.mxu0 %v2473
        %2488 = vmatprep.subr.mxu0 0.0
        %2489 = vmatpush1.msra.mxu0 %v2474
        %2490 = vmatprep.subr.mxu0 0.0
        %2491 = vmatpush1.msra.mxu0 %v2475
        %2492 = vmatprep.subr.mxu0 0.0
        %2493 = vmatpush1.msra.mxu0 %v2476
        %2494 = vmatprep.subr.mxu0 0.0
        %2495 = vmatpush1.msra.mxu0 %v2477
        %2496 = vmatprep.subr.mxu0 0.0
        %2497 = vmatpush1.msra.mxu0 %v2478
        %2498 = vmatprep.subr.mxu0 0.0
        %2499 = vmatpush1.msra.mxu0 %v2479
        %2500 = vmatprep.subr.mxu0 0.0
        %2501 = vmatpush1.msra.mxu0 %v2480
        %2502 = vmatprep.subr.mxu0 0.0
        %2503 = vmatpush1.msra.mxu0 %v2481
        %2504 = vmatprep.subr.mxu0 0.0
        %2505 = vmatpush1.msra.mxu0 %v2482
        %2506 = vmatprep.subr.mxu0 0.0
        %2507 = vmatpush1.msra.mxu0 %v2483
        %2508 = vmatprep.subr.mxu0 0.0
        %2509 = vmatpush1.msra.mxu0 0.0
        %2510 = vmatprep.subr.mxu0 0.0
        %2511 = vmatpush1.msra.mxu0 0.0
        %2512 = vmatprep.subr.mxu0 0.0
        %2513 = vmatpush1.msra.mxu0 0.0
        %2514 = vmatprep.subr.mxu0 0.0
        %2515 = vmatpush1.msra.mxu0 0.0
        %2516 = vmatprep.subr.mxu0 0.0
        %2517 = vmatpush1.msra.mxu0 0.0
        %2518 = vmatprep.subr.mxu0 0.0
        %2519 = vmatpush1.msra.mxu0 0.0
        %2520 = vmatprep.subr.mxu0 0.0
        %2521 = vmatpush1.msra.mxu0 0.0
        %2522 = vmatprep.subr.mxu0 0.0
        %2523 = vmatpush1.msra.mxu0 0.0
        %2524 = vmatprep.subr.mxu0 0.0
        %2525 = vmatpush1.msra.mxu0 0.0
        %2526 = vmatprep.subr.mxu0 0.0
        %2527 = vmatpush1.msra.mxu0 0.0
        %2528 = vmatprep.subr.mxu0 0.0
        %2529 = vmatpush1.msra.mxu0 0.0
        %2530 = vmatprep.subr.mxu0 0.0
        %2531 = vmatpush1.msra.mxu0 0.0
        %2532 = vmatprep.subr.mxu0 0.0
        %2533 = vmatpush1.msra.mxu0 0.0
        %2534 = vmatprep.subr.mxu0 0.0
        %2535 = vmatpush1.msra.mxu0 0.0
        %2536 = vmatprep.subr.mxu0 0.0
        %2537 = vmatpush1.msra.mxu0 0.0
        %2538 = vmatprep.subr.mxu0 0.0
        %2539 = vmatpush1.msra.mxu0 0.0
        %2540 = vmatprep.subr.mxu0 0.0
        %2541 = vmatpush1.msra.mxu0 0.0
        %2542 = vmatprep.subr.mxu0 0.0
        %2543 = vmatpush1.msra.mxu0 0.0
        %2544 = vmatprep.subr.mxu0 0.0
        %2545 = vmatpush1.msra.mxu0 0.0
        %2546 = vmatprep.subr.mxu0 0.0
        %2547 = vmatpush1.msra.mxu0 0.0
        %2548 = vmatprep.mubr.f32.mxu0 0.0
        %2549 = vmatmul.mubr.f32.gmra.mrb[0].mxu0 %v648
        %v2550 = vpop.f32.mrb[0].mxu0
        %v2551 = vadd.f32 0.0, %v2550
        %v2552 = vpop.f32.mrb[0].mxu0
        %2553 = vmatprep.mubr.f32.mxu0 0.0
        %2554 = vmatmul.mubr.f32.gmra.mrb[0].mxu0 %v651
        %v2555 = vpop.f32.mrb[0].mxu0
        %v2556 = vadd.f32 0.0, %v2555
        %v2557 = vpop.f32.mrb[0].mxu0
        %2558 = vdwg.mxu0
        %v2559 = vadd.s32 %v609, 56
        %vm2560 = vcmp.eq.s32.totalorder %v596, %v2559
        %vm2561 = vcmp.eq.s32.totalorder %v597, %v2559
        %vm2562 = vcmp.eq.s32.totalorder %v598, %v2559
        %vm2563 = vcmp.eq.s32.totalorder %v599, %v2559
        %vm2564 = vcmp.eq.s32.totalorder %v600, %v2559
        %vm2565 = vcmp.eq.s32.totalorder %v601, %v2559
        %vm2566 = vcmp.eq.s32.totalorder %v602, %v2559
        %vm2567 = vcmp.eq.s32.totalorder %v603, %v2559
        %vm2568 = vcmp.eq.s32.totalorder %v604, %v2559
        %vm2569 = vcmp.eq.s32.totalorder %v605, %v2559
        %vm2570 = vcmp.eq.s32.totalorder %v606, %v2559
        %vm2571 = vcmp.eq.s32.totalorder %v607, %v2559
        %v2572 = vsel %vm2560, 1, 0
        %v2573 = vsel %vm2561, 1, 0
        %v2574 = vsel %vm2562, 1, 0
        %v2575 = vsel %vm2563, 1, 0
        %v2576 = vsel %vm2564, 1, 0
        %v2577 = vsel %vm2565, 1, 0
        %v2578 = vsel %vm2566, 1, 0
        %v2579 = vsel %vm2567, 1, 0
        %v2580 = vsel %vm2568, 1, 0
        %v2581 = vsel %vm2569, 1, 0
        %v2582 = vsel %vm2570, 1, 0
        %v2583 = vsel %vm2571, 1, 0
        %v2584 = vcvt.s32.f32 %v2572
        %v2585 = vcvt.s32.f32 %v2573
        %v2586 = vcvt.s32.f32 %v2574
        %v2587 = vcvt.s32.f32 %v2575
        %v2588 = vcvt.s32.f32 %v2576
        %v2589 = vcvt.s32.f32 %v2577
        %v2590 = vcvt.s32.f32 %v2578
        %v2591 = vcvt.s32.f32 %v2579
        %v2592 = vcvt.s32.f32 %v2580
        %v2593 = vcvt.s32.f32 %v2581
        %v2594 = vcvt.s32.f32 %v2582
        %v2595 = vcvt.s32.f32 %v2583
        %2596 = vmatprep.subr.mxu0 0.0
        %2597 = vmatpush1.msra.mxu0 %v2584
        %2598 = vmatprep.subr.mxu0 0.0
        %2599 = vmatpush1.msra.mxu0 %v2585
        %2600 = vmatprep.subr.mxu0 0.0
        %2601 = vmatpush1.msra.mxu0 %v2586
        %2602 = vmatprep.subr.mxu0 0.0
        %2603 = vmatpush1.msra.mxu0 %v2587
        %2604 = vmatprep.subr.mxu0 0.0
        %2605 = vmatpush1.msra.mxu0 %v2588
        %2606 = vmatprep.subr.mxu0 0.0
        %2607 = vmatpush1.msra.mxu0 %v2589
        %2608 = vmatprep.subr.mxu0 0.0
        %2609 = vmatpush1.msra.mxu0 %v2590
        %2610 = vmatprep.subr.mxu0 0.0
        %2611 = vmatpush1.msra.mxu0 %v2591
        %2612 = vmatprep.subr.mxu0 0.0
        %2613 = vmatpush1.msra.mxu0 %v2592
        %2614 = vmatprep.subr.mxu0 0.0
        %2615 = vmatpush1.msra.mxu0 %v2593
        %2616 = vmatprep.subr.mxu0 0.0
        %2617 = vmatpush1.msra.mxu0 %v2594
        %2618 = vmatprep.subr.mxu0 0.0
        %2619 = vmatpush1.msra.mxu0 %v2595
        %2620 = vmatprep.subr.mxu0 0.0
        %2621 = vmatpush1.msra.mxu0 0.0
        %2622 = vmatprep.subr.mxu0 0.0
        %2623 = vmatpush1.msra.mxu0 0.0
        %2624 = vmatprep.subr.mxu0 0.0
        %2625 = vmatpush1.msra.mxu0 0.0
        %2626 = vmatprep.subr.mxu0 0.0
        %2627 = vmatpush1.msra.mxu0 0.0
        %2628 = vmatprep.subr.mxu0 0.0
        %2629 = vmatpush1.msra.mxu0 0.0
        %2630 = vmatprep.subr.mxu0 0.0
        %2631 = vmatpush1.msra.mxu0 0.0
        %2632 = vmatprep.subr.mxu0 0.0
        %2633 = vmatpush1.msra.mxu0 0.0
        %2634 = vmatprep.subr.mxu0 0.0
        %2635 = vmatpush1.msra.mxu0 0.0
        %2636 = vmatprep.subr.mxu0 0.0
        %2637 = vmatpush1.msra.mxu0 0.0
        %2638 = vmatprep.subr.mxu0 0.0
        %2639 = vmatpush1.msra.mxu0 0.0
        %2640 = vmatprep.subr.mxu0 0.0
        %2641 = vmatpush1.msra.mxu0 0.0
        %2642 = vmatprep.subr.mxu0 0.0
        %2643 = vmatpush1.msra.mxu0 0.0
        %2644 = vmatprep.subr.mxu0 0.0
        %2645 = vmatpush1.msra.mxu0 0.0
        %2646 = vmatprep.subr.mxu0 0.0
        %2647 = vmatpush1.msra.mxu0 0.0
        %2648 = vmatprep.subr.mxu0 0.0
        %2649 = vmatpush1.msra.mxu0 0.0
        %2650 = vmatprep.subr.mxu0 0.0
        %2651 = vmatpush1.msra.mxu0 0.0
        %2652 = vmatprep.subr.mxu0 0.0
        %2653 = vmatpush1.msra.mxu0 0.0
        %2654 = vmatprep.subr.mxu0 0.0
        %2655 = vmatpush1.msra.mxu0 0.0
        %2656 = vmatprep.subr.mxu0 0.0
        %2657 = vmatpush1.msra.mxu0 0.0
        %2658 = vmatprep.subr.mxu0 0.0
        %2659 = vmatpush1.msra.mxu0 0.0
        %2660 = vmatprep.mubr.f32.mxu0 0.0
        %2661 = vmatmul.mubr.f32.gmra.mrb[0].mxu0 %v648
        %v2662 = vpop.f32.mrb[0].mxu0
        %v2663 = vadd.f32 0.0, %v2662
        %v2664 = vpop.f32.mrb[0].mxu0
        %2665 = vmatprep.mubr.f32.mxu0 0.0
        %2666 = vmatmul.mubr.f32.gmra.mrb[0].mxu0 %v651
        %v2667 = vpop.f32.mrb[0].mxu0
        %v2668 = vadd.f32 0.0, %v2667
        %v2669 = vpop.f32.mrb[0].mxu0
        %2670 = vdwg.mxu0
        %v2671 = vadd.s32 %v609, 88
        %vm2672 = vcmp.eq.s32.totalorder %v596, %v2671
        %vm2673 = vcmp.eq.s32.totalorder %v597, %v2671
        %vm2674 = vcmp.eq.s32.totalorder %v598, %v2671
        %vm2675 = vcmp.eq.s32.totalorder %v599, %v2671
        %vm2676 = vcmp.eq.s32.totalorder %v600, %v2671
        %vm2677 = vcmp.eq.s32.totalorder %v601, %v2671
        %vm2678 = vcmp.eq.s32.totalorder %v602, %v2671
        %vm2679 = vcmp.eq.s32.totalorder %v603, %v2671
        %vm2680 = vcmp.eq.s32.totalorder %v604, %v2671
        %vm2681 = vcmp.eq.s32.totalorder %v605, %v2671
        %vm2682 = vcmp.eq.s32.totalorder %v606, %v2671
        %vm2683 = vcmp.eq.s32.totalorder %v607, %v2671
        %v2684 = vsel %vm2672, 1, 0
        %v2685 = vsel %vm2673, 1, 0
        %v2686 = vsel %vm2674, 1, 0
        %v2687 = vsel %vm2675, 1, 0
        %v2688 = vsel %vm2676, 1, 0
        %v2689 = vsel %vm2677, 1, 0
        %v2690 = vsel %vm2678, 1, 0
        %v2691 = vsel %vm2679, 1, 0
        %v2692 = vsel %vm2680, 1, 0
        %v2693 = vsel %vm2681, 1, 0
        %v2694 = vsel %vm2682, 1, 0
        %v2695 = vsel %vm2683, 1, 0
        %v2696 = vcvt.s32.f32 %v2684
        %v2697 = vcvt.s32.f32 %v2685
        %v2698 = vcvt.s32.f32 %v2686
        %v2699 = vcvt.s32.f32 %v2687
        %v2700 = vcvt.s32.f32 %v2688
        %v2701 = vcvt.s32.f32 %v2689
        %v2702 = vcvt.s32.f32 %v2690
        %v2703 = vcvt.s32.f32 %v2691
        %v2704 = vcvt.s32.f32 %v2692
        %v2705 = vcvt.s32.f32 %v2693
        %v2706 = vcvt.s32.f32 %v2694
        %v2707 = vcvt.s32.f32 %v2695
        %2708 = vmatprep.subr.mxu0 0.0
        %2709 = vmatpush1.msra.mxu0 %v2696
        %2710 = vmatprep.subr.mxu0 0.0
        %2711 = vmatpush1.msra.mxu0 %v2697
        %2712 = vmatprep.subr.mxu0 0.0
        %2713 = vmatpush1.msra.mxu0 %v2698
        %2714 = vmatprep.subr.mxu0 0.0
        %2715 = vmatpush1.msra.mxu0 %v2699
        %2716 = vmatprep.subr.mxu0 0.0
        %2717 = vmatpush1.msra.mxu0 %v2700
        %2718 = vmatprep.subr.mxu0 0.0
        %2719 = vmatpush1.msra.mxu0 %v2701
        %2720 = vmatprep.subr.mxu0 0.0
        %2721 = vmatpush1.msra.mxu0 %v2702
        %2722 = vmatprep.subr.mxu0 0.0
        %2723 = vmatpush1.msra.mxu0 %v2703
        %2724 = vmatprep.subr.mxu0 0.0
        %2725 = vmatpush1.msra.mxu0 %v2704
        %2726 = vmatprep.subr.mxu0 0.0
        %2727 = vmatpush1.msra.mxu0 %v2705
        %2728 = vmatprep.subr.mxu0 0.0
        %2729 = vmatpush1.msra.mxu0 %v2706
        %2730 = vmatprep.subr.mxu0 0.0
        %2731 = vmatpush1.msra.mxu0 %v2707
        %2732 = vmatprep.subr.mxu0 0.0
        %2733 = vmatpush1.msra.mxu0 0.0
        %2734 = vmatprep.subr.mxu0 0.0
        %2735 = vmatpush1.msra.mxu0 0.0
        %2736 = vmatprep.subr.mxu0 0.0
        %2737 = vmatpush1.msra.mxu0 0.0
        %2738 = vmatprep.subr.mxu0 0.0
        %2739 = vmatpush1.msra.mxu0 0.0
        %2740 = vmatprep.subr.mxu0 0.0
        %2741 = vmatpush1.msra.mxu0 0.0
        %2742 = vmatprep.subr.mxu0 0.0
        %2743 = vmatpush1.msra.mxu0 0.0
        %2744 = vmatprep.subr.mxu0 0.0
        %2745 = vmatpush1.msra.mxu0 0.0
        %2746 = vmatprep.subr.mxu0 0.0
        %2747 = vmatpush1.msra.mxu0 0.0
        %2748 = vmatprep.subr.mxu0 0.0
        %2749 = vmatpush1.msra.mxu0 0.0
        %2750 = vmatprep.subr.mxu0 0.0
        %2751 = vmatpush1.msra.mxu0 0.0
        %2752 = vmatprep.subr.mxu0 0.0
        %2753 = vmatpush1.msra.mxu0 0.0
        %2754 = vmatprep.subr.mxu0 0.0
        %2755 = vmatpush1.msra.mxu0 0.0
        %2756 = vmatprep.subr.mxu0 0.0
        %2757 = vmatpush1.msra.mxu0 0.0
        %2758 = vmatprep.subr.mxu0 0.0
        %2759 = vmatpush1.msra.mxu0 0.0
        %2760 = vmatprep.subr.mxu0 0.0
        %2761 = vmatpush1.msra.mxu0 0.0
        %2762 = vmatprep.subr.mxu0 0.0
        %2763 = vmatpush1.msra.mxu0 0.0
        %2764 = vmatprep.subr.mxu0 0.0
        %2765 = vmatpush1.msra.mxu0 0.0
        %2766 = vmatprep.subr.mxu0 0.0
        %2767 = vmatpush1.msra.mxu0 0.0
        %2768 = vmatprep.subr.mxu0 0.0
        %2769 = vmatpush1.msra.mxu0 0.0
        %2770 = vmatprep.subr.mxu0 0.0
        %2771 = vmatpush1.msra.mxu0 0.0
        %2772 = vmatprep.mubr.f32.mxu0 0.0
        %2773 = vmatmul.mubr.f32.gmra.mrb[0].mxu0 %v648
        %v2774 = vpop.f32.mrb[0].mxu0
        %v2775 = vadd.f32 0.0, %v2774
        %v2776 = vpop.f32.mrb[0].mxu0
        %2777 = vmatprep.mubr.f32.mxu0 0.0
        %2778 = vmatmul.mubr.f32.gmra.mrb[0].mxu0 %v651
        %v2779 = vpop.f32.mrb[0].mxu0
        %v2780 = vadd.f32 0.0, %v2779
        %v2781 = vpop.f32.mrb[0].mxu0
        %2782 = vdwg.mxu0
        %v2784 = vsel %vm952, %v2551, 0
        %v2787 = vsel %vm952, %v2556, 0
        %v2790 = vsel %vm952, %v2663, 0
        %v2793 = vsel %vm952, %v2668, 0
        %2795 = vmatprep.subr.mxu0 0.0
        %2796 = vmatpush1.xpose.msra.mxu0 %v2790
        %2797 = vmatprep.subr.mxu0 0.0
        %2798 = vmatpush1.xpose.msra.mxu0 %v2793
        %2799 = vmatprep.subr.mxu0 0.0
        %2800 = vmatpush1.xpose.msra.mxu0 0.0
        %2801 = vmatprep.subr.mxu0 0.0
        %2802 = vmatpush1.xpose.msra.mxu0 0.0
        %2803 = vmatprep.subr.mxu0 0.0
        %2804 = vmatpush1.xpose.msra.mxu0 0.0
        %2805 = vmatprep.subr.mxu0 0.0
        %2806 = vmatpush1.xpose.msra.mxu0 0.0
        %2807 = vmatprep.subr.mxu0 0.0
        %2808 = vmatpush1.xpose.msra.mxu0 0.0
        %2809 = vmatprep.subr.mxu0 0.0
        %2810 = vmatpush1.xpose.msra.mxu0 0.0
        %2811 = vmatprep.subr.mxu0 0.0
        %2812 = vmatpush1.xpose.msra.mxu0 0.0
        %2813 = vmatprep.subr.mxu0 0.0
        %2814 = vmatpush1.xpose.msra.mxu0 0.0
        %2815 = vmatprep.subr.mxu0 0.0
        %2816 = vmatpush1.xpose.msra.mxu0 0.0
        %2817 = vmatprep.subr.mxu0 0.0
        %2818 = vmatpush1.xpose.msra.mxu0 0.0
        %2819 = vmatprep.subr.mxu0 0.0
        %2820 = vmatpush1.xpose.msra.mxu0 0.0
        %2821 = vmatprep.subr.mxu0 0.0
        %2822 = vmatpush1.xpose.msra.mxu0 0.0
        %2823 = vmatprep.subr.mxu0 0.0
        %2824 = vmatpush1.xpose.msra.mxu0 0.0
        %2825 = vmatprep.subr.mxu0 0.0
        %2826 = vmatpush1.xpose.msra.mxu0 0.0
        %2827 = vmatprep.subr.mxu0 0.0
        %2828 = vmatpush1.xpose.msra.mxu0 0.0
        %2829 = vmatprep.subr.mxu0 0.0
        %2830 = vmatpush1.xpose.msra.mxu0 0.0
        %2831 = vmatprep.subr.mxu0 0.0
        %2832 = vmatpush1.xpose.msra.mxu0 0.0
        %2833 = vmatprep.subr.mxu0 0.0
        %2834 = vmatpush1.xpose.msra.mxu0 0.0
        %2835 = vmatprep.subr.mxu0 0.0
        %2836 = vmatpush1.xpose.msra.mxu0 0.0
        %2837 = vmatprep.subr.mxu0 0.0
        %2838 = vmatpush1.xpose.msra.mxu0 0.0
        %2839 = vmatprep.subr.mxu0 0.0
        %2840 = vmatpush1.xpose.msra.mxu0 0.0
        %2841 = vmatprep.subr.mxu0 0.0
        %2842 = vmatpush1.xpose.msra.mxu0 0.0
        %2843 = vmatprep.subr.mxu0 0.0
        %2844 = vmatpush1.xpose.msra.mxu0 0.0
        %2845 = vmatprep.subr.mxu0 0.0
        %2846 = vmatpush1.xpose.msra.mxu0 0.0
        %2847 = vmatprep.subr.mxu0 0.0
        %2848 = vmatpush1.xpose.msra.mxu0 0.0
        %2849 = vmatprep.subr.mxu0 0.0
        %2850 = vmatpush1.xpose.msra.mxu0 0.0
        %2851 = vmatprep.subr.mxu0 0.0
        %2852 = vmatpush1.xpose.msra.mxu0 0.0
        %2853 = vmatprep.subr.mxu0 0.0
        %2854 = vmatpush1.xpose.msra.mxu0 0.0
        %2855 = vmatprep.subr.mxu0 0.0
        %2856 = vmatpush1.xpose.msra.mxu0 0.0
        %2857 = vmatprep.subr.mxu0 0.0
        %2858 = vmatpush1.xpose.msra.mxu0 0.0
        %2859 = vmatprep.mubr.f32.mxu0 0.0
        %2860 = vmatmul.mubr.f32.gmra.mrb[0].mxu0 %v2784
        %v2861 = vpop.f32.mrb[0].mxu0
        %v2862 = vadd.f32 0.0, %v2861
        %v2863 = vpop.f32.mrb[0].mxu0
        %2864 = vmatprep.mubr.f32.mxu0 0.0
        %2865 = vmatmul.mubr.f32.gmra.mrb[0].mxu0 %v2787
        %v2866 = vpop.f32.mrb[0].mxu0
        %v2867 = vadd.f32 0.0, %v2866
        %v2868 = vpop.f32.mrb[0].mxu0
        %2869 = vdwg.mxu0
        %v2870 = vmul.f32 %v2862, 0.35355338
        %v2871 = vmul.f32 %v2867, 0.35355338
        %v2872 = vsel %vm1042, %v2870, -inf
        %2873 = vmax.xlane.f32.xlu0 %v2872
        %v2874 = vpop.xlane.xlu0 %2873
        %v2875 = vsel %vm1042, %v2871, -inf
        %2876 = vmax.xlane.f32.xlu0 %v2875
        %v2877 = vpop.xlane.xlu0 %2876
        %v2878 = vsub.f32 %v2870, %v2874
        %v2879 = vsub.f32 %v2871, %v2877
        %v2880 = vmul.f32 %v2878, 1.442695
        %v2881 = vpow.pop %v2880
        %v2882 = vmul.f32 %v2879, 1.442695
        %v2883 = vpow.pop %v2882
        %v2884 = vsel %vm1042, %v2881, 0.0
        %2885 = vadd.xlane.f32.xlu0 %v2884
        %v2886 = vpop.xlane.xlu0 %2885
        %v2887 = vsel %vm1042, %v2883, 0.0
        %2888 = vadd.xlane.f32.xlu0 %v2887
        %v2889 = vpop.xlane.xlu0 %2888
        %v2890 = vrcp.pop %v2886
        %v2891 = vrcp.pop %v2889
        %v2892 = vmul.f32 %v2881, %v2890
        %v2893 = vmul.f32 %v2883, %v2891
        %v2895 = vsel %vm1042, %v2892, 0
        %v2898 = vsel %vm1042, %v2893, 0
        %2900 = vmatprep.subr.mxu0 0.0
        %2901 = vmatpush1.msra.mxu0 %v2775
        %2902 = vmatprep.subr.mxu0 0.0
        %2903 = vmatpush1.msra.mxu0 %v2780
        %2904 = vmatprep.subr.mxu0 0.0
        %2905 = vmatpush1.msra.mxu0 0.0
        %2906 = vmatprep.subr.mxu0 0.0
        %2907 = vmatpush1.msra.mxu0 0.0
        %2908 = vmatprep.subr.mxu0 0.0
        %2909 = vmatpush1.msra.mxu0 0.0
        %2910 = vmatprep.subr.mxu0 0.0
        %2911 = vmatpush1.msra.mxu0 0.0
        %2912 = vmatprep.subr.mxu0 0.0
        %2913 = vmatpush1.msra.mxu0 0.0
        %2914 = vmatprep.subr.mxu0 0.0
        %2915 = vmatpush1.msra.mxu0 0.0
        %2916 = vmatprep.subr.mxu0 0.0
        %2917 = vmatpush1.msra.mxu0 0.0
        %2918 = vmatprep.subr.mxu0 0.0
        %2919 = vmatpush1.msra.mxu0 0.0
        %2920 = vmatprep.subr.mxu0 0.0
        %2921 = vmatpush1.msra.mxu0 0.0
        %2922 = vmatprep.subr.mxu0 0.0
        %2923 = vmatpush1.msra.mxu0 0.0
        %2924 = vmatprep.subr.mxu0 0.0
        %2925 = vmatpush1.msra.mxu0 0.0
        %2926 = vmatprep.subr.mxu0 0.0
        %2927 = vmatpush1.msra.mxu0 0.0
        %2928 = vmatprep.subr.mxu0 0.0
        %2929 = vmatpush1.msra.mxu0 0.0
        %2930 = vmatprep.subr.mxu0 0.0
        %2931 = vmatpush1.msra.mxu0 0.0
        %2932 = vmatprep.subr.mxu0 0.0
        %2933 = vmatpush1.msra.mxu0 0.0
        %2934 = vmatprep.subr.mxu0 0.0
        %2935 = vmatpush1.msra.mxu0 0.0
        %2936 = vmatprep.subr.mxu0 0.0
        %2937 = vmatpush1.msra.mxu0 0.0
        %2938 = vmatprep.subr.mxu0 0.0
        %2939 = vmatpush1.msra.mxu0 0.0
        %2940 = vmatprep.subr.mxu0 0.0
        %2941 = vmatpush1.msra.mxu0 0.0
        %2942 = vmatprep.subr.mxu0 0.0
        %2943 = vmatpush1.msra.mxu0 0.0
        %2944 = vmatprep.subr.mxu0 0.0
        %2945 = vmatpush1.msra.mxu0 0.0
        %2946 = vmatprep.subr.mxu0 0.0
        %2947 = vmatpush1.msra.mxu0 0.0
        %2948 = vmatprep.subr.mxu0 0.0
        %2949 = vmatpush1.msra.mxu0 0.0
        %2950 = vmatprep.subr.mxu0 0.0
        %2951 = vmatpush1.msra.mxu0 0.0
        %2952 = vmatprep.subr.mxu0 0.0
        %2953 = vmatpush1.msra.mxu0 0.0
        %2954 = vmatprep.subr.mxu0 0.0
        %2955 = vmatpush1.msra.mxu0 0.0
        %2956 = vmatprep.subr.mxu0 0.0
        %2957 = vmatpush1.msra.mxu0 0.0
        %2958 = vmatprep.subr.mxu0 0.0
        %2959 = vmatpush1.msra.mxu0 0.0
        %2960 = vmatprep.subr.mxu0 0.0
        %2961 = vmatpush1.msra.mxu0 0.0
        %2962 = vmatprep.subr.mxu0 0.0
        %2963 = vmatpush1.msra.mxu0 0.0
        %2964 = vmatprep.mubr.f32.mxu0 0.0
        %2965 = vmatmul.mubr.f32.gmra.mrb[0].mxu0 %v2895
        %v2966 = vpop.f32.mrb[0].mxu0
        %v2967 = vadd.f32 0.0, %v2966
        %v2968 = vpop.f32.mrb[0].mxu0
        %2969 = vmatprep.mubr.f32.mxu0 0.0
        %2970 = vmatmul.mubr.f32.gmra.mrb[0].mxu0 %v2898
        %v2971 = vpop.f32.mrb[0].mxu0
        %v2972 = vadd.f32 0.0, %v2971
        %v2973 = vpop.f32.mrb[0].mxu0
        %2974 = vdwg.mxu0
        %v2976 = vsel %vm952, %v2967, 0
        %v2979 = vsel %vm952, %v2972, 0
        %2981 = vmatprep.subr.mxu0 0.0
        %2982 = vmatpush1.msra.mxu0 %v503
        %2983 = vmatprep.subr.mxu0 0.0
        %2984 = vmatpush1.msra.mxu0 0.0
        %2985 = vmatprep.subr.mxu0 0.0
        %2986 = vmatpush1.msra.mxu0 0.0
        %2987 = vmatprep.subr.mxu0 0.0
        %2988 = vmatpush1.msra.mxu0 0.0
        %2989 = vmatprep.subr.mxu0 0.0
        %2990 = vmatpush1.msra.mxu0 0.0
        %2991 = vmatprep.subr.mxu0 0.0
        %2992 = vmatpush1.msra.mxu0 0.0
        %2993 = vmatprep.subr.mxu0 0.0
        %2994 = vmatpush1.msra.mxu0 0.0
        %2995 = vmatprep.subr.mxu0 0.0
        %2996 = vmatpush1.msra.mxu0 0.0
        %2997 = vmatprep.subr.mxu0 0.0
        %2998 = vmatpush1.msra.mxu0 0.0
        %2999 = vmatprep.subr.mxu0 0.0
        %3000 = vmatpush1.msra.mxu0 0.0
        %3001 = vmatprep.subr.mxu0 0.0
        %3002 = vmatpush1.msra.mxu0 0.0
        %3003 = vmatprep.subr.mxu0 0.0
        %3004 = vmatpush1.msra.mxu0 0.0
        %3005 = vmatprep.subr.mxu0 0.0
        %3006 = vmatpush1.msra.mxu0 0.0
        %3007 = vmatprep.subr.mxu0 0.0
        %3008 = vmatpush1.msra.mxu0 0.0
        %3009 = vmatprep.subr.mxu0 0.0
        %3010 = vmatpush1.msra.mxu0 0.0
        %3011 = vmatprep.subr.mxu0 0.0
        %3012 = vmatpush1.msra.mxu0 0.0
        %3013 = vmatprep.subr.mxu0 0.0
        %3014 = vmatpush1.msra.mxu0 0.0
        %3015 = vmatprep.subr.mxu0 0.0
        %3016 = vmatpush1.msra.mxu0 0.0
        %3017 = vmatprep.subr.mxu0 0.0
        %3018 = vmatpush1.msra.mxu0 0.0
        %3019 = vmatprep.subr.mxu0 0.0
        %3020 = vmatpush1.msra.mxu0 0.0
        %3021 = vmatprep.subr.mxu0 0.0
        %3022 = vmatpush1.msra.mxu0 0.0
        %3023 = vmatprep.subr.mxu0 0.0
        %3024 = vmatpush1.msra.mxu0 0.0
        %3025 = vmatprep.subr.mxu0 0.0
        %3026 = vmatpush1.msra.mxu0 0.0
        %3027 = vmatprep.subr.mxu0 0.0
        %3028 = vmatpush1.msra.mxu0 0.0
        %3029 = vmatprep.subr.mxu0 0.0
        %3030 = vmatpush1.msra.mxu0 0.0
        %3031 = vmatprep.subr.mxu0 0.0
        %3032 = vmatpush1.msra.mxu0 0.0
        %3033 = vmatprep.subr.mxu0 0.0
        %3034 = vmatpush1.msra.mxu0 0.0
        %3035 = vmatprep.subr.mxu0 0.0
        %3036 = vmatpush1.msra.mxu0 0.0
        %3037 = vmatprep.subr.mxu0 0.0
        %3038 = vmatpush1.msra.mxu0 0.0
        %3039 = vmatprep.subr.mxu0 0.0
        %3040 = vmatpush1.msra.mxu0 0.0
        %3041 = vmatprep.subr.mxu0 0.0
        %3042 = vmatpush1.msra.mxu0 0.0
        %3043 = vmatprep.subr.mxu0 0.0
        %3044 = vmatpush1.msra.mxu0 0.0
        %3045 = vmatprep.mubr.f32.mxu0 0.0
        %3046 = vmatmul.mubr.f32.gmra.mrb[0].mxu0 %v2976
        %v3047 = vpop.f32.mrb[0].mxu0
        %v3048 = vadd.f32 0.0, %v3047
        %v3049 = vpop.f32.mrb[0].mxu0
        %3050 = vmatprep.mubr.f32.mxu0 0.0
        %3051 = vmatmul.mubr.f32.gmra.mrb[0].mxu0 %v2979
        %v3052 = vpop.f32.mrb[0].mxu0
        %v3053 = vadd.f32 0.0, %v3052
        %v3054 = vpop.f32.mrb[0].mxu0
        %3055 = vdwg.mxu0
        %v3056 = vadd.f32 %v2445, %v3048
        %v3057 = vadd.f32 %v2446, %v3053
        %v3059 = vlaneseq
        %v3060 = vshrl.u32 %v3059, 7
        %v3061 = vsub.s32 0, %v3060
        %v3062 = vrot.slane %v504, %v3061
        %v3064 = vadd.f32 %v3056, %v3062
        %v3065 = vadd.f32 %v3057, %v3062
        %v3066 = vadd.f32 %v493, %v3064
        %v3067 = vadd.f32 %v494, %v3065
        %v3068 = vsel %vm550, %v3066, 0.0
        %3069 = vadd.xlane.f32.xlu0 %v3068
        %v3070 = vpop.xlane.xlu0 %3069
        %v3071 = vsel %vm550, %v3067, 0.0
        %3072 = vadd.xlane.f32.xlu0 %v3071
        %v3073 = vpop.xlane.xlu0 %3072
        %v3074 = vrcp.pop 32.0
        %v3075 = vmul.f32 %v3070, %v3074
        %v3076 = vmul.f32 %v3073, %v3074
        %v3077 = vsub.f32 %v3066, %v3075
        %v3078 = vsub.f32 %v3067, %v3076
        %v3079 = vmul.f32 %v3077, %v3077
        %v3080 = vmul.f32 %v3078, %v3078
        %v3081 = vsel %vm550, %v3079, 0.0
        %3082 = vadd.xlane.f32.xlu0 %v3081
        %v3083 = vpop.xlane.xlu0 %3082
        %v3084 = vsel %vm550, %v3080, 0.0
        %3085 = vadd.xlane.f32.xlu0 %v3084
        %v3086 = vpop.xlane.xlu0 %3085
        %v3087 = vmul.f32 %v3083, %v3074
        %v3088 = vmul.f32 %v3086, %v3074
        %v3089 = vadd.f32 %v3087, 1e-05
        %v3090 = vadd.f32 %v3088, 1e-05
        %v3091 = vrsqrt.pop %v3089
        %v3092 = vrsqrt.pop %v3090
        %v3093 = vmul.f32 %v3077, %v3091
        %v3094 = vmul.f32 %v3078, %v3092
        %v3096 = vlaneseq
        %v3097 = vshrl.u32 %v3096, 7
        %v3098 = vsub.s32 0, %v3097
        %v3099 = vrot.slane %v505, %v3098
        %v3101 = vmul.f32 %v3093, %v3099
        %v3102 = vmul.f32 %v3094, %v3099
        %v3104 = vlaneseq
        %v3105 = vshrl.u32 %v3104, 7
        %v3106 = vsub.s32 0, %v3105
        %v3107 = vrot.slane %v506, %v3106
        %v3109 = vadd.f32 %v3101, %v3107
        %v3110 = vadd.f32 %v3102, %v3107
        %v3111 = vpack.c.bf16 %v3110, %v3109
        %v3113 = vlaneseq
        %v3114 = vshrl.u32 %v3113, 7
        %v3115 = vsub.s32 0, %v3114
        %v3116 = vrot.slane %v511, %v3115
        %v3122 = vunpack.c.l.b16 %v507
        %v3123 = vunpack.c.l.b16 %v508
        %v3124 = vunpack.c.l.b16 %v509
        %v3125 = vunpack.c.l.b16 %v510
        %v3126 = vpack.c.b16 %v3123, %v3122
        %v3127 = vpack.c.b16 %v3125, %v3124
        %v3131 = vsel %vm550, %v3111, 0
        %3133 = vmatprep.subr.bf16.mxu0 0
        %3134 = vmatpush1.bf16.msra.mxu0 %v3126
        %3135 = vmatprep.subr.bf16.mxu0 0
        %3136 = vmatpush1.bf16.msra.mxu0 %v3127
        %3137 = vmatprep.subr.bf16.mxu0 0
        %3138 = vmatpush1.bf16.msra.mxu0 0
        %3139 = vmatprep.subr.bf16.mxu0 0
        %3140 = vmatpush1.bf16.msra.mxu0 0
        %3141 = vmatprep.subr.bf16.mxu0 0
        %3142 = vmatpush1.bf16.msra.mxu0 0
        %3143 = vmatprep.subr.bf16.mxu0 0
        %3144 = vmatpush1.bf16.msra.mxu0 0
        %3145 = vmatprep.subr.bf16.mxu0 0
        %3146 = vmatpush1.bf16.msra.mxu0 0
        %3147 = vmatprep.subr.bf16.mxu0 0
        %3148 = vmatpush1.bf16.msra.mxu0 0
        %3149 = vmatprep.subr.bf16.mxu0 0
        %3150 = vmatpush1.bf16.msra.mxu0 0
        %3151 = vmatprep.subr.bf16.mxu0 0
        %3152 = vmatpush1.bf16.msra.mxu0 0
        %3153 = vmatprep.subr.bf16.mxu0 0
        %3154 = vmatpush1.bf16.msra.mxu0 0
        %3155 = vmatprep.subr.bf16.mxu0 0
        %3156 = vmatpush1.bf16.msra.mxu0 0
        %3157 = vmatprep.subr.bf16.mxu0 0
        %3158 = vmatpush1.bf16.msra.mxu0 0
        %3159 = vmatprep.subr.bf16.mxu0 0
        %3160 = vmatpush1.bf16.msra.mxu0 0
        %3161 = vmatprep.subr.bf16.mxu0 0
        %3162 = vmatpush1.bf16.msra.mxu0 0
        %3163 = vmatprep.subr.bf16.mxu0 0
        %3164 = vmatpush1.bf16.msra.mxu0 0
        %3165 = vmatprep.mubr.bf16.mxu0 0
        %3166 = vmatmul.mubr.bf16.gmra.mrb[0].mxu0 %v3131
        %v3167 = vpop.f32.mrb[0].mxu0
        %v3168 = vadd.f32 %v3116, %v3167
        %v3169 = vpop.f32.mrb[0].mxu0
        %v3170 = vpop.f32.mrb[0].mxu0
        %v3171 = vadd.f32 %v3116, %v3170
        %v3172 = vpop.f32.mrb[0].mxu0
        %3173 = vdwg.mxu0
        %v3174 = vmax.f32 %v3168, 0.0
        %v3175 = vmax.f32 %v3171, 0.0
        %v3176 = vpack.c.bf16 %v3175, %v3174
        %v3178 = vlaneseq
        %v3179 = vshrl.u32 %v3178, 7
        %v3180 = vsub.s32 0, %v3179
        %v3181 = vrot.slane %v528, %v3180
        %v3199 = vunpack.c.l.b16 %v512
        %v3200 = vunpack.c.l.b16 %v513
        %v3201 = vunpack.c.l.b16 %v514
        %v3202 = vunpack.c.l.b16 %v515
        %v3203 = vunpack.c.l.b16 %v516
        %v3204 = vunpack.c.l.b16 %v517
        %v3205 = vunpack.c.l.b16 %v518
        %v3206 = vunpack.c.l.b16 %v519
        %v3207 = vunpack.c.l.b16 %v520
        %v3208 = vunpack.c.l.b16 %v521
        %v3209 = vunpack.c.l.b16 %v522
        %v3210 = vunpack.c.l.b16 %v523
        %v3211 = vunpack.c.l.b16 %v524
        %v3212 = vunpack.c.l.b16 %v525
        %v3213 = vunpack.c.l.b16 %v526
        %v3214 = vunpack.c.l.b16 %v527
        %v3215 = vpack.c.b16 %v3200, %v3199
        %v3216 = vpack.c.b16 %v3202, %v3201
        %v3217 = vpack.c.b16 %v3204, %v3203
        %v3218 = vpack.c.b16 %v3206, %v3205
        %v3219 = vpack.c.b16 %v3208, %v3207
        %v3220 = vpack.c.b16 %v3210, %v3209
        %v3221 = vpack.c.b16 %v3212, %v3211
        %v3222 = vpack.c.b16 %v3214, %v3213
        %3231 = vmatprep.subr.bf16.mxu0 0
        %3232 = vmatpush1.bf16.msra.mxu0 %v3215
        %3233 = vmatprep.subr.bf16.mxu0 0
        %3234 = vmatpush1.bf16.msra.mxu0 %v3216
        %3235 = vmatprep.subr.bf16.mxu0 0
        %3236 = vmatpush1.bf16.msra.mxu0 %v3217
        %3237 = vmatprep.subr.bf16.mxu0 0
        %3238 = vmatpush1.bf16.msra.mxu0 %v3218
        %3239 = vmatprep.subr.bf16.mxu0 0
        %3240 = vmatpush1.bf16.msra.mxu0 %v3219
        %3241 = vmatprep.subr.bf16.mxu0 0
        %3242 = vmatpush1.bf16.msra.mxu0 %v3220
        %3243 = vmatprep.subr.bf16.mxu0 0
        %3244 = vmatpush1.bf16.msra.mxu0 %v3221
        %3245 = vmatprep.subr.bf16.mxu0 0
        %3246 = vmatpush1.bf16.msra.mxu0 %v3222
        %3247 = vmatprep.subr.bf16.mxu0 0
        %3248 = vmatpush1.bf16.msra.mxu0 0
        %3249 = vmatprep.subr.bf16.mxu0 0
        %3250 = vmatpush1.bf16.msra.mxu0 0
        %3251 = vmatprep.subr.bf16.mxu0 0
        %3252 = vmatpush1.bf16.msra.mxu0 0
        %3253 = vmatprep.subr.bf16.mxu0 0
        %3254 = vmatpush1.bf16.msra.mxu0 0
        %3255 = vmatprep.subr.bf16.mxu0 0
        %3256 = vmatpush1.bf16.msra.mxu0 0
        %3257 = vmatprep.subr.bf16.mxu0 0
        %3258 = vmatpush1.bf16.msra.mxu0 0
        %3259 = vmatprep.subr.bf16.mxu0 0
        %3260 = vmatpush1.bf16.msra.mxu0 0
        %3261 = vmatprep.subr.bf16.mxu0 0
        %3262 = vmatpush1.bf16.msra.mxu0 0
        %3263 = vmatprep.mubr.bf16.mxu0 0
        %3264 = vmatmul.mubr.bf16.gmra.mrb[0].mxu0 %v3176
        %v3265 = vpop.f32.mrb[0].mxu0
        %v3266 = vadd.f32 %v3181, %v3265
        %v3267 = vpop.f32.mrb[0].mxu0
        %v3268 = vpop.f32.mrb[0].mxu0
        %v3269 = vadd.f32 %v3181, %v3268
        %v3270 = vpop.f32.mrb[0].mxu0
        %3271 = vdwg.mxu0
        %v3272 = vadd.f32 %v3109, %v3266
        %v3273 = vadd.f32 %v3110, %v3269
        %v3274 = vsel %vm550, %v3272, 0.0
        %3275 = vadd.xlane.f32.xlu0 %v3274
        %v3276 = vpop.xlane.xlu0 %3275
        %v3277 = vsel %vm550, %v3273, 0.0
        %3278 = vadd.xlane.f32.xlu0 %v3277
        %v3279 = vpop.xlane.xlu0 %3278
        %v3280 = vmul.f32 %v3276, %v3074
        %v3281 = vmul.f32 %v3279, %v3074
        %v3282 = vsub.f32 %v3272, %v3280
        %v3283 = vsub.f32 %v3273, %v3281
        %v3284 = vmul.f32 %v3282, %v3282
        %v3285 = vmul.f32 %v3283, %v3283
        %v3286 = vsel %vm550, %v3284, 0.0
        %3287 = vadd.xlane.f32.xlu0 %v3286
        %v3288 = vpop.xlane.xlu0 %3287
        %v3289 = vsel %vm550, %v3285, 0.0
        %3290 = vadd.xlane.f32.xlu0 %v3289
        %v3291 = vpop.xlane.xlu0 %3290
        %v3292 = vmul.f32 %v3288, %v3074
        %v3293 = vmul.f32 %v3291, %v3074
        %v3294 = vadd.f32 %v3292, 1e-05
        %v3295 = vadd.f32 %v3293, 1e-05
        %v3296 = vrsqrt.pop %v3294
        %v3297 = vrsqrt.pop %v3295
        %v3298 = vmul.f32 %v3282, %v3296
        %v3299 = vmul.f32 %v3283, %v3297
        %v3301 = vlaneseq
        %v3302 = vshrl.u32 %v3301, 7
        %v3303 = vsub.s32 0, %v3302
        %v3304 = vrot.slane %v529, %v3303
        %v3306 = vmul.f32 %v3298, %v3304
        %v3307 = vmul.f32 %v3299, %v3304
        %v3309 = vlaneseq
        %v3310 = vshrl.u32 %v3309, 7
        %v3311 = vsub.s32 0, %v3310
        %v3312 = vrot.slane %v530, %v3311
        %v3314 = vadd.f32 %v3306, %v3312
        %v3315 = vadd.f32 %v3307, %v3312
        %v3316 = vsel %vm550, %v3314, 0.0
        %v3317 = vsel %vm550, %v3315, 0.0
        %v3318 = vadd.f32 %v3316, %v3317
        %v3319 = vrot.slane %v3318, 4
        %v3320 = vadd.f32 %v3318, %v3319
        %v3321 = vrot.slane %v3320, 2
        %v3322 = vadd.f32 %v3320, %v3321
        %v3323 = vrot.slane %v3322, 1
        %v3324 = vadd.f32 %v3322, %v3323
        %v3325 = vrcp.pop 16.0
        %v3326 = vmul.f32 %v3324, %v3325
        %v3327 = vld [vmem:[%s13] sm:$0xff]
        %v3328 = vld [vmem:[%s13 + $0x8] sm:$0xff]
        %v3329 = vld [vmem:[%s13 + $0x10] sm:$0xff]
        %v3330 = vld [vmem:[%s13 + $0x18] sm:$0xff]
        %v3331 = vld [vmem:[%s14] sm:$0x1]
        %v3333 = vsel %vm550, %v3326, 0
        %3335 = vmatprep.subr.mxu0 0.0
        %3336 = vmatpush1.msra.mxu0 %v3327
        %3337 = vmatprep.subr.mxu0 0.0
        %3338 = vmatpush1.msra.mxu0 %v3328
        %3339 = vmatprep.subr.mxu0 0.0
        %3340 = vmatpush1.msra.mxu0 %v3329
        %3341 = vmatprep.subr.mxu0 0.0
        %3342 = vmatpush1.msra.mxu0 %v3330
        %3343 = vmatprep.subr.mxu0 0.0
        %3344 = vmatpush1.msra.mxu0 0.0
        %3345 = vmatprep.subr.mxu0 0.0
        %3346 = vmatpush1.msra.mxu0 0.0
        %3347 = vmatprep.subr.mxu0 0.0
        %3348 = vmatpush1.msra.mxu0 0.0
        %3349 = vmatprep.subr.mxu0 0.0
        %3350 = vmatpush1.msra.mxu0 0.0
        %3351 = vmatprep.subr.mxu0 0.0
        %3352 = vmatpush1.msra.mxu0 0.0
        %3353 = vmatprep.subr.mxu0 0.0
        %3354 = vmatpush1.msra.mxu0 0.0
        %3355 = vmatprep.subr.mxu0 0.0
        %3356 = vmatpush1.msra.mxu0 0.0
        %3357 = vmatprep.subr.mxu0 0.0
        %3358 = vmatpush1.msra.mxu0 0.0
        %3359 = vmatprep.subr.mxu0 0.0
        %3360 = vmatpush1.msra.mxu0 0.0
        %3361 = vmatprep.subr.mxu0 0.0
        %3362 = vmatpush1.msra.mxu0 0.0
        %3363 = vmatprep.subr.mxu0 0.0
        %3364 = vmatpush1.msra.mxu0 0.0
        %3365 = vmatprep.subr.mxu0 0.0
        %3366 = vmatpush1.msra.mxu0 0.0
        %3367 = vmatprep.subr.mxu0 0.0
        %3368 = vmatpush1.msra.mxu0 0.0
        %3369 = vmatprep.subr.mxu0 0.0
        %3370 = vmatpush1.msra.mxu0 0.0
        %3371 = vmatprep.subr.mxu0 0.0
        %3372 = vmatpush1.msra.mxu0 0.0
        %3373 = vmatprep.subr.mxu0 0.0
        %3374 = vmatpush1.msra.mxu0 0.0
        %3375 = vmatprep.subr.mxu0 0.0
        %3376 = vmatpush1.msra.mxu0 0.0
        %3377 = vmatprep.subr.mxu0 0.0
        %3378 = vmatpush1.msra.mxu0 0.0
        %3379 = vmatprep.subr.mxu0 0.0
        %3380 = vmatpush1.msra.mxu0 0.0
        %3381 = vmatprep.subr.mxu0 0.0
        %3382 = vmatpush1.msra.mxu0 0.0
        %3383 = vmatprep.subr.mxu0 0.0
        %3384 = vmatpush1.msra.mxu0 0.0
        %3385 = vmatprep.subr.mxu0 0.0
        %3386 = vmatpush1.msra.mxu0 0.0
        %3387 = vmatprep.subr.mxu0 0.0
        %3388 = vmatpush1.msra.mxu0 0.0
        %3389 = vmatprep.subr.mxu0 0.0
        %3390 = vmatpush1.msra.mxu0 0.0
        %3391 = vmatprep.subr.mxu0 0.0
        %3392 = vmatpush1.msra.mxu0 0.0
        %3393 = vmatprep.subr.mxu0 0.0
        %3394 = vmatpush1.msra.mxu0 0.0
        %3395 = vmatprep.subr.mxu0 0.0
        %3396 = vmatpush1.msra.mxu0 0.0
        %3397 = vmatprep.subr.mxu0 0.0
        %3398 = vmatpush1.msra.mxu0 0.0
        %3399 = vmatprep.mubr.f32.mxu0 0.0
        %3400 = vmatmul.mubr.f32.gmra.mrb[0].mxu0 %v3333
        %v3401 = vpop.f32.mrb[0].mxu0
        %v3402 = vadd.f32 %v3331, %v3401
        %v3403 = vpop.f32.mrb[0].mxu0
        %3404 = vdwg.mxu0
        %vm3405 = vcmask 16384
        %3406 = vst.msk [vmem:[%s486] sm:$0x1] %vm3405, %v3402
        %s3407 = sand.u32 %s357, 1
        %s3408 = scalar_lea.sflag [#allocation3], %s3407
        %s3409 = sand.u32 %s357, 1
        %s3410 = scalar_lea.vmem [#allocation2], %s3409
        // Predicated region
        $region81: #{cnn1d_transformer_forward.5} parent=79 // pred_check
          %p3411 = pneg %p367
        $region82: #{cnn1d_transformer_forward.5} parent=79 // pred_check_branch
          %3413 = sbr.rel (%p3411) target = $region84
        $region83: #{cnn1d_transformer_forward.5} parent=79 // pred_region
          %s3415 = ssub.s32 16, 16
          %3416 = vsyncadd %s3408, %s3415
          %s3417 = smul.addr %s29, 16
          %s3418 = scalar_lea.hbm %s15, %s3417
          %s3420 = sshll.u32 %s3410, 4
          %s3421 = int_to_ptr.vmem [resolvable:$true] %s3420
          %3423 = dma.vmem_to_hbm [thread:$0]  %s3421, 16, %s3418, %s3408
        $region84: #{cnn1d_transformer_forward.5} parent=79 // pred_fallthru
          _
      $region80: #{cnn1d_transformer_forward.5} parent=5 // pred_fallthru
        _
      %p3424 = scmp.le.s32.totalorder 2, %s24
      // Predicated region
      $region85: #{cnn1d_transformer_forward.5} parent=5 // pred_check
        %p3425 = pneg %p3424
      $region86: #{cnn1d_transformer_forward.5} parent=5 // pred_check_branch
        %3427 = sbr.rel (%p3425) target = $region88
      $region87: #{cnn1d_transformer_forward.5} parent=5 // pred_region
        %s3428 = ssub.s32 %s24, 2
        // Predicated region
        $region89: #{cnn1d_transformer_forward.5} parent=87 // pred_check
          %p3429 = pneg %p373
        $region90: #{cnn1d_transformer_forward.5} parent=87 // pred_check_branch
          %3431 = sbr.rel (%p3429) target = $region92
        $region91: #{cnn1d_transformer_forward.5} parent=87 // pred_region
          %s3432 = sand.u32 %s358, 1
          %s3433 = scalar_lea.sflag [#allocation3], %s3432
          %s3434 = sand.u32 %s358, 1
          %s3435 = scalar_lea.vmem [#allocation2], %s3434
          %3436 = dma.done %s3433, 16
        $region92: #{cnn1d_transformer_forward.5} parent=87 // pred_fallthru
          _
      $region88: #{cnn1d_transformer_forward.5} parent=5 // pred_fallthru
        _
    $region6: #{cnn1d_transformer_forward.5} parent=1 // loop_footer
      %s28 = sadd.s32 1, %s24
    $region7: #{cnn1d_transformer_forward.5} parent=1 // loop_footer_branch
      %23 = sbr.rel target = $region3
    $region8: #{cnn1d_transformer_forward.5} parent=1 // loop_exit
      _
    %3437 = vsyncpa [#allocation3], 1
    %s3438 = scalar_lea.sflag [#allocation3], 1
    %3439 = vsyncpa %s3438, 1

// kernel: cnn1d_transformer_forward.4
$region0: #{cnn1d_transformer_forward.4}
  #allocation0 [shape = 'u32[]', space=smem, size = 0x4, offset = 0x4, fixed_abs, tag = 'smem constant byte address 0x4 - core index']
  #allocation1 [shape = 'u32[144,128]{1,0:T(1,128)}', space=vmem, size = 0x12000, scoped, tag = 'internal scratch']
  %s0 = inlined_call_operand.vmem [shape: f32[2,16,32], index: 0, kind: input, shape index: {}]
  %s1 = inlined_call_operand.vmem [shape: bf16[32,96], index: 1, kind: input, shape index: {}]
  %s2 = inlined_call_operand.vmem [shape: f32[1,96], index: 2, kind: input, shape index: {}]
  %s3 = inlined_call_operand.vmem [shape: f32[32,32], index: 3, kind: input, shape index: {}]
  %s4 = inlined_call_operand.vmem [shape: f32[1,32], index: 4, kind: input, shape index: {}]
  %s5 = inlined_call_operand.vmem [shape: f32[1,32], index: 5, kind: input, shape index: {}]
  %s6 = inlined_call_operand.vmem [shape: f32[1,32], index: 6, kind: input, shape index: {}]
  %s7 = inlined_call_operand.vmem [shape: bf16[32,128], index: 7, kind: input, shape index: {}]
  %s8 = inlined_call_operand.vmem [shape: f32[1,128], index: 8, kind: input, shape index: {}]
  %s9 = inlined_call_operand.vmem [shape: bf16[128,32], index: 9, kind: input, shape index: {}]
  %s10 = inlined_call_operand.vmem [shape: f32[1,32], index: 10, kind: input, shape index: {}]
  %s11 = inlined_call_operand.vmem [shape: f32[1,32], index: 11, kind: input, shape index: {}]
  %s12 = inlined_call_operand.vmem [shape: f32[1,32], index: 12, kind: input, shape index: {}]
  %s13 = inlined_call_operand.vmem [shape: f32[2,16,32], index: 13, kind: output, shape index: {}]
  %s14 = sld [smem:[#allocation0]]
  $region85: #{cnn1d_transformer_forward.4} parent=0
    _
  %s16 = ssub.s32 1, %s14
  %s17 = scalar_select 0, %s16, %s14
  loop: start=0, step=1, limit=4
  $region2: #{cnn1d_transformer_forward.4} parent=0 // loop_pre_header
    _
  $region3: #{cnn1d_transformer_forward.4} parent=0 // loop_header
    %s19 = sphi 0, %s23
    %p20 = scmp.ge.s32.totalorder %s19, 4
    %s29 = sphi 0, %s31
    %s32 = sphi 0, %s29
    %s33 = sphi 0, %s32
    %s49 = sphi 0, %s33
    %s53 = sphi 0, %s53
    %s55 = sphi 0, %s53
    %s56 = sphi 0, %s55
    %s70 = sphi 0, %s56
    %s74 = sphi 0, %s74
    %s76 = sphi 0, %s74
    %s77 = sphi 0, %s76
    %s91 = sphi 0, %s77
    %s95 = sphi 0, %s95
    %s97 = sphi 0, %s95
    %s98 = sphi 0, %s97
    %s112 = sphi 0, %s98
    %s116 = sphi 0, %s116
    %s118 = sphi 0, %s116
    %s119 = sphi 0, %s118
    %s133 = sphi 0, %s119
    %s137 = sphi 0, %s137
    %s139 = sphi 0, %s137
    %s140 = sphi 0, %s139
    %s154 = sphi 0, %s140
    %s158 = sphi 0, %s158
    %s160 = sphi 0, %s158
    %s161 = sphi 0, %s160
    %s175 = sphi 0, %s161
    %s179 = sphi 0, %s179
    %s181 = sphi 0, %s179
    %s182 = sphi 0, %s181
    %s196 = sphi 0, %s182
    %s200 = sphi 0, %s200
    %s202 = sphi 0, %s200
    %s203 = sphi 0, %s202
    %s217 = sphi 0, %s203
    %s221 = sphi 0, %s221
    %s223 = sphi 0, %s221
    %s224 = sphi 0, %s223
    %s238 = sphi 0, %s224
    %s242 = sphi 0, %s242
    %s244 = sphi 0, %s242
    %s245 = sphi 0, %s244
    %s259 = sphi 0, %s245
    %s263 = sphi 0, %s263
    %s265 = sphi 0, %s263
    %s266 = sphi 0, %s265
    %s280 = sphi 0, %s266
    %s284 = sphi 0, %s284
    %s286 = sphi 0, %s284
    %s287 = sphi 0, %s286
    %s301 = sphi 0, %s287
    %s307 = sphi 0, %s309
    %s310 = sphi 0, %s307
    %s311 = sphi 0, %s310
    %s327 = sphi 0, %s311
  $region4: #{cnn1d_transformer_forward.4} parent=0 // loop_header_branch
    %22 = sbr.rel (%p20) target = $region8
  $region5: #{cnn1d_transformer_forward.4} parent=0 // loop_body
    %s24 = ssub.s32 %s19, 1
    %s25 = ssub.s32 %s19, 2
    %s26 = sadd.s32 %s19, 1
    %s27 = ssub.s32 %s19, %s26
    %p28 = scmp.eq.s32.totalorder %s27, 0
    %s30 = sadd.s32 %s29, 1
    %s31 = scalar_select %p28, %s29, %s30
    %p34 = pneg %p28
    %p35 = scmp.eq.s32.totalorder %s19, 1
    %p36 = por %p34, %p35
    %p37 = scmp.ne.s32.totalorder %s29, %s32
    %p38 = scmp.eq.s32.totalorder %s19, 0
    %p39 = por %p37, %p38
    %p40 = scmp.ne.s32.totalorder %s29, %s32
    %p41 = scmp.eq.s32.totalorder %s24, 1
    %p42 = por %p40, %p41
    %p43 = scmp.ne.s32.totalorder %s32, %s33
    %p44 = scmp.eq.s32.totalorder %s24, 0
    %p45 = por %p43, %p44
    %p46 = scmp.ne.s32.totalorder %s32, %s33
    %p47 = scmp.eq.s32.totalorder %s25, 1
    %p48 = por %p46, %p47
    %p50 = scmp.ne.s32.totalorder %s33, %s49
    %p51 = scmp.eq.s32.totalorder %s25, 0
    %p52 = por %p50, %p51
    %s54 = sadd.s32 %s53, 1
    %p57 = scmp.eq.s32.totalorder %s19, 1
    %p58 = scmp.ne.s32.totalorder %s53, %s55
    %p59 = scmp.eq.s32.totalorder %s19, 0
    %p60 = por %p58, %p59
    %p61 = scmp.ne.s32.totalorder %s53, %s55
    %p62 = scmp.eq.s32.totalorder %s24, 1
    %p63 = por %p61, %p62
    %p64 = scmp.ne.s32.totalorder %s55, %s56
    %p65 = scmp.eq.s32.totalorder %s24, 0
    %p66 = por %p64, %p65
    %p67 = scmp.ne.s32.totalorder %s55, %s56
    %p68 = scmp.eq.s32.totalorder %s25, 1
    %p69 = por %p67, %p68
    %p71 = scmp.ne.s32.totalorder %s56, %s70
    %p72 = scmp.eq.s32.totalorder %s25, 0
    %p73 = por %p71, %p72
    %s75 = sadd.s32 %s74, 1
    %p78 = scmp.eq.s32.totalorder %s19, 1
    %p79 = scmp.ne.s32.totalorder %s74, %s76
    %p80 = scmp.eq.s32.totalorder %s19, 0
    %p81 = por %p79, %p80
    %p82 = scmp.ne.s32.totalorder %s74, %s76
    %p83 = scmp.eq.s32.totalorder %s24, 1
    %p84 = por %p82, %p83
    %p85 = scmp.ne.s32.totalorder %s76, %s77
    %p86 = scmp.eq.s32.totalorder %s24, 0
    %p87 = por %p85, %p86
    %p88 = scmp.ne.s32.totalorder %s76, %s77
    %p89 = scmp.eq.s32.totalorder %s25, 1
    %p90 = por %p88, %p89
    %p92 = scmp.ne.s32.totalorder %s77, %s91
    %p93 = scmp.eq.s32.totalorder %s25, 0
    %p94 = por %p92, %p93
    %s96 = sadd.s32 %s95, 1
    %p99 = scmp.eq.s32.totalorder %s19, 1
    %p100 = scmp.ne.s32.totalorder %s95, %s97
    %p101 = scmp.eq.s32.totalorder %s19, 0
    %p102 = por %p100, %p101
    %p103 = scmp.ne.s32.totalorder %s95, %s97
    %p104 = scmp.eq.s32.totalorder %s24, 1
    %p105 = por %p103, %p104
    %p106 = scmp.ne.s32.totalorder %s97, %s98
    %p107 = scmp.eq.s32.totalorder %s24, 0
    %p108 = por %p106, %p107
    %p109 = scmp.ne.s32.totalorder %s97, %s98
    %p110 = scmp.eq.s32.totalorder %s25, 1
    %p111 = por %p109, %p110
    %p113 = scmp.ne.s32.totalorder %s98, %s112
    %p114 = scmp.eq.s32.totalorder %s25, 0
    %p115 = por %p113, %p114
    %s117 = sadd.s32 %s116, 1
    %p120 = scmp.eq.s32.totalorder %s19, 1
    %p121 = scmp.ne.s32.totalorder %s116, %s118
    %p122 = scmp.eq.s32.totalorder %s19, 0
    %p123 = por %p121, %p122
    %p124 = scmp.ne.s32.totalorder %s116, %s118
    %p125 = scmp.eq.s32.totalorder %s24, 1
    %p126 = por %p124, %p125
    %p127 = scmp.ne.s32.totalorder %s118, %s119
    %p128 = scmp.eq.s32.totalorder %s24, 0
    %p129 = por %p127, %p128
    %p130 = scmp.ne.s32.totalorder %s118, %s119
    %p131 = scmp.eq.s32.totalorder %s25, 1
    %p132 = por %p130, %p131
    %p134 = scmp.ne.s32.totalorder %s119, %s133
    %p135 = scmp.eq.s32.totalorder %s25, 0
    %p136 = por %p134, %p135
    %s138 = sadd.s32 %s137, 1
    %p141 = scmp.eq.s32.totalorder %s19, 1
    %p142 = scmp.ne.s32.totalorder %s137, %s139
    %p143 = scmp.eq.s32.totalorder %s19, 0
    %p144 = por %p142, %p143
    %p145 = scmp.ne.s32.totalorder %s137, %s139
    %p146 = scmp.eq.s32.totalorder %s24, 1
    %p147 = por %p145, %p146
    %p148 = scmp.ne.s32.totalorder %s139, %s140
    %p149 = scmp.eq.s32.totalorder %s24, 0
    %p150 = por %p148, %p149
    %p151 = scmp.ne.s32.totalorder %s139, %s140
    %p152 = scmp.eq.s32.totalorder %s25, 1
    %p153 = por %p151, %p152
    %p155 = scmp.ne.s32.totalorder %s140, %s154
    %p156 = scmp.eq.s32.totalorder %s25, 0
    %p157 = por %p155, %p156
    %s159 = sadd.s32 %s158, 1
    %p162 = scmp.eq.s32.totalorder %s19, 1
    %p163 = scmp.ne.s32.totalorder %s158, %s160
    %p164 = scmp.eq.s32.totalorder %s19, 0
    %p165 = por %p163, %p164
    %p166 = scmp.ne.s32.totalorder %s158, %s160
    %p167 = scmp.eq.s32.totalorder %s24, 1
    %p168 = por %p166, %p167
    %p169 = scmp.ne.s32.totalorder %s160, %s161
    %p170 = scmp.eq.s32.totalorder %s24, 0
    %p171 = por %p169, %p170
    %p172 = scmp.ne.s32.totalorder %s160, %s161
    %p173 = scmp.eq.s32.totalorder %s25, 1
    %p174 = por %p172, %p173
    %p176 = scmp.ne.s32.totalorder %s161, %s175
    %p177 = scmp.eq.s32.totalorder %s25, 0
    %p178 = por %p176, %p177
    %s180 = sadd.s32 %s179, 1
    %p183 = scmp.eq.s32.totalorder %s19, 1
    %p184 = scmp.ne.s32.totalorder %s179, %s181
    %p185 = scmp.eq.s32.totalorder %s19, 0
    %p186 = por %p184, %p185
    %p187 = scmp.ne.s32.totalorder %s179, %s181
    %p188 = scmp.eq.s32.totalorder %s24, 1
    %p189 = por %p187, %p188
    %p190 = scmp.ne.s32.totalorder %s181, %s182
    %p191 = scmp.eq.s32.totalorder %s24, 0
    %p192 = por %p190, %p191
    %p193 = scmp.ne.s32.totalorder %s181, %s182
    %p194 = scmp.eq.s32.totalorder %s25, 1
    %p195 = por %p193, %p194
    %p197 = scmp.ne.s32.totalorder %s182, %s196
    %p198 = scmp.eq.s32.totalorder %s25, 0
    %p199 = por %p197, %p198
    %s201 = sadd.s32 %s200, 1
    %p204 = scmp.eq.s32.totalorder %s19, 1
    %p205 = scmp.ne.s32.totalorder %s200, %s202
    %p206 = scmp.eq.s32.totalorder %s19, 0
    %p207 = por %p205, %p206
    %p208 = scmp.ne.s32.totalorder %s200, %s202
    %p209 = scmp.eq.s32.totalorder %s24, 1
    %p210 = por %p208, %p209
    %p211 = scmp.ne.s32.totalorder %s202, %s203
    %p212 = scmp.eq.s32.totalorder %s24, 0
    %p213 = por %p211, %p212
    %p214 = scmp.ne.s32.totalorder %s202, %s203
    %p215 = scmp.eq.s32.totalorder %s25, 1
    %p216 = por %p214, %p215
    %p218 = scmp.ne.s32.totalorder %s203, %s217
    %p219 = scmp.eq.s32.totalorder %s25, 0
    %p220 = por %p218, %p219
    %s222 = sadd.s32 %s221, 1
    %p225 = scmp.eq.s32.totalorder %s19, 1
    %p226 = scmp.ne.s32.totalorder %s221, %s223
    %p227 = scmp.eq.s32.totalorder %s19, 0
    %p228 = por %p226, %p227
    %p229 = scmp.ne.s32.totalorder %s221, %s223
    %p230 = scmp.eq.s32.totalorder %s24, 1
    %p231 = por %p229, %p230
    %p232 = scmp.ne.s32.totalorder %s223, %s224
    %p233 = scmp.eq.s32.totalorder %s24, 0
    %p234 = por %p232, %p233
    %p235 = scmp.ne.s32.totalorder %s223, %s224
    %p236 = scmp.eq.s32.totalorder %s25, 1
    %p237 = por %p235, %p236
    %p239 = scmp.ne.s32.totalorder %s224, %s238
    %p240 = scmp.eq.s32.totalorder %s25, 0
    %p241 = por %p239, %p240
    %s243 = sadd.s32 %s242, 1
    %p246 = scmp.eq.s32.totalorder %s19, 1
    %p247 = scmp.ne.s32.totalorder %s242, %s244
    %p248 = scmp.eq.s32.totalorder %s19, 0
    %p249 = por %p247, %p248
    %p250 = scmp.ne.s32.totalorder %s242, %s244
    %p251 = scmp.eq.s32.totalorder %s24, 1
    %p252 = por %p250, %p251
    %p253 = scmp.ne.s32.totalorder %s244, %s245
    %p254 = scmp.eq.s32.totalorder %s24, 0
    %p255 = por %p253, %p254
    %p256 = scmp.ne.s32.totalorder %s244, %s245
    %p257 = scmp.eq.s32.totalorder %s25, 1
    %p258 = por %p256, %p257
    %p260 = scmp.ne.s32.totalorder %s245, %s259
    %p261 = scmp.eq.s32.totalorder %s25, 0
    %p262 = por %p260, %p261
    %s264 = sadd.s32 %s263, 1
    %p267 = scmp.eq.s32.totalorder %s19, 1
    %p268 = scmp.ne.s32.totalorder %s263, %s265
    %p269 = scmp.eq.s32.totalorder %s19, 0
    %p270 = por %p268, %p269
    %p271 = scmp.ne.s32.totalorder %s263, %s265
    %p272 = scmp.eq.s32.totalorder %s24, 1
    %p273 = por %p271, %p272
    %p274 = scmp.ne.s32.totalorder %s265, %s266
    %p275 = scmp.eq.s32.totalorder %s24, 0
    %p276 = por %p274, %p275
    %p277 = scmp.ne.s32.totalorder %s265, %s266
    %p278 = scmp.eq.s32.totalorder %s25, 1
    %p279 = por %p277, %p278
    %p281 = scmp.ne.s32.totalorder %s266, %s280
    %p282 = scmp.eq.s32.totalorder %s25, 0
    %p283 = por %p281, %p282
    %s285 = sadd.s32 %s284, 1
    %p288 = scmp.eq.s32.totalorder %s19, 1
    %p289 = scmp.ne.s32.totalorder %s284, %s286
    %p290 = scmp.eq.s32.totalorder %s19, 0
    %p291 = por %p289, %p290
    %p292 = scmp.ne.s32.totalorder %s284, %s286
    %p293 = scmp.eq.s32.totalorder %s24, 1
    %p294 = por %p292, %p293
    %p295 = scmp.ne.s32.totalorder %s286, %s287
    %p296 = scmp.eq.s32.totalorder %s24, 0
    %p297 = por %p295, %p296
    %p298 = scmp.ne.s32.totalorder %s286, %s287
    %p299 = scmp.eq.s32.totalorder %s25, 1
    %p300 = por %p298, %p299
    %p302 = scmp.ne.s32.totalorder %s287, %s301
    %p303 = scmp.eq.s32.totalorder %s25, 0
    %p304 = por %p302, %p303
    %s305 = ssub.s32 %s19, %s26
    %p306 = scmp.eq.s32.totalorder %s305, 0
    %s308 = sadd.s32 %s307, 1
    %s309 = scalar_select %p306, %s307, %s308
    %p312 = pneg %p306
    %p313 = scmp.eq.s32.totalorder %s19, 1
    %p314 = por %p312, %p313
    %p315 = scmp.ne.s32.totalorder %s307, %s310
    %p316 = scmp.eq.s32.totalorder %s19, 0
    %p317 = por %p315, %p316
    %p318 = scmp.ne.s32.totalorder %s307, %s310
    %p319 = scmp.eq.s32.totalorder %s24, 1
    %p320 = por %p318, %p319
    %p321 = scmp.ne.s32.totalorder %s310, %s311
    %p322 = scmp.eq.s32.totalorder %s24, 0
    %p323 = por %p321, %p322
    %p324 = scmp.ne.s32.totalorder %s310, %s311
    %p325 = scmp.eq.s32.totalorder %s25, 1
    %p326 = por %p324, %p325
    %p328 = scmp.ne.s32.totalorder %s311, %s327
    %p329 = scmp.eq.s32.totalorder %s25, 0
    %p330 = por %p328, %p329
    %p331 = scmp.le.s32.totalorder 1, %s19
    %p332 = scmp.lt.s32.totalorder %s19, 3
    %p333 = pnand %p331, %p332
    %p334 = pneg %p333
    // Predicated region
    $region9: #{cnn1d_transformer_forward.4} parent=5 // pred_check
      _
    $region10: #{cnn1d_transformer_forward.4} parent=5 // pred_check_branch
      %336 = sbr.rel (%p333) target = $region12
    $region11: #{cnn1d_transformer_forward.4} parent=5 // pred_region
      %s337 = ssub.s32 %s19, 1
      // Predicated region
      $region13: #{cnn1d_transformer_forward.4} parent=11 // pred_check
        %p338 = pneg %p66
      $region14: #{cnn1d_transformer_forward.4} parent=11 // pred_check_branch
        %340 = sbr.rel (%p338) target = $region16
      $region15: #{cnn1d_transformer_forward.4} parent=11 // pred_region
        _
      $region16: #{cnn1d_transformer_forward.4} parent=11 // pred_fallthru
        _
      // Predicated region
      $region17: #{cnn1d_transformer_forward.4} parent=11 // pred_check
        %p341 = pneg %p87
      $region18: #{cnn1d_transformer_forward.4} parent=11 // pred_check_branch
        %343 = sbr.rel (%p341) target = $region20
      $region19: #{cnn1d_transformer_forward.4} parent=11 // pred_region
        _
      $region20: #{cnn1d_transformer_forward.4} parent=11 // pred_fallthru
        _
      // Predicated region
      $region21: #{cnn1d_transformer_forward.4} parent=11 // pred_check
        %p344 = pneg %p108
      $region22: #{cnn1d_transformer_forward.4} parent=11 // pred_check_branch
        %346 = sbr.rel (%p344) target = $region24
      $region23: #{cnn1d_transformer_forward.4} parent=11 // pred_region
        _
      $region24: #{cnn1d_transformer_forward.4} parent=11 // pred_fallthru
        _
      // Predicated region
      $region25: #{cnn1d_transformer_forward.4} parent=11 // pred_check
        %p347 = pneg %p129
      $region26: #{cnn1d_transformer_forward.4} parent=11 // pred_check_branch
        %349 = sbr.rel (%p347) target = $region28
      $region27: #{cnn1d_transformer_forward.4} parent=11 // pred_region
        _
      $region28: #{cnn1d_transformer_forward.4} parent=11 // pred_fallthru
        _
      // Predicated region
      $region29: #{cnn1d_transformer_forward.4} parent=11 // pred_check
        %p350 = pneg %p150
      $region30: #{cnn1d_transformer_forward.4} parent=11 // pred_check_branch
        %352 = sbr.rel (%p350) target = $region32
      $region31: #{cnn1d_transformer_forward.4} parent=11 // pred_region
        _
      $region32: #{cnn1d_transformer_forward.4} parent=11 // pred_fallthru
        _
      // Predicated region
      $region33: #{cnn1d_transformer_forward.4} parent=11 // pred_check
        %p353 = pneg %p171
      $region34: #{cnn1d_transformer_forward.4} parent=11 // pred_check_branch
        %355 = sbr.rel (%p353) target = $region36
      $region35: #{cnn1d_transformer_forward.4} parent=11 // pred_region
        _
      $region36: #{cnn1d_transformer_forward.4} parent=11 // pred_fallthru
        _
      // Predicated region
      $region37: #{cnn1d_transformer_forward.4} parent=11 // pred_check
        %p356 = pneg %p192
      $region38: #{cnn1d_transformer_forward.4} parent=11 // pred_check_branch
        %358 = sbr.rel (%p356) target = $region40
      $region39: #{cnn1d_transformer_forward.4} parent=11 // pred_region
        _
      $region40: #{cnn1d_transformer_forward.4} parent=11 // pred_fallthru
        _
      // Predicated region
      $region41: #{cnn1d_transformer_forward.4} parent=11 // pred_check
        %p359 = pneg %p213
      $region42: #{cnn1d_transformer_forward.4} parent=11 // pred_check_branch
        %361 = sbr.rel (%p359) target = $region44
      $region43: #{cnn1d_transformer_forward.4} parent=11 // pred_region
        _
      $region44: #{cnn1d_transformer_forward.4} parent=11 // pred_fallthru
        _
      // Predicated region
      $region45: #{cnn1d_transformer_forward.4} parent=11 // pred_check
        %p362 = pneg %p234
      $region46: #{cnn1d_transformer_forward.4} parent=11 // pred_check_branch
        %364 = sbr.rel (%p362) target = $region48
      $region47: #{cnn1d_transformer_forward.4} parent=11 // pred_region
        _
      $region48: #{cnn1d_transformer_forward.4} parent=11 // pred_fallthru
        _
      // Predicated region
      $region49: #{cnn1d_transformer_forward.4} parent=11 // pred_check
        %p365 = pneg %p255
      $region50: #{cnn1d_transformer_forward.4} parent=11 // pred_check_branch
        %367 = sbr.rel (%p365) target = $region52
      $region51: #{cnn1d_transformer_forward.4} parent=11 // pred_region
        _
      $region52: #{cnn1d_transformer_forward.4} parent=11 // pred_fallthru
        _
      // Predicated region
      $region53: #{cnn1d_transformer_forward.4} parent=11 // pred_check
        %p368 = pneg %p276
      $region54: #{cnn1d_transformer_forward.4} parent=11 // pred_check_branch
        %370 = sbr.rel (%p368) target = $region56
      $region55: #{cnn1d_transformer_forward.4} parent=11 // pred_region
        _
      $region56: #{cnn1d_transformer_forward.4} parent=11 // pred_fallthru
        _
      // Predicated region
      $region57: #{cnn1d_transformer_forward.4} parent=11 // pred_check
        %p371 = pneg %p297
      $region58: #{cnn1d_transformer_forward.4} parent=11 // pred_check_branch
        %373 = sbr.rel (%p371) target = $region60
      $region59: #{cnn1d_transformer_forward.4} parent=11 // pred_region
        _
      $region60: #{cnn1d_transformer_forward.4} parent=11 // pred_fallthru
        _
    $region12: #{cnn1d_transformer_forward.4} parent=5 // pred_fallthru
      _
    %p374 = scmp.lt.s32.totalorder %s19, 2
    // Predicated region
    $region61: #{cnn1d_transformer_forward.4} parent=5 // pred_check
      %p375 = pneg %p374
    $region62: #{cnn1d_transformer_forward.4} parent=5 // pred_check_branch
      %377 = sbr.rel (%p375) target = $region64
    $region63: #{cnn1d_transformer_forward.4} parent=5 // pred_region
      // Predicated region
      $region65: #{cnn1d_transformer_forward.4} parent=63 // pred_check
        %p378 = pneg %p39
      $region66: #{cnn1d_transformer_forward.4} parent=63 // pred_check_branch
        %380 = sbr.rel (%p378) target = $region68
      $region67: #{cnn1d_transformer_forward.4} parent=63 // pred_region
        %p381 = scmp.lt.s32.totalorder %s19, 1
        %s382 = scalar_select %p381, %s19, 1
        %s383 = smul.addr %s382, 2
        %s384 = smul.addr %s383, 8
        %s385 = scalar_lea.vmem %s0, %s384
      $region68: #{cnn1d_transformer_forward.4} parent=63 // pred_fallthru
        _
    $region64: #{cnn1d_transformer_forward.4} parent=5 // pred_fallthru
      _
    %p386 = scmp.le.s32.totalorder 1, %s19
    %p387 = scmp.lt.s32.totalorder %s19, 3
    %p388 = pnand %p386, %p387
    %p389 = pneg %p388
    // Predicated region
    $region69: #{cnn1d_transformer_forward.4} parent=5 // pred_check
      _
    $region70: #{cnn1d_transformer_forward.4} parent=5 // pred_check_branch
      %391 = sbr.rel (%p388) target = $region72
    $region71: #{cnn1d_transformer_forward.4} parent=5 // pred_region
      %s392 = ssub.s32 %s19, 1
      %p393 = scmp.lt.s32.totalorder %s24, 1
      %s394 = scalar_select %p393, %s24, 1
      %s395 = smul.addr %s394, 2
      %s396 = smul.addr %s395, 8
      %s397 = scalar_lea.vmem %s0, %s396
      %p398 = pneg %p45
      %p399 = pneg %p42
      %p400 = pneg %p66
      %p401 = pneg %p63
      %p402 = pneg %p87
      %p403 = pneg %p84
      %p404 = pneg %p108
      %p405 = pneg %p105
      %p406 = pneg %p129
      %p407 = pneg %p126
      %p408 = pneg %p150
      %p409 = pneg %p147
      %p410 = pneg %p171
      %p411 = pneg %p168
      %p412 = pneg %p192
      %p413 = pneg %p189
      %p414 = pneg %p213
      %p415 = pneg %p210
      %p416 = pneg %p234
      %p417 = pneg %p231
      %p418 = pneg %p255
      %p419 = pneg %p252
      %p420 = pneg %p276
      %p421 = pneg %p273
      %p422 = pneg %p297
      %p423 = pneg %p294
      %p424 = pneg %p323
      %p425 = pneg %p320
      %p426 = scmp.lt.s32.totalorder %s24, 1
      %s427 = scalar_select %p426, %s24, 1
      %s428 = smul.addr %s427, 2
      %s429 = smul.addr %s428, 8
      %s430 = scalar_lea.vmem %s13, %s429
      %p431 = scmp.lt.s32.totalorder %s24, 1
      %s432 = scalar_select %p431, %s24, 1
      %s433 = smul.addr %s432, 2
      %s434 = smul.addr %s433, 8
      %s435 = scalar_lea.vmem %s0, %s434
      %p436 = scmp.lt.s32.totalorder %s24, 1
      %s437 = scalar_select %p436, %s24, 1
      %s438 = smul.addr %s437, 2
      %s439 = smul.addr %s438, 8
      %s440 = scalar_lea.vmem %s13, %s439
      %v442 = vld [vmem:[%s435] sm:$0xff]
      %v443 = vld [vmem:[%s435 + $0x8] sm:$0xff]
      %v444 = vld [vmem:[%s1] sm:$0xf]
      %v445 = vld [vmem:[%s1 + $0x4] sm:$0xf]
      %v446 = vld [vmem:[%s1 + $0x8] sm:$0xf]
      %v447 = vld [vmem:[%s1 + $0xc] sm:$0xf]
      %v448 = vld [vmem:[%s2] sm:$0x1]
      %v449 = vld [vmem:[%s3] sm:$0xff]
      %v450 = vld [vmem:[%s3 + $0x8] sm:$0xff]
      %v451 = vld [vmem:[%s3 + $0x10] sm:$0xff]
      %v452 = vld [vmem:[%s3 + $0x18] sm:$0xff]
      %v453 = vld [vmem:[%s4] sm:$0x1]
      %v454 = vld [vmem:[%s5] sm:$0x1]
      %v455 = vld [vmem:[%s6] sm:$0x1]
      %v456 = vld [vmem:[%s7] sm:$0xf]
      %v457 = vld [vmem:[%s7 + $0x4] sm:$0xf]
      %v458 = vld [vmem:[%s7 + $0x8] sm:$0xf]
      %v459 = vld [vmem:[%s7 + $0xc] sm:$0xf]
      %v460 = vld [vmem:[%s8] sm:$0x1]
      %v461 = vld [vmem:[%s9] sm:$0xf]
      %v462 = vld [vmem:[%s9 + $0x4] sm:$0xf]
      %v463 = vld [vmem:[%s9 + $0x8] sm:$0xf]
      %v464 = vld [vmem:[%s9 + $0xc] sm:$0xf]
      %v465 = vld [vmem:[%s9 + $0x10] sm:$0xf]
      %v466 = vld [vmem:[%s9 + $0x14] sm:$0xf]
      %v467 = vld [vmem:[%s9 + $0x18] sm:$0xf]
      %v468 = vld [vmem:[%s9 + $0x1c] sm:$0xf]
      %v469 = vld [vmem:[%s9 + $0x20] sm:$0xf]
      %v470 = vld [vmem:[%s9 + $0x24] sm:$0xf]
      %v471 = vld [vmem:[%s9 + $0x28] sm:$0xf]
      %v472 = vld [vmem:[%s9 + $0x2c] sm:$0xf]
      %v473 = vld [vmem:[%s9 + $0x30] sm:$0xf]
      %v474 = vld [vmem:[%s9 + $0x34] sm:$0xf]
      %v475 = vld [vmem:[%s9 + $0x38] sm:$0xf]
      %v476 = vld [vmem:[%s9 + $0x3c] sm:$0xf]
      %v477 = vld [vmem:[%s10] sm:$0x1]
      %v478 = vld [vmem:[%s11] sm:$0x1]
      %v479 = vld [vmem:[%s12] sm:$0x1]
      %v480 = vpack.c.bf16 %v443, %v442
      %v482 = vlaneseq
      %v483 = vshrl.u32 %v482, 7
      %v484 = vsub.s32 0, %v483
      %v485 = vrot.slane %v448, %v484
      %v491 = vunpack.c.l.b16 %v444
      %v492 = vunpack.c.l.b16 %v445
      %v493 = vunpack.c.l.b16 %v446
      %v494 = vunpack.c.l.b16 %v447
      %v495 = vpack.c.b16 %v492, %v491
      %v496 = vpack.c.b16 %v494, %v493
      %vm499 = vcmask 261120
      %v501 = vsel %vm499, %v480, 0
      %503 = vmatprep.subr.bf16.mxu0 0
      %504 = vmatpush1.bf16.msra.mxu0 %v495
      %505 = vmatprep.subr.bf16.mxu0 0
      %506 = vmatpush1.bf16.msra.mxu0 %v496
      %507 = vmatprep.subr.bf16.mxu0 0
      %508 = vmatpush1.bf16.msra.mxu0 0
      %509 = vmatprep.subr.bf16.mxu0 0
      %510 = vmatpush1.bf16.msra.mxu0 0
      %511 = vmatprep.subr.bf16.mxu0 0
      %512 = vmatpush1.bf16.msra.mxu0 0
      %513 = vmatprep.subr.bf16.mxu0 0
      %514 = vmatpush1.bf16.msra.mxu0 0
      %515 = vmatprep.subr.bf16.mxu0 0
      %516 = vmatpush1.bf16.msra.mxu0 0
      %517 = vmatprep.subr.bf16.mxu0 0
      %518 = vmatpush1.bf16.msra.mxu0 0
      %519 = vmatprep.subr.bf16.mxu0 0
      %520 = vmatpush1.bf16.msra.mxu0 0
      %521 = vmatprep.subr.bf16.mxu0 0
      %522 = vmatpush1.bf16.msra.mxu0 0
      %523 = vmatprep.subr.bf16.mxu0 0
      %524 = vmatpush1.bf16.msra.mxu0 0
      %525 = vmatprep.subr.bf16.mxu0 0
      %526 = vmatpush1.bf16.msra.mxu0 0
      %527 = vmatprep.subr.bf16.mxu0 0
      %528 = vmatpush1.bf16.msra.mxu0 0
      %529 = vmatprep.subr.bf16.mxu0 0
      %530 = vmatpush1.bf16.msra.mxu0 0
      %531 = vmatprep.subr.bf16.mxu0 0
      %532 = vmatpush1.bf16.msra.mxu0 0
      %533 = vmatprep.subr.bf16.mxu0 0
      %534 = vmatpush1.bf16.msra.mxu0 0
      %535 = vmatprep.mubr.bf16.mxu0 0
      %536 = vmatmul.mubr.bf16.gmra.mrb[0].mxu0 %v501
      %v537 = vpop.f32.mrb[0].mxu0
      %v538 = vadd.f32 %v485, %v537
      %v539 = vpop.f32.mrb[0].mxu0
      %v540 = vpop.f32.mrb[0].mxu0
      %v541 = vadd.f32 %v485, %v540
      %v542 = vpop.f32.mrb[0].mxu0
      %543 = vdwg.mxu0
      %v544 = vlaneseq
      %v545 = vshrl.u32 %v544, 7
      %v546 = vadd.s32 %v545, 8
      %v547 = vadd.s32 %v545, 16
      %v548 = vadd.s32 %v545, 24
      %v549 = vadd.s32 %v545, 32
      %v550 = vadd.s32 %v545, 40
      %v551 = vadd.s32 %v545, 48
      %v552 = vadd.s32 %v545, 56
      %v553 = vadd.s32 %v545, 64
      %v554 = vadd.s32 %v545, 72
      %v555 = vadd.s32 %v545, 80
      %v556 = vadd.s32 %v545, 88
      %v557 = vlaneseq
      %v558 = vand.u32 %v557, 127
      %vm559 = vcmp.eq.s32.totalorder %v545, %v558
      %vm560 = vcmp.eq.s32.totalorder %v546, %v558
      %vm561 = vcmp.eq.s32.totalorder %v547, %v558
      %vm562 = vcmp.eq.s32.totalorder %v548, %v558
      %vm563 = vcmp.eq.s32.totalorder %v549, %v558
      %vm564 = vcmp.eq.s32.totalorder %v550, %v558
      %vm565 = vcmp.eq.s32.totalorder %v551, %v558
      %vm566 = vcmp.eq.s32.totalorder %v552, %v558
      %vm567 = vcmp.eq.s32.totalorder %v553, %v558
      %vm568 = vcmp.eq.s32.totalorder %v554, %v558
      %vm569 = vcmp.eq.s32.totalorder %v555, %v558
      %vm570 = vcmp.eq.s32.totalorder %v556, %v558
      %v571 = vsel %vm559, 1, 0
      %v572 = vsel %vm560, 1, 0
      %v573 = vsel %vm561, 1, 0
      %v574 = vsel %vm562, 1, 0
      %v575 = vsel %vm563, 1, 0
      %v576 = vsel %vm564, 1, 0
      %v577 = vsel %vm565, 1, 0
      %v578 = vsel %vm566, 1, 0
      %v579 = vsel %vm567, 1, 0
      %v580 = vsel %vm568, 1, 0
      %v581 = vsel %vm569, 1, 0
      %v582 = vsel %vm570, 1, 0
      %v583 = vcvt.s32.f32 %v571
      %v584 = vcvt.s32.f32 %v572
      %v585 = vcvt.s32.f32 %v573
      %v586 = vcvt.s32.f32 %v574
      %v587 = vcvt.s32.f32 %v575
      %v588 = vcvt.s32.f32 %v576
      %v589 = vcvt.s32.f32 %v577
      %v590 = vcvt.s32.f32 %v578
      %v591 = vcvt.s32.f32 %v579
      %v592 = vcvt.s32.f32 %v580
      %v593 = vcvt.s32.f32 %v581
      %v594 = vcvt.s32.f32 %v582
      %vm595 = vcmask 785408
      %v597 = vsel %vm595, %v538, 0
      %v600 = vsel %vm595, %v541, 0
      %602 = vmatprep.subr.mxu0 0.0
      %603 = vmatpush1.msra.mxu0 %v583
      %604 = vmatprep.subr.mxu0 0.0
      %605 = vmatpush1.msra.mxu0 %v584
      %606 = vmatprep.subr.mxu0 0.0
      %607 = vmatpush1.msra.mxu0 %v585
      %608 = vmatprep.subr.mxu0 0.0
      %609 = vmatpush1.msra.mxu0 %v586
      %610 = vmatprep.subr.mxu0 0.0
      %611 = vmatpush1.msra.mxu0 %v587
      %612 = vmatprep.subr.mxu0 0.0
      %613 = vmatpush1.msra.mxu0 %v588
      %614 = vmatprep.subr.mxu0 0.0
      %615 = vmatpush1.msra.mxu0 %v589
      %616 = vmatprep.subr.mxu0 0.0
      %617 = vmatpush1.msra.mxu0 %v590
      %618 = vmatprep.subr.mxu0 0.0
      %619 = vmatpush1.msra.mxu0 %v591
      %620 = vmatprep.subr.mxu0 0.0
      %621 = vmatpush1.msra.mxu0 %v592
      %622 = vmatprep.subr.mxu0 0.0
      %623 = vmatpush1.msra.mxu0 %v593
      %624 = vmatprep.subr.mxu0 0.0
      %625 = vmatpush1.msra.mxu0 %v594
      %626 = vmatprep.subr.mxu0 0.0
      %627 = vmatpush1.msra.mxu0 0.0
      %628 = vmatprep.subr.mxu0 0.0
      %629 = vmatpush1.msra.mxu0 0.0
      %630 = vmatprep.subr.mxu0 0.0
      %631 = vmatpush1.msra.mxu0 0.0
      %632 = vmatprep.subr.mxu0 0.0
      %633 = vmatpush1.msra.mxu0 0.0
      %634 = vmatprep.subr.mxu0 0.0
      %635 = vmatpush1.msra.mxu0 0.0
      %636 = vmatprep.subr.mxu0 0.0
      %637 = vmatpush1.msra.mxu0 0.0
      %638 = vmatprep.subr.mxu0 0.0
      %639 = vmatpush1.msra.mxu0 0.0
      %640 = vmatprep.subr.mxu0 0.0
      %641 = vmatpush1.msra.mxu0 0.0
      %642 = vmatprep.subr.mxu0 0.0
      %643 = vmatpush1.msra.mxu0 0.0
      %644 = vmatprep.subr.mxu0 0.0
      %645 = vmatpush1.msra.mxu0 0.0
      %646 = vmatprep.subr.mxu0 0.0
      %647 = vmatpush1.msra.mxu0 0.0
      %648 = vmatprep.subr.mxu0 0.0
      %649 = vmatpush1.msra.mxu0 0.0
      %650 = vmatprep.subr.mxu0 0.0
      %651 = vmatpush1.msra.mxu0 0.0
      %652 = vmatprep.subr.mxu0 0.0
      %653 = vmatpush1.msra.mxu0 0.0
      %654 = vmatprep.subr.mxu0 0.0
      %655 = vmatpush1.msra.mxu0 0.0
      %656 = vmatprep.subr.mxu0 0.0
      %657 = vmatpush1.msra.mxu0 0.0
      %658 = vmatprep.subr.mxu0 0.0
      %659 = vmatpush1.msra.mxu0 0.0
      %660 = vmatprep.subr.mxu0 0.0
      %661 = vmatpush1.msra.mxu0 0.0
      %662 = vmatprep.subr.mxu0 0.0
      %663 = vmatpush1.msra.mxu0 0.0
      %664 = vmatprep.subr.mxu0 0.0
      %665 = vmatpush1.msra.mxu0 0.0
      %666 = vmatprep.mubr.f32.mxu0 0.0
      %667 = vmatmul.mubr.f32.gmra.mrb[0].mxu0 %v597
      %v668 = vpop.f32.mrb[0].mxu0
      %v669 = vadd.f32 0.0, %v668
      %v670 = vpop.f32.mrb[0].mxu0
      %671 = vmatprep.mubr.f32.mxu0 0.0
      %672 = vmatmul.mubr.f32.gmra.mrb[0].mxu0 %v600
      %v673 = vpop.f32.mrb[0].mxu0
      %v674 = vadd.f32 0.0, %v673
      %v675 = vpop.f32.mrb[0].mxu0
      %676 = vdwg.mxu0
      %v677 = vadd.s32 %v558, 32
      %vm678 = vcmp.eq.s32.totalorder %v545, %v677
      %vm679 = vcmp.eq.s32.totalorder %v546, %v677
      %vm680 = vcmp.eq.s32.totalorder %v547, %v677
      %vm681 = vcmp.eq.s32.totalorder %v548, %v677
      %vm682 = vcmp.eq.s32.totalorder %v549, %v677
      %vm683 = vcmp.eq.s32.totalorder %v550, %v677
      %vm684 = vcmp.eq.s32.totalorder %v551, %v677
      %vm685 = vcmp.eq.s32.totalorder %v552, %v677
      %vm686 = vcmp.eq.s32.totalorder %v553, %v677
      %vm687 = vcmp.eq.s32.totalorder %v554, %v677
      %vm688 = vcmp.eq.s32.totalorder %v555, %v677
      %vm689 = vcmp.eq.s32.totalorder %v556, %v677
      %v690 = vsel %vm678, 1, 0
      %v691 = vsel %vm679, 1, 0
      %v692 = vsel %vm680, 1, 0
      %v693 = vsel %vm681, 1, 0
      %v694 = vsel %vm682, 1, 0
      %v695 = vsel %vm683, 1, 0
      %v696 = vsel %vm684, 1, 0
      %v697 = vsel %vm685, 1, 0
      %v698 = vsel %vm686, 1, 0
      %v699 = vsel %vm687, 1, 0
      %v700 = vsel %vm688, 1, 0
      %v701 = vsel %vm689, 1, 0
      %v702 = vcvt.s32.f32 %v690
      %v703 = vcvt.s32.f32 %v691
      %v704 = vcvt.s32.f32 %v692
      %v705 = vcvt.s32.f32 %v693
      %v706 = vcvt.s32.f32 %v694
      %v707 = vcvt.s32.f32 %v695
      %v708 = vcvt.s32.f32 %v696
      %v709 = vcvt.s32.f32 %v697
      %v710 = vcvt.s32.f32 %v698
      %v711 = vcvt.s32.f32 %v699
      %v712 = vcvt.s32.f32 %v700
      %v713 = vcvt.s32.f32 %v701
      %714 = vmatprep.subr.mxu0 0.0
      %715 = vmatpush1.msra.mxu0 %v702
      %716 = vmatprep.subr.mxu0 0.0
      %717 = vmatpush1.msra.mxu0 %v703
      %718 = vmatprep.subr.mxu0 0.0
      %719 = vmatpush1.msra.mxu0 %v704
      %720 = vmatprep.subr.mxu0 0.0
      %721 = vmatpush1.msra.mxu0 %v705
      %722 = vmatprep.subr.mxu0 0.0
      %723 = vmatpush1.msra.mxu0 %v706
      %724 = vmatprep.subr.mxu0 0.0
      %725 = vmatpush1.msra.mxu0 %v707
      %726 = vmatprep.subr.mxu0 0.0
      %727 = vmatpush1.msra.mxu0 %v708
      %728 = vmatprep.subr.mxu0 0.0
      %729 = vmatpush1.msra.mxu0 %v709
      %730 = vmatprep.subr.mxu0 0.0
      %731 = vmatpush1.msra.mxu0 %v710
      %732 = vmatprep.subr.mxu0 0.0
      %733 = vmatpush1.msra.mxu0 %v711
      %734 = vmatprep.subr.mxu0 0.0
      %735 = vmatpush1.msra.mxu0 %v712
      %736 = vmatprep.subr.mxu0 0.0
      %737 = vmatpush1.msra.mxu0 %v713
      %738 = vmatprep.subr.mxu0 0.0
      %739 = vmatpush1.msra.mxu0 0.0
      %740 = vmatprep.subr.mxu0 0.0
      %741 = vmatpush1.msra.mxu0 0.0
      %742 = vmatprep.subr.mxu0 0.0
      %743 = vmatpush1.msra.mxu0 0.0
      %744 = vmatprep.subr.mxu0 0.0
      %745 = vmatpush1.msra.mxu0 0.0
      %746 = vmatprep.subr.mxu0 0.0
      %747 = vmatpush1.msra.mxu0 0.0
      %748 = vmatprep.subr.mxu0 0.0
      %749 = vmatpush1.msra.mxu0 0.0
      %750 = vmatprep.subr.mxu0 0.0
      %751 = vmatpush1.msra.mxu0 0.0
      %752 = vmatprep.subr.mxu0 0.0
      %753 = vmatpush1.msra.mxu0 0.0
      %754 = vmatprep.subr.mxu0 0.0
      %755 = vmatpush1.msra.mxu0 0.0
      %756 = vmatprep.subr.mxu0 0.0
      %757 = vmatpush1.msra.mxu0 0.0
      %758 = vmatprep.subr.mxu0 0.0
      %759 = vmatpush1.msra.mxu0 0.0
      %760 = vmatprep.subr.mxu0 0.0
      %761 = vmatpush1.msra.mxu0 0.0
      %762 = vmatprep.subr.mxu0 0.0
      %763 = vmatpush1.msra.mxu0 0.0
      %764 = vmatprep.subr.mxu0 0.0
      %765 = vmatpush1.msra.mxu0 0.0
      %766 = vmatprep.subr.mxu0 0.0
      %767 = vmatpush1.msra.mxu0 0.0
      %768 = vmatprep.subr.mxu0 0.0
      %769 = vmatpush1.msra.mxu0 0.0
      %770 = vmatprep.subr.mxu0 0.0
      %771 = vmatpush1.msra.mxu0 0.0
      %772 = vmatprep.subr.mxu0 0.0
      %773 = vmatpush1.msra.mxu0 0.0
      %774 = vmatprep.subr.mxu0 0.0
      %775 = vmatpush1.msra.mxu0 0.0
      %776 = vmatprep.subr.mxu0 0.0
      %777 = vmatpush1.msra.mxu0 0.0
      %778 = vmatprep.mubr.f32.mxu0 0.0
      %779 = vmatmul.mubr.f32.gmra.mrb[0].mxu0 %v597
      %v780 = vpop.f32.mrb[0].mxu0
      %v781 = vadd.f32 0.0, %v780
      %v782 = vpop.f32.mrb[0].mxu0
      %783 = vmatprep.mubr.f32.mxu0 0.0
      %784 = vmatmul.mubr.f32.gmra.mrb[0].mxu0 %v600
      %v785 = vpop.f32.mrb[0].mxu0
      %v786 = vadd.f32 0.0, %v785
      %v787 = vpop.f32.mrb[0].mxu0
      %788 = vdwg.mxu0
      %v789 = vadd.s32 %v558, 64
      %vm790 = vcmp.eq.s32.totalorder %v545, %v789
      %vm791 = vcmp.eq.s32.totalorder %v546, %v789
      %vm792 = vcmp.eq.s32.totalorder %v547, %v789
      %vm793 = vcmp.eq.s32.totalorder %v548, %v789
      %vm794 = vcmp.eq.s32.totalorder %v549, %v789
      %vm795 = vcmp.eq.s32.totalorder %v550, %v789
      %vm796 = vcmp.eq.s32.totalorder %v551, %v789
      %vm797 = vcmp.eq.s32.totalorder %v552, %v789
      %vm798 = vcmp.eq.s32.totalorder %v553, %v789
      %vm799 = vcmp.eq.s32.totalorder %v554, %v789
      %vm800 = vcmp.eq.s32.totalorder %v555, %v789
      %vm801 = vcmp.eq.s32.totalorder %v556, %v789
      %v802 = vsel %vm790, 1, 0
      %v803 = vsel %vm791, 1, 0
      %v804 = vsel %vm792, 1, 0
      %v805 = vsel %vm793, 1, 0
      %v806 = vsel %vm794, 1, 0
      %v807 = vsel %vm795, 1, 0
      %v808 = vsel %vm796, 1, 0
      %v809 = vsel %vm797, 1, 0
      %v810 = vsel %vm798, 1, 0
      %v811 = vsel %vm799, 1, 0
      %v812 = vsel %vm800, 1, 0
      %v813 = vsel %vm801, 1, 0
      %v814 = vcvt.s32.f32 %v802
      %v815 = vcvt.s32.f32 %v803
      %v816 = vcvt.s32.f32 %v804
      %v817 = vcvt.s32.f32 %v805
      %v818 = vcvt.s32.f32 %v806
      %v819 = vcvt.s32.f32 %v807
      %v820 = vcvt.s32.f32 %v808
      %v821 = vcvt.s32.f32 %v809
      %v822 = vcvt.s32.f32 %v810
      %v823 = vcvt.s32.f32 %v811
      %v824 = vcvt.s32.f32 %v812
      %v825 = vcvt.s32.f32 %v813
      %826 = vmatprep.subr.mxu0 0.0
      %827 = vmatpush1.msra.mxu0 %v814
      %828 = vmatprep.subr.mxu0 0.0
      %829 = vmatpush1.msra.mxu0 %v815
      %830 = vmatprep.subr.mxu0 0.0
      %831 = vmatpush1.msra.mxu0 %v816
      %832 = vmatprep.subr.mxu0 0.0
      %833 = vmatpush1.msra.mxu0 %v817
      %834 = vmatprep.subr.mxu0 0.0
      %835 = vmatpush1.msra.mxu0 %v818
      %836 = vmatprep.subr.mxu0 0.0
      %837 = vmatpush1.msra.mxu0 %v819
      %838 = vmatprep.subr.mxu0 0.0
      %839 = vmatpush1.msra.mxu0 %v820
      %840 = vmatprep.subr.mxu0 0.0
      %841 = vmatpush1.msra.mxu0 %v821
      %842 = vmatprep.subr.mxu0 0.0
      %843 = vmatpush1.msra.mxu0 %v822
      %844 = vmatprep.subr.mxu0 0.0
      %845 = vmatpush1.msra.mxu0 %v823
      %846 = vmatprep.subr.mxu0 0.0
      %847 = vmatpush1.msra.mxu0 %v824
      %848 = vmatprep.subr.mxu0 0.0
      %849 = vmatpush1.msra.mxu0 %v825
      %850 = vmatprep.subr.mxu0 0.0
      %851 = vmatpush1.msra.mxu0 0.0
      %852 = vmatprep.subr.mxu0 0.0
      %853 = vmatpush1.msra.mxu0 0.0
      %854 = vmatprep.subr.mxu0 0.0
      %855 = vmatpush1.msra.mxu0 0.0
      %856 = vmatprep.subr.mxu0 0.0
      %857 = vmatpush1.msra.mxu0 0.0
      %858 = vmatprep.subr.mxu0 0.0
      %859 = vmatpush1.msra.mxu0 0.0
      %860 = vmatprep.subr.mxu0 0.0
      %861 = vmatpush1.msra.mxu0 0.0
      %862 = vmatprep.subr.mxu0 0.0
      %863 = vmatpush1.msra.mxu0 0.0
      %864 = vmatprep.subr.mxu0 0.0
      %865 = vmatpush1.msra.mxu0 0.0
      %866 = vmatprep.subr.mxu0 0.0
      %867 = vmatpush1.msra.mxu0 0.0
      %868 = vmatprep.subr.mxu0 0.0
      %869 = vmatpush1.msra.mxu0 0.0
      %870 = vmatprep.subr.mxu0 0.0
      %871 = vmatpush1.msra.mxu0 0.0
      %872 = vmatprep.subr.mxu0 0.0
      %873 = vmatpush1.msra.mxu0 0.0
      %874 = vmatprep.subr.mxu0 0.0
      %875 = vmatpush1.msra.mxu0 0.0
      %876 = vmatprep.subr.mxu0 0.0
      %877 = vmatpush1.msra.mxu0 0.0
      %878 = vmatprep.subr.mxu0 0.0
      %879 = vmatpush1.msra.mxu0 0.0
      %880 = vmatprep.subr.mxu0 0.0
      %881 = vmatpush1.msra.mxu0 0.0
      %882 = vmatprep.subr.mxu0 0.0
      %883 = vmatpush1.msra.mxu0 0.0
      %884 = vmatprep.subr.mxu0 0.0
      %885 = vmatpush1.msra.mxu0 0.0
      %886 = vmatprep.subr.mxu0 0.0
      %887 = vmatpush1.msra.mxu0 0.0
      %888 = vmatprep.subr.mxu0 0.0
      %889 = vmatpush1.msra.mxu0 0.0
      %890 = vmatprep.mubr.f32.mxu0 0.0
      %891 = vmatmul.mubr.f32.gmra.mrb[0].mxu0 %v597
      %v892 = vpop.f32.mrb[0].mxu0
      %v893 = vadd.f32 0.0, %v892
      %v894 = vpop.f32.mrb[0].mxu0
      %895 = vmatprep.mubr.f32.mxu0 0.0
      %896 = vmatmul.mubr.f32.gmra.mrb[0].mxu0 %v600
      %v897 = vpop.f32.mrb[0].mxu0
      %v898 = vadd.f32 0.0, %v897
      %v899 = vpop.f32.mrb[0].mxu0
      %900 = vdwg.mxu0
      %vm901 = vcmask 64512
      %v903 = vsel %vm901, %v669, 0
      %v906 = vsel %vm901, %v674, 0
      %v909 = vsel %vm901, %v781, 0
      %v912 = vsel %vm901, %v786, 0
      %914 = vmatprep.subr.mxu0 0.0
      %915 = vmatpush1.xpose.msra.mxu0 %v909
      %916 = vmatprep.subr.mxu0 0.0
      %917 = vmatpush1.xpose.msra.mxu0 %v912
      %918 = vmatprep.subr.mxu0 0.0
      %919 = vmatpush1.xpose.msra.mxu0 0.0
      %920 = vmatprep.subr.mxu0 0.0
      %921 = vmatpush1.xpose.msra.mxu0 0.0
      %922 = vmatprep.subr.mxu0 0.0
      %923 = vmatpush1.xpose.msra.mxu0 0.0
      %924 = vmatprep.subr.mxu0 0.0
      %925 = vmatpush1.xpose.msra.mxu0 0.0
      %926 = vmatprep.subr.mxu0 0.0
      %927 = vmatpush1.xpose.msra.mxu0 0.0
      %928 = vmatprep.subr.mxu0 0.0
      %929 = vmatpush1.xpose.msra.mxu0 0.0
      %930 = vmatprep.subr.mxu0 0.0
      %931 = vmatpush1.xpose.msra.mxu0 0.0
      %932 = vmatprep.subr.mxu0 0.0
      %933 = vmatpush1.xpose.msra.mxu0 0.0
      %934 = vmatprep.subr.mxu0 0.0
      %935 = vmatpush1.xpose.msra.mxu0 0.0
      %936 = vmatprep.subr.mxu0 0.0
      %937 = vmatpush1.xpose.msra.mxu0 0.0
      %938 = vmatprep.subr.mxu0 0.0
      %939 = vmatpush1.xpose.msra.mxu0 0.0
      %940 = vmatprep.subr.mxu0 0.0
      %941 = vmatpush1.xpose.msra.mxu0 0.0
      %942 = vmatprep.subr.mxu0 0.0
      %943 = vmatpush1.xpose.msra.mxu0 0.0
      %944 = vmatprep.subr.mxu0 0.0
      %945 = vmatpush1.xpose.msra.mxu0 0.0
      %946 = vmatprep.subr.mxu0 0.0
      %947 = vmatpush1.xpose.msra.mxu0 0.0
      %948 = vmatprep.subr.mxu0 0.0
      %949 = vmatpush1.xpose.msra.mxu0 0.0
      %950 = vmatprep.subr.mxu0 0.0
      %951 = vmatpush1.xpose.msra.mxu0 0.0
      %952 = vmatprep.subr.mxu0 0.0
      %953 = vmatpush1.xpose.msra.mxu0 0.0
      %954 = vmatprep.subr.mxu0 0.0
      %955 = vmatpush1.xpose.msra.mxu0 0.0
      %956 = vmatprep.subr.mxu0 0.0
      %957 = vmatpush1.xpose.msra.mxu0 0.0
      %958 = vmatprep.subr.mxu0 0.0
      %959 = vmatpush1.xpose.msra.mxu0 0.0
      %960 = vmatprep.subr.mxu0 0.0
      %961 = vmatpush1.xpose.msra.mxu0 0.0
      %962 = vmatprep.subr.mxu0 0.0
      %963 = vmatpush1.xpose.msra.mxu0 0.0
      %964 = vmatprep.subr.mxu0 0.0
      %965 = vmatpush1.xpose.msra.mxu0 0.0
      %966 = vmatprep.subr.mxu0 0.0
      %967 = vmatpush1.xpose.msra.mxu0 0.0
      %968 = vmatprep.subr.mxu0 0.0
      %969 = vmatpush1.xpose.msra.mxu0 0.0
      %970 = vmatprep.subr.mxu0 0.0
      %971 = vmatpush1.xpose.msra.mxu0 0.0
      %972 = vmatprep.subr.mxu0 0.0
      %973 = vmatpush1.xpose.msra.mxu0 0.0
      %974 = vmatprep.subr.mxu0 0.0
      %975 = vmatpush1.xpose.msra.mxu0 0.0
      %976 = vmatprep.subr.mxu0 0.0
      %977 = vmatpush1.xpose.msra.mxu0 0.0
      %978 = vmatprep.mubr.f32.mxu0 0.0
      %979 = vmatmul.mubr.f32.gmra.mrb[0].mxu0 %v903
      %v980 = vpop.f32.mrb[0].mxu0
      %v981 = vadd.f32 0.0, %v980
      %v982 = vpop.f32.mrb[0].mxu0
      %983 = vmatprep.mubr.f32.mxu0 0.0
      %984 = vmatmul.mubr.f32.gmra.mrb[0].mxu0 %v906
      %v985 = vpop.f32.mrb[0].mxu0
      %v986 = vadd.f32 0.0, %v985
      %v987 = vpop.f32.mrb[0].mxu0
      %988 = vdwg.mxu0
      %v989 = vmul.f32 %v981, 0.35355338
      %v990 = vmul.f32 %v986, 0.35355338
      %vm991 = vcmask 130048
      %v992 = vsel %vm991, %v989, -inf
      %993 = vmax.xlane.f32.xlu0 %v992
      %v994 = vpop.xlane.xlu0 %993
      %v995 = vsel %vm991, %v990, -inf
      %996 = vmax.xlane.f32.xlu0 %v995
      %v997 = vpop.xlane.xlu0 %996
      %v998 = vsub.f32 %v989, %v994
      %v999 = vsub.f32 %v990, %v997
      %v1000 = vmul.f32 %v998, 1.442695
      %v1001 = vpow.pop %v1000
      %v1002 = vmul.f32 %v999, 1.442695
      %v1003 = vpow.pop %v1002
      %v1004 = vsel %vm991, %v1001, 0.0
      %1005 = vadd.xlane.f32.xlu0 %v1004
      %v1006 = vpop.xlane.xlu0 %1005
      %v1007 = vsel %vm991, %v1003, 0.0
      %1008 = vadd.xlane.f32.xlu0 %v1007
      %v1009 = vpop.xlane.xlu0 %1008
      %v1010 = vrcp.pop %v1006
      %v1011 = vrcp.pop %v1009
      %v1012 = vmul.f32 %v1001, %v1010
      %v1013 = vmul.f32 %v1003, %v1011
      %v1015 = vsel %vm991, %v1012, 0
      %v1018 = vsel %vm991, %v1013, 0
      %1020 = vmatprep.subr.mxu0 0.0
      %1021 = vmatpush1.msra.mxu0 %v893
      %1022 = vmatprep.subr.mxu0 0.0
      %1023 = vmatpush1.msra.mxu0 %v898
      %1024 = vmatprep.subr.mxu0 0.0
      %1025 = vmatpush1.msra.mxu0 0.0
      %1026 = vmatprep.subr.mxu0 0.0
      %1027 = vmatpush1.msra.mxu0 0.0
      %1028 = vmatprep.subr.mxu0 0.0
      %1029 = vmatpush1.msra.mxu0 0.0
      %1030 = vmatprep.subr.mxu0 0.0
      %1031 = vmatpush1.msra.mxu0 0.0
      %1032 = vmatprep.subr.mxu0 0.0
      %1033 = vmatpush1.msra.mxu0 0.0
      %1034 = vmatprep.subr.mxu0 0.0
      %1035 = vmatpush1.msra.mxu0 0.0
      %1036 = vmatprep.subr.mxu0 0.0
      %1037 = vmatpush1.msra.mxu0 0.0
      %1038 = vmatprep.subr.mxu0 0.0
      %1039 = vmatpush1.msra.mxu0 0.0
      %1040 = vmatprep.subr.mxu0 0.0
      %1041 = vmatpush1.msra.mxu0 0.0
      %1042 = vmatprep.subr.mxu0 0.0
      %1043 = vmatpush1.msra.mxu0 0.0
      %1044 = vmatprep.subr.mxu0 0.0
      %1045 = vmatpush1.msra.mxu0 0.0
      %1046 = vmatprep.subr.mxu0 0.0
      %1047 = vmatpush1.msra.mxu0 0.0
      %1048 = vmatprep.subr.mxu0 0.0
      %1049 = vmatpush1.msra.mxu0 0.0
      %1050 = vmatprep.subr.mxu0 0.0
      %1051 = vmatpush1.msra.mxu0 0.0
      %1052 = vmatprep.subr.mxu0 0.0
      %1053 = vmatpush1.msra.mxu0 0.0
      %1054 = vmatprep.subr.mxu0 0.0
      %1055 = vmatpush1.msra.mxu0 0.0
      %1056 = vmatprep.subr.mxu0 0.0
      %1057 = vmatpush1.msra.mxu0 0.0
      %1058 = vmatprep.subr.mxu0 0.0
      %1059 = vmatpush1.msra.mxu0 0.0
      %1060 = vmatprep.subr.mxu0 0.0
      %1061 = vmatpush1.msra.mxu0 0.0
      %1062 = vmatprep.subr.mxu0 0.0
      %1063 = vmatpush1.msra.mxu0 0.0
      %1064 = vmatprep.subr.mxu0 0.0
      %1065 = vmatpush1.msra.mxu0 0.0
      %1066 = vmatprep.subr.mxu0 0.0
      %1067 = vmatpush1.msra.mxu0 0.0
      %1068 = vmatprep.subr.mxu0 0.0
      %1069 = vmatpush1.msra.mxu0 0.0
      %1070 = vmatprep.subr.mxu0 0.0
      %1071 = vmatpush1.msra.mxu0 0.0
      %1072 = vmatprep.subr.mxu0 0.0
      %1073 = vmatpush1.msra.mxu0 0.0
      %1074 = vmatprep.subr.mxu0 0.0
      %1075 = vmatpush1.msra.mxu0 0.0
      %1076 = vmatprep.subr.mxu0 0.0
      %1077 = vmatpush1.msra.mxu0 0.0
      %1078 = vmatprep.subr.mxu0 0.0
      %1079 = vmatpush1.msra.mxu0 0.0
      %1080 = vmatprep.subr.mxu0 0.0
      %1081 = vmatpush1.msra.mxu0 0.0
      %1082 = vmatprep.subr.mxu0 0.0
      %1083 = vmatpush1.msra.mxu0 0.0
      %1084 = vmatprep.mubr.f32.mxu0 0.0
      %1085 = vmatmul.mubr.f32.gmra.mrb[0].mxu0 %v1015
      %v1086 = vpop.f32.mrb[0].mxu0
      %v1087 = vadd.f32 0.0, %v1086
      %v1088 = vpop.f32.mrb[0].mxu0
      %1089 = vmatprep.mubr.f32.mxu0 0.0
      %1090 = vmatmul.mubr.f32.gmra.mrb[0].mxu0 %v1018
      %v1091 = vpop.f32.mrb[0].mxu0
      %v1092 = vadd.f32 0.0, %v1091
      %v1093 = vpop.f32.mrb[0].mxu0
      %1094 = vdwg.mxu0
      %v1095 = vadd.s32 %v558, 8
      %vm1096 = vcmp.eq.s32.totalorder %v545, %v1095
      %vm1097 = vcmp.eq.s32.totalorder %v546, %v1095
      %vm1098 = vcmp.eq.s32.totalorder %v547, %v1095
      %vm1099 = vcmp.eq.s32.totalorder %v548, %v1095
      %vm1100 = vcmp.eq.s32.totalorder %v549, %v1095
      %vm1101 = vcmp.eq.s32.totalorder %v550, %v1095
      %vm1102 = vcmp.eq.s32.totalorder %v551, %v1095
      %vm1103 = vcmp.eq.s32.totalorder %v552, %v1095
      %vm1104 = vcmp.eq.s32.totalorder %v553, %v1095
      %vm1105 = vcmp.eq.s32.totalorder %v554, %v1095
      %vm1106 = vcmp.eq.s32.totalorder %v555, %v1095
      %vm1107 = vcmp.eq.s32.totalorder %v556, %v1095
      %v1108 = vsel %vm1096, 1, 0
      %v1109 = vsel %vm1097, 1, 0
      %v1110 = vsel %vm1098, 1, 0
      %v1111 = vsel %vm1099, 1, 0
      %v1112 = vsel %vm1100, 1, 0
      %v1113 = vsel %vm1101, 1, 0
      %v1114 = vsel %vm1102, 1, 0
      %v1115 = vsel %vm1103, 1, 0
      %v1116 = vsel %vm1104, 1, 0
      %v1117 = vsel %vm1105, 1, 0
      %v1118 = vsel %vm1106, 1, 0
      %v1119 = vsel %vm1107, 1, 0
      %v1120 = vcvt.s32.f32 %v1108
      %v1121 = vcvt.s32.f32 %v1109
      %v1122 = vcvt.s32.f32 %v1110
      %v1123 = vcvt.s32.f32 %v1111
      %v1124 = vcvt.s32.f32 %v1112
      %v1125 = vcvt.s32.f32 %v1113
      %v1126 = vcvt.s32.f32 %v1114
      %v1127 = vcvt.s32.f32 %v1115
      %v1128 = vcvt.s32.f32 %v1116
      %v1129 = vcvt.s32.f32 %v1117
      %v1130 = vcvt.s32.f32 %v1118
      %v1131 = vcvt.s32.f32 %v1119
      %1132 = vmatprep.subr.mxu0 0.0
      %1133 = vmatpush1.msra.mxu0 %v1120
      %1134 = vmatprep.subr.mxu0 0.0
      %1135 = vmatpush1.msra.mxu0 %v1121
      %1136 = vmatprep.subr.mxu0 0.0
      %1137 = vmatpush1.msra.mxu0 %v1122
      %1138 = vmatprep.subr.mxu0 0.0
      %1139 = vmatpush1.msra.mxu0 %v1123
      %1140 = vmatprep.subr.mxu0 0.0
      %1141 = vmatpush1.msra.mxu0 %v1124
      %1142 = vmatprep.subr.mxu0 0.0
      %1143 = vmatpush1.msra.mxu0 %v1125
      %1144 = vmatprep.subr.mxu0 0.0
      %1145 = vmatpush1.msra.mxu0 %v1126
      %1146 = vmatprep.subr.mxu0 0.0
      %1147 = vmatpush1.msra.mxu0 %v1127
      %1148 = vmatprep.subr.mxu0 0.0
      %1149 = vmatpush1.msra.mxu0 %v1128
      %1150 = vmatprep.subr.mxu0 0.0
      %1151 = vmatpush1.msra.mxu0 %v1129
      %1152 = vmatprep.subr.mxu0 0.0
      %1153 = vmatpush1.msra.mxu0 %v1130
      %1154 = vmatprep.subr.mxu0 0.0
      %1155 = vmatpush1.msra.mxu0 %v1131
      %1156 = vmatprep.subr.mxu0 0.0
      %1157 = vmatpush1.msra.mxu0 0.0
      %1158 = vmatprep.subr.mxu0 0.0
      %1159 = vmatpush1.msra.mxu0 0.0
      %1160 = vmatprep.subr.mxu0 0.0
      %1161 = vmatpush1.msra.mxu0 0.0
      %1162 = vmatprep.subr.mxu0 0.0
      %1163 = vmatpush1.msra.mxu0 0.0
      %1164 = vmatprep.subr.mxu0 0.0
      %1165 = vmatpush1.msra.mxu0 0.0
      %1166 = vmatprep.subr.mxu0 0.0
      %1167 = vmatpush1.msra.mxu0 0.0
      %1168 = vmatprep.subr.mxu0 0.0
      %1169 = vmatpush1.msra.mxu0 0.0
      %1170 = vmatprep.subr.mxu0 0.0
      %1171 = vmatpush1.msra.mxu0 0.0
      %1172 = vmatprep.subr.mxu0 0.0
      %1173 = vmatpush1.msra.mxu0 0.0
      %1174 = vmatprep.subr.mxu0 0.0
      %1175 = vmatpush1.msra.mxu0 0.0
      %1176 = vmatprep.subr.mxu0 0.0
      %1177 = vmatpush1.msra.mxu0 0.0
      %1178 = vmatprep.subr.mxu0 0.0
      %1179 = vmatpush1.msra.mxu0 0.0
      %1180 = vmatprep.subr.mxu0 0.0
      %1181 = vmatpush1.msra.mxu0 0.0
      %1182 = vmatprep.subr.mxu0 0.0
      %1183 = vmatpush1.msra.mxu0 0.0
      %1184 = vmatprep.subr.mxu0 0.0
      %1185 = vmatpush1.msra.mxu0 0.0
      %1186 = vmatprep.subr.mxu0 0.0
      %1187 = vmatpush1.msra.mxu0 0.0
      %1188 = vmatprep.subr.mxu0 0.0
      %1189 = vmatpush1.msra.mxu0 0.0
      %1190 = vmatprep.subr.mxu0 0.0
      %1191 = vmatpush1.msra.mxu0 0.0
      %1192 = vmatprep.subr.mxu0 0.0
      %1193 = vmatpush1.msra.mxu0 0.0
      %1194 = vmatprep.subr.mxu0 0.0
      %1195 = vmatpush1.msra.mxu0 0.0
      %1196 = vmatprep.mubr.f32.mxu0 0.0
      %1197 = vmatmul.mubr.f32.gmra.mrb[0].mxu0 %v597
      %v1198 = vpop.f32.mrb[0].mxu0
      %v1199 = vadd.f32 0.0, %v1198
      %v1200 = vpop.f32.mrb[0].mxu0
      %1201 = vmatprep.mubr.f32.mxu0 0.0
      %1202 = vmatmul.mubr.f32.gmra.mrb[0].mxu0 %v600
      %v1203 = vpop.f32.mrb[0].mxu0
      %v1204 = vadd.f32 0.0, %v1203
      %v1205 = vpop.f32.mrb[0].mxu0
      %1206 = vdwg.mxu0
      %v1207 = vadd.s32 %v558, 40
      %vm1208 = vcmp.eq.s32.totalorder %v545, %v1207
      %vm1209 = vcmp.eq.s32.totalorder %v546, %v1207
      %vm1210 = vcmp.eq.s32.totalorder %v547, %v1207
      %vm1211 = vcmp.eq.s32.totalorder %v548, %v1207
      %vm1212 = vcmp.eq.s32.totalorder %v549, %v1207
      %vm1213 = vcmp.eq.s32.totalorder %v550, %v1207
      %vm1214 = vcmp.eq.s32.totalorder %v551, %v1207
      %vm1215 = vcmp.eq.s32.totalorder %v552, %v1207
      %vm1216 = vcmp.eq.s32.totalorder %v553, %v1207
      %vm1217 = vcmp.eq.s32.totalorder %v554, %v1207
      %vm1218 = vcmp.eq.s32.totalorder %v555, %v1207
      %vm1219 = vcmp.eq.s32.totalorder %v556, %v1207
      %v1220 = vsel %vm1208, 1, 0
      %v1221 = vsel %vm1209, 1, 0
      %v1222 = vsel %vm1210, 1, 0
      %v1223 = vsel %vm1211, 1, 0
      %v1224 = vsel %vm1212, 1, 0
      %v1225 = vsel %vm1213, 1, 0
      %v1226 = vsel %vm1214, 1, 0
      %v1227 = vsel %vm1215, 1, 0
      %v1228 = vsel %vm1216, 1, 0
      %v1229 = vsel %vm1217, 1, 0
      %v1230 = vsel %vm1218, 1, 0
      %v1231 = vsel %vm1219, 1, 0
      %v1232 = vcvt.s32.f32 %v1220
      %v1233 = vcvt.s32.f32 %v1221
      %v1234 = vcvt.s32.f32 %v1222
      %v1235 = vcvt.s32.f32 %v1223
      %v1236 = vcvt.s32.f32 %v1224
      %v1237 = vcvt.s32.f32 %v1225
      %v1238 = vcvt.s32.f32 %v1226
      %v1239 = vcvt.s32.f32 %v1227
      %v1240 = vcvt.s32.f32 %v1228
      %v1241 = vcvt.s32.f32 %v1229
      %v1242 = vcvt.s32.f32 %v1230
      %v1243 = vcvt.s32.f32 %v1231
      %1244 = vmatprep.subr.mxu0 0.0
      %1245 = vmatpush1.msra.mxu0 %v1232
      %1246 = vmatprep.subr.mxu0 0.0
      %1247 = vmatpush1.msra.mxu0 %v1233
      %1248 = vmatprep.subr.mxu0 0.0
      %1249 = vmatpush1.msra.mxu0 %v1234
      %1250 = vmatprep.subr.mxu0 0.0
      %1251 = vmatpush1.msra.mxu0 %v1235
      %1252 = vmatprep.subr.mxu0 0.0
      %1253 = vmatpush1.msra.mxu0 %v1236
      %1254 = vmatprep.subr.mxu0 0.0
      %1255 = vmatpush1.msra.mxu0 %v1237
      %1256 = vmatprep.subr.mxu0 0.0
      %1257 = vmatpush1.msra.mxu0 %v1238
      %1258 = vmatprep.subr.mxu0 0.0
      %1259 = vmatpush1.msra.mxu0 %v1239
      %1260 = vmatprep.subr.mxu0 0.0
      %1261 = vmatpush1.msra.mxu0 %v1240
      %1262 = vmatprep.subr.mxu0 0.0
      %1263 = vmatpush1.msra.mxu0 %v1241
      %1264 = vmatprep.subr.mxu0 0.0
      %1265 = vmatpush1.msra.mxu0 %v1242
      %1266 = vmatprep.subr.mxu0 0.0
      %1267 = vmatpush1.msra.mxu0 %v1243
      %1268 = vmatprep.subr.mxu0 0.0
      %1269 = vmatpush1.msra.mxu0 0.0
      %1270 = vmatprep.subr.mxu0 0.0
      %1271 = vmatpush1.msra.mxu0 0.0
      %1272 = vmatprep.subr.mxu0 0.0
      %1273 = vmatpush1.msra.mxu0 0.0
      %1274 = vmatprep.subr.mxu0 0.0
      %1275 = vmatpush1.msra.mxu0 0.0
      %1276 = vmatprep.subr.mxu0 0.0
      %1277 = vmatpush1.msra.mxu0 0.0
      %1278 = vmatprep.subr.mxu0 0.0
      %1279 = vmatpush1.msra.mxu0 0.0
      %1280 = vmatprep.subr.mxu0 0.0
      %1281 = vmatpush1.msra.mxu0 0.0
      %1282 = vmatprep.subr.mxu0 0.0
      %1283 = vmatpush1.msra.mxu0 0.0
      %1284 = vmatprep.subr.mxu0 0.0
      %1285 = vmatpush1.msra.mxu0 0.0
      %1286 = vmatprep.subr.mxu0 0.0
      %1287 = vmatpush1.msra.mxu0 0.0
      %1288 = vmatprep.subr.mxu0 0.0
      %1289 = vmatpush1.msra.mxu0 0.0
      %1290 = vmatprep.subr.mxu0 0.0
      %1291 = vmatpush1.msra.mxu0 0.0
      %1292 = vmatprep.subr.mxu0 0.0
      %1293 = vmatpush1.msra.mxu0 0.0
      %1294 = vmatprep.subr.mxu0 0.0
      %1295 = vmatpush1.msra.mxu0 0.0
      %1296 = vmatprep.subr.mxu0 0.0
      %1297 = vmatpush1.msra.mxu0 0.0
      %1298 = vmatprep.subr.mxu0 0.0
      %1299 = vmatpush1.msra.mxu0 0.0
      %1300 = vmatprep.subr.mxu0 0.0
      %1301 = vmatpush1.msra.mxu0 0.0
      %1302 = vmatprep.subr.mxu0 0.0
      %1303 = vmatpush1.msra.mxu0 0.0
      %1304 = vmatprep.subr.mxu0 0.0
      %1305 = vmatpush1.msra.mxu0 0.0
      %1306 = vmatprep.subr.mxu0 0.0
      %1307 = vmatpush1.msra.mxu0 0.0
      %1308 = vmatprep.mubr.f32.mxu0 0.0
      %1309 = vmatmul.mubr.f32.gmra.mrb[0].mxu0 %v597
      %v1310 = vpop.f32.mrb[0].mxu0
      %v1311 = vadd.f32 0.0, %v1310
      %v1312 = vpop.f32.mrb[0].mxu0
      %1313 = vmatprep.mubr.f32.mxu0 0.0
      %1314 = vmatmul.mubr.f32.gmra.mrb[0].mxu0 %v600
      %v1315 = vpop.f32.mrb[0].mxu0
      %v1316 = vadd.f32 0.0, %v1315
      %v1317 = vpop.f32.mrb[0].mxu0
      %1318 = vdwg.mxu0
      %v1319 = vadd.s32 %v558, 72
      %vm1320 = vcmp.eq.s32.totalorder %v545, %v1319
      %vm1321 = vcmp.eq.s32.totalorder %v546, %v1319
      %vm1322 = vcmp.eq.s32.totalorder %v547, %v1319
      %vm1323 = vcmp.eq.s32.totalorder %v548, %v1319
      %vm1324 = vcmp.eq.s32.totalorder %v549, %v1319
      %vm1325 = vcmp.eq.s32.totalorder %v550, %v1319
      %vm1326 = vcmp.eq.s32.totalorder %v551, %v1319
      %vm1327 = vcmp.eq.s32.totalorder %v552, %v1319
      %vm1328 = vcmp.eq.s32.totalorder %v553, %v1319
      %vm1329 = vcmp.eq.s32.totalorder %v554, %v1319
      %vm1330 = vcmp.eq.s32.totalorder %v555, %v1319
      %vm1331 = vcmp.eq.s32.totalorder %v556, %v1319
      %v1332 = vsel %vm1320, 1, 0
      %v1333 = vsel %vm1321, 1, 0
      %v1334 = vsel %vm1322, 1, 0
      %v1335 = vsel %vm1323, 1, 0
      %v1336 = vsel %vm1324, 1, 0
      %v1337 = vsel %vm1325, 1, 0
      %v1338 = vsel %vm1326, 1, 0
      %v1339 = vsel %vm1327, 1, 0
      %v1340 = vsel %vm1328, 1, 0
      %v1341 = vsel %vm1329, 1, 0
      %v1342 = vsel %vm1330, 1, 0
      %v1343 = vsel %vm1331, 1, 0
      %v1344 = vcvt.s32.f32 %v1332
      %v1345 = vcvt.s32.f32 %v1333
      %v1346 = vcvt.s32.f32 %v1334
      %v1347 = vcvt.s32.f32 %v1335
      %v1348 = vcvt.s32.f32 %v1336
      %v1349 = vcvt.s32.f32 %v1337
      %v1350 = vcvt.s32.f32 %v1338
      %v1351 = vcvt.s32.f32 %v1339
      %v1352 = vcvt.s32.f32 %v1340
      %v1353 = vcvt.s32.f32 %v1341
      %v1354 = vcvt.s32.f32 %v1342
      %v1355 = vcvt.s32.f32 %v1343
      %1356 = vmatprep.subr.mxu0 0.0
      %1357 = vmatpush1.msra.mxu0 %v1344
      %1358 = vmatprep.subr.mxu0 0.0
      %1359 = vmatpush1.msra.mxu0 %v1345
      %1360 = vmatprep.subr.mxu0 0.0
      %1361 = vmatpush1.msra.mxu0 %v1346
      %1362 = vmatprep.subr.mxu0 0.0
      %1363 = vmatpush1.msra.mxu0 %v1347
      %1364 = vmatprep.subr.mxu0 0.0
      %1365 = vmatpush1.msra.mxu0 %v1348
      %1366 = vmatprep.subr.mxu0 0.0
      %1367 = vmatpush1.msra.mxu0 %v1349
      %1368 = vmatprep.subr.mxu0 0.0
      %1369 = vmatpush1.msra.mxu0 %v1350
      %1370 = vmatprep.subr.mxu0 0.0
      %1371 = vmatpush1.msra.mxu0 %v1351
      %1372 = vmatprep.subr.mxu0 0.0
      %1373 = vmatpush1.msra.mxu0 %v1352
      %1374 = vmatprep.subr.mxu0 0.0
      %1375 = vmatpush1.msra.mxu0 %v1353
      %1376 = vmatprep.subr.mxu0 0.0
      %1377 = vmatpush1.msra.mxu0 %v1354
      %1378 = vmatprep.subr.mxu0 0.0
      %1379 = vmatpush1.msra.mxu0 %v1355
      %1380 = vmatprep.subr.mxu0 0.0
      %1381 = vmatpush1.msra.mxu0 0.0
      %1382 = vmatprep.subr.mxu0 0.0
      %1383 = vmatpush1.msra.mxu0 0.0
      %1384 = vmatprep.subr.mxu0 0.0
      %1385 = vmatpush1.msra.mxu0 0.0
      %1386 = vmatprep.subr.mxu0 0.0
      %1387 = vmatpush1.msra.mxu0 0.0
      %1388 = vmatprep.subr.mxu0 0.0
      %1389 = vmatpush1.msra.mxu0 0.0
      %1390 = vmatprep.subr.mxu0 0.0
      %1391 = vmatpush1.msra.mxu0 0.0
      %1392 = vmatprep.subr.mxu0 0.0
      %1393 = vmatpush1.msra.mxu0 0.0
      %1394 = vmatprep.subr.mxu0 0.0
      %1395 = vmatpush1.msra.mxu0 0.0
      %1396 = vmatprep.subr.mxu0 0.0
      %1397 = vmatpush1.msra.mxu0 0.0
      %1398 = vmatprep.subr.mxu0 0.0
      %1399 = vmatpush1.msra.mxu0 0.0
      %1400 = vmatprep.subr.mxu0 0.0
      %1401 = vmatpush1.msra.mxu0 0.0
      %1402 = vmatprep.subr.mxu0 0.0
      %1403 = vmatpush1.msra.mxu0 0.0
      %1404 = vmatprep.subr.mxu0 0.0
      %1405 = vmatpush1.msra.mxu0 0.0
      %1406 = vmatprep.subr.mxu0 0.0
      %1407 = vmatpush1.msra.mxu0 0.0
      %1408 = vmatprep.subr.mxu0 0.0
      %1409 = vmatpush1.msra.mxu0 0.0
      %1410 = vmatprep.subr.mxu0 0.0
      %1411 = vmatpush1.msra.mxu0 0.0
      %1412 = vmatprep.subr.mxu0 0.0
      %1413 = vmatpush1.msra.mxu0 0.0
      %1414 = vmatprep.subr.mxu0 0.0
      %1415 = vmatpush1.msra.mxu0 0.0
      %1416 = vmatprep.subr.mxu0 0.0
      %1417 = vmatpush1.msra.mxu0 0.0
      %1418 = vmatprep.subr.mxu0 0.0
      %1419 = vmatpush1.msra.mxu0 0.0
      %1420 = vmatprep.mubr.f32.mxu0 0.0
      %1421 = vmatmul.mubr.f32.gmra.mrb[0].mxu0 %v597
      %v1422 = vpop.f32.mrb[0].mxu0
      %v1423 = vadd.f32 0.0, %v1422
      %v1424 = vpop.f32.mrb[0].mxu0
      %1425 = vmatprep.mubr.f32.mxu0 0.0
      %1426 = vmatmul.mubr.f32.gmra.mrb[0].mxu0 %v600
      %v1427 = vpop.f32.mrb[0].mxu0
      %v1428 = vadd.f32 0.0, %v1427
      %v1429 = vpop.f32.mrb[0].mxu0
      %1430 = vdwg.mxu0
      %v1432 = vsel %vm901, %v1199, 0
      %v1435 = vsel %vm901, %v1204, 0
      %v1438 = vsel %vm901, %v1311, 0
      %v1441 = vsel %vm901, %v1316, 0
      %1443 = vmatprep.subr.mxu0 0.0
      %1444 = vmatpush1.xpose.msra.mxu0 %v1438
      %1445 = vmatprep.subr.mxu0 0.0
      %1446 = vmatpush1.xpose.msra.mxu0 %v1441
      %1447 = vmatprep.subr.mxu0 0.0
      %1448 = vmatpush1.xpose.msra.mxu0 0.0
      %1449 = vmatprep.subr.mxu0 0.0
      %1450 = vmatpush1.xpose.msra.mxu0 0.0
      %1451 = vmatprep.subr.mxu0 0.0
      %1452 = vmatpush1.xpose.msra.mxu0 0.0
      %1453 = vmatprep.subr.mxu0 0.0
      %1454 = vmatpush1.xpose.msra.mxu0 0.0
      %1455 = vmatprep.subr.mxu0 0.0
      %1456 = vmatpush1.xpose.msra.mxu0 0.0
      %1457 = vmatprep.subr.mxu0 0.0
      %1458 = vmatpush1.xpose.msra.mxu0 0.0
      %1459 = vmatprep.subr.mxu0 0.0
      %1460 = vmatpush1.xpose.msra.mxu0 0.0
      %1461 = vmatprep.subr.mxu0 0.0
      %1462 = vmatpush1.xpose.msra.mxu0 0.0
      %1463 = vmatprep.subr.mxu0 0.0
      %1464 = vmatpush1.xpose.msra.mxu0 0.0
      %1465 = vmatprep.subr.mxu0 0.0
      %1466 = vmatpush1.xpose.msra.mxu0 0.0
      %1467 = vmatprep.subr.mxu0 0.0
      %1468 = vmatpush1.xpose.msra.mxu0 0.0
      %1469 = vmatprep.subr.mxu0 0.0
      %1470 = vmatpush1.xpose.msra.mxu0 0.0
      %1471 = vmatprep.subr.mxu0 0.0
      %1472 = vmatpush1.xpose.msra.mxu0 0.0
      %1473 = vmatprep.subr.mxu0 0.0
      %1474 = vmatpush1.xpose.msra.mxu0 0.0
      %1475 = vmatprep.subr.mxu0 0.0
      %1476 = vmatpush1.xpose.msra.mxu0 0.0
      %1477 = vmatprep.subr.mxu0 0.0
      %1478 = vmatpush1.xpose.msra.mxu0 0.0
      %1479 = vmatprep.subr.mxu0 0.0
      %1480 = vmatpush1.xpose.msra.mxu0 0.0
      %1481 = vmatprep.subr.mxu0 0.0
      %1482 = vmatpush1.xpose.msra.mxu0 0.0
      %1483 = vmatprep.subr.mxu0 0.0
      %1484 = vmatpush1.xpose.msra.mxu0 0.0
      %1485 = vmatprep.subr.mxu0 0.0
      %1486 = vmatpush1.xpose.msra.mxu0 0.0
      %1487 = vmatprep.subr.mxu0 0.0
      %1488 = vmatpush1.xpose.msra.mxu0 0.0
      %1489 = vmatprep.subr.mxu0 0.0
      %1490 = vmatpush1.xpose.msra.mxu0 0.0
      %1491 = vmatprep.subr.mxu0 0.0
      %1492 = vmatpush1.xpose.msra.mxu0 0.0
      %1493 = vmatprep.subr.mxu0 0.0
      %1494 = vmatpush1.xpose.msra.mxu0 0.0
      %1495 = vmatprep.subr.mxu0 0.0
      %1496 = vmatpush1.xpose.msra.mxu0 0.0
      %1497 = vmatprep.subr.mxu0 0.0
      %1498 = vmatpush1.xpose.msra.mxu0 0.0
      %1499 = vmatprep.subr.mxu0 0.0
      %1500 = vmatpush1.xpose.msra.mxu0 0.0
      %1501 = vmatprep.subr.mxu0 0.0
      %1502 = vmatpush1.xpose.msra.mxu0 0.0
      %1503 = vmatprep.subr.mxu0 0.0
      %1504 = vmatpush1.xpose.msra.mxu0 0.0
      %1505 = vmatprep.subr.mxu0 0.0
      %1506 = vmatpush1.xpose.msra.mxu0 0.0
      %1507 = vmatprep.mubr.f32.mxu0 0.0
      %1508 = vmatmul.mubr.f32.gmra.mrb[0].mxu0 %v1432
      %v1509 = vpop.f32.mrb[0].mxu0
      %v1510 = vadd.f32 0.0, %v1509
      %v1511 = vpop.f32.mrb[0].mxu0
      %1512 = vmatprep.mubr.f32.mxu0 0.0
      %1513 = vmatmul.mubr.f32.gmra.mrb[0].mxu0 %v1435
      %v1514 = vpop.f32.mrb[0].mxu0
      %v1515 = vadd.f32 0.0, %v1514
      %v1516 = vpop.f32.mrb[0].mxu0
      %1517 = vdwg.mxu0
      %v1518 = vmul.f32 %v1510, 0.35355338
      %v1519 = vmul.f32 %v1515, 0.35355338
      %v1520 = vsel %vm991, %v1518, -inf
      %1521 = vmax.xlane.f32.xlu0 %v1520
      %v1522 = vpop.xlane.xlu0 %1521
      %v1523 = vsel %vm991, %v1519, -inf
      %1524 = vmax.xlane.f32.xlu0 %v1523
      %v1525 = vpop.xlane.xlu0 %1524
      %v1526 = vsub.f32 %v1518, %v1522
      %v1527 = vsub.f32 %v1519, %v1525
      %v1528 = vmul.f32 %v1526, 1.442695
      %v1529 = vpow.pop %v1528
      %v1530 = vmul.f32 %v1527, 1.442695
      %v1531 = vpow.pop %v1530
      %v1532 = vsel %vm991, %v1529, 0.0
      %1533 = vadd.xlane.f32.xlu0 %v1532
      %v1534 = vpop.xlane.xlu0 %1533
      %v1535 = vsel %vm991, %v1531, 0.0
      %1536 = vadd.xlane.f32.xlu0 %v1535
      %v1537 = vpop.xlane.xlu0 %1536
      %v1538 = vrcp.pop %v1534
      %v1539 = vrcp.pop %v1537
      %v1540 = vmul.f32 %v1529, %v1538
      %v1541 = vmul.f32 %v1531, %v1539
      %v1543 = vsel %vm991, %v1540, 0
      %v1546 = vsel %vm991, %v1541, 0
      %1548 = vmatprep.subr.mxu0 0.0
      %1549 = vmatpush1.msra.mxu0 %v1423
      %1550 = vmatprep.subr.mxu0 0.0
      %1551 = vmatpush1.msra.mxu0 %v1428
      %1552 = vmatprep.subr.mxu0 0.0
      %1553 = vmatpush1.msra.mxu0 0.0
      %1554 = vmatprep.subr.mxu0 0.0
      %1555 = vmatpush1.msra.mxu0 0.0
      %1556 = vmatprep.subr.mxu0 0.0
      %1557 = vmatpush1.msra.mxu0 0.0
      %1558 = vmatprep.subr.mxu0 0.0
      %1559 = vmatpush1.msra.mxu0 0.0
      %1560 = vmatprep.subr.mxu0 0.0
      %1561 = vmatpush1.msra.mxu0 0.0
      %1562 = vmatprep.subr.mxu0 0.0
      %1563 = vmatpush1.msra.mxu0 0.0
      %1564 = vmatprep.subr.mxu0 0.0
      %1565 = vmatpush1.msra.mxu0 0.0
      %1566 = vmatprep.subr.mxu0 0.0
      %1567 = vmatpush1.msra.mxu0 0.0
      %1568 = vmatprep.subr.mxu0 0.0
      %1569 = vmatpush1.msra.mxu0 0.0
      %1570 = vmatprep.subr.mxu0 0.0
      %1571 = vmatpush1.msra.mxu0 0.0
      %1572 = vmatprep.subr.mxu0 0.0
      %1573 = vmatpush1.msra.mxu0 0.0
      %1574 = vmatprep.subr.mxu0 0.0
      %1575 = vmatpush1.msra.mxu0 0.0
      %1576 = vmatprep.subr.mxu0 0.0
      %1577 = vmatpush1.msra.mxu0 0.0
      %1578 = vmatprep.subr.mxu0 0.0
      %1579 = vmatpush1.msra.mxu0 0.0
      %1580 = vmatprep.subr.mxu0 0.0
      %1581 = vmatpush1.msra.mxu0 0.0
      %1582 = vmatprep.subr.mxu0 0.0
      %1583 = vmatpush1.msra.mxu0 0.0
      %1584 = vmatprep.subr.mxu0 0.0
      %1585 = vmatpush1.msra.mxu0 0.0
      %1586 = vmatprep.subr.mxu0 0.0
      %1587 = vmatpush1.msra.mxu0 0.0
      %1588 = vmatprep.subr.mxu0 0.0
      %1589 = vmatpush1.msra.mxu0 0.0
      %1590 = vmatprep.subr.mxu0 0.0
      %1591 = vmatpush1.msra.mxu0 0.0
      %1592 = vmatprep.subr.mxu0 0.0
      %1593 = vmatpush1.msra.mxu0 0.0
      %1594 = vmatprep.subr.mxu0 0.0
      %1595 = vmatpush1.msra.mxu0 0.0
      %1596 = vmatprep.subr.mxu0 0.0
      %1597 = vmatpush1.msra.mxu0 0.0
      %1598 = vmatprep.subr.mxu0 0.0
      %1599 = vmatpush1.msra.mxu0 0.0
      %1600 = vmatprep.subr.mxu0 0.0
      %1601 = vmatpush1.msra.mxu0 0.0
      %1602 = vmatprep.subr.mxu0 0.0
      %1603 = vmatpush1.msra.mxu0 0.0
      %1604 = vmatprep.subr.mxu0 0.0
      %1605 = vmatpush1.msra.mxu0 0.0
      %1606 = vmatprep.subr.mxu0 0.0
      %1607 = vmatpush1.msra.mxu0 0.0
      %1608 = vmatprep.subr.mxu0 0.0
      %1609 = vmatpush1.msra.mxu0 0.0
      %1610 = vmatprep.subr.mxu0 0.0
      %1611 = vmatpush1.msra.mxu0 0.0
      %1612 = vmatprep.mubr.f32.mxu0 0.0
      %1613 = vmatmul.mubr.f32.gmra.mrb[0].mxu0 %v1543
      %v1614 = vpop.f32.mrb[0].mxu0
      %v1615 = vadd.f32 0.0, %v1614
      %v1616 = vpop.f32.mrb[0].mxu0
      %1617 = vmatprep.mubr.f32.mxu0 0.0
      %1618 = vmatmul.mubr.f32.gmra.mrb[0].mxu0 %v1546
      %v1619 = vpop.f32.mrb[0].mxu0
      %v1620 = vadd.f32 0.0, %v1619
      %v1621 = vpop.f32.mrb[0].mxu0
      %1622 = vdwg.mxu0
      %v1624 = vsel %vm901, %v1615, 0
      %v1627 = vsel %vm901, %v1620, 0
      %1629 = vmatprep.subr.mxu0 0.0
      %1630 = vmatpush1.msra.mxu0 %v450
      %1631 = vmatprep.subr.mxu0 0.0
      %1632 = vmatpush1.msra.mxu0 0.0
      %1633 = vmatprep.subr.mxu0 0.0
      %1634 = vmatpush1.msra.mxu0 0.0
      %1635 = vmatprep.subr.mxu0 0.0
      %1636 = vmatpush1.msra.mxu0 0.0
      %1637 = vmatprep.subr.mxu0 0.0
      %1638 = vmatpush1.msra.mxu0 0.0
      %1639 = vmatprep.subr.mxu0 0.0
      %1640 = vmatpush1.msra.mxu0 0.0
      %1641 = vmatprep.subr.mxu0 0.0
      %1642 = vmatpush1.msra.mxu0 0.0
      %1643 = vmatprep.subr.mxu0 0.0
      %1644 = vmatpush1.msra.mxu0 0.0
      %1645 = vmatprep.subr.mxu0 0.0
      %1646 = vmatpush1.msra.mxu0 0.0
      %1647 = vmatprep.subr.mxu0 0.0
      %1648 = vmatpush1.msra.mxu0 0.0
      %1649 = vmatprep.subr.mxu0 0.0
      %1650 = vmatpush1.msra.mxu0 0.0
      %1651 = vmatprep.subr.mxu0 0.0
      %1652 = vmatpush1.msra.mxu0 0.0
      %1653 = vmatprep.subr.mxu0 0.0
      %1654 = vmatpush1.msra.mxu0 0.0
      %1655 = vmatprep.subr.mxu0 0.0
      %1656 = vmatpush1.msra.mxu0 0.0
      %1657 = vmatprep.subr.mxu0 0.0
      %1658 = vmatpush1.msra.mxu0 0.0
      %1659 = vmatprep.subr.mxu0 0.0
      %1660 = vmatpush1.msra.mxu0 0.0
      %1661 = vmatprep.subr.mxu0 0.0
      %1662 = vmatpush1.msra.mxu0 0.0
      %1663 = vmatprep.subr.mxu0 0.0
      %1664 = vmatpush1.msra.mxu0 0.0
      %1665 = vmatprep.subr.mxu0 0.0
      %1666 = vmatpush1.msra.mxu0 0.0
      %1667 = vmatprep.subr.mxu0 0.0
      %1668 = vmatpush1.msra.mxu0 0.0
      %1669 = vmatprep.subr.mxu0 0.0
      %1670 = vmatpush1.msra.mxu0 0.0
      %1671 = vmatprep.subr.mxu0 0.0
      %1672 = vmatpush1.msra.mxu0 0.0
      %1673 = vmatprep.subr.mxu0 0.0
      %1674 = vmatpush1.msra.mxu0 0.0
      %1675 = vmatprep.subr.mxu0 0.0
      %1676 = vmatpush1.msra.mxu0 0.0
      %1677 = vmatprep.subr.mxu0 0.0
      %1678 = vmatpush1.msra.mxu0 0.0
      %1679 = vmatprep.subr.mxu0 0.0
      %1680 = vmatpush1.msra.mxu0 0.0
      %1681 = vmatprep.subr.mxu0 0.0
      %1682 = vmatpush1.msra.mxu0 0.0
      %1683 = vmatprep.subr.mxu0 0.0
      %1684 = vmatpush1.msra.mxu0 0.0
      %1685 = vmatprep.subr.mxu0 0.0
      %1686 = vmatpush1.msra.mxu0 0.0
      %1687 = vmatprep.subr.mxu0 0.0
      %1688 = vmatpush1.msra.mxu0 0.0
      %1689 = vmatprep.subr.mxu0 0.0
      %1690 = vmatpush1.msra.mxu0 0.0
      %1691 = vmatprep.subr.mxu0 0.0
      %1692 = vmatpush1.msra.mxu0 0.0
      %1693 = vmatprep.mubr.f32.mxu0 0.0
      %1694 = vmatmul.mubr.f32.gmra.mrb[0].mxu0 %v1624
      %v1695 = vpop.f32.mrb[0].mxu0
      %v1696 = vadd.f32 0.0, %v1695
      %v1697 = vpop.f32.mrb[0].mxu0
      %1698 = vmatprep.mubr.f32.mxu0 0.0
      %1699 = vmatmul.mubr.f32.gmra.mrb[0].mxu0 %v1627
      %v1700 = vpop.f32.mrb[0].mxu0
      %v1701 = vadd.f32 0.0, %v1700
      %v1702 = vpop.f32.mrb[0].mxu0
      %1703 = vdwg.mxu0
      %v1705 = vsel %vm901, %v1087, 0
      %v1708 = vsel %vm901, %v1092, 0
      %1710 = vmatprep.subr.mxu0 0.0
      %1711 = vmatpush1.msra.mxu0 %v449
      %1712 = vmatprep.subr.mxu0 0.0
      %1713 = vmatpush1.msra.mxu0 0.0
      %1714 = vmatprep.subr.mxu0 0.0
      %1715 = vmatpush1.msra.mxu0 0.0
      %1716 = vmatprep.subr.mxu0 0.0
      %1717 = vmatpush1.msra.mxu0 0.0
      %1718 = vmatprep.subr.mxu0 0.0
      %1719 = vmatpush1.msra.mxu0 0.0
      %1720 = vmatprep.subr.mxu0 0.0
      %1721 = vmatpush1.msra.mxu0 0.0
      %1722 = vmatprep.subr.mxu0 0.0
      %1723 = vmatpush1.msra.mxu0 0.0
      %1724 = vmatprep.subr.mxu0 0.0
      %1725 = vmatpush1.msra.mxu0 0.0
      %1726 = vmatprep.subr.mxu0 0.0
      %1727 = vmatpush1.msra.mxu0 0.0
      %1728 = vmatprep.subr.mxu0 0.0
      %1729 = vmatpush1.msra.mxu0 0.0
      %1730 = vmatprep.subr.mxu0 0.0
      %1731 = vmatpush1.msra.mxu0 0.0
      %1732 = vmatprep.subr.mxu0 0.0
      %1733 = vmatpush1.msra.mxu0 0.0
      %1734 = vmatprep.subr.mxu0 0.0
      %1735 = vmatpush1.msra.mxu0 0.0
      %1736 = vmatprep.subr.mxu0 0.0
      %1737 = vmatpush1.msra.mxu0 0.0
      %1738 = vmatprep.subr.mxu0 0.0
      %1739 = vmatpush1.msra.mxu0 0.0
      %1740 = vmatprep.subr.mxu0 0.0
      %1741 = vmatpush1.msra.mxu0 0.0
      %1742 = vmatprep.subr.mxu0 0.0
      %1743 = vmatpush1.msra.mxu0 0.0
      %1744 = vmatprep.subr.mxu0 0.0
      %1745 = vmatpush1.msra.mxu0 0.0
      %1746 = vmatprep.subr.mxu0 0.0
      %1747 = vmatpush1.msra.mxu0 0.0
      %1748 = vmatprep.subr.mxu0 0.0
      %1749 = vmatpush1.msra.mxu0 0.0
      %1750 = vmatprep.subr.mxu0 0.0
      %1751 = vmatpush1.msra.mxu0 0.0
      %1752 = vmatprep.subr.mxu0 0.0
      %1753 = vmatpush1.msra.mxu0 0.0
      %1754 = vmatprep.subr.mxu0 0.0
      %1755 = vmatpush1.msra.mxu0 0.0
      %1756 = vmatprep.subr.mxu0 0.0
      %1757 = vmatpush1.msra.mxu0 0.0
      %1758 = vmatprep.subr.mxu0 0.0
      %1759 = vmatpush1.msra.mxu0 0.0
      %1760 = vmatprep.subr.mxu0 0.0
      %1761 = vmatpush1.msra.mxu0 0.0
      %1762 = vmatprep.subr.mxu0 0.0
      %1763 = vmatpush1.msra.mxu0 0.0
      %1764 = vmatprep.subr.mxu0 0.0
      %1765 = vmatpush1.msra.mxu0 0.0
      %1766 = vmatprep.subr.mxu0 0.0
      %1767 = vmatpush1.msra.mxu0 0.0
      %1768 = vmatprep.subr.mxu0 0.0
      %1769 = vmatpush1.msra.mxu0 0.0
      %1770 = vmatprep.subr.mxu0 0.0
      %1771 = vmatpush1.msra.mxu0 0.0
      %1772 = vmatprep.subr.mxu0 0.0
      %1773 = vmatpush1.msra.mxu0 0.0
      %1774 = vmatprep.mubr.f32.mxu0 0.0
      %1775 = vmatmul.mubr.f32.gmra.mrb[0].mxu0 %v1705
      %v1776 = vpop.f32.mrb[0].mxu0
      %v1777 = vadd.f32 %v1696, %v1776
      %v1778 = vpop.f32.mrb[0].mxu0
      %1779 = vmatprep.mubr.f32.mxu0 0.0
      %1780 = vmatmul.mubr.f32.gmra.mrb[0].mxu0 %v1708
      %v1781 = vpop.f32.mrb[0].mxu0
      %v1782 = vadd.f32 %v1701, %v1781
      %v1783 = vpop.f32.mrb[0].mxu0
      %1784 = vdwg.mxu0
      %v1785 = vadd.s32 %v558, 16
      %vm1786 = vcmp.eq.s32.totalorder %v545, %v1785
      %vm1787 = vcmp.eq.s32.totalorder %v546, %v1785
      %vm1788 = vcmp.eq.s32.totalorder %v547, %v1785
      %vm1789 = vcmp.eq.s32.totalorder %v548, %v1785
      %vm1790 = vcmp.eq.s32.totalorder %v549, %v1785
      %vm1791 = vcmp.eq.s32.totalorder %v550, %v1785
      %vm1792 = vcmp.eq.s32.totalorder %v551, %v1785
      %vm1793 = vcmp.eq.s32.totalorder %v552, %v1785
      %vm1794 = vcmp.eq.s32.totalorder %v553, %v1785
      %vm1795 = vcmp.eq.s32.totalorder %v554, %v1785
      %vm1796 = vcmp.eq.s32.totalorder %v555, %v1785
      %vm1797 = vcmp.eq.s32.totalorder %v556, %v1785
      %v1798 = vsel %vm1786, 1, 0
      %v1799 = vsel %vm1787, 1, 0
      %v1800 = vsel %vm1788, 1, 0
      %v1801 = vsel %vm1789, 1, 0
      %v1802 = vsel %vm1790, 1, 0
      %v1803 = vsel %vm1791, 1, 0
      %v1804 = vsel %vm1792, 1, 0
      %v1805 = vsel %vm1793, 1, 0
      %v1806 = vsel %vm1794, 1, 0
      %v1807 = vsel %vm1795, 1, 0
      %v1808 = vsel %vm1796, 1, 0
      %v1809 = vsel %vm1797, 1, 0
      %v1810 = vcvt.s32.f32 %v1798
      %v1811 = vcvt.s32.f32 %v1799
      %v1812 = vcvt.s32.f32 %v1800
      %v1813 = vcvt.s32.f32 %v1801
      %v1814 = vcvt.s32.f32 %v1802
      %v1815 = vcvt.s32.f32 %v1803
      %v1816 = vcvt.s32.f32 %v1804
      %v1817 = vcvt.s32.f32 %v1805
      %v1818 = vcvt.s32.f32 %v1806
      %v1819 = vcvt.s32.f32 %v1807
      %v1820 = vcvt.s32.f32 %v1808
      %v1821 = vcvt.s32.f32 %v1809
      %1822 = vmatprep.subr.mxu0 0.0
      %1823 = vmatpush1.msra.mxu0 %v1810
      %1824 = vmatprep.subr.mxu0 0.0
      %1825 = vmatpush1.msra.mxu0 %v1811
      %1826 = vmatprep.subr.mxu0 0.0
      %1827 = vmatpush1.msra.mxu0 %v1812
      %1828 = vmatprep.subr.mxu0 0.0
      %1829 = vmatpush1.msra.mxu0 %v1813
      %1830 = vmatprep.subr.mxu0 0.0
      %1831 = vmatpush1.msra.mxu0 %v1814
      %1832 = vmatprep.subr.mxu0 0.0
      %1833 = vmatpush1.msra.mxu0 %v1815
      %1834 = vmatprep.subr.mxu0 0.0
      %1835 = vmatpush1.msra.mxu0 %v1816
      %1836 = vmatprep.subr.mxu0 0.0
      %1837 = vmatpush1.msra.mxu0 %v1817
      %1838 = vmatprep.subr.mxu0 0.0
      %1839 = vmatpush1.msra.mxu0 %v1818
      %1840 = vmatprep.subr.mxu0 0.0
      %1841 = vmatpush1.msra.mxu0 %v1819
      %1842 = vmatprep.subr.mxu0 0.0
      %1843 = vmatpush1.msra.mxu0 %v1820
      %1844 = vmatprep.subr.mxu0 0.0
      %1845 = vmatpush1.msra.mxu0 %v1821
      %1846 = vmatprep.subr.mxu0 0.0
      %1847 = vmatpush1.msra.mxu0 0.0
      %1848 = vmatprep.subr.mxu0 0.0
      %1849 = vmatpush1.msra.mxu0 0.0
      %1850 = vmatprep.subr.mxu0 0.0
      %1851 = vmatpush1.msra.mxu0 0.0
      %1852 = vmatprep.subr.mxu0 0.0
      %1853 = vmatpush1.msra.mxu0 0.0
      %1854 = vmatprep.subr.mxu0 0.0
      %1855 = vmatpush1.msra.mxu0 0.0
      %1856 = vmatprep.subr.mxu0 0.0
      %1857 = vmatpush1.msra.mxu0 0.0
      %1858 = vmatprep.subr.mxu0 0.0
      %1859 = vmatpush1.msra.mxu0 0.0
      %1860 = vmatprep.subr.mxu0 0.0
      %1861 = vmatpush1.msra.mxu0 0.0
      %1862 = vmatprep.subr.mxu0 0.0
      %1863 = vmatpush1.msra.mxu0 0.0
      %1864 = vmatprep.subr.mxu0 0.0
      %1865 = vmatpush1.msra.mxu0 0.0
      %1866 = vmatprep.subr.mxu0 0.0
      %1867 = vmatpush1.msra.mxu0 0.0
      %1868 = vmatprep.subr.mxu0 0.0
      %1869 = vmatpush1.msra.mxu0 0.0
      %1870 = vmatprep.subr.mxu0 0.0
      %1871 = vmatpush1.msra.mxu0 0.0
      %1872 = vmatprep.subr.mxu0 0.0
      %1873 = vmatpush1.msra.mxu0 0.0
      %1874 = vmatprep.subr.mxu0 0.0
      %1875 = vmatpush1.msra.mxu0 0.0
      %1876 = vmatprep.subr.mxu0 0.0
      %1877 = vmatpush1.msra.mxu0 0.0
      %1878 = vmatprep.subr.mxu0 0.0
      %1879 = vmatpush1.msra.mxu0 0.0
      %1880 = vmatprep.subr.mxu0 0.0
      %1881 = vmatpush1.msra.mxu0 0.0
      %1882 = vmatprep.subr.mxu0 0.0
      %1883 = vmatpush1.msra.mxu0 0.0
      %1884 = vmatprep.subr.mxu0 0.0
      %1885 = vmatpush1.msra.mxu0 0.0
      %1886 = vmatprep.mubr.f32.mxu0 0.0
      %1887 = vmatmul.mubr.f32.gmra.mrb[0].mxu0 %v597
      %v1888 = vpop.f32.mrb[0].mxu0
      %v1889 = vadd.f32 0.0, %v1888
      %v1890 = vpop.f32.mrb[0].mxu0
      %1891 = vmatprep.mubr.f32.mxu0 0.0
      %1892 = vmatmul.mubr.f32.gmra.mrb[0].mxu0 %v600
      %v1893 = vpop.f32.mrb[0].mxu0
      %v1894 = vadd.f32 0.0, %v1893
      %v1895 = vpop.f32.mrb[0].mxu0
      %1896 = vdwg.mxu0
      %v1897 = vadd.s32 %v558, 48
      %vm1898 = vcmp.eq.s32.totalorder %v545, %v1897
      %vm1899 = vcmp.eq.s32.totalorder %v546, %v1897
      %vm1900 = vcmp.eq.s32.totalorder %v547, %v1897
      %vm1901 = vcmp.eq.s32.totalorder %v548, %v1897
      %vm1902 = vcmp.eq.s32.totalorder %v549, %v1897
      %vm1903 = vcmp.eq.s32.totalorder %v550, %v1897
      %vm1904 = vcmp.eq.s32.totalorder %v551, %v1897
      %vm1905 = vcmp.eq.s32.totalorder %v552, %v1897
      %vm1906 = vcmp.eq.s32.totalorder %v553, %v1897
      %vm1907 = vcmp.eq.s32.totalorder %v554, %v1897
      %vm1908 = vcmp.eq.s32.totalorder %v555, %v1897
      %vm1909 = vcmp.eq.s32.totalorder %v556, %v1897
      %v1910 = vsel %vm1898, 1, 0
      %v1911 = vsel %vm1899, 1, 0
      %v1912 = vsel %vm1900, 1, 0
      %v1913 = vsel %vm1901, 1, 0
      %v1914 = vsel %vm1902, 1, 0
      %v1915 = vsel %vm1903, 1, 0
      %v1916 = vsel %vm1904, 1, 0
      %v1917 = vsel %vm1905, 1, 0
      %v1918 = vsel %vm1906, 1, 0
      %v1919 = vsel %vm1907, 1, 0
      %v1920 = vsel %vm1908, 1, 0
      %v1921 = vsel %vm1909, 1, 0
      %v1922 = vcvt.s32.f32 %v1910
      %v1923 = vcvt.s32.f32 %v1911
      %v1924 = vcvt.s32.f32 %v1912
      %v1925 = vcvt.s32.f32 %v1913
      %v1926 = vcvt.s32.f32 %v1914
      %v1927 = vcvt.s32.f32 %v1915
      %v1928 = vcvt.s32.f32 %v1916
      %v1929 = vcvt.s32.f32 %v1917
      %v1930 = vcvt.s32.f32 %v1918
      %v1931 = vcvt.s32.f32 %v1919
      %v1932 = vcvt.s32.f32 %v1920
      %v1933 = vcvt.s32.f32 %v1921
      %1934 = vmatprep.subr.mxu0 0.0
      %1935 = vmatpush1.msra.mxu0 %v1922
      %1936 = vmatprep.subr.mxu0 0.0
      %1937 = vmatpush1.msra.mxu0 %v1923
      %1938 = vmatprep.subr.mxu0 0.0
      %1939 = vmatpush1.msra.mxu0 %v1924
      %1940 = vmatprep.subr.mxu0 0.0
      %1941 = vmatpush1.msra.mxu0 %v1925
      %1942 = vmatprep.subr.mxu0 0.0
      %1943 = vmatpush1.msra.mxu0 %v1926
      %1944 = vmatprep.subr.mxu0 0.0
      %1945 = vmatpush1.msra.mxu0 %v1927
      %1946 = vmatprep.subr.mxu0 0.0
      %1947 = vmatpush1.msra.mxu0 %v1928
      %1948 = vmatprep.subr.mxu0 0.0
      %1949 = vmatpush1.msra.mxu0 %v1929
      %1950 = vmatprep.subr.mxu0 0.0
      %1951 = vmatpush1.msra.mxu0 %v1930
      %1952 = vmatprep.subr.mxu0 0.0
      %1953 = vmatpush1.msra.mxu0 %v1931
      %1954 = vmatprep.subr.mxu0 0.0
      %1955 = vmatpush1.msra.mxu0 %v1932
      %1956 = vmatprep.subr.mxu0 0.0
      %1957 = vmatpush1.msra.mxu0 %v1933
      %1958 = vmatprep.subr.mxu0 0.0
      %1959 = vmatpush1.msra.mxu0 0.0
      %1960 = vmatprep.subr.mxu0 0.0
      %1961 = vmatpush1.msra.mxu0 0.0
      %1962 = vmatprep.subr.mxu0 0.0
      %1963 = vmatpush1.msra.mxu0 0.0
      %1964 = vmatprep.subr.mxu0 0.0
      %1965 = vmatpush1.msra.mxu0 0.0
      %1966 = vmatprep.subr.mxu0 0.0
      %1967 = vmatpush1.msra.mxu0 0.0
      %1968 = vmatprep.subr.mxu0 0.0
      %1969 = vmatpush1.msra.mxu0 0.0
      %1970 = vmatprep.subr.mxu0 0.0
      %1971 = vmatpush1.msra.mxu0 0.0
      %1972 = vmatprep.subr.mxu0 0.0
      %1973 = vmatpush1.msra.mxu0 0.0
      %1974 = vmatprep.subr.mxu0 0.0
      %1975 = vmatpush1.msra.mxu0 0.0
      %1976 = vmatprep.subr.mxu0 0.0
      %1977 = vmatpush1.msra.mxu0 0.0
      %1978 = vmatprep.subr.mxu0 0.0
      %1979 = vmatpush1.msra.mxu0 0.0
      %1980 = vmatprep.subr.mxu0 0.0
      %1981 = vmatpush1.msra.mxu0 0.0
      %1982 = vmatprep.subr.mxu0 0.0
      %1983 = vmatpush1.msra.mxu0 0.0
      %1984 = vmatprep.subr.mxu0 0.0
      %1985 = vmatpush1.msra.mxu0 0.0
      %1986 = vmatprep.subr.mxu0 0.0
      %1987 = vmatpush1.msra.mxu0 0.0
      %1988 = vmatprep.subr.mxu0 0.0
      %1989 = vmatpush1.msra.mxu0 0.0
      %1990 = vmatprep.subr.mxu0 0.0
      %1991 = vmatpush1.msra.mxu0 0.0
      %1992 = vmatprep.subr.mxu0 0.0
      %1993 = vmatpush1.msra.mxu0 0.0
      %1994 = vmatprep.subr.mxu0 0.0
      %1995 = vmatpush1.msra.mxu0 0.0
      %1996 = vmatprep.subr.mxu0 0.0
      %1997 = vmatpush1.msra.mxu0 0.0
      %1998 = vmatprep.mubr.f32.mxu0 0.0
      %1999 = vmatmul.mubr.f32.gmra.mrb[0].mxu0 %v597
      %v2000 = vpop.f32.mrb[0].mxu0
      %v2001 = vadd.f32 0.0, %v2000
      %v2002 = vpop.f32.mrb[0].mxu0
      %2003 = vmatprep.mubr.f32.mxu0 0.0
      %2004 = vmatmul.mubr.f32.gmra.mrb[0].mxu0 %v600
      %v2005 = vpop.f32.mrb[0].mxu0
      %v2006 = vadd.f32 0.0, %v2005
      %v2007 = vpop.f32.mrb[0].mxu0
      %2008 = vdwg.mxu0
      %v2009 = vadd.s32 %v558, 80
      %vm2010 = vcmp.eq.s32.totalorder %v545, %v2009
      %vm2011 = vcmp.eq.s32.totalorder %v546, %v2009
      %vm2012 = vcmp.eq.s32.totalorder %v547, %v2009
      %vm2013 = vcmp.eq.s32.totalorder %v548, %v2009
      %vm2014 = vcmp.eq.s32.totalorder %v549, %v2009
      %vm2015 = vcmp.eq.s32.totalorder %v550, %v2009
      %vm2016 = vcmp.eq.s32.totalorder %v551, %v2009
      %vm2017 = vcmp.eq.s32.totalorder %v552, %v2009
      %vm2018 = vcmp.eq.s32.totalorder %v553, %v2009
      %vm2019 = vcmp.eq.s32.totalorder %v554, %v2009
      %vm2020 = vcmp.eq.s32.totalorder %v555, %v2009
      %vm2021 = vcmp.eq.s32.totalorder %v556, %v2009
      %v2022 = vsel %vm2010, 1, 0
      %v2023 = vsel %vm2011, 1, 0
      %v2024 = vsel %vm2012, 1, 0
      %v2025 = vsel %vm2013, 1, 0
      %v2026 = vsel %vm2014, 1, 0
      %v2027 = vsel %vm2015, 1, 0
      %v2028 = vsel %vm2016, 1, 0
      %v2029 = vsel %vm2017, 1, 0
      %v2030 = vsel %vm2018, 1, 0
      %v2031 = vsel %vm2019, 1, 0
      %v2032 = vsel %vm2020, 1, 0
      %v2033 = vsel %vm2021, 1, 0
      %v2034 = vcvt.s32.f32 %v2022
      %v2035 = vcvt.s32.f32 %v2023
      %v2036 = vcvt.s32.f32 %v2024
      %v2037 = vcvt.s32.f32 %v2025
      %v2038 = vcvt.s32.f32 %v2026
      %v2039 = vcvt.s32.f32 %v2027
      %v2040 = vcvt.s32.f32 %v2028
      %v2041 = vcvt.s32.f32 %v2029
      %v2042 = vcvt.s32.f32 %v2030
      %v2043 = vcvt.s32.f32 %v2031
      %v2044 = vcvt.s32.f32 %v2032
      %v2045 = vcvt.s32.f32 %v2033
      %2046 = vmatprep.subr.mxu0 0.0
      %2047 = vmatpush1.msra.mxu0 %v2034
      %2048 = vmatprep.subr.mxu0 0.0
      %2049 = vmatpush1.msra.mxu0 %v2035
      %2050 = vmatprep.subr.mxu0 0.0
      %2051 = vmatpush1.msra.mxu0 %v2036
      %2052 = vmatprep.subr.mxu0 0.0
      %2053 = vmatpush1.msra.mxu0 %v2037
      %2054 = vmatprep.subr.mxu0 0.0
      %2055 = vmatpush1.msra.mxu0 %v2038
      %2056 = vmatprep.subr.mxu0 0.0
      %2057 = vmatpush1.msra.mxu0 %v2039
      %2058 = vmatprep.subr.mxu0 0.0
      %2059 = vmatpush1.msra.mxu0 %v2040
      %2060 = vmatprep.subr.mxu0 0.0
      %2061 = vmatpush1.msra.mxu0 %v2041
      %2062 = vmatprep.subr.mxu0 0.0
      %2063 = vmatpush1.msra.mxu0 %v2042
      %2064 = vmatprep.subr.mxu0 0.0
      %2065 = vmatpush1.msra.mxu0 %v2043
      %2066 = vmatprep.subr.mxu0 0.0
      %2067 = vmatpush1.msra.mxu0 %v2044
      %2068 = vmatprep.subr.mxu0 0.0
      %2069 = vmatpush1.msra.mxu0 %v2045
      %2070 = vmatprep.subr.mxu0 0.0
      %2071 = vmatpush1.msra.mxu0 0.0
      %2072 = vmatprep.subr.mxu0 0.0
      %2073 = vmatpush1.msra.mxu0 0.0
      %2074 = vmatprep.subr.mxu0 0.0
      %2075 = vmatpush1.msra.mxu0 0.0
      %2076 = vmatprep.subr.mxu0 0.0
      %2077 = vmatpush1.msra.mxu0 0.0
      %2078 = vmatprep.subr.mxu0 0.0
      %2079 = vmatpush1.msra.mxu0 0.0
      %2080 = vmatprep.subr.mxu0 0.0
      %2081 = vmatpush1.msra.mxu0 0.0
      %2082 = vmatprep.subr.mxu0 0.0
      %2083 = vmatpush1.msra.mxu0 0.0
      %2084 = vmatprep.subr.mxu0 0.0
      %2085 = vmatpush1.msra.mxu0 0.0
      %2086 = vmatprep.subr.mxu0 0.0
      %2087 = vmatpush1.msra.mxu0 0.0
      %2088 = vmatprep.subr.mxu0 0.0
      %2089 = vmatpush1.msra.mxu0 0.0
      %2090 = vmatprep.subr.mxu0 0.0
      %2091 = vmatpush1.msra.mxu0 0.0
      %2092 = vmatprep.subr.mxu0 0.0
      %2093 = vmatpush1.msra.mxu0 0.0
      %2094 = vmatprep.subr.mxu0 0.0
      %2095 = vmatpush1.msra.mxu0 0.0
      %2096 = vmatprep.subr.mxu0 0.0
      %2097 = vmatpush1.msra.mxu0 0.0
      %2098 = vmatprep.subr.mxu0 0.0
      %2099 = vmatpush1.msra.mxu0 0.0
      %2100 = vmatprep.subr.mxu0 0.0
      %2101 = vmatpush1.msra.mxu0 0.0
      %2102 = vmatprep.subr.mxu0 0.0
      %2103 = vmatpush1.msra.mxu0 0.0
      %2104 = vmatprep.subr.mxu0 0.0
      %2105 = vmatpush1.msra.mxu0 0.0
      %2106 = vmatprep.subr.mxu0 0.0
      %2107 = vmatpush1.msra.mxu0 0.0
      %2108 = vmatprep.subr.mxu0 0.0
      %2109 = vmatpush1.msra.mxu0 0.0
      %2110 = vmatprep.mubr.f32.mxu0 0.0
      %2111 = vmatmul.mubr.f32.gmra.mrb[0].mxu0 %v597
      %v2112 = vpop.f32.mrb[0].mxu0
      %v2113 = vadd.f32 0.0, %v2112
      %v2114 = vpop.f32.mrb[0].mxu0
      %2115 = vmatprep.mubr.f32.mxu0 0.0
      %2116 = vmatmul.mubr.f32.gmra.mrb[0].mxu0 %v600
      %v2117 = vpop.f32.mrb[0].mxu0
      %v2118 = vadd.f32 0.0, %v2117
      %v2119 = vpop.f32.mrb[0].mxu0
      %2120 = vdwg.mxu0
      %v2122 = vsel %vm901, %v1889, 0
      %v2125 = vsel %vm901, %v1894, 0
      %v2128 = vsel %vm901, %v2001, 0
      %v2131 = vsel %vm901, %v2006, 0
      %2133 = vmatprep.subr.mxu0 0.0
      %2134 = vmatpush1.xpose.msra.mxu0 %v2128
      %2135 = vmatprep.subr.mxu0 0.0
      %2136 = vmatpush1.xpose.msra.mxu0 %v2131
      %2137 = vmatprep.subr.mxu0 0.0
      %2138 = vmatpush1.xpose.msra.mxu0 0.0
      %2139 = vmatprep.subr.mxu0 0.0
      %2140 = vmatpush1.xpose.msra.mxu0 0.0
      %2141 = vmatprep.subr.mxu0 0.0
      %2142 = vmatpush1.xpose.msra.mxu0 0.0
      %2143 = vmatprep.subr.mxu0 0.0
      %2144 = vmatpush1.xpose.msra.mxu0 0.0
      %2145 = vmatprep.subr.mxu0 0.0
      %2146 = vmatpush1.xpose.msra.mxu0 0.0
      %2147 = vmatprep.subr.mxu0 0.0
      %2148 = vmatpush1.xpose.msra.mxu0 0.0
      %2149 = vmatprep.subr.mxu0 0.0
      %2150 = vmatpush1.xpose.msra.mxu0 0.0
      %2151 = vmatprep.subr.mxu0 0.0
      %2152 = vmatpush1.xpose.msra.mxu0 0.0
      %2153 = vmatprep.subr.mxu0 0.0
      %2154 = vmatpush1.xpose.msra.mxu0 0.0
      %2155 = vmatprep.subr.mxu0 0.0
      %2156 = vmatpush1.xpose.msra.mxu0 0.0
      %2157 = vmatprep.subr.mxu0 0.0
      %2158 = vmatpush1.xpose.msra.mxu0 0.0
      %2159 = vmatprep.subr.mxu0 0.0
      %2160 = vmatpush1.xpose.msra.mxu0 0.0
      %2161 = vmatprep.subr.mxu0 0.0
      %2162 = vmatpush1.xpose.msra.mxu0 0.0
      %2163 = vmatprep.subr.mxu0 0.0
      %2164 = vmatpush1.xpose.msra.mxu0 0.0
      %2165 = vmatprep.subr.mxu0 0.0
      %2166 = vmatpush1.xpose.msra.mxu0 0.0
      %2167 = vmatprep.subr.mxu0 0.0
      %2168 = vmatpush1.xpose.msra.mxu0 0.0
      %2169 = vmatprep.subr.mxu0 0.0
      %2170 = vmatpush1.xpose.msra.mxu0 0.0
      %2171 = vmatprep.subr.mxu0 0.0
      %2172 = vmatpush1.xpose.msra.mxu0 0.0
      %2173 = vmatprep.subr.mxu0 0.0
      %2174 = vmatpush1.xpose.msra.mxu0 0.0
      %2175 = vmatprep.subr.mxu0 0.0
      %2176 = vmatpush1.xpose.msra.mxu0 0.0
      %2177 = vmatprep.subr.mxu0 0.0
      %2178 = vmatpush1.xpose.msra.mxu0 0.0
      %2179 = vmatprep.subr.mxu0 0.0
      %2180 = vmatpush1.xpose.msra.mxu0 0.0
      %2181 = vmatprep.subr.mxu0 0.0
      %2182 = vmatpush1.xpose.msra.mxu0 0.0
      %2183 = vmatprep.subr.mxu0 0.0
      %2184 = vmatpush1.xpose.msra.mxu0 0.0
      %2185 = vmatprep.subr.mxu0 0.0
      %2186 = vmatpush1.xpose.msra.mxu0 0.0
      %2187 = vmatprep.subr.mxu0 0.0
      %2188 = vmatpush1.xpose.msra.mxu0 0.0
      %2189 = vmatprep.subr.mxu0 0.0
      %2190 = vmatpush1.xpose.msra.mxu0 0.0
      %2191 = vmatprep.subr.mxu0 0.0
      %2192 = vmatpush1.xpose.msra.mxu0 0.0
      %2193 = vmatprep.subr.mxu0 0.0
      %2194 = vmatpush1.xpose.msra.mxu0 0.0
      %2195 = vmatprep.subr.mxu0 0.0
      %2196 = vmatpush1.xpose.msra.mxu0 0.0
      %2197 = vmatprep.mubr.f32.mxu0 0.0
      %2198 = vmatmul.mubr.f32.gmra.mrb[0].mxu0 %v2122
      %v2199 = vpop.f32.mrb[0].mxu0
      %v2200 = vadd.f32 0.0, %v2199
      %v2201 = vpop.f32.mrb[0].mxu0
      %2202 = vmatprep.mubr.f32.mxu0 0.0
      %2203 = vmatmul.mubr.f32.gmra.mrb[0].mxu0 %v2125
      %v2204 = vpop.f32.mrb[0].mxu0
      %v2205 = vadd.f32 0.0, %v2204
      %v2206 = vpop.f32.mrb[0].mxu0
      %2207 = vdwg.mxu0
      %v2208 = vmul.f32 %v2200, 0.35355338
      %v2209 = vmul.f32 %v2205, 0.35355338
      %v2210 = vsel %vm991, %v2208, -inf
      %2211 = vmax.xlane.f32.xlu0 %v2210
      %v2212 = vpop.xlane.xlu0 %2211
      %v2213 = vsel %vm991, %v2209, -inf
      %2214 = vmax.xlane.f32.xlu0 %v2213
      %v2215 = vpop.xlane.xlu0 %2214
      %v2216 = vsub.f32 %v2208, %v2212
      %v2217 = vsub.f32 %v2209, %v2215
      %v2218 = vmul.f32 %v2216, 1.442695
      %v2219 = vpow.pop %v2218
      %v2220 = vmul.f32 %v2217, 1.442695
      %v2221 = vpow.pop %v2220
      %v2222 = vsel %vm991, %v2219, 0.0
      %2223 = vadd.xlane.f32.xlu0 %v2222
      %v2224 = vpop.xlane.xlu0 %2223
      %v2225 = vsel %vm991, %v2221, 0.0
      %2226 = vadd.xlane.f32.xlu0 %v2225
      %v2227 = vpop.xlane.xlu0 %2226
      %v2228 = vrcp.pop %v2224
      %v2229 = vrcp.pop %v2227
      %v2230 = vmul.f32 %v2219, %v2228
      %v2231 = vmul.f32 %v2221, %v2229
      %v2233 = vsel %vm991, %v2230, 0
      %v2236 = vsel %vm991, %v2231, 0
      %2238 = vmatprep.subr.mxu0 0.0
      %2239 = vmatpush1.msra.mxu0 %v2113
      %2240 = vmatprep.subr.mxu0 0.0
      %2241 = vmatpush1.msra.mxu0 %v2118
      %2242 = vmatprep.subr.mxu0 0.0
      %2243 = vmatpush1.msra.mxu0 0.0
      %2244 = vmatprep.subr.mxu0 0.0
      %2245 = vmatpush1.msra.mxu0 0.0
      %2246 = vmatprep.subr.mxu0 0.0
      %2247 = vmatpush1.msra.mxu0 0.0
      %2248 = vmatprep.subr.mxu0 0.0
      %2249 = vmatpush1.msra.mxu0 0.0
      %2250 = vmatprep.subr.mxu0 0.0
      %2251 = vmatpush1.msra.mxu0 0.0
      %2252 = vmatprep.subr.mxu0 0.0
      %2253 = vmatpush1.msra.mxu0 0.0
      %2254 = vmatprep.subr.mxu0 0.0
      %2255 = vmatpush1.msra.mxu0 0.0
      %2256 = vmatprep.subr.mxu0 0.0
      %2257 = vmatpush1.msra.mxu0 0.0
      %2258 = vmatprep.subr.mxu0 0.0
      %2259 = vmatpush1.msra.mxu0 0.0
      %2260 = vmatprep.subr.mxu0 0.0
      %2261 = vmatpush1.msra.mxu0 0.0
      %2262 = vmatprep.subr.mxu0 0.0
      %2263 = vmatpush1.msra.mxu0 0.0
      %2264 = vmatprep.subr.mxu0 0.0
      %2265 = vmatpush1.msra.mxu0 0.0
      %2266 = vmatprep.subr.mxu0 0.0
      %2267 = vmatpush1.msra.mxu0 0.0
      %2268 = vmatprep.subr.mxu0 0.0
      %2269 = vmatpush1.msra.mxu0 0.0
      %2270 = vmatprep.subr.mxu0 0.0
      %2271 = vmatpush1.msra.mxu0 0.0
      %2272 = vmatprep.subr.mxu0 0.0
      %2273 = vmatpush1.msra.mxu0 0.0
      %2274 = vmatprep.subr.mxu0 0.0
      %2275 = vmatpush1.msra.mxu0 0.0
      %2276 = vmatprep.subr.mxu0 0.0
      %2277 = vmatpush1.msra.mxu0 0.0
      %2278 = vmatprep.subr.mxu0 0.0
      %2279 = vmatpush1.msra.mxu0 0.0
      %2280 = vmatprep.subr.mxu0 0.0
      %2281 = vmatpush1.msra.mxu0 0.0
      %2282 = vmatprep.subr.mxu0 0.0
      %2283 = vmatpush1.msra.mxu0 0.0
      %2284 = vmatprep.subr.mxu0 0.0
      %2285 = vmatpush1.msra.mxu0 0.0
      %2286 = vmatprep.subr.mxu0 0.0
      %2287 = vmatpush1.msra.mxu0 0.0
      %2288 = vmatprep.subr.mxu0 0.0
      %2289 = vmatpush1.msra.mxu0 0.0
      %2290 = vmatprep.subr.mxu0 0.0
      %2291 = vmatpush1.msra.mxu0 0.0
      %2292 = vmatprep.subr.mxu0 0.0
      %2293 = vmatpush1.msra.mxu0 0.0
      %2294 = vmatprep.subr.mxu0 0.0
      %2295 = vmatpush1.msra.mxu0 0.0
      %2296 = vmatprep.subr.mxu0 0.0
      %2297 = vmatpush1.msra.mxu0 0.0
      %2298 = vmatprep.subr.mxu0 0.0
      %2299 = vmatpush1.msra.mxu0 0.0
      %2300 = vmatprep.subr.mxu0 0.0
      %2301 = vmatpush1.msra.mxu0 0.0
      %2302 = vmatprep.mubr.f32.mxu0 0.0
      %2303 = vmatmul.mubr.f32.gmra.mrb[0].mxu0 %v2233
      %v2304 = vpop.f32.mrb[0].mxu0
      %v2305 = vadd.f32 0.0, %v2304
      %v2306 = vpop.f32.mrb[0].mxu0
      %2307 = vmatprep.mubr.f32.mxu0 0.0
      %2308 = vmatmul.mubr.f32.gmra.mrb[0].mxu0 %v2236
      %v2309 = vpop.f32.mrb[0].mxu0
      %v2310 = vadd.f32 0.0, %v2309
      %v2311 = vpop.f32.mrb[0].mxu0
      %2312 = vdwg.mxu0
      %v2314 = vsel %vm901, %v2305, 0
      %v2317 = vsel %vm901, %v2310, 0
      %2319 = vmatprep.subr.mxu0 0.0
      %2320 = vmatpush1.msra.mxu0 %v451
      %2321 = vmatprep.subr.mxu0 0.0
      %2322 = vmatpush1.msra.mxu0 0.0
      %2323 = vmatprep.subr.mxu0 0.0
      %2324 = vmatpush1.msra.mxu0 0.0
      %2325 = vmatprep.subr.mxu0 0.0
      %2326 = vmatpush1.msra.mxu0 0.0
      %2327 = vmatprep.subr.mxu0 0.0
      %2328 = vmatpush1.msra.mxu0 0.0
      %2329 = vmatprep.subr.mxu0 0.0
      %2330 = vmatpush1.msra.mxu0 0.0
      %2331 = vmatprep.subr.mxu0 0.0
      %2332 = vmatpush1.msra.mxu0 0.0
      %2333 = vmatprep.subr.mxu0 0.0
      %2334 = vmatpush1.msra.mxu0 0.0
      %2335 = vmatprep.subr.mxu0 0.0
      %2336 = vmatpush1.msra.mxu0 0.0
      %2337 = vmatprep.subr.mxu0 0.0
      %2338 = vmatpush1.msra.mxu0 0.0
      %2339 = vmatprep.subr.mxu0 0.0
      %2340 = vmatpush1.msra.mxu0 0.0
      %2341 = vmatprep.subr.mxu0 0.0
      %2342 = vmatpush1.msra.mxu0 0.0
      %2343 = vmatprep.subr.mxu0 0.0
      %2344 = vmatpush1.msra.mxu0 0.0
      %2345 = vmatprep.subr.mxu0 0.0
      %2346 = vmatpush1.msra.mxu0 0.0
      %2347 = vmatprep.subr.mxu0 0.0
      %2348 = vmatpush1.msra.mxu0 0.0
      %2349 = vmatprep.subr.mxu0 0.0
      %2350 = vmatpush1.msra.mxu0 0.0
      %2351 = vmatprep.subr.mxu0 0.0
      %2352 = vmatpush1.msra.mxu0 0.0
      %2353 = vmatprep.subr.mxu0 0.0
      %2354 = vmatpush1.msra.mxu0 0.0
      %2355 = vmatprep.subr.mxu0 0.0
      %2356 = vmatpush1.msra.mxu0 0.0
      %2357 = vmatprep.subr.mxu0 0.0
      %2358 = vmatpush1.msra.mxu0 0.0
      %2359 = vmatprep.subr.mxu0 0.0
      %2360 = vmatpush1.msra.mxu0 0.0
      %2361 = vmatprep.subr.mxu0 0.0
      %2362 = vmatpush1.msra.mxu0 0.0
      %2363 = vmatprep.subr.mxu0 0.0
      %2364 = vmatpush1.msra.mxu0 0.0
      %2365 = vmatprep.subr.mxu0 0.0
      %2366 = vmatpush1.msra.mxu0 0.0
      %2367 = vmatprep.subr.mxu0 0.0
      %2368 = vmatpush1.msra.mxu0 0.0
      %2369 = vmatprep.subr.mxu0 0.0
      %2370 = vmatpush1.msra.mxu0 0.0
      %2371 = vmatprep.subr.mxu0 0.0
      %2372 = vmatpush1.msra.mxu0 0.0
      %2373 = vmatprep.subr.mxu0 0.0
      %2374 = vmatpush1.msra.mxu0 0.0
      %2375 = vmatprep.subr.mxu0 0.0
      %2376 = vmatpush1.msra.mxu0 0.0
      %2377 = vmatprep.subr.mxu0 0.0
      %2378 = vmatpush1.msra.mxu0 0.0
      %2379 = vmatprep.subr.mxu0 0.0
      %2380 = vmatpush1.msra.mxu0 0.0
      %2381 = vmatprep.subr.mxu0 0.0
      %2382 = vmatpush1.msra.mxu0 0.0
      %2383 = vmatprep.mubr.f32.mxu0 0.0
      %2384 = vmatmul.mubr.f32.gmra.mrb[0].mxu0 %v2314
      %v2385 = vpop.f32.mrb[0].mxu0
      %v2386 = vadd.f32 0.0, %v2385
      %v2387 = vpop.f32.mrb[0].mxu0
      %2388 = vmatprep.mubr.f32.mxu0 0.0
      %2389 = vmatmul.mubr.f32.gmra.mrb[0].mxu0 %v2317
      %v2390 = vpop.f32.mrb[0].mxu0
      %v2391 = vadd.f32 0.0, %v2390
      %v2392 = vpop.f32.mrb[0].mxu0
      %2393 = vdwg.mxu0
      %v2394 = vadd.f32 %v1777, %v2386
      %v2395 = vadd.f32 %v1782, %v2391
      %v2396 = vadd.s32 %v558, 24
      %vm2397 = vcmp.eq.s32.totalorder %v545, %v2396
      %vm2398 = vcmp.eq.s32.totalorder %v546, %v2396
      %vm2399 = vcmp.eq.s32.totalorder %v547, %v2396
      %vm2400 = vcmp.eq.s32.totalorder %v548, %v2396
      %vm2401 = vcmp.eq.s32.totalorder %v549, %v2396
      %vm2402 = vcmp.eq.s32.totalorder %v550, %v2396
      %vm2403 = vcmp.eq.s32.totalorder %v551, %v2396
      %vm2404 = vcmp.eq.s32.totalorder %v552, %v2396
      %vm2405 = vcmp.eq.s32.totalorder %v553, %v2396
      %vm2406 = vcmp.eq.s32.totalorder %v554, %v2396
      %vm2407 = vcmp.eq.s32.totalorder %v555, %v2396
      %vm2408 = vcmp.eq.s32.totalorder %v556, %v2396
      %v2409 = vsel %vm2397, 1, 0
      %v2410 = vsel %vm2398, 1, 0
      %v2411 = vsel %vm2399, 1, 0
      %v2412 = vsel %vm2400, 1, 0
      %v2413 = vsel %vm2401, 1, 0
      %v2414 = vsel %vm2402, 1, 0
      %v2415 = vsel %vm2403, 1, 0
      %v2416 = vsel %vm2404, 1, 0
      %v2417 = vsel %vm2405, 1, 0
      %v2418 = vsel %vm2406, 1, 0
      %v2419 = vsel %vm2407, 1, 0
      %v2420 = vsel %vm2408, 1, 0
      %v2421 = vcvt.s32.f32 %v2409
      %v2422 = vcvt.s32.f32 %v2410
      %v2423 = vcvt.s32.f32 %v2411
      %v2424 = vcvt.s32.f32 %v2412
      %v2425 = vcvt.s32.f32 %v2413
      %v2426 = vcvt.s32.f32 %v2414
      %v2427 = vcvt.s32.f32 %v2415
      %v2428 = vcvt.s32.f32 %v2416
      %v2429 = vcvt.s32.f32 %v2417
      %v2430 = vcvt.s32.f32 %v2418
      %v2431 = vcvt.s32.f32 %v2419
      %v2432 = vcvt.s32.f32 %v2420
      %2433 = vmatprep.subr.mxu0 0.0
      %2434 = vmatpush1.msra.mxu0 %v2421
      %2435 = vmatprep.subr.mxu0 0.0
      %2436 = vmatpush1.msra.mxu0 %v2422
      %2437 = vmatprep.subr.mxu0 0.0
      %2438 = vmatpush1.msra.mxu0 %v2423
      %2439 = vmatprep.subr.mxu0 0.0
      %2440 = vmatpush1.msra.mxu0 %v2424
      %2441 = vmatprep.subr.mxu0 0.0
      %2442 = vmatpush1.msra.mxu0 %v2425
      %2443 = vmatprep.subr.mxu0 0.0
      %2444 = vmatpush1.msra.mxu0 %v2426
      %2445 = vmatprep.subr.mxu0 0.0
      %2446 = vmatpush1.msra.mxu0 %v2427
      %2447 = vmatprep.subr.mxu0 0.0
      %2448 = vmatpush1.msra.mxu0 %v2428
      %2449 = vmatprep.subr.mxu0 0.0
      %2450 = vmatpush1.msra.mxu0 %v2429
      %2451 = vmatprep.subr.mxu0 0.0
      %2452 = vmatpush1.msra.mxu0 %v2430
      %2453 = vmatprep.subr.mxu0 0.0
      %2454 = vmatpush1.msra.mxu0 %v2431
      %2455 = vmatprep.subr.mxu0 0.0
      %2456 = vmatpush1.msra.mxu0 %v2432
      %2457 = vmatprep.subr.mxu0 0.0
      %2458 = vmatpush1.msra.mxu0 0.0
      %2459 = vmatprep.subr.mxu0 0.0
      %2460 = vmatpush1.msra.mxu0 0.0
      %2461 = vmatprep.subr.mxu0 0.0
      %2462 = vmatpush1.msra.mxu0 0.0
      %2463 = vmatprep.subr.mxu0 0.0
      %2464 = vmatpush1.msra.mxu0 0.0
      %2465 = vmatprep.subr.mxu0 0.0
      %2466 = vmatpush1.msra.mxu0 0.0
      %2467 = vmatprep.subr.mxu0 0.0
      %2468 = vmatpush1.msra.mxu0 0.0
      %2469 = vmatprep.subr.mxu0 0.0
      %2470 = vmatpush1.msra.mxu0 0.0
      %2471 = vmatprep.subr.mxu0 0.0
      %2472 = vmatpush1.msra.mxu0 0.0
      %2473 = vmatprep.subr.mxu0 0.0
      %2474 = vmatpush1.msra.mxu0 0.0
      %2475 = vmatprep.subr.mxu0 0.0
      %2476 = vmatpush1.msra.mxu0 0.0
      %2477 = vmatprep.subr.mxu0 0.0
      %2478 = vmatpush1.msra.mxu0 0.0
      %2479 = vmatprep.subr.mxu0 0.0
      %2480 = vmatpush1.msra.mxu0 0.0
      %2481 = vmatprep.subr.mxu0 0.0
      %2482 = vmatpush1.msra.mxu0 0.0
      %2483 = vmatprep.subr.mxu0 0.0
      %2484 = vmatpush1.msra.mxu0 0.0
      %2485 = vmatprep.subr.mxu0 0.0
      %2486 = vmatpush1.msra.mxu0 0.0
      %2487 = vmatprep.subr.mxu0 0.0
      %2488 = vmatpush1.msra.mxu0 0.0
      %2489 = vmatprep.subr.mxu0 0.0
      %2490 = vmatpush1.msra.mxu0 0.0
      %2491 = vmatprep.subr.mxu0 0.0
      %2492 = vmatpush1.msra.mxu0 0.0
      %2493 = vmatprep.subr.mxu0 0.0
      %2494 = vmatpush1.msra.mxu0 0.0
      %2495 = vmatprep.subr.mxu0 0.0
      %2496 = vmatpush1.msra.mxu0 0.0
      %2497 = vmatprep.mubr.f32.mxu0 0.0
      %2498 = vmatmul.mubr.f32.gmra.mrb[0].mxu0 %v597
      %v2499 = vpop.f32.mrb[0].mxu0
      %v2500 = vadd.f32 0.0, %v2499
      %v2501 = vpop.f32.mrb[0].mxu0
      %2502 = vmatprep.mubr.f32.mxu0 0.0
      %2503 = vmatmul.mubr.f32.gmra.mrb[0].mxu0 %v600
      %v2504 = vpop.f32.mrb[0].mxu0
      %v2505 = vadd.f32 0.0, %v2504
      %v2506 = vpop.f32.mrb[0].mxu0
      %2507 = vdwg.mxu0
      %v2508 = vadd.s32 %v558, 56
      %vm2509 = vcmp.eq.s32.totalorder %v545, %v2508
      %vm2510 = vcmp.eq.s32.totalorder %v546, %v2508
      %vm2511 = vcmp.eq.s32.totalorder %v547, %v2508
      %vm2512 = vcmp.eq.s32.totalorder %v548, %v2508
      %vm2513 = vcmp.eq.s32.totalorder %v549, %v2508
      %vm2514 = vcmp.eq.s32.totalorder %v550, %v2508
      %vm2515 = vcmp.eq.s32.totalorder %v551, %v2508
      %vm2516 = vcmp.eq.s32.totalorder %v552, %v2508
      %vm2517 = vcmp.eq.s32.totalorder %v553, %v2508
      %vm2518 = vcmp.eq.s32.totalorder %v554, %v2508
      %vm2519 = vcmp.eq.s32.totalorder %v555, %v2508
      %vm2520 = vcmp.eq.s32.totalorder %v556, %v2508
      %v2521 = vsel %vm2509, 1, 0
      %v2522 = vsel %vm2510, 1, 0
      %v2523 = vsel %vm2511, 1, 0
      %v2524 = vsel %vm2512, 1, 0
      %v2525 = vsel %vm2513, 1, 0
      %v2526 = vsel %vm2514, 1, 0
      %v2527 = vsel %vm2515, 1, 0
      %v2528 = vsel %vm2516, 1, 0
      %v2529 = vsel %vm2517, 1, 0
      %v2530 = vsel %vm2518, 1, 0
      %v2531 = vsel %vm2519, 1, 0
      %v2532 = vsel %vm2520, 1, 0
      %v2533 = vcvt.s32.f32 %v2521
      %v2534 = vcvt.s32.f32 %v2522
      %v2535 = vcvt.s32.f32 %v2523
      %v2536 = vcvt.s32.f32 %v2524
      %v2537 = vcvt.s32.f32 %v2525
      %v2538 = vcvt.s32.f32 %v2526
      %v2539 = vcvt.s32.f32 %v2527
      %v2540 = vcvt.s32.f32 %v2528
      %v2541 = vcvt.s32.f32 %v2529
      %v2542 = vcvt.s32.f32 %v2530
      %v2543 = vcvt.s32.f32 %v2531
      %v2544 = vcvt.s32.f32 %v2532
      %2545 = vmatprep.subr.mxu0 0.0
      %2546 = vmatpush1.msra.mxu0 %v2533
      %2547 = vmatprep.subr.mxu0 0.0
      %2548 = vmatpush1.msra.mxu0 %v2534
      %2549 = vmatprep.subr.mxu0 0.0
      %2550 = vmatpush1.msra.mxu0 %v2535
      %2551 = vmatprep.subr.mxu0 0.0
      %2552 = vmatpush1.msra.mxu0 %v2536
      %2553 = vmatprep.subr.mxu0 0.0
      %2554 = vmatpush1.msra.mxu0 %v2537
      %2555 = vmatprep.subr.mxu0 0.0
      %2556 = vmatpush1.msra.mxu0 %v2538
      %2557 = vmatprep.subr.mxu0 0.0
      %2558 = vmatpush1.msra.mxu0 %v2539
      %2559 = vmatprep.subr.mxu0 0.0
      %2560 = vmatpush1.msra.mxu0 %v2540
      %2561 = vmatprep.subr.mxu0 0.0
      %2562 = vmatpush1.msra.mxu0 %v2541
      %2563 = vmatprep.subr.mxu0 0.0
      %2564 = vmatpush1.msra.mxu0 %v2542
      %2565 = vmatprep.subr.mxu0 0.0
      %2566 = vmatpush1.msra.mxu0 %v2543
      %2567 = vmatprep.subr.mxu0 0.0
      %2568 = vmatpush1.msra.mxu0 %v2544
      %2569 = vmatprep.subr.mxu0 0.0
      %2570 = vmatpush1.msra.mxu0 0.0
      %2571 = vmatprep.subr.mxu0 0.0
      %2572 = vmatpush1.msra.mxu0 0.0
      %2573 = vmatprep.subr.mxu0 0.0
      %2574 = vmatpush1.msra.mxu0 0.0
      %2575 = vmatprep.subr.mxu0 0.0
      %2576 = vmatpush1.msra.mxu0 0.0
      %2577 = vmatprep.subr.mxu0 0.0
      %2578 = vmatpush1.msra.mxu0 0.0
      %2579 = vmatprep.subr.mxu0 0.0
      %2580 = vmatpush1.msra.mxu0 0.0
      %2581 = vmatprep.subr.mxu0 0.0
      %2582 = vmatpush1.msra.mxu0 0.0
      %2583 = vmatprep.subr.mxu0 0.0
      %2584 = vmatpush1.msra.mxu0 0.0
      %2585 = vmatprep.subr.mxu0 0.0
      %2586 = vmatpush1.msra.mxu0 0.0
      %2587 = vmatprep.subr.mxu0 0.0
      %2588 = vmatpush1.msra.mxu0 0.0
      %2589 = vmatprep.subr.mxu0 0.0
      %2590 = vmatpush1.msra.mxu0 0.0
      %2591 = vmatprep.subr.mxu0 0.0
      %2592 = vmatpush1.msra.mxu0 0.0
      %2593 = vmatprep.subr.mxu0 0.0
      %2594 = vmatpush1.msra.mxu0 0.0
      %2595 = vmatprep.subr.mxu0 0.0
      %2596 = vmatpush1.msra.mxu0 0.0
      %2597 = vmatprep.subr.mxu0 0.0
      %2598 = vmatpush1.msra.mxu0 0.0
      %2599 = vmatprep.subr.mxu0 0.0
      %2600 = vmatpush1.msra.mxu0 0.0
      %2601 = vmatprep.subr.mxu0 0.0
      %2602 = vmatpush1.msra.mxu0 0.0
      %2603 = vmatprep.subr.mxu0 0.0
      %2604 = vmatpush1.msra.mxu0 0.0
      %2605 = vmatprep.subr.mxu0 0.0
      %2606 = vmatpush1.msra.mxu0 0.0
      %2607 = vmatprep.subr.mxu0 0.0
      %2608 = vmatpush1.msra.mxu0 0.0
      %2609 = vmatprep.mubr.f32.mxu0 0.0
      %2610 = vmatmul.mubr.f32.gmra.mrb[0].mxu0 %v597
      %v2611 = vpop.f32.mrb[0].mxu0
      %v2612 = vadd.f32 0.0, %v2611
      %v2613 = vpop.f32.mrb[0].mxu0
      %2614 = vmatprep.mubr.f32.mxu0 0.0
      %2615 = vmatmul.mubr.f32.gmra.mrb[0].mxu0 %v600
      %v2616 = vpop.f32.mrb[0].mxu0
      %v2617 = vadd.f32 0.0, %v2616
      %v2618 = vpop.f32.mrb[0].mxu0
      %2619 = vdwg.mxu0
      %v2620 = vadd.s32 %v558, 88
      %vm2621 = vcmp.eq.s32.totalorder %v545, %v2620
      %vm2622 = vcmp.eq.s32.totalorder %v546, %v2620
      %vm2623 = vcmp.eq.s32.totalorder %v547, %v2620
      %vm2624 = vcmp.eq.s32.totalorder %v548, %v2620
      %vm2625 = vcmp.eq.s32.totalorder %v549, %v2620
      %vm2626 = vcmp.eq.s32.totalorder %v550, %v2620
      %vm2627 = vcmp.eq.s32.totalorder %v551, %v2620
      %vm2628 = vcmp.eq.s32.totalorder %v552, %v2620
      %vm2629 = vcmp.eq.s32.totalorder %v553, %v2620
      %vm2630 = vcmp.eq.s32.totalorder %v554, %v2620
      %vm2631 = vcmp.eq.s32.totalorder %v555, %v2620
      %vm2632 = vcmp.eq.s32.totalorder %v556, %v2620
      %v2633 = vsel %vm2621, 1, 0
      %v2634 = vsel %vm2622, 1, 0
      %v2635 = vsel %vm2623, 1, 0
      %v2636 = vsel %vm2624, 1, 0
      %v2637 = vsel %vm2625, 1, 0
      %v2638 = vsel %vm2626, 1, 0
      %v2639 = vsel %vm2627, 1, 0
      %v2640 = vsel %vm2628, 1, 0
      %v2641 = vsel %vm2629, 1, 0
      %v2642 = vsel %vm2630, 1, 0
      %v2643 = vsel %vm2631, 1, 0
      %v2644 = vsel %vm2632, 1, 0
      %v2645 = vcvt.s32.f32 %v2633
      %v2646 = vcvt.s32.f32 %v2634
      %v2647 = vcvt.s32.f32 %v2635
      %v2648 = vcvt.s32.f32 %v2636
      %v2649 = vcvt.s32.f32 %v2637
      %v2650 = vcvt.s32.f32 %v2638
      %v2651 = vcvt.s32.f32 %v2639
      %v2652 = vcvt.s32.f32 %v2640
      %v2653 = vcvt.s32.f32 %v2641
      %v2654 = vcvt.s32.f32 %v2642
      %v2655 = vcvt.s32.f32 %v2643
      %v2656 = vcvt.s32.f32 %v2644
      %2657 = vmatprep.subr.mxu0 0.0
      %2658 = vmatpush1.msra.mxu0 %v2645
      %2659 = vmatprep.subr.mxu0 0.0
      %2660 = vmatpush1.msra.mxu0 %v2646
      %2661 = vmatprep.subr.mxu0 0.0
      %2662 = vmatpush1.msra.mxu0 %v2647
      %2663 = vmatprep.subr.mxu0 0.0
      %2664 = vmatpush1.msra.mxu0 %v2648
      %2665 = vmatprep.subr.mxu0 0.0
      %2666 = vmatpush1.msra.mxu0 %v2649
      %2667 = vmatprep.subr.mxu0 0.0
      %2668 = vmatpush1.msra.mxu0 %v2650
      %2669 = vmatprep.subr.mxu0 0.0
      %2670 = vmatpush1.msra.mxu0 %v2651
      %2671 = vmatprep.subr.mxu0 0.0
      %2672 = vmatpush1.msra.mxu0 %v2652
      %2673 = vmatprep.subr.mxu0 0.0
      %2674 = vmatpush1.msra.mxu0 %v2653
      %2675 = vmatprep.subr.mxu0 0.0
      %2676 = vmatpush1.msra.mxu0 %v2654
      %2677 = vmatprep.subr.mxu0 0.0
      %2678 = vmatpush1.msra.mxu0 %v2655
      %2679 = vmatprep.subr.mxu0 0.0
      %2680 = vmatpush1.msra.mxu0 %v2656
      %2681 = vmatprep.subr.mxu0 0.0
      %2682 = vmatpush1.msra.mxu0 0.0
      %2683 = vmatprep.subr.mxu0 0.0
      %2684 = vmatpush1.msra.mxu0 0.0
      %2685 = vmatprep.subr.mxu0 0.0
      %2686 = vmatpush1.msra.mxu0 0.0
      %2687 = vmatprep.subr.mxu0 0.0
      %2688 = vmatpush1.msra.mxu0 0.0
      %2689 = vmatprep.subr.mxu0 0.0
      %2690 = vmatpush1.msra.mxu0 0.0
      %2691 = vmatprep.subr.mxu0 0.0
      %2692 = vmatpush1.msra.mxu0 0.0
      %2693 = vmatprep.subr.mxu0 0.0
      %2694 = vmatpush1.msra.mxu0 0.0
      %2695 = vmatprep.subr.mxu0 0.0
      %2696 = vmatpush1.msra.mxu0 0.0
      %2697 = vmatprep.subr.mxu0 0.0
      %2698 = vmatpush1.msra.mxu0 0.0
      %2699 = vmatprep.subr.mxu0 0.0
      %2700 = vmatpush1.msra.mxu0 0.0
      %2701 = vmatprep.subr.mxu0 0.0
      %2702 = vmatpush1.msra.mxu0 0.0
      %2703 = vmatprep.subr.mxu0 0.0
      %2704 = vmatpush1.msra.mxu0 0.0
      %2705 = vmatprep.subr.mxu0 0.0
      %2706 = vmatpush1.msra.mxu0 0.0
      %2707 = vmatprep.subr.mxu0 0.0
      %2708 = vmatpush1.msra.mxu0 0.0
      %2709 = vmatprep.subr.mxu0 0.0
      %2710 = vmatpush1.msra.mxu0 0.0
      %2711 = vmatprep.subr.mxu0 0.0
      %2712 = vmatpush1.msra.mxu0 0.0
      %2713 = vmatprep.subr.mxu0 0.0
      %2714 = vmatpush1.msra.mxu0 0.0
      %2715 = vmatprep.subr.mxu0 0.0
      %2716 = vmatpush1.msra.mxu0 0.0
      %2717 = vmatprep.subr.mxu0 0.0
      %2718 = vmatpush1.msra.mxu0 0.0
      %2719 = vmatprep.subr.mxu0 0.0
      %2720 = vmatpush1.msra.mxu0 0.0
      %2721 = vmatprep.mubr.f32.mxu0 0.0
      %2722 = vmatmul.mubr.f32.gmra.mrb[0].mxu0 %v597
      %v2723 = vpop.f32.mrb[0].mxu0
      %v2724 = vadd.f32 0.0, %v2723
      %v2725 = vpop.f32.mrb[0].mxu0
      %2726 = vmatprep.mubr.f32.mxu0 0.0
      %2727 = vmatmul.mubr.f32.gmra.mrb[0].mxu0 %v600
      %v2728 = vpop.f32.mrb[0].mxu0
      %v2729 = vadd.f32 0.0, %v2728
      %v2730 = vpop.f32.mrb[0].mxu0
      %2731 = vdwg.mxu0
      %v2733 = vsel %vm901, %v2500, 0
      %v2736 = vsel %vm901, %v2505, 0
      %v2739 = vsel %vm901, %v2612, 0
      %v2742 = vsel %vm901, %v2617, 0
      %2744 = vmatprep.subr.mxu0 0.0
      %2745 = vmatpush1.xpose.msra.mxu0 %v2739
      %2746 = vmatprep.subr.mxu0 0.0
      %2747 = vmatpush1.xpose.msra.mxu0 %v2742
      %2748 = vmatprep.subr.mxu0 0.0
      %2749 = vmatpush1.xpose.msra.mxu0 0.0
      %2750 = vmatprep.subr.mxu0 0.0
      %2751 = vmatpush1.xpose.msra.mxu0 0.0
      %2752 = vmatprep.subr.mxu0 0.0
      %2753 = vmatpush1.xpose.msra.mxu0 0.0
      %2754 = vmatprep.subr.mxu0 0.0
      %2755 = vmatpush1.xpose.msra.mxu0 0.0
      %2756 = vmatprep.subr.mxu0 0.0
      %2757 = vmatpush1.xpose.msra.mxu0 0.0
      %2758 = vmatprep.subr.mxu0 0.0
      %2759 = vmatpush1.xpose.msra.mxu0 0.0
      %2760 = vmatprep.subr.mxu0 0.0
      %2761 = vmatpush1.xpose.msra.mxu0 0.0
      %2762 = vmatprep.subr.mxu0 0.0
      %2763 = vmatpush1.xpose.msra.mxu0 0.0
      %2764 = vmatprep.subr.mxu0 0.0
      %2765 = vmatpush1.xpose.msra.mxu0 0.0
      %2766 = vmatprep.subr.mxu0 0.0
      %2767 = vmatpush1.xpose.msra.mxu0 0.0
      %2768 = vmatprep.subr.mxu0 0.0
      %2769 = vmatpush1.xpose.msra.mxu0 0.0
      %2770 = vmatprep.subr.mxu0 0.0
      %2771 = vmatpush1.xpose.msra.mxu0 0.0
      %2772 = vmatprep.subr.mxu0 0.0
      %2773 = vmatpush1.xpose.msra.mxu0 0.0
      %2774 = vmatprep.subr.mxu0 0.0
      %2775 = vmatpush1.xpose.msra.mxu0 0.0
      %2776 = vmatprep.subr.mxu0 0.0
      %2777 = vmatpush1.xpose.msra.mxu0 0.0
      %2778 = vmatprep.subr.mxu0 0.0
      %2779 = vmatpush1.xpose.msra.mxu0 0.0
      %2780 = vmatprep.subr.mxu0 0.0
      %2781 = vmatpush1.xpose.msra.mxu0 0.0
      %2782 = vmatprep.subr.mxu0 0.0
      %2783 = vmatpush1.xpose.msra.mxu0 0.0
      %2784 = vmatprep.subr.mxu0 0.0
      %2785 = vmatpush1.xpose.msra.mxu0 0.0
      %2786 = vmatprep.subr.mxu0 0.0
      %2787 = vmatpush1.xpose.msra.mxu0 0.0
      %2788 = vmatprep.subr.mxu0 0.0
      %2789 = vmatpush1.xpose.msra.mxu0 0.0
      %2790 = vmatprep.subr.mxu0 0.0
      %2791 = vmatpush1.xpose.msra.mxu0 0.0
      %2792 = vmatprep.subr.mxu0 0.0
      %2793 = vmatpush1.xpose.msra.mxu0 0.0
      %2794 = vmatprep.subr.mxu0 0.0
      %2795 = vmatpush1.xpose.msra.mxu0 0.0
      %2796 = vmatprep.subr.mxu0 0.0
      %2797 = vmatpush1.xpose.msra.mxu0 0.0
      %2798 = vmatprep.subr.mxu0 0.0
      %2799 = vmatpush1.xpose.msra.mxu0 0.0
      %2800 = vmatprep.subr.mxu0 0.0
      %2801 = vmatpush1.xpose.msra.mxu0 0.0
      %2802 = vmatprep.subr.mxu0 0.0
      %2803 = vmatpush1.xpose.msra.mxu0 0.0
      %2804 = vmatprep.subr.mxu0 0.0
      %2805 = vmatpush1.xpose.msra.mxu0 0.0
      %2806 = vmatprep.subr.mxu0 0.0
      %2807 = vmatpush1.xpose.msra.mxu0 0.0
      %2808 = vmatprep.mubr.f32.mxu0 0.0
      %2809 = vmatmul.mubr.f32.gmra.mrb[0].mxu0 %v2733
      %v2810 = vpop.f32.mrb[0].mxu0
      %v2811 = vadd.f32 0.0, %v2810
      %v2812 = vpop.f32.mrb[0].mxu0
      %2813 = vmatprep.mubr.f32.mxu0 0.0
      %2814 = vmatmul.mubr.f32.gmra.mrb[0].mxu0 %v2736
      %v2815 = vpop.f32.mrb[0].mxu0
      %v2816 = vadd.f32 0.0, %v2815
      %v2817 = vpop.f32.mrb[0].mxu0
      %2818 = vdwg.mxu0
      %v2819 = vmul.f32 %v2811, 0.35355338
      %v2820 = vmul.f32 %v2816, 0.35355338
      %v2821 = vsel %vm991, %v2819, -inf
      %2822 = vmax.xlane.f32.xlu0 %v2821
      %v2823 = vpop.xlane.xlu0 %2822
      %v2824 = vsel %vm991, %v2820, -inf
      %2825 = vmax.xlane.f32.xlu0 %v2824
      %v2826 = vpop.xlane.xlu0 %2825
      %v2827 = vsub.f32 %v2819, %v2823
      %v2828 = vsub.f32 %v2820, %v2826
      %v2829 = vmul.f32 %v2827, 1.442695
      %v2830 = vpow.pop %v2829
      %v2831 = vmul.f32 %v2828, 1.442695
      %v2832 = vpow.pop %v2831
      %v2833 = vsel %vm991, %v2830, 0.0
      %2834 = vadd.xlane.f32.xlu0 %v2833
      %v2835 = vpop.xlane.xlu0 %2834
      %v2836 = vsel %vm991, %v2832, 0.0
      %2837 = vadd.xlane.f32.xlu0 %v2836
      %v2838 = vpop.xlane.xlu0 %2837
      %v2839 = vrcp.pop %v2835
      %v2840 = vrcp.pop %v2838
      %v2841 = vmul.f32 %v2830, %v2839
      %v2842 = vmul.f32 %v2832, %v2840
      %v2844 = vsel %vm991, %v2841, 0
      %v2847 = vsel %vm991, %v2842, 0
      %2849 = vmatprep.subr.mxu0 0.0
      %2850 = vmatpush1.msra.mxu0 %v2724
      %2851 = vmatprep.subr.mxu0 0.0
      %2852 = vmatpush1.msra.mxu0 %v2729
      %2853 = vmatprep.subr.mxu0 0.0
      %2854 = vmatpush1.msra.mxu0 0.0
      %2855 = vmatprep.subr.mxu0 0.0
      %2856 = vmatpush1.msra.mxu0 0.0
      %2857 = vmatprep.subr.mxu0 0.0
      %2858 = vmatpush1.msra.mxu0 0.0
      %2859 = vmatprep.subr.mxu0 0.0
      %2860 = vmatpush1.msra.mxu0 0.0
      %2861 = vmatprep.subr.mxu0 0.0
      %2862 = vmatpush1.msra.mxu0 0.0
      %2863 = vmatprep.subr.mxu0 0.0
      %2864 = vmatpush1.msra.mxu0 0.0
      %2865 = vmatprep.subr.mxu0 0.0
      %2866 = vmatpush1.msra.mxu0 0.0
      %2867 = vmatprep.subr.mxu0 0.0
      %2868 = vmatpush1.msra.mxu0 0.0
      %2869 = vmatprep.subr.mxu0 0.0
      %2870 = vmatpush1.msra.mxu0 0.0
      %2871 = vmatprep.subr.mxu0 0.0
      %2872 = vmatpush1.msra.mxu0 0.0
      %2873 = vmatprep.subr.mxu0 0.0
      %2874 = vmatpush1.msra.mxu0 0.0
      %2875 = vmatprep.subr.mxu0 0.0
      %2876 = vmatpush1.msra.mxu0 0.0
      %2877 = vmatprep.subr.mxu0 0.0
      %2878 = vmatpush1.msra.mxu0 0.0
      %2879 = vmatprep.subr.mxu0 0.0
      %2880 = vmatpush1.msra.mxu0 0.0
      %2881 = vmatprep.subr.mxu0 0.0
      %2882 = vmatpush1.msra.mxu0 0.0
      %2883 = vmatprep.subr.mxu0 0.0
      %2884 = vmatpush1.msra.mxu0 0.0
      %2885 = vmatprep.subr.mxu0 0.0
      %2886 = vmatpush1.msra.mxu0 0.0
      %2887 = vmatprep.subr.mxu0 0.0
      %2888 = vmatpush1.msra.mxu0 0.0
      %2889 = vmatprep.subr.mxu0 0.0
      %2890 = vmatpush1.msra.mxu0 0.0
      %2891 = vmatprep.subr.mxu0 0.0
      %2892 = vmatpush1.msra.mxu0 0.0
      %2893 = vmatprep.subr.mxu0 0.0
      %2894 = vmatpush1.msra.mxu0 0.0
      %2895 = vmatprep.subr.mxu0 0.0
      %2896 = vmatpush1.msra.mxu0 0.0
      %2897 = vmatprep.subr.mxu0 0.0
      %2898 = vmatpush1.msra.mxu0 0.0
      %2899 = vmatprep.subr.mxu0 0.0
      %2900 = vmatpush1.msra.mxu0 0.0
      %2901 = vmatprep.subr.mxu0 0.0
      %2902 = vmatpush1.msra.mxu0 0.0
      %2903 = vmatprep.subr.mxu0 0.0
      %2904 = vmatpush1.msra.mxu0 0.0
      %2905 = vmatprep.subr.mxu0 0.0
      %2906 = vmatpush1.msra.mxu0 0.0
      %2907 = vmatprep.subr.mxu0 0.0
      %2908 = vmatpush1.msra.mxu0 0.0
      %2909 = vmatprep.subr.mxu0 0.0
      %2910 = vmatpush1.msra.mxu0 0.0
      %2911 = vmatprep.subr.mxu0 0.0
      %2912 = vmatpush1.msra.mxu0 0.0
      %2913 = vmatprep.mubr.f32.mxu0 0.0
      %2914 = vmatmul.mubr.f32.gmra.mrb[0].mxu0 %v2844
      %v2915 = vpop.f32.mrb[0].mxu0
      %v2916 = vadd.f32 0.0, %v2915
      %v2917 = vpop.f32.mrb[0].mxu0
      %2918 = vmatprep.mubr.f32.mxu0 0.0
      %2919 = vmatmul.mubr.f32.gmra.mrb[0].mxu0 %v2847
      %v2920 = vpop.f32.mrb[0].mxu0
      %v2921 = vadd.f32 0.0, %v2920
      %v2922 = vpop.f32.mrb[0].mxu0
      %2923 = vdwg.mxu0
      %v2925 = vsel %vm901, %v2916, 0
      %v2928 = vsel %vm901, %v2921, 0
      %2930 = vmatprep.subr.mxu0 0.0
      %2931 = vmatpush1.msra.mxu0 %v452
      %2932 = vmatprep.subr.mxu0 0.0
      %2933 = vmatpush1.msra.mxu0 0.0
      %2934 = vmatprep.subr.mxu0 0.0
      %2935 = vmatpush1.msra.mxu0 0.0
      %2936 = vmatprep.subr.mxu0 0.0
      %2937 = vmatpush1.msra.mxu0 0.0
      %2938 = vmatprep.subr.mxu0 0.0
      %2939 = vmatpush1.msra.mxu0 0.0
      %2940 = vmatprep.subr.mxu0 0.0
      %2941 = vmatpush1.msra.mxu0 0.0
      %2942 = vmatprep.subr.mxu0 0.0
      %2943 = vmatpush1.msra.mxu0 0.0
      %2944 = vmatprep.subr.mxu0 0.0
      %2945 = vmatpush1.msra.mxu0 0.0
      %2946 = vmatprep.subr.mxu0 0.0
      %2947 = vmatpush1.msra.mxu0 0.0
      %2948 = vmatprep.subr.mxu0 0.0
      %2949 = vmatpush1.msra.mxu0 0.0
      %2950 = vmatprep.subr.mxu0 0.0
      %2951 = vmatpush1.msra.mxu0 0.0
      %2952 = vmatprep.subr.mxu0 0.0
      %2953 = vmatpush1.msra.mxu0 0.0
      %2954 = vmatprep.subr.mxu0 0.0
      %2955 = vmatpush1.msra.mxu0 0.0
      %2956 = vmatprep.subr.mxu0 0.0
      %2957 = vmatpush1.msra.mxu0 0.0
      %2958 = vmatprep.subr.mxu0 0.0
      %2959 = vmatpush1.msra.mxu0 0.0
      %2960 = vmatprep.subr.mxu0 0.0
      %2961 = vmatpush1.msra.mxu0 0.0
      %2962 = vmatprep.subr.mxu0 0.0
      %2963 = vmatpush1.msra.mxu0 0.0
      %2964 = vmatprep.subr.mxu0 0.0
      %2965 = vmatpush1.msra.mxu0 0.0
      %2966 = vmatprep.subr.mxu0 0.0
      %2967 = vmatpush1.msra.mxu0 0.0
      %2968 = vmatprep.subr.mxu0 0.0
      %2969 = vmatpush1.msra.mxu0 0.0
      %2970 = vmatprep.subr.mxu0 0.0
      %2971 = vmatpush1.msra.mxu0 0.0
      %2972 = vmatprep.subr.mxu0 0.0
      %2973 = vmatpush1.msra.mxu0 0.0
      %2974 = vmatprep.subr.mxu0 0.0
      %2975 = vmatpush1.msra.mxu0 0.0
      %2976 = vmatprep.subr.mxu0 0.0
      %2977 = vmatpush1.msra.mxu0 0.0
      %2978 = vmatprep.subr.mxu0 0.0
      %2979 = vmatpush1.msra.mxu0 0.0
      %2980 = vmatprep.subr.mxu0 0.0
      %2981 = vmatpush1.msra.mxu0 0.0
      %2982 = vmatprep.subr.mxu0 0.0
      %2983 = vmatpush1.msra.mxu0 0.0
      %2984 = vmatprep.subr.mxu0 0.0
      %2985 = vmatpush1.msra.mxu0 0.0
      %2986 = vmatprep.subr.mxu0 0.0
      %2987 = vmatpush1.msra.mxu0 0.0
      %2988 = vmatprep.subr.mxu0 0.0
      %2989 = vmatpush1.msra.mxu0 0.0
      %2990 = vmatprep.subr.mxu0 0.0
      %2991 = vmatpush1.msra.mxu0 0.0
      %2992 = vmatprep.subr.mxu0 0.0
      %2993 = vmatpush1.msra.mxu0 0.0
      %2994 = vmatprep.mubr.f32.mxu0 0.0
      %2995 = vmatmul.mubr.f32.gmra.mrb[0].mxu0 %v2925
      %v2996 = vpop.f32.mrb[0].mxu0
      %v2997 = vadd.f32 0.0, %v2996
      %v2998 = vpop.f32.mrb[0].mxu0
      %2999 = vmatprep.mubr.f32.mxu0 0.0
      %3000 = vmatmul.mubr.f32.gmra.mrb[0].mxu0 %v2928
      %v3001 = vpop.f32.mrb[0].mxu0
      %v3002 = vadd.f32 0.0, %v3001
      %v3003 = vpop.f32.mrb[0].mxu0
      %3004 = vdwg.mxu0
      %v3005 = vadd.f32 %v2394, %v2997
      %v3006 = vadd.f32 %v2395, %v3002
      %v3008 = vlaneseq
      %v3009 = vshrl.u32 %v3008, 7
      %v3010 = vsub.s32 0, %v3009
      %v3011 = vrot.slane %v453, %v3010
      %v3013 = vadd.f32 %v3005, %v3011
      %v3014 = vadd.f32 %v3006, %v3011
      %v3015 = vadd.f32 %v442, %v3013
      %v3016 = vadd.f32 %v443, %v3014
      %v3017 = vsel %vm499, %v3015, 0.0
      %3018 = vadd.xlane.f32.xlu0 %v3017
      %v3019 = vpop.xlane.xlu0 %3018
      %v3020 = vsel %vm499, %v3016, 0.0
      %3021 = vadd.xlane.f32.xlu0 %v3020
      %v3022 = vpop.xlane.xlu0 %3021
      %v3023 = vrcp.pop 32.0
      %v3024 = vmul.f32 %v3019, %v3023
      %v3025 = vmul.f32 %v3022, %v3023
      %v3026 = vsub.f32 %v3015, %v3024
      %v3027 = vsub.f32 %v3016, %v3025
      %v3028 = vmul.f32 %v3026, %v3026
      %v3029 = vmul.f32 %v3027, %v3027
      %v3030 = vsel %vm499, %v3028, 0.0
      %3031 = vadd.xlane.f32.xlu0 %v3030
      %v3032 = vpop.xlane.xlu0 %3031
      %v3033 = vsel %vm499, %v3029, 0.0
      %3034 = vadd.xlane.f32.xlu0 %v3033
      %v3035 = vpop.xlane.xlu0 %3034
      %v3036 = vmul.f32 %v3032, %v3023
      %v3037 = vmul.f32 %v3035, %v3023
      %v3038 = vadd.f32 %v3036, 1e-05
      %v3039 = vadd.f32 %v3037, 1e-05
      %v3040 = vrsqrt.pop %v3038
      %v3041 = vrsqrt.pop %v3039
      %v3042 = vmul.f32 %v3026, %v3040
      %v3043 = vmul.f32 %v3027, %v3041
      %v3045 = vlaneseq
      %v3046 = vshrl.u32 %v3045, 7
      %v3047 = vsub.s32 0, %v3046
      %v3048 = vrot.slane %v454, %v3047
      %v3050 = vmul.f32 %v3042, %v3048
      %v3051 = vmul.f32 %v3043, %v3048
      %v3053 = vlaneseq
      %v3054 = vshrl.u32 %v3053, 7
      %v3055 = vsub.s32 0, %v3054
      %v3056 = vrot.slane %v455, %v3055
      %v3058 = vadd.f32 %v3050, %v3056
      %v3059 = vadd.f32 %v3051, %v3056
      %v3060 = vpack.c.bf16 %v3059, %v3058
      %v3062 = vlaneseq
      %v3063 = vshrl.u32 %v3062, 7
      %v3064 = vsub.s32 0, %v3063
      %v3065 = vrot.slane %v460, %v3064
      %v3071 = vunpack.c.l.b16 %v456
      %v3072 = vunpack.c.l.b16 %v457
      %v3073 = vunpack.c.l.b16 %v458
      %v3074 = vunpack.c.l.b16 %v459
      %v3075 = vpack.c.b16 %v3072, %v3071
      %v3076 = vpack.c.b16 %v3074, %v3073
      %v3080 = vsel %vm499, %v3060, 0
      %3082 = vmatprep.subr.bf16.mxu0 0
      %3083 = vmatpush1.bf16.msra.mxu0 %v3075
      %3084 = vmatprep.subr.bf16.mxu0 0
      %3085 = vmatpush1.bf16.msra.mxu0 %v3076
      %3086 = vmatprep.subr.bf16.mxu0 0
      %3087 = vmatpush1.bf16.msra.mxu0 0
      %3088 = vmatprep.subr.bf16.mxu0 0
      %3089 = vmatpush1.bf16.msra.mxu0 0
      %3090 = vmatprep.subr.bf16.mxu0 0
      %3091 = vmatpush1.bf16.msra.mxu0 0
      %3092 = vmatprep.subr.bf16.mxu0 0
      %3093 = vmatpush1.bf16.msra.mxu0 0
      %3094 = vmatprep.subr.bf16.mxu0 0
      %3095 = vmatpush1.bf16.msra.mxu0 0
      %3096 = vmatprep.subr.bf16.mxu0 0
      %3097 = vmatpush1.bf16.msra.mxu0 0
      %3098 = vmatprep.subr.bf16.mxu0 0
      %3099 = vmatpush1.bf16.msra.mxu0 0
      %3100 = vmatprep.subr.bf16.mxu0 0
      %3101 = vmatpush1.bf16.msra.mxu0 0
      %3102 = vmatprep.subr.bf16.mxu0 0
      %3103 = vmatpush1.bf16.msra.mxu0 0
      %3104 = vmatprep.subr.bf16.mxu0 0
      %3105 = vmatpush1.bf16.msra.mxu0 0
      %3106 = vmatprep.subr.bf16.mxu0 0
      %3107 = vmatpush1.bf16.msra.mxu0 0
      %3108 = vmatprep.subr.bf16.mxu0 0
      %3109 = vmatpush1.bf16.msra.mxu0 0
      %3110 = vmatprep.subr.bf16.mxu0 0
      %3111 = vmatpush1.bf16.msra.mxu0 0
      %3112 = vmatprep.subr.bf16.mxu0 0
      %3113 = vmatpush1.bf16.msra.mxu0 0
      %3114 = vmatprep.mubr.bf16.mxu0 0
      %3115 = vmatmul.mubr.bf16.gmra.mrb[0].mxu0 %v3080
      %v3116 = vpop.f32.mrb[0].mxu0
      %v3117 = vadd.f32 %v3065, %v3116
      %v3118 = vpop.f32.mrb[0].mxu0
      %v3119 = vpop.f32.mrb[0].mxu0
      %v3120 = vadd.f32 %v3065, %v3119
      %v3121 = vpop.f32.mrb[0].mxu0
      %3122 = vdwg.mxu0
      %v3123 = vmax.f32 %v3117, 0.0
      %v3124 = vmax.f32 %v3120, 0.0
      %v3125 = vpack.c.bf16 %v3124, %v3123
      %v3127 = vlaneseq
      %v3128 = vshrl.u32 %v3127, 7
      %v3129 = vsub.s32 0, %v3128
      %v3130 = vrot.slane %v477, %v3129
      %v3148 = vunpack.c.l.b16 %v461
      %v3149 = vunpack.c.l.b16 %v462
      %v3150 = vunpack.c.l.b16 %v463
      %v3151 = vunpack.c.l.b16 %v464
      %v3152 = vunpack.c.l.b16 %v465
      %v3153 = vunpack.c.l.b16 %v466
      %v3154 = vunpack.c.l.b16 %v467
      %v3155 = vunpack.c.l.b16 %v468
      %v3156 = vunpack.c.l.b16 %v469
      %v3157 = vunpack.c.l.b16 %v470
      %v3158 = vunpack.c.l.b16 %v471
      %v3159 = vunpack.c.l.b16 %v472
      %v3160 = vunpack.c.l.b16 %v473
      %v3161 = vunpack.c.l.b16 %v474
      %v3162 = vunpack.c.l.b16 %v475
      %v3163 = vunpack.c.l.b16 %v476
      %v3164 = vpack.c.b16 %v3149, %v3148
      %v3165 = vpack.c.b16 %v3151, %v3150
      %v3166 = vpack.c.b16 %v3153, %v3152
      %v3167 = vpack.c.b16 %v3155, %v3154
      %v3168 = vpack.c.b16 %v3157, %v3156
      %v3169 = vpack.c.b16 %v3159, %v3158
      %v3170 = vpack.c.b16 %v3161, %v3160
      %v3171 = vpack.c.b16 %v3163, %v3162
      %3180 = vmatprep.subr.bf16.mxu0 0
      %3181 = vmatpush1.bf16.msra.mxu0 %v3164
      %3182 = vmatprep.subr.bf16.mxu0 0
      %3183 = vmatpush1.bf16.msra.mxu0 %v3165
      %3184 = vmatprep.subr.bf16.mxu0 0
      %3185 = vmatpush1.bf16.msra.mxu0 %v3166
      %3186 = vmatprep.subr.bf16.mxu0 0
      %3187 = vmatpush1.bf16.msra.mxu0 %v3167
      %3188 = vmatprep.subr.bf16.mxu0 0
      %3189 = vmatpush1.bf16.msra.mxu0 %v3168
      %3190 = vmatprep.subr.bf16.mxu0 0
      %3191 = vmatpush1.bf16.msra.mxu0 %v3169
      %3192 = vmatprep.subr.bf16.mxu0 0
      %3193 = vmatpush1.bf16.msra.mxu0 %v3170
      %3194 = vmatprep.subr.bf16.mxu0 0
      %3195 = vmatpush1.bf16.msra.mxu0 %v3171
      %3196 = vmatprep.subr.bf16.mxu0 0
      %3197 = vmatpush1.bf16.msra.mxu0 0
      %3198 = vmatprep.subr.bf16.mxu0 0
      %3199 = vmatpush1.bf16.msra.mxu0 0
      %3200 = vmatprep.subr.bf16.mxu0 0
      %3201 = vmatpush1.bf16.msra.mxu0 0
      %3202 = vmatprep.subr.bf16.mxu0 0
      %3203 = vmatpush1.bf16.msra.mxu0 0
      %3204 = vmatprep.subr.bf16.mxu0 0
      %3205 = vmatpush1.bf16.msra.mxu0 0
      %3206 = vmatprep.subr.bf16.mxu0 0
      %3207 = vmatpush1.bf16.msra.mxu0 0
      %3208 = vmatprep.subr.bf16.mxu0 0
      %3209 = vmatpush1.bf16.msra.mxu0 0
      %3210 = vmatprep.subr.bf16.mxu0 0
      %3211 = vmatpush1.bf16.msra.mxu0 0
      %3212 = vmatprep.mubr.bf16.mxu0 0
      %3213 = vmatmul.mubr.bf16.gmra.mrb[0].mxu0 %v3125
      %v3214 = vpop.f32.mrb[0].mxu0
      %v3215 = vadd.f32 %v3130, %v3214
      %v3216 = vpop.f32.mrb[0].mxu0
      %v3217 = vpop.f32.mrb[0].mxu0
      %v3218 = vadd.f32 %v3130, %v3217
      %v3219 = vpop.f32.mrb[0].mxu0
      %3220 = vdwg.mxu0
      %v3221 = vadd.f32 %v3058, %v3215
      %v3222 = vadd.f32 %v3059, %v3218
      %v3223 = vsel %vm499, %v3221, 0.0
      %3224 = vadd.xlane.f32.xlu0 %v3223
      %v3225 = vpop.xlane.xlu0 %3224
      %v3226 = vsel %vm499, %v3222, 0.0
      %3227 = vadd.xlane.f32.xlu0 %v3226
      %v3228 = vpop.xlane.xlu0 %3227
      %v3229 = vmul.f32 %v3225, %v3023
      %v3230 = vmul.f32 %v3228, %v3023
      %v3231 = vsub.f32 %v3221, %v3229
      %v3232 = vsub.f32 %v3222, %v3230
      %v3233 = vmul.f32 %v3231, %v3231
      %v3234 = vmul.f32 %v3232, %v3232
      %v3235 = vsel %vm499, %v3233, 0.0
      %3236 = vadd.xlane.f32.xlu0 %v3235
      %v3237 = vpop.xlane.xlu0 %3236
      %v3238 = vsel %vm499, %v3234, 0.0
      %3239 = vadd.xlane.f32.xlu0 %v3238
      %v3240 = vpop.xlane.xlu0 %3239
      %v3241 = vmul.f32 %v3237, %v3023
      %v3242 = vmul.f32 %v3240, %v3023
      %v3243 = vadd.f32 %v3241, 1e-05
      %v3244 = vadd.f32 %v3242, 1e-05
      %v3245 = vrsqrt.pop %v3243
      %v3246 = vrsqrt.pop %v3244
      %v3247 = vmul.f32 %v3231, %v3245
      %v3248 = vmul.f32 %v3232, %v3246
      %v3250 = vlaneseq
      %v3251 = vshrl.u32 %v3250, 7
      %v3252 = vsub.s32 0, %v3251
      %v3253 = vrot.slane %v478, %v3252
      %v3255 = vmul.f32 %v3247, %v3253
      %v3256 = vmul.f32 %v3248, %v3253
      %v3258 = vlaneseq
      %v3259 = vshrl.u32 %v3258, 7
      %v3260 = vsub.s32 0, %v3259
      %v3261 = vrot.slane %v479, %v3260
      %v3263 = vadd.f32 %v3255, %v3261
      %v3264 = vadd.f32 %v3256, %v3261
      %3265 = vst.msk [vmem:[%s440] sm:$0xff] %vm499, %v3263
      %3266 = vst.msk [vmem:[%s440 + $0x8] sm:$0xff] %vm499, %v3264
      %p3267 = scmp.lt.s32.totalorder %s24, 1
      %s3268 = scalar_select %p3267, %s24, 1
      %s3269 = smul.addr %s3268, 2
      %s3270 = smul.addr %s3269, 8
      %s3271 = scalar_lea.vmem %s13, %s3270
      // Predicated region
      $region73: #{cnn1d_transformer_forward.4} parent=71 // pred_check
        %p3272 = pneg %p320
      $region74: #{cnn1d_transformer_forward.4} parent=71 // pred_check_branch
        %3274 = sbr.rel (%p3272) target = $region76
      $region75: #{cnn1d_transformer_forward.4} parent=71 // pred_region
        _
      $region76: #{cnn1d_transformer_forward.4} parent=71 // pred_fallthru
        _
    $region72: #{cnn1d_transformer_forward.4} parent=5 // pred_fallthru
      _
    %p3275 = scmp.le.s32.totalorder 2, %s19
    // Predicated region
    $region77: #{cnn1d_transformer_forward.4} parent=5 // pred_check
      %p3276 = pneg %p3275
    $region78: #{cnn1d_transformer_forward.4} parent=5 // pred_check_branch
      %3278 = sbr.rel (%p3276) target = $region80
    $region79: #{cnn1d_transformer_forward.4} parent=5 // pred_region
      %s3279 = ssub.s32 %s19, 2
      // Predicated region
      $region81: #{cnn1d_transformer_forward.4} parent=79 // pred_check
        %p3280 = pneg %p326
      $region82: #{cnn1d_transformer_forward.4} parent=79 // pred_check_branch
        %3282 = sbr.rel (%p3280) target = $region84
      $region83: #{cnn1d_transformer_forward.4} parent=79 // pred_region
        %p3283 = scmp.lt.s32.totalorder %s25, 1
        %s3284 = scalar_select %p3283, %s25, 1
        %s3285 = smul.addr %s3284, 2
        %s3286 = smul.addr %s3285, 8
        %s3287 = scalar_lea.vmem %s13, %s3286
      $region84: #{cnn1d_transformer_forward.4} parent=79 // pred_fallthru
        _
    $region80: #{cnn1d_transformer_forward.4} parent=5 // pred_fallthru
      _
  $region6: #{cnn1d_transformer_forward.4} parent=0 // loop_footer
    %s23 = sadd.s32 1, %s19
  $region7: #{cnn1d_transformer_forward.4} parent=0 // loop_footer_branch
    %18 = sbr.rel target = $region3
  $region8: #{cnn1d_transformer_forward.4} parent=0 // loop_exit
    _

</llo_original>
